<compile_context>
chip_gen: v5e
topology: v5e:2x2
jax: 0.10.0
libtpu: 0.0.40
codegen_flags: <defaults>
</compile_context>

<pallas_src>
import jax
import jax.numpy as jnp
from jax.experimental import pallas as pl
from jax.experimental.pallas import tpu as pltpu

EPS = 1e-5


def _resblock_kernel(xcol_ref, x_ref, mask_ref, w1_ref, w2_ref, ws_ref,
                     g1_ref, b1_ref, g2_ref, b2_ref, gs_ref, bs_ref, o_ref):
    N, Hp, Wp, K1 = xcol_ref.shape          # conv1 im2col on the (H+2, W+2) halo grid
    H, W = Hp - 2, Wp - 2
    Cp = o_ref.shape[-1]                    # lane-padded channel count (128)
    Cin = x_ref.shape[-1]
    Rp = N * Hp * Wp                        # rows on the halo grid
    R = N * H * W                           # true batch*spatial count (BN denominator)
    inv_r = 1.0 / R

    interior = mask_ref[...]                # (Rp, 1) f32: 1 on true output pixels, 0 on halo

    # ---- conv1: one im2col matmul, bf16 operands, f32 accumulation -------------------
    acc1 = jnp.dot(xcol_ref[...].reshape(Rp, K1), w1_ref[...],
                   preferred_element_type=jnp.float32)              # (Rp, Cp) f32

    # ---- BN1 (training-mode stats over the interior only), folded scale/shift, ReLU --
    s1 = jnp.sum(acc1 * interior, axis=0, keepdims=True)
    q1 = jnp.sum((acc1 * acc1) * interior, axis=0, keepdims=True)
    m1 = s1 * inv_r
    v1 = q1 * inv_r - m1 * m1
    sc1 = g1_ref[...] * jax.lax.rsqrt(v1 + EPS)
    sh1 = b1_ref[...] - m1 * sc1
    # masking the halo to zero reproduces conv2's zero padding (no padded scratch needed)
    y1 = (jnp.maximum(acc1 * sc1 + sh1, 0.0) * interior).astype(jnp.bfloat16)
    y1 = y1.reshape(N, Hp, Wp, Cp)

    # ---- conv2: in-kernel im2col (lane-aligned 128-wide pieces) -> one matmul --------
    p2 = jnp.concatenate(
        [y1[:, ky:ky + H, kx:kx + W, :] for ky in range(3) for kx in range(3)],
        axis=-1).reshape(R, 9 * Cp)
    acc2 = jnp.dot(p2, w2_ref[...], preferred_element_type=jnp.float32)   # (R, Cp) f32

    # ---- BN2 (single-pass stats, folded) ----------------------------------------------
    s2 = jnp.sum(acc2, axis=0, keepdims=True)
    q2 = jnp.sum(acc2 * acc2, axis=0, keepdims=True)
    m2 = s2 * inv_r
    v2 = q2 * inv_r - m2 * m2
    sc2 = g2_ref[...] * jax.lax.rsqrt(v2 + EPS)
    sh2 = b2_ref[...] - m2 * sc2
    y2 = acc2 * sc2 + sh2

    # ---- shortcut: 1x1 conv (one matmul) + BN ------------------------------------------
    accs = jnp.dot(x_ref[...].reshape(R, Cin), ws_ref[...],
                   preferred_element_type=jnp.float32)               # (R, Cp) f32
    ss = jnp.sum(accs, axis=0, keepdims=True)
    qs = jnp.sum(accs * accs, axis=0, keepdims=True)
    ms = ss * inv_r
    vs = qs * inv_r - ms * ms
    scs = gs_ref[...] * jax.lax.rsqrt(vs + EPS)
    shs = bs_ref[...] - ms * scs
    ys = accs * scs + shs

    # ---- residual add + final ReLU; lane-dense (last dim = Cp = 128) store ------------
    o_ref[...] = jnp.maximum(y2 + ys, 0.0).reshape(N, H, W, Cp)


def residual_block(x_nchw, params, stride=1):
    """Fused ResidualBlock forward. x_nchw: (N, Cin, H, W) float32."""
    assert stride == 1  # TODO(synk): stride>1 variant not implemented in this demo
    x = jnp.transpose(x_nchw, (0, 2, 3, 1)).astype(jnp.float32)      # -> NHWC
    N, H, W, Cin = x.shape
    Cout = params["w1"].shape[-1]
    Cp = max(128, -(-Cout // 128) * 128)                             # lane-dense channel pad
    Hp, Wp = H + 2, W + 2
    Rp = N * Hp * Wp

    # bf16 operands for the MXU (accumulation stays f32 inside the kernel)
    xb = x.astype(jnp.bfloat16)
    xpad2 = jnp.pad(xb, ((0, 0), (2, 2), (2, 2), (0, 0)))
    # conv1 im2col hoisted to XLA: (N, H+2, W+2, 9*Cin), tap order (ky, kx, c)
    xcol = jnp.concatenate([xpad2[:, ky:ky + Hp, kx:kx + Wp, :]
                            for ky in range(3) for kx in range(3)], axis=-1)

    def pad_c(a, axes):
        pads = [(0, 0)] * a.ndim
        for ax in axes:
            pads[ax] = (0, Cp - a.shape[ax])
        return jnp.pad(a, pads)                                      # zeros => padded lanes stay 0

    # weight packing hoisted to the wrapper, matching the kernel's im2col column order
    w1p = pad_c(params["w1"], [3]).reshape(9 * Cin, Cp).astype(jnp.bfloat16)
    w2p = pad_c(params["w2"], [2, 3]).reshape(9 * Cp, Cp).astype(jnp.bfloat16)
    wsp = pad_c(params["ws"], [1]).astype(jnp.bfloat16)
    g1, b1 = pad_c(params["g1"], [1]), pad_c(params["b1"], [1])      # gamma/beta = 0 on padded ch.
    g2, b2 = pad_c(params["g2"], [1]), pad_c(params["b2"], [1])
    gs, bs = pad_c(params["gs"], [1]), pad_c(params["bs"], [1])

    # interior mask of the halo grid (1 on real output pixels, 0 on the 1-wide border)
    hh, ww = jnp.arange(Hp), jnp.arange(Wp)
    m2d = ((hh[:, None] >= 1) & (hh[:, None] <= H) &
           (ww[None, :] >= 1) & (ww[None, :] <= W)).astype(jnp.float32)
    interior = jnp.broadcast_to(m2d[None, :, :], (N, Hp, Wp)).reshape(Rp, 1)

    vmem = pl.BlockSpec(memory_space=pltpu.MemorySpace.VMEM)
    out = pl.pallas_call(
        _resblock_kernel,
        out_shape=jax.ShapeDtypeStruct((N, H, W, Cp), jnp.float32),
        in_specs=[vmem] * 12,
        out_specs=vmem,
        compiler_params=pltpu.CompilerParams(vmem_limit_bytes=64 * 1024 * 1024),
    )(xcol, xb, interior, w1p, w2p, wsp, g1, b1, g2, b2, gs, bs)

    out = out[..., :Cout]                                            # drop lane padding
    return jnp.transpose(out, (0, 3, 1, 2))                          # back to NCHW


# ---------------- pure-JAX references (for correctness check) ----------------
def _bn_train(x, gamma, beta):
    m = jnp.mean(x, axis=(0, 1, 2), keepdims=True)
    v = jnp.mean((x - m) ** 2, axis=(0, 1, 2), keepdims=True)
    return (x - m) * jax.lax.rsqrt(v + EPS) * gamma.reshape(1, 1, 1, -1) + beta.reshape(1, 1, 1, -1)


def _conv_nhwc(x, w, bf16_ops):
    if bf16_ops:   # same operand quantization as the kernel's MXU path (f32 accumulation)
        x, w = x.astype(jnp.bfloat16), w.astype(jnp.bfloat16)
        prec = None
    else:
        prec = jax.lax.Precision.HIGHEST
    return jax.lax.conv_general_dilated(
        x, w, window_strides=(1, 1), padding="SAME",
        dimension_numbers=("NHWC", "HWIO", "NHWC"),
        preferred_element_type=jnp.float32, precision=prec)


def residual_block_ref(x_nchw, params, bf16_ops=True):
    x = jnp.transpose(x_nchw, (0, 2, 3, 1)).astype(jnp.float32)
    y = _conv_nhwc(x, params["w1"], bf16_ops)
    y = jnp.maximum(_bn_train(y, params["g1"][0], params["b1"][0]), 0.0)
    y = _conv_nhwc(y, params["w2"], bf16_ops)
    y = _bn_train(y, params["g2"][0], params["b2"][0])
    s = _conv_nhwc(x, params["ws"].reshape(1, 1, *params["ws"].shape), bf16_ops)
    s = _bn_train(s, params["gs"][0], params["bs"][0])
    out = jnp.maximum(y + s, 0.0)
    return jnp.transpose(out, (0, 3, 1, 2))


def make_params(key, cin, cout):
    k1, k2, k3 = jax.random.split(key, 3)
    return {
        # conv weights in HWIO layout
        "w1": 0.1 * jax.random.normal(k1, (3, 3, cin, cout), jnp.float32),
        "w2": 0.1 * jax.random.normal(k2, (3, 3, cout, cout), jnp.float32),
        "ws": 0.1 * jax.random.normal(k3, (cin, cout), jnp.float32),  # 1x1 shortcut conv
        # BatchNorm affine params (PyTorch defaults: gamma=1, beta=0)
        "g1": jnp.ones((1, cout), jnp.float32), "b1": jnp.zeros((1, cout), jnp.float32),
        "g2": jnp.ones((1, cout), jnp.float32), "b2": jnp.zeros((1, cout), jnp.float32),
        "gs": jnp.ones((1, cout), jnp.float32), "bs": jnp.zeros((1, cout), jnp.float32),
    }


if __name__ == "__main__":
    key = jax.random.PRNGKey(0)
    kx, kp = jax.random.split(key)
    N, Cin, Cout, H, W = 2, 4, 8, 16, 16          # inchannel != outchannel -> conv shortcut path
    x = jax.random.normal(kx, (N, Cin, H, W), jnp.float32)   # PyTorch NCHW convention
    params = make_params(kp, Cin, Cout)

    out = jax.block_until_ready(residual_block(x, params, stride=1))
    # tight check vs. a reference that uses the same bf16 MXU-operand policy (f32 accumulate/BN)
    ref_bf16 = jax.block_until_ready(residual_block_ref(x, params, bf16_ops=True))
    # sanity check vs. the full-f32 reference of the original module (bf16 operand quantization
    # only introduces ~1e-2-level differences after BN normalization)
    ref_f32 = jax.block_until_ready(residual_block_ref(x, params, bf16_ops=False))

    assert out.shape == (N, Cout, H, W)
    assert jnp.allclose(out, ref_bf16, rtol=1e-2, atol=1e-2), float(jnp.max(jnp.abs(out - ref_bf16)))
    assert jnp.allclose(out, ref_f32, rtol=1e-1, atol=1e-1), float(jnp.max(jnp.abs(out - ref_f32)))
    print("KERNEL_OK")
</pallas_src>

<mosaic_0001>
module attributes {stable_mosaic.version = 11 : i64} {
  func.func @_resblock_kernel(%arg0: memref<2x18x18x36xbf16, #tpu.memory_space<vmem>>, %arg1: memref<2x16x16x4xbf16, #tpu.memory_space<vmem>>, %arg2: memref<648x1xf32, #tpu.memory_space<vmem>>, %arg3: memref<36x128xbf16, #tpu.memory_space<vmem>>, %arg4: memref<1152x128xbf16, #tpu.memory_space<vmem>>, %arg5: memref<4x128xbf16, #tpu.memory_space<vmem>>, %arg6: memref<1x128xf32, #tpu.memory_space<vmem>>, %arg7: memref<1x128xf32, #tpu.memory_space<vmem>>, %arg8: memref<1x128xf32, #tpu.memory_space<vmem>>, %arg9: memref<1x128xf32, #tpu.memory_space<vmem>>, %arg10: memref<1x128xf32, #tpu.memory_space<vmem>>, %arg11: memref<1x128xf32, #tpu.memory_space<vmem>>, %arg12: memref<2x16x16x128xf32, #tpu.memory_space<vmem>>) attributes {dimension_semantics = [], scalar_prefetch = 0 : i64, scratch_operands = 0 : i64, tpu.core_type = #tpu.core_type<tc>} {
    %c0 = arith.constant 0 : index
    %c0_0 = arith.constant 0 : index
    %0 = vector.load %arg2[%c0, %c0_0] : memref<648x1xf32, #tpu.memory_space<vmem>>, vector<648x1xf32>
    %c0_1 = arith.constant 0 : index
    %c0_2 = arith.constant 0 : index
    %c0_3 = arith.constant 0 : index
    %c0_4 = arith.constant 0 : index
    %1 = vector.load %arg0[%c0_1, %c0_2, %c0_3, %c0_4] : memref<2x18x18x36xbf16, #tpu.memory_space<vmem>>, vector<2x18x18x36xbf16>
    %2 = vector.shape_cast %1 : vector<2x18x18x36xbf16> to vector<648x36xbf16>
    %c0_5 = arith.constant 0 : index
    %c0_6 = arith.constant 0 : index
    %3 = vector.load %arg3[%c0_5, %c0_6] : memref<36x128xbf16, #tpu.memory_space<vmem>>, vector<36x128xbf16>
    %cst = arith.constant dense<0.000000e+00> : vector<648x128xf32>
    %4 = tpu.matmul %2, %3, %cst {dimension_numbers = #tpu.dot_dimension_numbers<[1], [0], [0], [1], [0, 0, 1, 1], [], []>} : vector<648x36xbf16>, vector<36x128xbf16>, vector<648x128xf32> -> vector<648x128xf32>
    %5 = vector.broadcast %0 : vector<648x1xf32> to vector<648x128xf32>
    %6 = arith.mulf %4, %5 : vector<648x128xf32>
    %cst_7 = arith.constant dense<0.000000e+00> : vector<128xf32>
    %7 = vector.multi_reduction <add>, %6, %cst_7 [0] : vector<648x128xf32> to vector<128xf32>
    %8 = vector.shape_cast %7 : vector<128xf32> to vector<1x128xf32>
    %9 = arith.mulf %4, %4 : vector<648x128xf32>
    %10 = vector.broadcast %0 : vector<648x1xf32> to vector<648x128xf32>
    %11 = arith.mulf %9, %10 : vector<648x128xf32>
    %cst_8 = arith.constant dense<0.000000e+00> : vector<128xf32>
    %12 = vector.multi_reduction <add>, %11, %cst_8 [0] : vector<648x128xf32> to vector<128xf32>
    %13 = vector.shape_cast %12 : vector<128xf32> to vector<1x128xf32>
    %cst_9 = arith.constant 0.001953125 : f32
    %14 = vector.broadcast %cst_9 : f32 to vector<1x128xf32>
    %15 = arith.mulf %8, %14 : vector<1x128xf32>
    %cst_10 = arith.constant 0.001953125 : f32
    %16 = vector.broadcast %cst_10 : f32 to vector<1x128xf32>
    %17 = arith.mulf %13, %16 : vector<1x128xf32>
    %18 = arith.mulf %15, %15 : vector<1x128xf32>
    %19 = arith.subf %17, %18 : vector<1x128xf32>
    %c0_11 = arith.constant 0 : index
    %c0_12 = arith.constant 0 : index
    %20 = vector.load %arg6[%c0_11, %c0_12] : memref<1x128xf32, #tpu.memory_space<vmem>>, vector<1x128xf32>
    %cst_13 = arith.constant 9.99999974E-6 : f32
    %21 = vector.broadcast %cst_13 : f32 to vector<1x128xf32>
    %22 = arith.addf %19, %21 : vector<1x128xf32>
    %23 = math.rsqrt %22 : vector<1x128xf32>
    %24 = arith.mulf %20, %23 : vector<1x128xf32>
    %c0_14 = arith.constant 0 : index
    %c0_15 = arith.constant 0 : index
    %25 = vector.load %arg7[%c0_14, %c0_15] : memref<1x128xf32, #tpu.memory_space<vmem>>, vector<1x128xf32>
    %26 = arith.mulf %15, %24 : vector<1x128xf32>
    %27 = arith.subf %25, %26 : vector<1x128xf32>
    %28 = vector.broadcast %24 : vector<1x128xf32> to vector<648x128xf32>
    %29 = arith.mulf %4, %28 : vector<648x128xf32>
    %30 = vector.broadcast %27 : vector<1x128xf32> to vector<648x128xf32>
    %31 = arith.addf %29, %30 : vector<648x128xf32>
    %cst_16 = arith.constant 0.000000e+00 : f32
    %32 = vector.broadcast %cst_16 : f32 to vector<648x128xf32>
    %33 = arith.maximumf %31, %32 : vector<648x128xf32>
    %34 = vector.broadcast %0 : vector<648x1xf32> to vector<648x128xf32>
    %35 = arith.mulf %33, %34 : vector<648x128xf32>
    %36 = arith.truncf %35 : vector<648x128xf32> to vector<648x128xbf16>
    %37 = vector.shape_cast %36 : vector<648x128xbf16> to vector<2x18x18x128xbf16>
    %38 = vector.extract_strided_slice %37 {offsets = [0, 0, 0, 0], sizes = [2, 16, 16, 128], strides = [1, 1, 1, 1]} : vector<2x18x18x128xbf16> to vector<2x16x16x128xbf16>
    %39 = vector.extract_strided_slice %37 {offsets = [0, 0, 1, 0], sizes = [2, 16, 16, 128], strides = [1, 1, 1, 1]} : vector<2x18x18x128xbf16> to vector<2x16x16x128xbf16>
    %40 = vector.extract_strided_slice %37 {offsets = [0, 0, 2, 0], sizes = [2, 16, 16, 128], strides = [1, 1, 1, 1]} : vector<2x18x18x128xbf16> to vector<2x16x16x128xbf16>
    %41 = vector.extract_strided_slice %37 {offsets = [0, 1, 0, 0], sizes = [2, 16, 16, 128], strides = [1, 1, 1, 1]} : vector<2x18x18x128xbf16> to vector<2x16x16x128xbf16>
    %42 = vector.extract_strided_slice %37 {offsets = [0, 1, 1, 0], sizes = [2, 16, 16, 128], strides = [1, 1, 1, 1]} : vector<2x18x18x128xbf16> to vector<2x16x16x128xbf16>
    %43 = vector.extract_strided_slice %37 {offsets = [0, 1, 2, 0], sizes = [2, 16, 16, 128], strides = [1, 1, 1, 1]} : vector<2x18x18x128xbf16> to vector<2x16x16x128xbf16>
    %44 = vector.extract_strided_slice %37 {offsets = [0, 2, 0, 0], sizes = [2, 16, 16, 128], strides = [1, 1, 1, 1]} : vector<2x18x18x128xbf16> to vector<2x16x16x128xbf16>
    %45 = vector.extract_strided_slice %37 {offsets = [0, 2, 1, 0], sizes = [2, 16, 16, 128], strides = [1, 1, 1, 1]} : vector<2x18x18x128xbf16> to vector<2x16x16x128xbf16>
    %46 = vector.extract_strided_slice %37 {offsets = [0, 2, 2, 0], sizes = [2, 16, 16, 128], strides = [1, 1, 1, 1]} : vector<2x18x18x128xbf16> to vector<2x16x16x128xbf16>
    %47 = tpu.concatenate %38, %39, %40, %41, %42, %43, %44, %45, %46 in 3 : vector<2x16x16x128xbf16>, vector<2x16x16x128xbf16>, vector<2x16x16x128xbf16>, vector<2x16x16x128xbf16>, vector<2x16x16x128xbf16>, vector<2x16x16x128xbf16>, vector<2x16x16x128xbf16>, vector<2x16x16x128xbf16>, vector<2x16x16x128xbf16> -> vector<2x16x16x1152xbf16>
    %48 = vector.shape_cast %47 : vector<2x16x16x1152xbf16> to vector<512x1152xbf16>
    %c0_17 = arith.constant 0 : index
    %c0_18 = arith.constant 0 : index
    %49 = vector.load %arg4[%c0_17, %c0_18] : memref<1152x128xbf16, #tpu.memory_space<vmem>>, vector<1152x128xbf16>
    %cst_19 = arith.constant dense<0.000000e+00> : vector<512x128xf32>
    %50 = tpu.matmul %48, %49, %cst_19 {dimension_numbers = #tpu.dot_dimension_numbers<[1], [0], [0], [1], [0, 0, 1, 1], [], []>} : vector<512x1152xbf16>, vector<1152x128xbf16>, vector<512x128xf32> -> vector<512x128xf32>
    %cst_20 = arith.constant dense<0.000000e+00> : vector<128xf32>
    %51 = vector.multi_reduction <add>, %50, %cst_20 [0] : vector<512x128xf32> to vector<128xf32>
    %52 = vector.shape_cast %51 : vector<128xf32> to vector<1x128xf32>
    %53 = arith.mulf %50, %50 : vector<512x128xf32>
    %cst_21 = arith.constant dense<0.000000e+00> : vector<128xf32>
    %54 = vector.multi_reduction <add>, %53, %cst_21 [0] : vector<512x128xf32> to vector<128xf32>
    %55 = vector.shape_cast %54 : vector<128xf32> to vector<1x128xf32>
    %cst_22 = arith.constant 0.001953125 : f32
    %56 = vector.broadcast %cst_22 : f32 to vector<1x128xf32>
    %57 = arith.mulf %52, %56 : vector<1x128xf32>
    %cst_23 = arith.constant 0.001953125 : f32
    %58 = vector.broadcast %cst_23 : f32 to vector<1x128xf32>
    %59 = arith.mulf %55, %58 : vector<1x128xf32>
    %60 = arith.mulf %57, %57 : vector<1x128xf32>
    %61 = arith.subf %59, %60 : vector<1x128xf32>
    %c0_24 = arith.constant 0 : index
    %c0_25 = arith.constant 0 : index
    %62 = vector.load %arg8[%c0_24, %c0_25] : memref<1x128xf32, #tpu.memory_space<vmem>>, vector<1x128xf32>
    %cst_26 = arith.constant 9.99999974E-6 : f32
    %63 = vector.broadcast %cst_26 : f32 to vector<1x128xf32>
    %64 = arith.addf %61, %63 : vector<1x128xf32>
    %65 = math.rsqrt %64 : vector<1x128xf32>
    %66 = arith.mulf %62, %65 : vector<1x128xf32>
    %c0_27 = arith.constant 0 : index
    %c0_28 = arith.constant 0 : index
    %67 = vector.load %arg9[%c0_27, %c0_28] : memref<1x128xf32, #tpu.memory_space<vmem>>, vector<1x128xf32>
    %68 = arith.mulf %57, %66 : vector<1x128xf32>
    %69 = arith.subf %67, %68 : vector<1x128xf32>
    %70 = vector.broadcast %66 : vector<1x128xf32> to vector<512x128xf32>
    %71 = arith.mulf %50, %70 : vector<512x128xf32>
    %72 = vector.broadcast %69 : vector<1x128xf32> to vector<512x128xf32>
    %73 = arith.addf %71, %72 : vector<512x128xf32>
    %c0_29 = arith.constant 0 : index
    %c0_30 = arith.constant 0 : index
    %c0_31 = arith.constant 0 : index
    %c0_32 = arith.constant 0 : index
    %74 = vector.load %arg1[%c0_29, %c0_30, %c0_31, %c0_32] : memref<2x16x16x4xbf16, #tpu.memory_space<vmem>>, vector<2x16x16x4xbf16>
    %75 = vector.shape_cast %74 : vector<2x16x16x4xbf16> to vector<512x4xbf16>
    %c0_33 = arith.constant 0 : index
    %c0_34 = arith.constant 0 : index
    %76 = vector.load %arg5[%c0_33, %c0_34] : memref<4x128xbf16, #tpu.memory_space<vmem>>, vector<4x128xbf16>
    %cst_35 = arith.constant dense<0.000000e+00> : vector<512x128xf32>
    %77 = tpu.matmul %75, %76, %cst_35 {dimension_numbers = #tpu.dot_dimension_numbers<[1], [0], [0], [1], [0, 0, 1, 1], [], []>} : vector<512x4xbf16>, vector<4x128xbf16>, vector<512x128xf32> -> vector<512x128xf32>
    %cst_36 = arith.constant dense<0.000000e+00> : vector<128xf32>
    %78 = vector.multi_reduction <add>, %77, %cst_36 [0] : vector<512x128xf32> to vector<128xf32>
    %79 = vector.shape_cast %78 : vector<128xf32> to vector<1x128xf32>
    %80 = arith.mulf %77, %77 : vector<512x128xf32>
    %cst_37 = arith.constant dense<0.000000e+00> : vector<128xf32>
    %81 = vector.multi_reduction <add>, %80, %cst_37 [0] : vector<512x128xf32> to vector<128xf32>
    %82 = vector.shape_cast %81 : vector<128xf32> to vector<1x128xf32>
    %cst_38 = arith.constant 0.001953125 : f32
    %83 = vector.broadcast %cst_38 : f32 to vector<1x128xf32>
    %84 = arith.mulf %79, %83 : vector<1x128xf32>
    %cst_39 = arith.constant 0.001953125 : f32
    %85 = vector.broadcast %cst_39 : f32 to vector<1x128xf32>
    %86 = arith.mulf %82, %85 : vector<1x128xf32>
    %87 = arith.mulf %84, %84 : vector<1x128xf32>
    %88 = arith.subf %86, %87 : vector<1x128xf32>
    %c0_40 = arith.constant 0 : index
    %c0_41 = arith.constant 0 : index
    %89 = vector.load %arg10[%c0_40, %c0_41] : memref<1x128xf32, #tpu.memory_space<vmem>>, vector<1x128xf32>
    %cst_42 = arith.constant 9.99999974E-6 : f32
    %90 = vector.broadcast %cst_42 : f32 to vector<1x128xf32>
    %91 = arith.addf %88, %90 : vector<1x128xf32>
    %92 = math.rsqrt %91 : vector<1x128xf32>
    %93 = arith.mulf %89, %92 : vector<1x128xf32>
    %c0_43 = arith.constant 0 : index
    %c0_44 = arith.constant 0 : index
    %94 = vector.load %arg11[%c0_43, %c0_44] : memref<1x128xf32, #tpu.memory_space<vmem>>, vector<1x128xf32>
    %95 = arith.mulf %84, %93 : vector<1x128xf32>
    %96 = arith.subf %94, %95 : vector<1x128xf32>
    %97 = vector.broadcast %93 : vector<1x128xf32> to vector<512x128xf32>
    %98 = arith.mulf %77, %97 : vector<512x128xf32>
    %99 = vector.broadcast %96 : vector<1x128xf32> to vector<512x128xf32>
    %100 = arith.addf %98, %99 : vector<512x128xf32>
    %101 = arith.addf %73, %100 : vector<512x128xf32>
    %cst_45 = arith.constant 0.000000e+00 : f32
    %102 = vector.broadcast %cst_45 : f32 to vector<512x128xf32>
    %103 = arith.maximumf %101, %102 : vector<512x128xf32>
    %104 = vector.shape_cast %103 : vector<512x128xf32> to vector<2x16x16x128xf32>
    %c0_46 = arith.constant 0 : index
    %c0_47 = arith.constant 0 : index
    %c0_48 = arith.constant 0 : index
    %c0_49 = arith.constant 0 : index
    %105 = vector.load %arg12[%c0_46, %c0_47, %c0_48, %c0_49] : memref<2x16x16x128xf32, #tpu.memory_space<vmem>>, vector<2x16x16x128xf32>
    tpu.vector_store %arg12[%c0_46, %c0_47, %c0_48, %c0_49], %104 {strides = array<i32>} : memref<2x16x16x128xf32, #tpu.memory_space<vmem>>, vector<2x16x16x128xf32>,
    return
  }
}

</mosaic_0001>

<llo_original>
// kernel: tpu_custom_call.1
$region0: #{tpu_custom_call.1}
  #allocation0 [shape = 'u32[]', space=smem, size = 0x4, offset = 0x4, fixed_abs, tag = 'smem constant byte address 0x4 - core index']
  #allocation1 [shape = 'u32[72,128]{1,0:T(1,128)}', space=vmem, size = 0x9000, scoped, tag = 'internal scratch']
  %s0 = inlined_call_operand.vmem [shape: bf16[2,18,18,36], index: 0, kind: input, shape index: {}]
  %s1 = inlined_call_operand.vmem [shape: bf16[2,16,16,4], index: 1, kind: input, shape index: {}]
  %s2 = inlined_call_operand.vmem [shape: f32[648,1], index: 2, kind: input, shape index: {}]
  %s3 = inlined_call_operand.vmem [shape: bf16[36,128], index: 3, kind: input, shape index: {}]
  %s4 = inlined_call_operand.vmem [shape: bf16[1152,128], index: 4, kind: input, shape index: {}]
  %s5 = inlined_call_operand.vmem [shape: bf16[4,128], index: 5, kind: input, shape index: {}]
  %s6 = inlined_call_operand.vmem [shape: f32[1,128], index: 6, kind: input, shape index: {}]
  %s7 = inlined_call_operand.vmem [shape: f32[1,128], index: 7, kind: input, shape index: {}]
  %s8 = inlined_call_operand.vmem [shape: f32[1,128], index: 8, kind: input, shape index: {}]
  %s9 = inlined_call_operand.vmem [shape: f32[1,128], index: 9, kind: input, shape index: {}]
  %s10 = inlined_call_operand.vmem [shape: f32[1,128], index: 10, kind: input, shape index: {}]
  %s11 = inlined_call_operand.vmem [shape: f32[1,128], index: 11, kind: input, shape index: {}]
  %s12 = inlined_call_operand.hbm [shape: f32[2,16,16,128], index: 12, kind: output, shape index: {}]
  %s13 = sld [smem:[#allocation0]]
  $region58: #{tpu_custom_call.1} parent=0
    _
  %s15 = ssub.s32 1, %s13
  %s16 = scalar_select 0, %s15, %s13
  $region1: #{tpu_custom_call.1} parent=0
    #allocation2 [shape = 'u8[262144]{0}', space=vmem, size = 0x40000, scoped, tag = 'output window, operand 0, single buffered']
    #allocation3 [shape = 's32[1]{0}', space=sflag, size = 0x4, scoped, tag = 'scoped memory for tpu_custom_call.1']
    %17 = vsyncpa [#allocation3], 0
    // Predicated region
    $region2: #{tpu_custom_call.1} parent=1 // pred_check
      _
    $region3: #{tpu_custom_call.1} parent=1 // pred_check_branch
      %19 = sbr.rel (0) target = $region5
    $region4: #{tpu_custom_call.1} parent=1 // pred_region
      _
    $region5: #{tpu_custom_call.1} parent=1 // pred_fallthru
      _
    // Predicated region
    $region6: #{tpu_custom_call.1} parent=1 // pred_check
      _
    $region7: #{tpu_custom_call.1} parent=1 // pred_check_branch
      %21 = sbr.rel (0) target = $region9
    $region8: #{tpu_custom_call.1} parent=1 // pred_region
      _
    $region9: #{tpu_custom_call.1} parent=1 // pred_fallthru
      _
    // Predicated region
    $region10: #{tpu_custom_call.1} parent=1 // pred_check
      _
    $region11: #{tpu_custom_call.1} parent=1 // pred_check_branch
      %23 = sbr.rel (0) target = $region13
    $region12: #{tpu_custom_call.1} parent=1 // pred_region
      _
    $region13: #{tpu_custom_call.1} parent=1 // pred_fallthru
      _
    // Predicated region
    $region14: #{tpu_custom_call.1} parent=1 // pred_check
      _
    $region15: #{tpu_custom_call.1} parent=1 // pred_check_branch
      %25 = sbr.rel (0) target = $region17
    $region16: #{tpu_custom_call.1} parent=1 // pred_region
      _
    $region17: #{tpu_custom_call.1} parent=1 // pred_fallthru
      _
    // Predicated region
    $region18: #{tpu_custom_call.1} parent=1 // pred_check
      _
    $region19: #{tpu_custom_call.1} parent=1 // pred_check_branch
      %27 = sbr.rel (0) target = $region21
    $region20: #{tpu_custom_call.1} parent=1 // pred_region
      _
    $region21: #{tpu_custom_call.1} parent=1 // pred_fallthru
      _
    // Predicated region
    $region22: #{tpu_custom_call.1} parent=1 // pred_check
      _
    $region23: #{tpu_custom_call.1} parent=1 // pred_check_branch
      %29 = sbr.rel (0) target = $region25
    $region24: #{tpu_custom_call.1} parent=1 // pred_region
      _
    $region25: #{tpu_custom_call.1} parent=1 // pred_fallthru
      _
    // Predicated region
    $region26: #{tpu_custom_call.1} parent=1 // pred_check
      _
    $region27: #{tpu_custom_call.1} parent=1 // pred_check_branch
      %31 = sbr.rel (0) target = $region29
    $region28: #{tpu_custom_call.1} parent=1 // pred_region
      _
    $region29: #{tpu_custom_call.1} parent=1 // pred_fallthru
      _
    // Predicated region
    $region30: #{tpu_custom_call.1} parent=1 // pred_check
      _
    $region31: #{tpu_custom_call.1} parent=1 // pred_check_branch
      %33 = sbr.rel (0) target = $region33
    $region32: #{tpu_custom_call.1} parent=1 // pred_region
      _
    $region33: #{tpu_custom_call.1} parent=1 // pred_fallthru
      _
    // Predicated region
    $region34: #{tpu_custom_call.1} parent=1 // pred_check
      _
    $region35: #{tpu_custom_call.1} parent=1 // pred_check_branch
      %35 = sbr.rel (0) target = $region37
    $region36: #{tpu_custom_call.1} parent=1 // pred_region
      _
    $region37: #{tpu_custom_call.1} parent=1 // pred_fallthru
      _
    // Predicated region
    $region38: #{tpu_custom_call.1} parent=1 // pred_check
      _
    $region39: #{tpu_custom_call.1} parent=1 // pred_check_branch
      %37 = sbr.rel (0) target = $region41
    $region40: #{tpu_custom_call.1} parent=1 // pred_region
      _
    $region41: #{tpu_custom_call.1} parent=1 // pred_fallthru
      _
    // Predicated region
    $region42: #{tpu_custom_call.1} parent=1 // pred_check
      _
    $region43: #{tpu_custom_call.1} parent=1 // pred_check_branch
      %39 = sbr.rel (0) target = $region45
    $region44: #{tpu_custom_call.1} parent=1 // pred_region
      _
    $region45: #{tpu_custom_call.1} parent=1 // pred_fallthru
      _
    // Predicated region
    $region46: #{tpu_custom_call.1} parent=1 // pred_check
      _
    $region47: #{tpu_custom_call.1} parent=1 // pred_check_branch
      %41 = sbr.rel (0) target = $region49
    $region48: #{tpu_custom_call.1} parent=1 // pred_region
      _
    $region49: #{tpu_custom_call.1} parent=1 // pred_fallthru
      _
    %v43 = vld [vmem:[%s2] sm:$0xff]
    %v44 = vld [vmem:[%s2 + $0x8] sm:$0xff]
    %v45 = vld [vmem:[%s2 + $0x10] sm:$0xff]
    %v46 = vld [vmem:[%s2 + $0x18] sm:$0xff]
    %v47 = vld [vmem:[%s2 + $0x20] sm:$0xff]
    %v48 = vld [vmem:[%s2 + $0x28] sm:$0xff]
    %v49 = vld [vmem:[%s2 + $0x30] sm:$0xff]
    %v50 = vld [vmem:[%s2 + $0x38] sm:$0xff]
    %v51 = vld [vmem:[%s2 + $0x40] sm:$0xff]
    %v52 = vld [vmem:[%s2 + $0x48] sm:$0xff]
    %v53 = vld [vmem:[%s2 + $0x50] sm:$0xff]
    %v54 = vld [vmem:[%s2 + $0x58] sm:$0xff]
    %v55 = vld [vmem:[%s2 + $0x60] sm:$0xff]
    %v56 = vld [vmem:[%s2 + $0x68] sm:$0xff]
    %v57 = vld [vmem:[%s2 + $0x70] sm:$0xff]
    %v58 = vld [vmem:[%s2 + $0x78] sm:$0xff]
    %v59 = vld [vmem:[%s2 + $0x80] sm:$0xff]
    %v60 = vld [vmem:[%s2 + $0x88] sm:$0xff]
    %v61 = vld [vmem:[%s2 + $0x90] sm:$0xff]
    %v62 = vld [vmem:[%s2 + $0x98] sm:$0xff]
    %v63 = vld [vmem:[%s2 + $0xa0] sm:$0xff]
    %v64 = vld [vmem:[%s2 + $0xa8] sm:$0xff]
    %v65 = vld [vmem:[%s2 + $0xb0] sm:$0xff]
    %v66 = vld [vmem:[%s2 + $0xb8] sm:$0xff]
    %v67 = vld [vmem:[%s2 + $0xc0] sm:$0xff]
    %v68 = vld [vmem:[%s2 + $0xc8] sm:$0xff]
    %v69 = vld [vmem:[%s2 + $0xd0] sm:$0xff]
    %v70 = vld [vmem:[%s2 + $0xd8] sm:$0xff]
    %v71 = vld [vmem:[%s2 + $0xe0] sm:$0xff]
    %v72 = vld [vmem:[%s2 + $0xe8] sm:$0xff]
    %v73 = vld [vmem:[%s2 + $0xf0] sm:$0xff]
    %v74 = vld [vmem:[%s2 + $0xf8] sm:$0xff]
    %v75 = vld [vmem:[%s2 + $0x100] sm:$0xff]
    %v76 = vld [vmem:[%s2 + $0x108] sm:$0xff]
    %v77 = vld [vmem:[%s2 + $0x110] sm:$0xff]
    %v78 = vld [vmem:[%s2 + $0x118] sm:$0xff]
    %v79 = vld [vmem:[%s2 + $0x120] sm:$0xff]
    %v80 = vld [vmem:[%s2 + $0x128] sm:$0xff]
    %v81 = vld [vmem:[%s2 + $0x130] sm:$0xff]
    %v82 = vld [vmem:[%s2 + $0x138] sm:$0xff]
    %v83 = vld [vmem:[%s2 + $0x140] sm:$0xff]
    %v84 = vld [vmem:[%s2 + $0x148] sm:$0xff]
    %v85 = vld [vmem:[%s2 + $0x150] sm:$0xff]
    %v86 = vld [vmem:[%s2 + $0x158] sm:$0xff]
    %v87 = vld [vmem:[%s2 + $0x160] sm:$0xff]
    %v88 = vld [vmem:[%s2 + $0x168] sm:$0xff]
    %v89 = vld [vmem:[%s2 + $0x170] sm:$0xff]
    %v90 = vld [vmem:[%s2 + $0x178] sm:$0xff]
    %v91 = vld [vmem:[%s2 + $0x180] sm:$0xff]
    %v92 = vld [vmem:[%s2 + $0x188] sm:$0xff]
    %v93 = vld [vmem:[%s2 + $0x190] sm:$0xff]
    %v94 = vld [vmem:[%s2 + $0x198] sm:$0xff]
    %v95 = vld [vmem:[%s2 + $0x1a0] sm:$0xff]
    %v96 = vld [vmem:[%s2 + $0x1a8] sm:$0xff]
    %v97 = vld [vmem:[%s2 + $0x1b0] sm:$0xff]
    %v98 = vld [vmem:[%s2 + $0x1b8] sm:$0xff]
    %v99 = vld [vmem:[%s2 + $0x1c0] sm:$0xff]
    %v100 = vld [vmem:[%s2 + $0x1c8] sm:$0xff]
    %v101 = vld [vmem:[%s2 + $0x1d0] sm:$0xff]
    %v102 = vld [vmem:[%s2 + $0x1d8] sm:$0xff]
    %v103 = vld [vmem:[%s2 + $0x1e0] sm:$0xff]
    %v104 = vld [vmem:[%s2 + $0x1e8] sm:$0xff]
    %v105 = vld [vmem:[%s2 + $0x1f0] sm:$0xff]
    %v106 = vld [vmem:[%s2 + $0x1f8] sm:$0xff]
    %v107 = vld [vmem:[%s2 + $0x200] sm:$0xff]
    %v108 = vld [vmem:[%s2 + $0x208] sm:$0xff]
    %v109 = vld [vmem:[%s2 + $0x210] sm:$0xff]
    %v110 = vld [vmem:[%s2 + $0x218] sm:$0xff]
    %v111 = vld [vmem:[%s2 + $0x220] sm:$0xff]
    %v112 = vld [vmem:[%s2 + $0x228] sm:$0xff]
    %v113 = vld [vmem:[%s2 + $0x230] sm:$0xff]
    %v114 = vld [vmem:[%s2 + $0x238] sm:$0xff]
    %v115 = vld [vmem:[%s2 + $0x240] sm:$0xff]
    %v116 = vld [vmem:[%s2 + $0x248] sm:$0xff]
    %v117 = vld [vmem:[%s2 + $0x250] sm:$0xff]
    %v118 = vld [vmem:[%s2 + $0x258] sm:$0xff]
    %v119 = vld [vmem:[%s2 + $0x260] sm:$0xff]
    %v120 = vld [vmem:[%s2 + $0x268] sm:$0xff]
    %v121 = vld [vmem:[%s2 + $0x270] sm:$0xff]
    %v122 = vld [vmem:[%s2 + $0x278] sm:$0xff]
    %v123 = vld [vmem:[%s2 + $0x280] sm:$0xff]
    %v124 = vld [vmem:[%s0] sm:$0xf]
    %v125 = vld [vmem:[%s0 + $0x4] sm:$0xf]
    %v126 = vld [vmem:[%s0 + $0x8] sm:$0x1]
    %v127 = vld [vmem:[%s0 + $0xc] sm:$0xf]
    %v128 = vld [vmem:[%s0 + $0x10] sm:$0xf]
    %v129 = vld [vmem:[%s0 + $0x14] sm:$0x1]
    %v130 = vld [vmem:[%s0 + $0x18] sm:$0xf]
    %v131 = vld [vmem:[%s0 + $0x1c] sm:$0xf]
    %v132 = vld [vmem:[%s0 + $0x20] sm:$0x1]
    %v133 = vld [vmem:[%s0 + $0x24] sm:$0xf]
    %v134 = vld [vmem:[%s0 + $0x28] sm:$0xf]
    %v135 = vld [vmem:[%s0 + $0x2c] sm:$0x1]
    %v136 = vld [vmem:[%s0 + $0x30] sm:$0xf]
    %v137 = vld [vmem:[%s0 + $0x34] sm:$0xf]
    %v138 = vld [vmem:[%s0 + $0x38] sm:$0x1]
    %v139 = vld [vmem:[%s0 + $0x3c] sm:$0xf]
    %v140 = vld [vmem:[%s0 + $0x40] sm:$0xf]
    %v141 = vld [vmem:[%s0 + $0x44] sm:$0x1]
    %v142 = vld [vmem:[%s0 + $0x48] sm:$0xf]
    %v143 = vld [vmem:[%s0 + $0x4c] sm:$0xf]
    %v144 = vld [vmem:[%s0 + $0x50] sm:$0x1]
    %v145 = vld [vmem:[%s0 + $0x54] sm:$0xf]
    %v146 = vld [vmem:[%s0 + $0x58] sm:$0xf]
    %v147 = vld [vmem:[%s0 + $0x5c] sm:$0x1]
    %v148 = vld [vmem:[%s0 + $0x60] sm:$0xf]
    %v149 = vld [vmem:[%s0 + $0x64] sm:$0xf]
    %v150 = vld [vmem:[%s0 + $0x68] sm:$0x1]
    %v151 = vld [vmem:[%s0 + $0x6c] sm:$0xf]
    %v152 = vld [vmem:[%s0 + $0x70] sm:$0xf]
    %v153 = vld [vmem:[%s0 + $0x74] sm:$0x1]
    %v154 = vld [vmem:[%s0 + $0x78] sm:$0xf]
    %v155 = vld [vmem:[%s0 + $0x7c] sm:$0xf]
    %v156 = vld [vmem:[%s0 + $0x80] sm:$0x1]
    %v157 = vld [vmem:[%s0 + $0x84] sm:$0xf]
    %v158 = vld [vmem:[%s0 + $0x88] sm:$0xf]
    %v159 = vld [vmem:[%s0 + $0x8c] sm:$0x1]
    %v160 = vld [vmem:[%s0 + $0x90] sm:$0xf]
    %v161 = vld [vmem:[%s0 + $0x94] sm:$0xf]
    %v162 = vld [vmem:[%s0 + $0x98] sm:$0x1]
    %v163 = vld [vmem:[%s0 + $0x9c] sm:$0xf]
    %v164 = vld [vmem:[%s0 + $0xa0] sm:$0xf]
    %v165 = vld [vmem:[%s0 + $0xa4] sm:$0x1]
    %v166 = vld [vmem:[%s0 + $0xa8] sm:$0xf]
    %v167 = vld [vmem:[%s0 + $0xac] sm:$0xf]
    %v168 = vld [vmem:[%s0 + $0xb0] sm:$0x1]
    %v169 = vld [vmem:[%s0 + $0xb4] sm:$0xf]
    %v170 = vld [vmem:[%s0 + $0xb8] sm:$0xf]
    %v171 = vld [vmem:[%s0 + $0xbc] sm:$0x1]
    %v172 = vld [vmem:[%s0 + $0xc0] sm:$0xf]
    %v173 = vld [vmem:[%s0 + $0xc4] sm:$0xf]
    %v174 = vld [vmem:[%s0 + $0xc8] sm:$0x1]
    %v175 = vld [vmem:[%s0 + $0xcc] sm:$0xf]
    %v176 = vld [vmem:[%s0 + $0xd0] sm:$0xf]
    %v177 = vld [vmem:[%s0 + $0xd4] sm:$0x1]
    %v178 = vld [vmem:[%s0 + $0xd8] sm:$0xf]
    %v179 = vld [vmem:[%s0 + $0xdc] sm:$0xf]
    %v180 = vld [vmem:[%s0 + $0xe0] sm:$0x1]
    %v181 = vld [vmem:[%s0 + $0xe4] sm:$0xf]
    %v182 = vld [vmem:[%s0 + $0xe8] sm:$0xf]
    %v183 = vld [vmem:[%s0 + $0xec] sm:$0x1]
    %v184 = vld [vmem:[%s0 + $0xf0] sm:$0xf]
    %v185 = vld [vmem:[%s0 + $0xf4] sm:$0xf]
    %v186 = vld [vmem:[%s0 + $0xf8] sm:$0x1]
    %v187 = vld [vmem:[%s0 + $0xfc] sm:$0xf]
    %v188 = vld [vmem:[%s0 + $0x100] sm:$0xf]
    %v189 = vld [vmem:[%s0 + $0x104] sm:$0x1]
    %v190 = vld [vmem:[%s0 + $0x108] sm:$0xf]
    %v191 = vld [vmem:[%s0 + $0x10c] sm:$0xf]
    %v192 = vld [vmem:[%s0 + $0x110] sm:$0x1]
    %v193 = vld [vmem:[%s0 + $0x114] sm:$0xf]
    %v194 = vld [vmem:[%s0 + $0x118] sm:$0xf]
    %v195 = vld [vmem:[%s0 + $0x11c] sm:$0x1]
    %v196 = vld [vmem:[%s0 + $0x120] sm:$0xf]
    %v197 = vld [vmem:[%s0 + $0x124] sm:$0xf]
    %v198 = vld [vmem:[%s0 + $0x128] sm:$0x1]
    %v199 = vld [vmem:[%s0 + $0x12c] sm:$0xf]
    %v200 = vld [vmem:[%s0 + $0x130] sm:$0xf]
    %v201 = vld [vmem:[%s0 + $0x134] sm:$0x1]
    %v202 = vld [vmem:[%s0 + $0x138] sm:$0xf]
    %v203 = vld [vmem:[%s0 + $0x13c] sm:$0xf]
    %v204 = vld [vmem:[%s0 + $0x140] sm:$0x1]
    %v205 = vld [vmem:[%s0 + $0x144] sm:$0xf]
    %v206 = vld [vmem:[%s0 + $0x148] sm:$0xf]
    %v207 = vld [vmem:[%s0 + $0x14c] sm:$0x1]
    %v208 = vld [vmem:[%s0 + $0x150] sm:$0xf]
    %v209 = vld [vmem:[%s0 + $0x154] sm:$0xf]
    %v210 = vld [vmem:[%s0 + $0x158] sm:$0x1]
    %v211 = vld [vmem:[%s0 + $0x15c] sm:$0xf]
    %v212 = vld [vmem:[%s0 + $0x160] sm:$0xf]
    %v213 = vld [vmem:[%s0 + $0x164] sm:$0x1]
    %v214 = vld [vmem:[%s0 + $0x168] sm:$0xf]
    %v215 = vld [vmem:[%s0 + $0x16c] sm:$0xf]
    %v216 = vld [vmem:[%s0 + $0x170] sm:$0x1]
    %v217 = vld [vmem:[%s0 + $0x174] sm:$0xf]
    %v218 = vld [vmem:[%s0 + $0x178] sm:$0xf]
    %v219 = vld [vmem:[%s0 + $0x17c] sm:$0x1]
    %v220 = vld [vmem:[%s0 + $0x180] sm:$0xf]
    %v221 = vld [vmem:[%s0 + $0x184] sm:$0xf]
    %v222 = vld [vmem:[%s0 + $0x188] sm:$0x1]
    %v223 = vld [vmem:[%s0 + $0x18c] sm:$0xf]
    %v224 = vld [vmem:[%s0 + $0x190] sm:$0xf]
    %v225 = vld [vmem:[%s0 + $0x194] sm:$0x1]
    %v226 = vld [vmem:[%s0 + $0x198] sm:$0xf]
    %v227 = vld [vmem:[%s0 + $0x19c] sm:$0xf]
    %v228 = vld [vmem:[%s0 + $0x1a0] sm:$0x1]
    %v229 = vld [vmem:[%s0 + $0x1a4] sm:$0xf]
    %v230 = vld [vmem:[%s0 + $0x1a8] sm:$0xf]
    %v231 = vld [vmem:[%s0 + $0x1ac] sm:$0x1]
    %v340 = vrot.slane %v124, 3
    %v341 = vrot.slane %v125, 3
    %v342 = vrot.slane %v126, 3
    %v343 = vrot.slane %v127, 3
    %v344 = vrot.slane %v128, 3
    %v345 = vrot.slane %v129, 3
    %v346 = vrot.slane %v130, 3
    %v347 = vrot.slane %v131, 3
    %v348 = vrot.slane %v132, 3
    %v349 = vrot.slane %v133, 3
    %v350 = vrot.slane %v134, 3
    %v351 = vrot.slane %v135, 3
    %v352 = vrot.slane %v136, 3
    %v353 = vrot.slane %v137, 3
    %v354 = vrot.slane %v138, 3
    %v355 = vrot.slane %v139, 3
    %v356 = vrot.slane %v140, 3
    %v357 = vrot.slane %v141, 3
    %v358 = vrot.slane %v142, 3
    %v359 = vrot.slane %v143, 3
    %v360 = vrot.slane %v144, 3
    %v361 = vrot.slane %v145, 3
    %v362 = vrot.slane %v146, 3
    %v363 = vrot.slane %v147, 3
    %v364 = vrot.slane %v148, 3
    %v365 = vrot.slane %v149, 3
    %v366 = vrot.slane %v150, 3
    %v367 = vrot.slane %v151, 3
    %v368 = vrot.slane %v152, 3
    %v369 = vrot.slane %v153, 3
    %v370 = vrot.slane %v154, 3
    %v371 = vrot.slane %v155, 3
    %v372 = vrot.slane %v156, 3
    %v373 = vrot.slane %v157, 3
    %v374 = vrot.slane %v158, 3
    %v375 = vrot.slane %v159, 3
    %v376 = vrot.slane %v160, 3
    %v377 = vrot.slane %v161, 3
    %v378 = vrot.slane %v162, 3
    %v379 = vrot.slane %v163, 3
    %v380 = vrot.slane %v164, 3
    %v381 = vrot.slane %v165, 3
    %v382 = vrot.slane %v166, 3
    %v383 = vrot.slane %v167, 3
    %v384 = vrot.slane %v168, 3
    %v385 = vrot.slane %v169, 3
    %v386 = vrot.slane %v170, 3
    %v387 = vrot.slane %v171, 3
    %v388 = vrot.slane %v172, 3
    %v389 = vrot.slane %v173, 3
    %v390 = vrot.slane %v174, 3
    %v391 = vrot.slane %v175, 3
    %v392 = vrot.slane %v176, 3
    %v393 = vrot.slane %v177, 3
    %v394 = vrot.slane %v178, 3
    %v395 = vrot.slane %v179, 3
    %v396 = vrot.slane %v180, 3
    %v397 = vrot.slane %v181, 3
    %v398 = vrot.slane %v182, 3
    %v399 = vrot.slane %v183, 3
    %v400 = vrot.slane %v184, 3
    %v401 = vrot.slane %v185, 3
    %v402 = vrot.slane %v186, 3
    %v403 = vrot.slane %v187, 3
    %v404 = vrot.slane %v188, 3
    %v405 = vrot.slane %v189, 3
    %v406 = vrot.slane %v190, 3
    %v407 = vrot.slane %v191, 3
    %v408 = vrot.slane %v192, 3
    %v409 = vrot.slane %v193, 3
    %v410 = vrot.slane %v194, 3
    %v411 = vrot.slane %v195, 3
    %v412 = vrot.slane %v196, 3
    %v413 = vrot.slane %v197, 3
    %v414 = vrot.slane %v198, 3
    %v415 = vrot.slane %v199, 3
    %v416 = vrot.slane %v200, 3
    %v417 = vrot.slane %v201, 3
    %v418 = vrot.slane %v202, 3
    %v419 = vrot.slane %v203, 3
    %v420 = vrot.slane %v204, 3
    %v421 = vrot.slane %v205, 3
    %v422 = vrot.slane %v206, 3
    %v423 = vrot.slane %v207, 3
    %v424 = vrot.slane %v208, 3
    %v425 = vrot.slane %v209, 3
    %v426 = vrot.slane %v210, 3
    %v427 = vrot.slane %v211, 3
    %v428 = vrot.slane %v212, 3
    %v429 = vrot.slane %v213, 3
    %v430 = vrot.slane %v214, 3
    %v431 = vrot.slane %v215, 3
    %v432 = vrot.slane %v216, 3
    %v433 = vrot.slane %v217, 3
    %v434 = vrot.slane %v218, 3
    %v435 = vrot.slane %v219, 3
    %v436 = vrot.slane %v220, 3
    %v437 = vrot.slane %v221, 3
    %v438 = vrot.slane %v222, 3
    %v439 = vrot.slane %v223, 3
    %v440 = vrot.slane %v224, 3
    %v441 = vrot.slane %v225, 3
    %v442 = vrot.slane %v226, 3
    %v443 = vrot.slane %v227, 3
    %v444 = vrot.slane %v228, 3
    %v445 = vrot.slane %v229, 3
    %v446 = vrot.slane %v230, 3
    %v447 = vrot.slane %v231, 3
    %vm448 = vcmask 1040384
    %v451 = vsel %vm448, %v124, %v340
    %vm452 = vcmask 1041409
    %v453 = vsel %vm452, %v124, %v340
    %v455 = vrot.slane %v453, 1
    %vm456 = vcmask 1042434
    %v457 = vsel %vm456, %v124, %v340
    %v459 = vrot.slane %v457, 2
    %vm460 = vcmask 1043459
    %v461 = vsel %vm460, %v124, %v340
    %v463 = vrot.slane %v461, 3
    %v466 = vsel %vm448, %v125, %v341
    %v467 = vsel %vm452, %v125, %v341
    %v469 = vrot.slane %v467, 1
    %v470 = vsel %vm456, %v125, %v341
    %v472 = vrot.slane %v470, 2
    %v473 = vsel %vm460, %v125, %v341
    %v475 = vrot.slane %v473, 3
    %v478 = vsel %vm448, %v126, %v342
    %v481 = vsel %vm448, %v127, %v343
    %v482 = vsel %vm452, %v127, %v343
    %v484 = vrot.slane %v482, 1
    %v485 = vsel %vm456, %v127, %v343
    %v487 = vrot.slane %v485, 2
    %v488 = vsel %vm460, %v127, %v343
    %v490 = vrot.slane %v488, 3
    %v493 = vsel %vm448, %v128, %v344
    %v494 = vsel %vm452, %v128, %v344
    %v496 = vrot.slane %v494, 1
    %v497 = vsel %vm456, %v128, %v344
    %v499 = vrot.slane %v497, 2
    %v500 = vsel %vm460, %v128, %v344
    %v502 = vrot.slane %v500, 3
    %v505 = vsel %vm448, %v129, %v345
    %v508 = vsel %vm448, %v130, %v346
    %v509 = vsel %vm452, %v130, %v346
    %v511 = vrot.slane %v509, 1
    %v512 = vsel %vm456, %v130, %v346
    %v514 = vrot.slane %v512, 2
    %v515 = vsel %vm460, %v130, %v346
    %v517 = vrot.slane %v515, 3
    %v520 = vsel %vm448, %v131, %v347
    %v521 = vsel %vm452, %v131, %v347
    %v523 = vrot.slane %v521, 1
    %v524 = vsel %vm456, %v131, %v347
    %v526 = vrot.slane %v524, 2
    %v527 = vsel %vm460, %v131, %v347
    %v529 = vrot.slane %v527, 3
    %v532 = vsel %vm448, %v132, %v348
    %v535 = vsel %vm448, %v133, %v349
    %v536 = vsel %vm452, %v133, %v349
    %v538 = vrot.slane %v536, 1
    %v539 = vsel %vm456, %v133, %v349
    %v541 = vrot.slane %v539, 2
    %v542 = vsel %vm460, %v133, %v349
    %v544 = vrot.slane %v542, 3
    %v547 = vsel %vm448, %v134, %v350
    %v548 = vsel %vm452, %v134, %v350
    %v550 = vrot.slane %v548, 1
    %v551 = vsel %vm456, %v134, %v350
    %v553 = vrot.slane %v551, 2
    %v554 = vsel %vm460, %v134, %v350
    %v556 = vrot.slane %v554, 3
    %v559 = vsel %vm448, %v135, %v351
    %v562 = vsel %vm448, %v136, %v352
    %v563 = vsel %vm452, %v136, %v352
    %v565 = vrot.slane %v563, 1
    %v566 = vsel %vm456, %v136, %v352
    %v568 = vrot.slane %v566, 2
    %v569 = vsel %vm460, %v136, %v352
    %v571 = vrot.slane %v569, 3
    %v574 = vsel %vm448, %v137, %v353
    %v575 = vsel %vm452, %v137, %v353
    %v577 = vrot.slane %v575, 1
    %v578 = vsel %vm456, %v137, %v353
    %v580 = vrot.slane %v578, 2
    %v581 = vsel %vm460, %v137, %v353
    %v583 = vrot.slane %v581, 3
    %v586 = vsel %vm448, %v138, %v354
    %v589 = vsel %vm448, %v139, %v355
    %v590 = vsel %vm452, %v139, %v355
    %v592 = vrot.slane %v590, 1
    %v593 = vsel %vm456, %v139, %v355
    %v595 = vrot.slane %v593, 2
    %v596 = vsel %vm460, %v139, %v355
    %v598 = vrot.slane %v596, 3
    %v601 = vsel %vm448, %v140, %v356
    %v602 = vsel %vm452, %v140, %v356
    %v604 = vrot.slane %v602, 1
    %v605 = vsel %vm456, %v140, %v356
    %v607 = vrot.slane %v605, 2
    %v608 = vsel %vm460, %v140, %v356
    %v610 = vrot.slane %v608, 3
    %v613 = vsel %vm448, %v141, %v357
    %v616 = vsel %vm448, %v142, %v358
    %v617 = vsel %vm452, %v142, %v358
    %v619 = vrot.slane %v617, 1
    %v620 = vsel %vm456, %v142, %v358
    %v622 = vrot.slane %v620, 2
    %v623 = vsel %vm460, %v142, %v358
    %v625 = vrot.slane %v623, 3
    %v628 = vsel %vm448, %v143, %v359
    %v629 = vsel %vm452, %v143, %v359
    %v631 = vrot.slane %v629, 1
    %v632 = vsel %vm456, %v143, %v359
    %v634 = vrot.slane %v632, 2
    %v635 = vsel %vm460, %v143, %v359
    %v637 = vrot.slane %v635, 3
    %v640 = vsel %vm448, %v144, %v360
    %v643 = vsel %vm448, %v145, %v361
    %v644 = vsel %vm452, %v145, %v361
    %v646 = vrot.slane %v644, 1
    %v647 = vsel %vm456, %v145, %v361
    %v649 = vrot.slane %v647, 2
    %v650 = vsel %vm460, %v145, %v361
    %v652 = vrot.slane %v650, 3
    %v655 = vsel %vm448, %v146, %v362
    %v656 = vsel %vm452, %v146, %v362
    %v658 = vrot.slane %v656, 1
    %v659 = vsel %vm456, %v146, %v362
    %v661 = vrot.slane %v659, 2
    %v662 = vsel %vm460, %v146, %v362
    %v664 = vrot.slane %v662, 3
    %v667 = vsel %vm448, %v147, %v363
    %v670 = vsel %vm448, %v148, %v364
    %v671 = vsel %vm452, %v148, %v364
    %v673 = vrot.slane %v671, 1
    %v674 = vsel %vm456, %v148, %v364
    %v676 = vrot.slane %v674, 2
    %v677 = vsel %vm460, %v148, %v364
    %v679 = vrot.slane %v677, 3
    %v682 = vsel %vm448, %v149, %v365
    %v683 = vsel %vm452, %v149, %v365
    %v685 = vrot.slane %v683, 1
    %v686 = vsel %vm456, %v149, %v365
    %v688 = vrot.slane %v686, 2
    %v689 = vsel %vm460, %v149, %v365
    %v691 = vrot.slane %v689, 3
    %v694 = vsel %vm448, %v150, %v366
    %v697 = vsel %vm448, %v151, %v367
    %v698 = vsel %vm452, %v151, %v367
    %v700 = vrot.slane %v698, 1
    %v701 = vsel %vm456, %v151, %v367
    %v703 = vrot.slane %v701, 2
    %v704 = vsel %vm460, %v151, %v367
    %v706 = vrot.slane %v704, 3
    %v709 = vsel %vm448, %v152, %v368
    %v710 = vsel %vm452, %v152, %v368
    %v712 = vrot.slane %v710, 1
    %v713 = vsel %vm456, %v152, %v368
    %v715 = vrot.slane %v713, 2
    %v716 = vsel %vm460, %v152, %v368
    %v718 = vrot.slane %v716, 3
    %v721 = vsel %vm448, %v153, %v369
    %v724 = vsel %vm448, %v154, %v370
    %v725 = vsel %vm452, %v154, %v370
    %v727 = vrot.slane %v725, 1
    %v728 = vsel %vm456, %v154, %v370
    %v730 = vrot.slane %v728, 2
    %v731 = vsel %vm460, %v154, %v370
    %v733 = vrot.slane %v731, 3
    %v736 = vsel %vm448, %v155, %v371
    %v737 = vsel %vm452, %v155, %v371
    %v739 = vrot.slane %v737, 1
    %v740 = vsel %vm456, %v155, %v371
    %v742 = vrot.slane %v740, 2
    %v743 = vsel %vm460, %v155, %v371
    %v745 = vrot.slane %v743, 3
    %v748 = vsel %vm448, %v156, %v372
    %v751 = vsel %vm448, %v157, %v373
    %v752 = vsel %vm452, %v157, %v373
    %v754 = vrot.slane %v752, 1
    %v755 = vsel %vm456, %v157, %v373
    %v757 = vrot.slane %v755, 2
    %v758 = vsel %vm460, %v157, %v373
    %v760 = vrot.slane %v758, 3
    %v763 = vsel %vm448, %v158, %v374
    %v764 = vsel %vm452, %v158, %v374
    %v766 = vrot.slane %v764, 1
    %v767 = vsel %vm456, %v158, %v374
    %v769 = vrot.slane %v767, 2
    %v770 = vsel %vm460, %v158, %v374
    %v772 = vrot.slane %v770, 3
    %v775 = vsel %vm448, %v159, %v375
    %v778 = vsel %vm448, %v160, %v376
    %v779 = vsel %vm452, %v160, %v376
    %v781 = vrot.slane %v779, 1
    %v782 = vsel %vm456, %v160, %v376
    %v784 = vrot.slane %v782, 2
    %v785 = vsel %vm460, %v160, %v376
    %v787 = vrot.slane %v785, 3
    %v790 = vsel %vm448, %v161, %v377
    %v791 = vsel %vm452, %v161, %v377
    %v793 = vrot.slane %v791, 1
    %v794 = vsel %vm456, %v161, %v377
    %v796 = vrot.slane %v794, 2
    %v797 = vsel %vm460, %v161, %v377
    %v799 = vrot.slane %v797, 3
    %v802 = vsel %vm448, %v162, %v378
    %v805 = vsel %vm448, %v163, %v379
    %v806 = vsel %vm452, %v163, %v379
    %v808 = vrot.slane %v806, 1
    %v809 = vsel %vm456, %v163, %v379
    %v811 = vrot.slane %v809, 2
    %v812 = vsel %vm460, %v163, %v379
    %v814 = vrot.slane %v812, 3
    %v817 = vsel %vm448, %v164, %v380
    %v818 = vsel %vm452, %v164, %v380
    %v820 = vrot.slane %v818, 1
    %v821 = vsel %vm456, %v164, %v380
    %v823 = vrot.slane %v821, 2
    %v824 = vsel %vm460, %v164, %v380
    %v826 = vrot.slane %v824, 3
    %v829 = vsel %vm448, %v165, %v381
    %v832 = vsel %vm448, %v166, %v382
    %v833 = vsel %vm452, %v166, %v382
    %v835 = vrot.slane %v833, 1
    %v836 = vsel %vm456, %v166, %v382
    %v838 = vrot.slane %v836, 2
    %v839 = vsel %vm460, %v166, %v382
    %v841 = vrot.slane %v839, 3
    %v844 = vsel %vm448, %v167, %v383
    %v845 = vsel %vm452, %v167, %v383
    %v847 = vrot.slane %v845, 1
    %v848 = vsel %vm456, %v167, %v383
    %v850 = vrot.slane %v848, 2
    %v851 = vsel %vm460, %v167, %v383
    %v853 = vrot.slane %v851, 3
    %v856 = vsel %vm448, %v168, %v384
    %v859 = vsel %vm448, %v169, %v385
    %v860 = vsel %vm452, %v169, %v385
    %v862 = vrot.slane %v860, 1
    %v863 = vsel %vm456, %v169, %v385
    %v865 = vrot.slane %v863, 2
    %v866 = vsel %vm460, %v169, %v385
    %v868 = vrot.slane %v866, 3
    %v871 = vsel %vm448, %v170, %v386
    %v872 = vsel %vm452, %v170, %v386
    %v874 = vrot.slane %v872, 1
    %v875 = vsel %vm456, %v170, %v386
    %v877 = vrot.slane %v875, 2
    %v878 = vsel %vm460, %v170, %v386
    %v880 = vrot.slane %v878, 3
    %v883 = vsel %vm448, %v171, %v387
    %v886 = vsel %vm448, %v172, %v388
    %v887 = vsel %vm452, %v172, %v388
    %v889 = vrot.slane %v887, 1
    %v890 = vsel %vm456, %v172, %v388
    %v892 = vrot.slane %v890, 2
    %v893 = vsel %vm460, %v172, %v388
    %v895 = vrot.slane %v893, 3
    %v898 = vsel %vm448, %v173, %v389
    %v899 = vsel %vm452, %v173, %v389
    %v901 = vrot.slane %v899, 1
    %v902 = vsel %vm456, %v173, %v389
    %v904 = vrot.slane %v902, 2
    %v905 = vsel %vm460, %v173, %v389
    %v907 = vrot.slane %v905, 3
    %v910 = vsel %vm448, %v174, %v390
    %v913 = vsel %vm448, %v175, %v391
    %v914 = vsel %vm452, %v175, %v391
    %v916 = vrot.slane %v914, 1
    %v917 = vsel %vm456, %v175, %v391
    %v919 = vrot.slane %v917, 2
    %v920 = vsel %vm460, %v175, %v391
    %v922 = vrot.slane %v920, 3
    %v925 = vsel %vm448, %v176, %v392
    %v926 = vsel %vm452, %v176, %v392
    %v928 = vrot.slane %v926, 1
    %v929 = vsel %vm456, %v176, %v392
    %v931 = vrot.slane %v929, 2
    %v932 = vsel %vm460, %v176, %v392
    %v934 = vrot.slane %v932, 3
    %v937 = vsel %vm448, %v177, %v393
    %v940 = vsel %vm448, %v178, %v394
    %v941 = vsel %vm452, %v178, %v394
    %v943 = vrot.slane %v941, 1
    %v944 = vsel %vm456, %v178, %v394
    %v946 = vrot.slane %v944, 2
    %v947 = vsel %vm460, %v178, %v394
    %v949 = vrot.slane %v947, 3
    %v952 = vsel %vm448, %v179, %v395
    %v953 = vsel %vm452, %v179, %v395
    %v955 = vrot.slane %v953, 1
    %v956 = vsel %vm456, %v179, %v395
    %v958 = vrot.slane %v956, 2
    %v959 = vsel %vm460, %v179, %v395
    %v961 = vrot.slane %v959, 3
    %v964 = vsel %vm448, %v180, %v396
    %v967 = vsel %vm448, %v181, %v397
    %v968 = vsel %vm452, %v181, %v397
    %v970 = vrot.slane %v968, 1
    %v971 = vsel %vm456, %v181, %v397
    %v973 = vrot.slane %v971, 2
    %v974 = vsel %vm460, %v181, %v397
    %v976 = vrot.slane %v974, 3
    %v979 = vsel %vm448, %v182, %v398
    %v980 = vsel %vm452, %v182, %v398
    %v982 = vrot.slane %v980, 1
    %v983 = vsel %vm456, %v182, %v398
    %v985 = vrot.slane %v983, 2
    %v986 = vsel %vm460, %v182, %v398
    %v988 = vrot.slane %v986, 3
    %v991 = vsel %vm448, %v183, %v399
    %v994 = vsel %vm448, %v184, %v400
    %v995 = vsel %vm452, %v184, %v400
    %v997 = vrot.slane %v995, 1
    %v998 = vsel %vm456, %v184, %v400
    %v1000 = vrot.slane %v998, 2
    %v1001 = vsel %vm460, %v184, %v400
    %v1003 = vrot.slane %v1001, 3
    %v1006 = vsel %vm448, %v185, %v401
    %v1007 = vsel %vm452, %v185, %v401
    %v1009 = vrot.slane %v1007, 1
    %v1010 = vsel %vm456, %v185, %v401
    %v1012 = vrot.slane %v1010, 2
    %v1013 = vsel %vm460, %v185, %v401
    %v1015 = vrot.slane %v1013, 3
    %v1018 = vsel %vm448, %v186, %v402
    %v1021 = vsel %vm448, %v187, %v403
    %v1022 = vsel %vm452, %v187, %v403
    %v1024 = vrot.slane %v1022, 1
    %v1025 = vsel %vm456, %v187, %v403
    %v1027 = vrot.slane %v1025, 2
    %v1028 = vsel %vm460, %v187, %v403
    %v1030 = vrot.slane %v1028, 3
    %v1033 = vsel %vm448, %v188, %v404
    %v1034 = vsel %vm452, %v188, %v404
    %v1036 = vrot.slane %v1034, 1
    %v1037 = vsel %vm456, %v188, %v404
    %v1039 = vrot.slane %v1037, 2
    %v1040 = vsel %vm460, %v188, %v404
    %v1042 = vrot.slane %v1040, 3
    %v1045 = vsel %vm448, %v189, %v405
    %v1048 = vsel %vm448, %v190, %v406
    %v1049 = vsel %vm452, %v190, %v406
    %v1051 = vrot.slane %v1049, 1
    %v1052 = vsel %vm456, %v190, %v406
    %v1054 = vrot.slane %v1052, 2
    %v1055 = vsel %vm460, %v190, %v406
    %v1057 = vrot.slane %v1055, 3
    %v1060 = vsel %vm448, %v191, %v407
    %v1061 = vsel %vm452, %v191, %v407
    %v1063 = vrot.slane %v1061, 1
    %v1064 = vsel %vm456, %v191, %v407
    %v1066 = vrot.slane %v1064, 2
    %v1067 = vsel %vm460, %v191, %v407
    %v1069 = vrot.slane %v1067, 3
    %v1072 = vsel %vm448, %v192, %v408
    %v1075 = vsel %vm448, %v193, %v409
    %v1076 = vsel %vm452, %v193, %v409
    %v1078 = vrot.slane %v1076, 1
    %v1079 = vsel %vm456, %v193, %v409
    %v1081 = vrot.slane %v1079, 2
    %v1082 = vsel %vm460, %v193, %v409
    %v1084 = vrot.slane %v1082, 3
    %v1087 = vsel %vm448, %v194, %v410
    %v1088 = vsel %vm452, %v194, %v410
    %v1090 = vrot.slane %v1088, 1
    %v1091 = vsel %vm456, %v194, %v410
    %v1093 = vrot.slane %v1091, 2
    %v1094 = vsel %vm460, %v194, %v410
    %v1096 = vrot.slane %v1094, 3
    %v1099 = vsel %vm448, %v195, %v411
    %v1102 = vsel %vm448, %v196, %v412
    %v1103 = vsel %vm452, %v196, %v412
    %v1105 = vrot.slane %v1103, 1
    %v1106 = vsel %vm456, %v196, %v412
    %v1108 = vrot.slane %v1106, 2
    %v1109 = vsel %vm460, %v196, %v412
    %v1111 = vrot.slane %v1109, 3
    %v1114 = vsel %vm448, %v197, %v413
    %v1115 = vsel %vm452, %v197, %v413
    %v1117 = vrot.slane %v1115, 1
    %v1118 = vsel %vm456, %v197, %v413
    %v1120 = vrot.slane %v1118, 2
    %v1121 = vsel %vm460, %v197, %v413
    %v1123 = vrot.slane %v1121, 3
    %v1126 = vsel %vm448, %v198, %v414
    %v1129 = vsel %vm448, %v199, %v415
    %v1130 = vsel %vm452, %v199, %v415
    %v1132 = vrot.slane %v1130, 1
    %v1133 = vsel %vm456, %v199, %v415
    %v1135 = vrot.slane %v1133, 2
    %v1136 = vsel %vm460, %v199, %v415
    %v1138 = vrot.slane %v1136, 3
    %v1141 = vsel %vm448, %v200, %v416
    %v1142 = vsel %vm452, %v200, %v416
    %v1144 = vrot.slane %v1142, 1
    %v1145 = vsel %vm456, %v200, %v416
    %v1147 = vrot.slane %v1145, 2
    %v1148 = vsel %vm460, %v200, %v416
    %v1150 = vrot.slane %v1148, 3
    %v1153 = vsel %vm448, %v201, %v417
    %v1156 = vsel %vm448, %v202, %v418
    %v1157 = vsel %vm452, %v202, %v418
    %v1159 = vrot.slane %v1157, 1
    %v1160 = vsel %vm456, %v202, %v418
    %v1162 = vrot.slane %v1160, 2
    %v1163 = vsel %vm460, %v202, %v418
    %v1165 = vrot.slane %v1163, 3
    %v1168 = vsel %vm448, %v203, %v419
    %v1169 = vsel %vm452, %v203, %v419
    %v1171 = vrot.slane %v1169, 1
    %v1172 = vsel %vm456, %v203, %v419
    %v1174 = vrot.slane %v1172, 2
    %v1175 = vsel %vm460, %v203, %v419
    %v1177 = vrot.slane %v1175, 3
    %v1180 = vsel %vm448, %v204, %v420
    %v1183 = vsel %vm448, %v205, %v421
    %v1184 = vsel %vm452, %v205, %v421
    %v1186 = vrot.slane %v1184, 1
    %v1187 = vsel %vm456, %v205, %v421
    %v1189 = vrot.slane %v1187, 2
    %v1190 = vsel %vm460, %v205, %v421
    %v1192 = vrot.slane %v1190, 3
    %v1195 = vsel %vm448, %v206, %v422
    %v1196 = vsel %vm452, %v206, %v422
    %v1198 = vrot.slane %v1196, 1
    %v1199 = vsel %vm456, %v206, %v422
    %v1201 = vrot.slane %v1199, 2
    %v1202 = vsel %vm460, %v206, %v422
    %v1204 = vrot.slane %v1202, 3
    %v1207 = vsel %vm448, %v207, %v423
    %v1210 = vsel %vm448, %v208, %v424
    %v1211 = vsel %vm452, %v208, %v424
    %v1213 = vrot.slane %v1211, 1
    %v1214 = vsel %vm456, %v208, %v424
    %v1216 = vrot.slane %v1214, 2
    %v1217 = vsel %vm460, %v208, %v424
    %v1219 = vrot.slane %v1217, 3
    %v1222 = vsel %vm448, %v209, %v425
    %v1223 = vsel %vm452, %v209, %v425
    %v1225 = vrot.slane %v1223, 1
    %v1226 = vsel %vm456, %v209, %v425
    %v1228 = vrot.slane %v1226, 2
    %v1229 = vsel %vm460, %v209, %v425
    %v1231 = vrot.slane %v1229, 3
    %v1234 = vsel %vm448, %v210, %v426
    %v1237 = vsel %vm448, %v211, %v427
    %v1238 = vsel %vm452, %v211, %v427
    %v1240 = vrot.slane %v1238, 1
    %v1241 = vsel %vm456, %v211, %v427
    %v1243 = vrot.slane %v1241, 2
    %v1244 = vsel %vm460, %v211, %v427
    %v1246 = vrot.slane %v1244, 3
    %v1249 = vsel %vm448, %v212, %v428
    %v1250 = vsel %vm452, %v212, %v428
    %v1252 = vrot.slane %v1250, 1
    %v1253 = vsel %vm456, %v212, %v428
    %v1255 = vrot.slane %v1253, 2
    %v1256 = vsel %vm460, %v212, %v428
    %v1258 = vrot.slane %v1256, 3
    %v1261 = vsel %vm448, %v213, %v429
    %v1264 = vsel %vm448, %v214, %v430
    %v1265 = vsel %vm452, %v214, %v430
    %v1267 = vrot.slane %v1265, 1
    %v1268 = vsel %vm456, %v214, %v430
    %v1270 = vrot.slane %v1268, 2
    %v1271 = vsel %vm460, %v214, %v430
    %v1273 = vrot.slane %v1271, 3
    %v1276 = vsel %vm448, %v215, %v431
    %v1277 = vsel %vm452, %v215, %v431
    %v1279 = vrot.slane %v1277, 1
    %v1280 = vsel %vm456, %v215, %v431
    %v1282 = vrot.slane %v1280, 2
    %v1283 = vsel %vm460, %v215, %v431
    %v1285 = vrot.slane %v1283, 3
    %v1288 = vsel %vm448, %v216, %v432
    %v1291 = vsel %vm448, %v217, %v433
    %v1292 = vsel %vm452, %v217, %v433
    %v1294 = vrot.slane %v1292, 1
    %v1295 = vsel %vm456, %v217, %v433
    %v1297 = vrot.slane %v1295, 2
    %v1298 = vsel %vm460, %v217, %v433
    %v1300 = vrot.slane %v1298, 3
    %v1303 = vsel %vm448, %v218, %v434
    %v1304 = vsel %vm452, %v218, %v434
    %v1306 = vrot.slane %v1304, 1
    %v1307 = vsel %vm456, %v218, %v434
    %v1309 = vrot.slane %v1307, 2
    %v1310 = vsel %vm460, %v218, %v434
    %v1312 = vrot.slane %v1310, 3
    %v1315 = vsel %vm448, %v219, %v435
    %v1318 = vsel %vm448, %v220, %v436
    %v1319 = vsel %vm452, %v220, %v436
    %v1321 = vrot.slane %v1319, 1
    %v1322 = vsel %vm456, %v220, %v436
    %v1324 = vrot.slane %v1322, 2
    %v1325 = vsel %vm460, %v220, %v436
    %v1327 = vrot.slane %v1325, 3
    %v1330 = vsel %vm448, %v221, %v437
    %v1331 = vsel %vm452, %v221, %v437
    %v1333 = vrot.slane %v1331, 1
    %v1334 = vsel %vm456, %v221, %v437
    %v1336 = vrot.slane %v1334, 2
    %v1337 = vsel %vm460, %v221, %v437
    %v1339 = vrot.slane %v1337, 3
    %v1342 = vsel %vm448, %v222, %v438
    %v1345 = vsel %vm448, %v223, %v439
    %v1346 = vsel %vm452, %v223, %v439
    %v1348 = vrot.slane %v1346, 1
    %v1349 = vsel %vm456, %v223, %v439
    %v1351 = vrot.slane %v1349, 2
    %v1352 = vsel %vm460, %v223, %v439
    %v1354 = vrot.slane %v1352, 3
    %v1357 = vsel %vm448, %v224, %v440
    %v1358 = vsel %vm452, %v224, %v440
    %v1360 = vrot.slane %v1358, 1
    %v1361 = vsel %vm456, %v224, %v440
    %v1363 = vrot.slane %v1361, 2
    %v1364 = vsel %vm460, %v224, %v440
    %v1366 = vrot.slane %v1364, 3
    %v1369 = vsel %vm448, %v225, %v441
    %v1372 = vsel %vm448, %v226, %v442
    %v1373 = vsel %vm452, %v226, %v442
    %v1375 = vrot.slane %v1373, 1
    %v1376 = vsel %vm456, %v226, %v442
    %v1378 = vrot.slane %v1376, 2
    %v1379 = vsel %vm460, %v226, %v442
    %v1381 = vrot.slane %v1379, 3
    %v1384 = vsel %vm448, %v227, %v443
    %v1385 = vsel %vm452, %v227, %v443
    %v1387 = vrot.slane %v1385, 1
    %v1388 = vsel %vm456, %v227, %v443
    %v1390 = vrot.slane %v1388, 2
    %v1391 = vsel %vm460, %v227, %v443
    %v1393 = vrot.slane %v1391, 3
    %v1396 = vsel %vm448, %v228, %v444
    %v1399 = vsel %vm448, %v229, %v445
    %v1400 = vsel %vm452, %v229, %v445
    %v1402 = vrot.slane %v1400, 1
    %v1403 = vsel %vm456, %v229, %v445
    %v1405 = vrot.slane %v1403, 2
    %v1406 = vsel %vm460, %v229, %v445
    %v1408 = vrot.slane %v1406, 3
    %v1411 = vsel %vm448, %v230, %v446
    %v1412 = vsel %vm452, %v230, %v446
    %v1414 = vrot.slane %v1412, 1
    %v1415 = vsel %vm456, %v230, %v446
    %v1417 = vrot.slane %v1415, 2
    %v1418 = vsel %vm460, %v230, %v446
    %v1420 = vrot.slane %v1418, 3
    %v1423 = vsel %vm448, %v231, %v447
    %v1424 = vld [vmem:[%s3] sm:$0xf]
    %v1425 = vld [vmem:[%s3 + $0x4] sm:$0xf]
    %v1426 = vld [vmem:[%s3 + $0x8] sm:$0xf]
    %v1427 = vld [vmem:[%s3 + $0xc] sm:$0xf]
    %v1428 = vld [vmem:[%s3 + $0x10] sm:$0x3]
    %1429 = vst [vmem:[#allocation1] ss:$9 sm:$0xff] %v451
    %s1431 = scalar_lea.vmem [#allocation1], 1
    %1432 = vst [vmem:[%s1431] ss:$9 sm:$0xff] %v455
    %s1434 = scalar_lea.vmem [#allocation1], 2
    %1435 = vst [vmem:[%s1434] ss:$9 sm:$0xff] %v459
    %s1437 = scalar_lea.vmem [#allocation1], 3
    %1438 = vst [vmem:[%s1437] ss:$9 sm:$0xff] %v463
    %s1439 = scalar_lea.vmem [#allocation1], 4
    %1440 = vst [vmem:[%s1439] ss:$9 sm:$0xff] %v466
    %s1442 = scalar_lea.vmem [#allocation1], 5
    %1443 = vst [vmem:[%s1442] ss:$9 sm:$0xff] %v469
    %s1445 = scalar_lea.vmem [#allocation1], 6
    %1446 = vst [vmem:[%s1445] ss:$9 sm:$0xff] %v472
    %s1448 = scalar_lea.vmem [#allocation1], 7
    %1449 = vst [vmem:[%s1448] ss:$9 sm:$0xff] %v475
    %v1450 = vld [vmem:[#allocation1] sm:$0xff]
    %1451 = vst [vmem:[#allocation1] ss:$9 sm:$0xff] %v478
    %1452 = vst [vmem:[%s1431] ss:$9 sm:$0xff] %v481
    %1454 = vst [vmem:[%s1434] ss:$9 sm:$0xff] %v484
    %1456 = vst [vmem:[%s1437] ss:$9 sm:$0xff] %v487
    %1458 = vst [vmem:[%s1439] ss:$9 sm:$0xff] %v490
    %1459 = vst [vmem:[%s1442] ss:$9 sm:$0xff] %v493
    %1461 = vst [vmem:[%s1445] ss:$9 sm:$0xff] %v496
    %1463 = vst [vmem:[%s1448] ss:$9 sm:$0xff] %v499
    %v1464 = vld [vmem:[#allocation1] sm:$0xff]
    %1466 = vst [vmem:[#allocation1] ss:$9 sm:$0xff] %v502
    %1467 = vst [vmem:[%s1431] ss:$9 sm:$0xff] %v505
    %1468 = vst [vmem:[%s1434] ss:$9 sm:$0xff] %v508
    %1470 = vst [vmem:[%s1437] ss:$9 sm:$0xff] %v511
    %1472 = vst [vmem:[%s1439] ss:$9 sm:$0xff] %v514
    %1474 = vst [vmem:[%s1442] ss:$9 sm:$0xff] %v517
    %1475 = vst [vmem:[%s1445] ss:$9 sm:$0xff] %v520
    %1477 = vst [vmem:[%s1448] ss:$9 sm:$0xff] %v523
    %v1478 = vld [vmem:[#allocation1] sm:$0xff]
    %1480 = vst [vmem:[#allocation1] ss:$9 sm:$0xff] %v526
    %1482 = vst [vmem:[%s1431] ss:$9 sm:$0xff] %v529
    %1483 = vst [vmem:[%s1434] ss:$9 sm:$0xff] %v532
    %1484 = vst [vmem:[%s1437] ss:$9 sm:$0xff] %v535
    %1486 = vst [vmem:[%s1439] ss:$9 sm:$0xff] %v538
    %1488 = vst [vmem:[%s1442] ss:$9 sm:$0xff] %v541
    %1490 = vst [vmem:[%s1445] ss:$9 sm:$0xff] %v544
    %1491 = vst [vmem:[%s1448] ss:$9 sm:$0xff] %v547
    %v1492 = vld [vmem:[#allocation1] sm:$0xff]
    %1494 = vst [vmem:[#allocation1] ss:$9 sm:$0xff] %v550
    %1496 = vst [vmem:[%s1431] ss:$9 sm:$0xff] %v553
    %1498 = vst [vmem:[%s1434] ss:$9 sm:$0xff] %v556
    %1499 = vst [vmem:[%s1437] ss:$9 sm:$0xff] %v559
    %1500 = vst [vmem:[%s1439] ss:$9 sm:$0xff] %v562
    %1502 = vst [vmem:[%s1442] ss:$9 sm:$0xff] %v565
    %1504 = vst [vmem:[%s1445] ss:$9 sm:$0xff] %v568
    %1506 = vst [vmem:[%s1448] ss:$9 sm:$0xff] %v571
    %v1507 = vld [vmem:[#allocation1] sm:$0xff]
    %1508 = vst [vmem:[#allocation1] ss:$9 sm:$0xff] %v574
    %1510 = vst [vmem:[%s1431] ss:$9 sm:$0xff] %v577
    %1512 = vst [vmem:[%s1434] ss:$9 sm:$0xff] %v580
    %1514 = vst [vmem:[%s1437] ss:$9 sm:$0xff] %v583
    %1515 = vst [vmem:[%s1439] ss:$9 sm:$0xff] %v586
    %1516 = vst [vmem:[%s1442] ss:$9 sm:$0xff] %v589
    %1518 = vst [vmem:[%s1445] ss:$9 sm:$0xff] %v592
    %1520 = vst [vmem:[%s1448] ss:$9 sm:$0xff] %v595
    %v1521 = vld [vmem:[#allocation1] sm:$0xff]
    %1523 = vst [vmem:[#allocation1] ss:$9 sm:$0xff] %v598
    %1524 = vst [vmem:[%s1431] ss:$9 sm:$0xff] %v601
    %1526 = vst [vmem:[%s1434] ss:$9 sm:$0xff] %v604
    %1528 = vst [vmem:[%s1437] ss:$9 sm:$0xff] %v607
    %1530 = vst [vmem:[%s1439] ss:$9 sm:$0xff] %v610
    %1531 = vst [vmem:[%s1442] ss:$9 sm:$0xff] %v613
    %1532 = vst [vmem:[%s1445] ss:$9 sm:$0xff] %v616
    %1534 = vst [vmem:[%s1448] ss:$9 sm:$0xff] %v619
    %v1535 = vld [vmem:[#allocation1] sm:$0xff]
    %1537 = vst [vmem:[#allocation1] ss:$9 sm:$0xff] %v622
    %1539 = vst [vmem:[%s1431] ss:$9 sm:$0xff] %v625
    %1540 = vst [vmem:[%s1434] ss:$9 sm:$0xff] %v628
    %1542 = vst [vmem:[%s1437] ss:$9 sm:$0xff] %v631
    %1544 = vst [vmem:[%s1439] ss:$9 sm:$0xff] %v634
    %1546 = vst [vmem:[%s1442] ss:$9 sm:$0xff] %v637
    %1547 = vst [vmem:[%s1445] ss:$9 sm:$0xff] %v640
    %1548 = vst [vmem:[%s1448] ss:$9 sm:$0xff] %v643
    %v1549 = vld [vmem:[#allocation1] sm:$0xff]
    %1551 = vst [vmem:[#allocation1] ss:$9 sm:$0xff] %v646
    %1553 = vst [vmem:[%s1431] ss:$9 sm:$0xff] %v649
    %1555 = vst [vmem:[%s1434] ss:$9 sm:$0xff] %v652
    %1556 = vst [vmem:[%s1437] ss:$9 sm:$0xff] %v655
    %1558 = vst [vmem:[%s1439] ss:$9 sm:$0xff] %v658
    %1560 = vst [vmem:[%s1442] ss:$9 sm:$0xff] %v661
    %1562 = vst [vmem:[%s1445] ss:$9 sm:$0xff] %v664
    %1563 = vst [vmem:[%s1448] ss:$9 sm:$0xff] %v667
    %v1564 = vld [vmem:[#allocation1] sm:$0xff]
    %1565 = vst [vmem:[#allocation1] ss:$9 sm:$0xff] %v670
    %1567 = vst [vmem:[%s1431] ss:$9 sm:$0xff] %v673
    %1569 = vst [vmem:[%s1434] ss:$9 sm:$0xff] %v676
    %1571 = vst [vmem:[%s1437] ss:$9 sm:$0xff] %v679
    %1572 = vst [vmem:[%s1439] ss:$9 sm:$0xff] %v682
    %1574 = vst [vmem:[%s1442] ss:$9 sm:$0xff] %v685
    %1576 = vst [vmem:[%s1445] ss:$9 sm:$0xff] %v688
    %1578 = vst [vmem:[%s1448] ss:$9 sm:$0xff] %v691
    %v1579 = vld [vmem:[#allocation1] sm:$0xff]
    %1580 = vst [vmem:[#allocation1] ss:$9 sm:$0xff] %v694
    %1581 = vst [vmem:[%s1431] ss:$9 sm:$0xff] %v697
    %1583 = vst [vmem:[%s1434] ss:$9 sm:$0xff] %v700
    %1585 = vst [vmem:[%s1437] ss:$9 sm:$0xff] %v703
    %1587 = vst [vmem:[%s1439] ss:$9 sm:$0xff] %v706
    %1588 = vst [vmem:[%s1442] ss:$9 sm:$0xff] %v709
    %1590 = vst [vmem:[%s1445] ss:$9 sm:$0xff] %v712
    %1592 = vst [vmem:[%s1448] ss:$9 sm:$0xff] %v715
    %v1593 = vld [vmem:[#allocation1] sm:$0xff]
    %1595 = vst [vmem:[#allocation1] ss:$9 sm:$0xff] %v718
    %1596 = vst [vmem:[%s1431] ss:$9 sm:$0xff] %v721
    %1597 = vst [vmem:[%s1434] ss:$9 sm:$0xff] %v724
    %1599 = vst [vmem:[%s1437] ss:$9 sm:$0xff] %v727
    %1601 = vst [vmem:[%s1439] ss:$9 sm:$0xff] %v730
    %1603 = vst [vmem:[%s1442] ss:$9 sm:$0xff] %v733
    %1604 = vst [vmem:[%s1445] ss:$9 sm:$0xff] %v736
    %1606 = vst [vmem:[%s1448] ss:$9 sm:$0xff] %v739
    %v1607 = vld [vmem:[#allocation1] sm:$0xff]
    %1609 = vst [vmem:[#allocation1] ss:$9 sm:$0xff] %v742
    %1611 = vst [vmem:[%s1431] ss:$9 sm:$0xff] %v745
    %1612 = vst [vmem:[%s1434] ss:$9 sm:$0xff] %v748
    %1613 = vst [vmem:[%s1437] ss:$9 sm:$0xff] %v751
    %1615 = vst [vmem:[%s1439] ss:$9 sm:$0xff] %v754
    %1617 = vst [vmem:[%s1442] ss:$9 sm:$0xff] %v757
    %1619 = vst [vmem:[%s1445] ss:$9 sm:$0xff] %v760
    %1620 = vst [vmem:[%s1448] ss:$9 sm:$0xff] %v763
    %v1621 = vld [vmem:[#allocation1] sm:$0xff]
    %1623 = vst [vmem:[#allocation1] ss:$9 sm:$0xff] %v766
    %1625 = vst [vmem:[%s1431] ss:$9 sm:$0xff] %v769
    %1627 = vst [vmem:[%s1434] ss:$9 sm:$0xff] %v772
    %1628 = vst [vmem:[%s1437] ss:$9 sm:$0xff] %v775
    %1629 = vst [vmem:[%s1439] ss:$9 sm:$0xff] %v778
    %1631 = vst [vmem:[%s1442] ss:$9 sm:$0xff] %v781
    %1633 = vst [vmem:[%s1445] ss:$9 sm:$0xff] %v784
    %1635 = vst [vmem:[%s1448] ss:$9 sm:$0xff] %v787
    %v1636 = vld [vmem:[#allocation1] sm:$0xff]
    %1637 = vst [vmem:[#allocation1] ss:$9 sm:$0xff] %v790
    %1639 = vst [vmem:[%s1431] ss:$9 sm:$0xff] %v793
    %1641 = vst [vmem:[%s1434] ss:$9 sm:$0xff] %v796
    %1643 = vst [vmem:[%s1437] ss:$9 sm:$0xff] %v799
    %1644 = vst [vmem:[%s1439] ss:$9 sm:$0xff] %v802
    %1645 = vst [vmem:[%s1442] ss:$9 sm:$0xff] %v805
    %1647 = vst [vmem:[%s1445] ss:$9 sm:$0xff] %v808
    %1649 = vst [vmem:[%s1448] ss:$9 sm:$0xff] %v811
    %v1650 = vld [vmem:[#allocation1] sm:$0xff]
    %1652 = vst [vmem:[#allocation1] ss:$9 sm:$0xff] %v814
    %1653 = vst [vmem:[%s1431] ss:$9 sm:$0xff] %v817
    %1655 = vst [vmem:[%s1434] ss:$9 sm:$0xff] %v820
    %1657 = vst [vmem:[%s1437] ss:$9 sm:$0xff] %v823
    %1659 = vst [vmem:[%s1439] ss:$9 sm:$0xff] %v826
    %1660 = vst [vmem:[%s1442] ss:$9 sm:$0xff] %v829
    %1661 = vst [vmem:[%s1445] ss:$9 sm:$0xff] %v832
    %1663 = vst [vmem:[%s1448] ss:$9 sm:$0xff] %v835
    %v1664 = vld [vmem:[#allocation1] sm:$0xff]
    %1666 = vst [vmem:[#allocation1] ss:$9 sm:$0xff] %v838
    %1668 = vst [vmem:[%s1431] ss:$9 sm:$0xff] %v841
    %1669 = vst [vmem:[%s1434] ss:$9 sm:$0xff] %v844
    %1671 = vst [vmem:[%s1437] ss:$9 sm:$0xff] %v847
    %1673 = vst [vmem:[%s1439] ss:$9 sm:$0xff] %v850
    %1675 = vst [vmem:[%s1442] ss:$9 sm:$0xff] %v853
    %1676 = vst [vmem:[%s1445] ss:$9 sm:$0xff] %v856
    %1677 = vst [vmem:[%s1448] ss:$9 sm:$0xff] %v859
    %v1678 = vld [vmem:[#allocation1] sm:$0xff]
    %1680 = vst [vmem:[#allocation1] ss:$9 sm:$0xff] %v862
    %1682 = vst [vmem:[%s1431] ss:$9 sm:$0xff] %v865
    %1684 = vst [vmem:[%s1434] ss:$9 sm:$0xff] %v868
    %1685 = vst [vmem:[%s1437] ss:$9 sm:$0xff] %v871
    %1687 = vst [vmem:[%s1439] ss:$9 sm:$0xff] %v874
    %1689 = vst [vmem:[%s1442] ss:$9 sm:$0xff] %v877
    %1691 = vst [vmem:[%s1445] ss:$9 sm:$0xff] %v880
    %1692 = vst [vmem:[%s1448] ss:$9 sm:$0xff] %v883
    %v1693 = vld [vmem:[#allocation1] sm:$0xff]
    %1694 = vst [vmem:[#allocation1] ss:$9 sm:$0xff] %v886
    %1696 = vst [vmem:[%s1431] ss:$9 sm:$0xff] %v889
    %1698 = vst [vmem:[%s1434] ss:$9 sm:$0xff] %v892
    %1700 = vst [vmem:[%s1437] ss:$9 sm:$0xff] %v895
    %1701 = vst [vmem:[%s1439] ss:$9 sm:$0xff] %v898
    %1703 = vst [vmem:[%s1442] ss:$9 sm:$0xff] %v901
    %1705 = vst [vmem:[%s1445] ss:$9 sm:$0xff] %v904
    %1707 = vst [vmem:[%s1448] ss:$9 sm:$0xff] %v907
    %v1708 = vld [vmem:[#allocation1] sm:$0xff]
    %1709 = vst [vmem:[#allocation1] ss:$9 sm:$0xff] %v910
    %1710 = vst [vmem:[%s1431] ss:$9 sm:$0xff] %v913
    %1712 = vst [vmem:[%s1434] ss:$9 sm:$0xff] %v916
    %1714 = vst [vmem:[%s1437] ss:$9 sm:$0xff] %v919
    %1716 = vst [vmem:[%s1439] ss:$9 sm:$0xff] %v922
    %1717 = vst [vmem:[%s1442] ss:$9 sm:$0xff] %v925
    %1719 = vst [vmem:[%s1445] ss:$9 sm:$0xff] %v928
    %1721 = vst [vmem:[%s1448] ss:$9 sm:$0xff] %v931
    %v1722 = vld [vmem:[#allocation1] sm:$0xff]
    %1724 = vst [vmem:[#allocation1] ss:$9 sm:$0xff] %v934
    %1725 = vst [vmem:[%s1431] ss:$9 sm:$0xff] %v937
    %1726 = vst [vmem:[%s1434] ss:$9 sm:$0xff] %v940
    %1728 = vst [vmem:[%s1437] ss:$9 sm:$0xff] %v943
    %1730 = vst [vmem:[%s1439] ss:$9 sm:$0xff] %v946
    %1732 = vst [vmem:[%s1442] ss:$9 sm:$0xff] %v949
    %1733 = vst [vmem:[%s1445] ss:$9 sm:$0xff] %v952
    %1735 = vst [vmem:[%s1448] ss:$9 sm:$0xff] %v955
    %v1736 = vld [vmem:[#allocation1] sm:$0xff]
    %1738 = vst [vmem:[#allocation1] ss:$9 sm:$0xff] %v958
    %1740 = vst [vmem:[%s1431] ss:$9 sm:$0xff] %v961
    %1741 = vst [vmem:[%s1434] ss:$9 sm:$0xff] %v964
    %1742 = vst [vmem:[%s1437] ss:$9 sm:$0xff] %v967
    %1744 = vst [vmem:[%s1439] ss:$9 sm:$0xff] %v970
    %1746 = vst [vmem:[%s1442] ss:$9 sm:$0xff] %v973
    %1748 = vst [vmem:[%s1445] ss:$9 sm:$0xff] %v976
    %1749 = vst [vmem:[%s1448] ss:$9 sm:$0xff] %v979
    %v1750 = vld [vmem:[#allocation1] sm:$0xff]
    %1752 = vst [vmem:[#allocation1] ss:$9 sm:$0xff] %v982
    %1754 = vst [vmem:[%s1431] ss:$9 sm:$0xff] %v985
    %1756 = vst [vmem:[%s1434] ss:$9 sm:$0xff] %v988
    %1757 = vst [vmem:[%s1437] ss:$9 sm:$0xff] %v991
    %1758 = vst [vmem:[%s1439] ss:$9 sm:$0xff] %v994
    %1760 = vst [vmem:[%s1442] ss:$9 sm:$0xff] %v997
    %1762 = vst [vmem:[%s1445] ss:$9 sm:$0xff] %v1000
    %1764 = vst [vmem:[%s1448] ss:$9 sm:$0xff] %v1003
    %v1765 = vld [vmem:[#allocation1] sm:$0xff]
    %1766 = vst [vmem:[#allocation1] ss:$9 sm:$0xff] %v1006
    %1768 = vst [vmem:[%s1431] ss:$9 sm:$0xff] %v1009
    %1770 = vst [vmem:[%s1434] ss:$9 sm:$0xff] %v1012
    %1772 = vst [vmem:[%s1437] ss:$9 sm:$0xff] %v1015
    %1773 = vst [vmem:[%s1439] ss:$9 sm:$0xff] %v1018
    %1774 = vst [vmem:[%s1442] ss:$9 sm:$0xff] %v1021
    %1776 = vst [vmem:[%s1445] ss:$9 sm:$0xff] %v1024
    %1778 = vst [vmem:[%s1448] ss:$9 sm:$0xff] %v1027
    %v1779 = vld [vmem:[#allocation1] sm:$0xff]
    %1781 = vst [vmem:[#allocation1] ss:$9 sm:$0xff] %v1030
    %1782 = vst [vmem:[%s1431] ss:$9 sm:$0xff] %v1033
    %1784 = vst [vmem:[%s1434] ss:$9 sm:$0xff] %v1036
    %1786 = vst [vmem:[%s1437] ss:$9 sm:$0xff] %v1039
    %1788 = vst [vmem:[%s1439] ss:$9 sm:$0xff] %v1042
    %1789 = vst [vmem:[%s1442] ss:$9 sm:$0xff] %v1045
    %1790 = vst [vmem:[%s1445] ss:$9 sm:$0xff] %v1048
    %1792 = vst [vmem:[%s1448] ss:$9 sm:$0xff] %v1051
    %v1793 = vld [vmem:[#allocation1] sm:$0xff]
    %1795 = vst [vmem:[#allocation1] ss:$9 sm:$0xff] %v1054
    %1797 = vst [vmem:[%s1431] ss:$9 sm:$0xff] %v1057
    %1798 = vst [vmem:[%s1434] ss:$9 sm:$0xff] %v1060
    %1800 = vst [vmem:[%s1437] ss:$9 sm:$0xff] %v1063
    %1802 = vst [vmem:[%s1439] ss:$9 sm:$0xff] %v1066
    %1804 = vst [vmem:[%s1442] ss:$9 sm:$0xff] %v1069
    %1805 = vst [vmem:[%s1445] ss:$9 sm:$0xff] %v1072
    %1806 = vst [vmem:[%s1448] ss:$9 sm:$0xff] %v1075
    %v1807 = vld [vmem:[#allocation1] sm:$0xff]
    %1809 = vst [vmem:[#allocation1] ss:$9 sm:$0xff] %v1078
    %1811 = vst [vmem:[%s1431] ss:$9 sm:$0xff] %v1081
    %1813 = vst [vmem:[%s1434] ss:$9 sm:$0xff] %v1084
    %1814 = vst [vmem:[%s1437] ss:$9 sm:$0xff] %v1087
    %1816 = vst [vmem:[%s1439] ss:$9 sm:$0xff] %v1090
    %1818 = vst [vmem:[%s1442] ss:$9 sm:$0xff] %v1093
    %1820 = vst [vmem:[%s1445] ss:$9 sm:$0xff] %v1096
    %1821 = vst [vmem:[%s1448] ss:$9 sm:$0xff] %v1099
    %v1822 = vld [vmem:[#allocation1] sm:$0xff]
    %1823 = vst [vmem:[#allocation1] ss:$9 sm:$0xff] %v1102
    %1825 = vst [vmem:[%s1431] ss:$9 sm:$0xff] %v1105
    %1827 = vst [vmem:[%s1434] ss:$9 sm:$0xff] %v1108
    %1829 = vst [vmem:[%s1437] ss:$9 sm:$0xff] %v1111
    %1830 = vst [vmem:[%s1439] ss:$9 sm:$0xff] %v1114
    %1832 = vst [vmem:[%s1442] ss:$9 sm:$0xff] %v1117
    %1834 = vst [vmem:[%s1445] ss:$9 sm:$0xff] %v1120
    %1836 = vst [vmem:[%s1448] ss:$9 sm:$0xff] %v1123
    %v1837 = vld [vmem:[#allocation1] sm:$0xff]
    %1838 = vst [vmem:[#allocation1] ss:$9 sm:$0xff] %v1126
    %1839 = vst [vmem:[%s1431] ss:$9 sm:$0xff] %v1129
    %1841 = vst [vmem:[%s1434] ss:$9 sm:$0xff] %v1132
    %1843 = vst [vmem:[%s1437] ss:$9 sm:$0xff] %v1135
    %1845 = vst [vmem:[%s1439] ss:$9 sm:$0xff] %v1138
    %1846 = vst [vmem:[%s1442] ss:$9 sm:$0xff] %v1141
    %1848 = vst [vmem:[%s1445] ss:$9 sm:$0xff] %v1144
    %1850 = vst [vmem:[%s1448] ss:$9 sm:$0xff] %v1147
    %v1851 = vld [vmem:[#allocation1] sm:$0xff]
    %1853 = vst [vmem:[#allocation1] ss:$9 sm:$0xff] %v1150
    %1854 = vst [vmem:[%s1431] ss:$9 sm:$0xff] %v1153
    %1855 = vst [vmem:[%s1434] ss:$9 sm:$0xff] %v1156
    %1857 = vst [vmem:[%s1437] ss:$9 sm:$0xff] %v1159
    %1859 = vst [vmem:[%s1439] ss:$9 sm:$0xff] %v1162
    %1861 = vst [vmem:[%s1442] ss:$9 sm:$0xff] %v1165
    %1862 = vst [vmem:[%s1445] ss:$9 sm:$0xff] %v1168
    %1864 = vst [vmem:[%s1448] ss:$9 sm:$0xff] %v1171
    %v1865 = vld [vmem:[#allocation1] sm:$0xff]
    %1867 = vst [vmem:[#allocation1] ss:$9 sm:$0xff] %v1174
    %1869 = vst [vmem:[%s1431] ss:$9 sm:$0xff] %v1177
    %1870 = vst [vmem:[%s1434] ss:$9 sm:$0xff] %v1180
    %1871 = vst [vmem:[%s1437] ss:$9 sm:$0xff] %v1183
    %1873 = vst [vmem:[%s1439] ss:$9 sm:$0xff] %v1186
    %1875 = vst [vmem:[%s1442] ss:$9 sm:$0xff] %v1189
    %1877 = vst [vmem:[%s1445] ss:$9 sm:$0xff] %v1192
    %1878 = vst [vmem:[%s1448] ss:$9 sm:$0xff] %v1195
    %v1879 = vld [vmem:[#allocation1] sm:$0xff]
    %1881 = vst [vmem:[#allocation1] ss:$9 sm:$0xff] %v1198
    %1883 = vst [vmem:[%s1431] ss:$9 sm:$0xff] %v1201
    %1885 = vst [vmem:[%s1434] ss:$9 sm:$0xff] %v1204
    %1886 = vst [vmem:[%s1437] ss:$9 sm:$0xff] %v1207
    %1887 = vst [vmem:[%s1439] ss:$9 sm:$0xff] %v1210
    %1889 = vst [vmem:[%s1442] ss:$9 sm:$0xff] %v1213
    %1891 = vst [vmem:[%s1445] ss:$9 sm:$0xff] %v1216
    %1893 = vst [vmem:[%s1448] ss:$9 sm:$0xff] %v1219
    %v1894 = vld [vmem:[#allocation1] sm:$0xff]
    %1895 = vst [vmem:[#allocation1] ss:$9 sm:$0xff] %v1222
    %1897 = vst [vmem:[%s1431] ss:$9 sm:$0xff] %v1225
    %1899 = vst [vmem:[%s1434] ss:$9 sm:$0xff] %v1228
    %1901 = vst [vmem:[%s1437] ss:$9 sm:$0xff] %v1231
    %1902 = vst [vmem:[%s1439] ss:$9 sm:$0xff] %v1234
    %1903 = vst [vmem:[%s1442] ss:$9 sm:$0xff] %v1237
    %1905 = vst [vmem:[%s1445] ss:$9 sm:$0xff] %v1240
    %1907 = vst [vmem:[%s1448] ss:$9 sm:$0xff] %v1243
    %v1908 = vld [vmem:[#allocation1] sm:$0xff]
    %1910 = vst [vmem:[#allocation1] ss:$9 sm:$0xff] %v1246
    %1911 = vst [vmem:[%s1431] ss:$9 sm:$0xff] %v1249
    %1913 = vst [vmem:[%s1434] ss:$9 sm:$0xff] %v1252
    %1915 = vst [vmem:[%s1437] ss:$9 sm:$0xff] %v1255
    %1917 = vst [vmem:[%s1439] ss:$9 sm:$0xff] %v1258
    %1918 = vst [vmem:[%s1442] ss:$9 sm:$0xff] %v1261
    %1919 = vst [vmem:[%s1445] ss:$9 sm:$0xff] %v1264
    %1921 = vst [vmem:[%s1448] ss:$9 sm:$0xff] %v1267
    %v1922 = vld [vmem:[#allocation1] sm:$0xff]
    %1924 = vst [vmem:[#allocation1] ss:$9 sm:$0xff] %v1270
    %1926 = vst [vmem:[%s1431] ss:$9 sm:$0xff] %v1273
    %1927 = vst [vmem:[%s1434] ss:$9 sm:$0xff] %v1276
    %1929 = vst [vmem:[%s1437] ss:$9 sm:$0xff] %v1279
    %1931 = vst [vmem:[%s1439] ss:$9 sm:$0xff] %v1282
    %1933 = vst [vmem:[%s1442] ss:$9 sm:$0xff] %v1285
    %1934 = vst [vmem:[%s1445] ss:$9 sm:$0xff] %v1288
    %1935 = vst [vmem:[%s1448] ss:$9 sm:$0xff] %v1291
    %v1936 = vld [vmem:[#allocation1] sm:$0xff]
    %1938 = vst [vmem:[#allocation1] ss:$9 sm:$0xff] %v1294
    %1940 = vst [vmem:[%s1431] ss:$9 sm:$0xff] %v1297
    %1942 = vst [vmem:[%s1434] ss:$9 sm:$0xff] %v1300
    %1943 = vst [vmem:[%s1437] ss:$9 sm:$0xff] %v1303
    %1945 = vst [vmem:[%s1439] ss:$9 sm:$0xff] %v1306
    %1947 = vst [vmem:[%s1442] ss:$9 sm:$0xff] %v1309
    %1949 = vst [vmem:[%s1445] ss:$9 sm:$0xff] %v1312
    %1950 = vst [vmem:[%s1448] ss:$9 sm:$0xff] %v1315
    %v1951 = vld [vmem:[#allocation1] sm:$0xff]
    %1952 = vst [vmem:[#allocation1] ss:$9 sm:$0xff] %v1318
    %1954 = vst [vmem:[%s1431] ss:$9 sm:$0xff] %v1321
    %1956 = vst [vmem:[%s1434] ss:$9 sm:$0xff] %v1324
    %1958 = vst [vmem:[%s1437] ss:$9 sm:$0xff] %v1327
    %1959 = vst [vmem:[%s1439] ss:$9 sm:$0xff] %v1330
    %1961 = vst [vmem:[%s1442] ss:$9 sm:$0xff] %v1333
    %1963 = vst [vmem:[%s1445] ss:$9 sm:$0xff] %v1336
    %1965 = vst [vmem:[%s1448] ss:$9 sm:$0xff] %v1339
    %v1966 = vld [vmem:[#allocation1] sm:$0xff]
    %1967 = vst [vmem:[#allocation1] ss:$9 sm:$0xff] %v1342
    %1968 = vst [vmem:[%s1431] ss:$9 sm:$0xff] %v1345
    %1970 = vst [vmem:[%s1434] ss:$9 sm:$0xff] %v1348
    %1972 = vst [vmem:[%s1437] ss:$9 sm:$0xff] %v1351
    %1974 = vst [vmem:[%s1439] ss:$9 sm:$0xff] %v1354
    %1975 = vst [vmem:[%s1442] ss:$9 sm:$0xff] %v1357
    %1977 = vst [vmem:[%s1445] ss:$9 sm:$0xff] %v1360
    %1979 = vst [vmem:[%s1448] ss:$9 sm:$0xff] %v1363
    %v1980 = vld [vmem:[#allocation1] sm:$0xff]
    %1982 = vst [vmem:[#allocation1] ss:$9 sm:$0xff] %v1366
    %1983 = vst [vmem:[%s1431] ss:$9 sm:$0xff] %v1369
    %1984 = vst [vmem:[%s1434] ss:$9 sm:$0xff] %v1372
    %1986 = vst [vmem:[%s1437] ss:$9 sm:$0xff] %v1375
    %1988 = vst [vmem:[%s1439] ss:$9 sm:$0xff] %v1378
    %1990 = vst [vmem:[%s1442] ss:$9 sm:$0xff] %v1381
    %1991 = vst [vmem:[%s1445] ss:$9 sm:$0xff] %v1384
    %1993 = vst [vmem:[%s1448] ss:$9 sm:$0xff] %v1387
    %v1994 = vld [vmem:[#allocation1] sm:$0xff]
    %1996 = vst [vmem:[#allocation1] ss:$9 sm:$0xff] %v1390
    %1998 = vst [vmem:[%s1431] ss:$9 sm:$0xff] %v1393
    %1999 = vst [vmem:[%s1434] ss:$9 sm:$0xff] %v1396
    %2000 = vst [vmem:[%s1437] ss:$9 sm:$0xff] %v1399
    %2002 = vst [vmem:[%s1439] ss:$9 sm:$0xff] %v1402
    %2004 = vst [vmem:[%s1442] ss:$9 sm:$0xff] %v1405
    %2006 = vst [vmem:[%s1445] ss:$9 sm:$0xff] %v1408
    %2007 = vst [vmem:[%s1448] ss:$9 sm:$0xff] %v1411
    %v2008 = vld [vmem:[#allocation1] sm:$0xff]
    %2010 = vst [vmem:[#allocation1] ss:$9 sm:$0xff] %v1414
    %2012 = vst [vmem:[%s1431] ss:$9 sm:$0xff] %v1417
    %2014 = vst [vmem:[%s1434] ss:$9 sm:$0xff] %v1420
    %2015 = vst [vmem:[%s1437] ss:$9 sm:$0xff] %v1423
    %v2016 = vld [vmem:[#allocation1] sm:$0xff]
    %v2022 = vunpack.c.l.b16 %v1424
    %v2023 = vunpack.c.l.b16 %v1425
    %v2024 = vunpack.c.l.b16 %v1426
    %v2025 = vunpack.c.l.b16 %v1427
    %v2026 = vunpack.c.l.b16 %v1428
    %v2027 = vpack.c.b16 %v2023, %v2022
    %v2028 = vpack.c.b16 %v2025, %v2024
    %v2029 = vpack.c.b16 %v2026, %v2026
    %vm2032 = vcmask 293888
    %v2033 = vsel %vm2032, %v1450, 0
    %v2035 = vsel %vm2032, %v1464, 0
    %v2037 = vsel %vm2032, %v1478, 0
    %v2039 = vsel %vm2032, %v1492, 0
    %v2041 = vsel %vm2032, %v1507, 0
    %v2043 = vsel %vm2032, %v1521, 0
    %v2045 = vsel %vm2032, %v1535, 0
    %v2047 = vsel %vm2032, %v1549, 0
    %v2049 = vsel %vm2032, %v1564, 0
    %v2051 = vsel %vm2032, %v1579, 0
    %v2053 = vsel %vm2032, %v1593, 0
    %v2055 = vsel %vm2032, %v1607, 0
    %v2057 = vsel %vm2032, %v1621, 0
    %v2059 = vsel %vm2032, %v1636, 0
    %v2061 = vsel %vm2032, %v1650, 0
    %v2063 = vsel %vm2032, %v1664, 0
    %v2065 = vsel %vm2032, %v1678, 0
    %v2067 = vsel %vm2032, %v1693, 0
    %v2069 = vsel %vm2032, %v1708, 0
    %v2071 = vsel %vm2032, %v1722, 0
    %v2073 = vsel %vm2032, %v1736, 0
    %v2075 = vsel %vm2032, %v1750, 0
    %v2077 = vsel %vm2032, %v1765, 0
    %v2079 = vsel %vm2032, %v1779, 0
    %v2081 = vsel %vm2032, %v1793, 0
    %v2083 = vsel %vm2032, %v1807, 0
    %v2085 = vsel %vm2032, %v1822, 0
    %v2087 = vsel %vm2032, %v1837, 0
    %v2089 = vsel %vm2032, %v1851, 0
    %v2091 = vsel %vm2032, %v1865, 0
    %v2093 = vsel %vm2032, %v1879, 0
    %v2095 = vsel %vm2032, %v1894, 0
    %v2097 = vsel %vm2032, %v1908, 0
    %v2099 = vsel %vm2032, %v1922, 0
    %v2101 = vsel %vm2032, %v1936, 0
    %v2103 = vsel %vm2032, %v1951, 0
    %v2105 = vsel %vm2032, %v1966, 0
    %v2107 = vsel %vm2032, %v1980, 0
    %v2109 = vsel %vm2032, %v1994, 0
    %v2111 = vsel %vm2032, %v2008, 0
    %v2113 = vsel %vm2032, %v2016, 0
    %vm2115 = vcmask 1041408
    %v2117 = vsel %vm2115, %v2029, 0
    %2119 = vmatpush.bf16.msra.mxu0 0
    %2120 = vmatpush.bf16.msra.mxu0 0
    %2121 = vmatpush.bf16.msra.mxu0 0
    %2122 = vmatpush.bf16.msra.mxu0 0
    %2123 = vmatpush.bf16.msra.mxu0 0
    %2124 = vmatpush.bf16.msra.mxu0 %v2117
    %2125 = vmatpush.bf16.msra.mxu0 %v2028
    %2126 = vmatpush.bf16.msra.mxu0 %v2027
    %2127 = vmatmul.bf16.gmra.mxu0 %v2033
    %v2128 = vpop.f32.mrf.mxu0
    %v2129 = vadd.f32 0.0, %v2128
    %v2130 = vpop.f32.mrf.mxu0
    %v2131 = vadd.f32 0.0, %v2130
    %2132 = vmatmul.bf16.gmra.mxu0 %v2035
    %v2133 = vpop.f32.mrf.mxu0
    %v2134 = vadd.f32 0.0, %v2133
    %v2135 = vpop.f32.mrf.mxu0
    %v2136 = vadd.f32 0.0, %v2135
    %2137 = vmatmul.bf16.gmra.mxu0 %v2037
    %v2138 = vpop.f32.mrf.mxu0
    %v2139 = vadd.f32 0.0, %v2138
    %v2140 = vpop.f32.mrf.mxu0
    %v2141 = vadd.f32 0.0, %v2140
    %2142 = vmatmul.bf16.gmra.mxu0 %v2039
    %v2143 = vpop.f32.mrf.mxu0
    %v2144 = vadd.f32 0.0, %v2143
    %v2145 = vpop.f32.mrf.mxu0
    %v2146 = vadd.f32 0.0, %v2145
    %2147 = vmatmul.bf16.gmra.mxu0 %v2041
    %v2148 = vpop.f32.mrf.mxu0
    %v2149 = vadd.f32 0.0, %v2148
    %v2150 = vpop.f32.mrf.mxu0
    %v2151 = vadd.f32 0.0, %v2150
    %2152 = vmatmul.bf16.gmra.mxu0 %v2043
    %v2153 = vpop.f32.mrf.mxu0
    %v2154 = vadd.f32 0.0, %v2153
    %v2155 = vpop.f32.mrf.mxu0
    %v2156 = vadd.f32 0.0, %v2155
    %2157 = vmatmul.bf16.gmra.mxu0 %v2045
    %v2158 = vpop.f32.mrf.mxu0
    %v2159 = vadd.f32 0.0, %v2158
    %v2160 = vpop.f32.mrf.mxu0
    %v2161 = vadd.f32 0.0, %v2160
    %2162 = vmatmul.bf16.gmra.mxu0 %v2047
    %v2163 = vpop.f32.mrf.mxu0
    %v2164 = vadd.f32 0.0, %v2163
    %v2165 = vpop.f32.mrf.mxu0
    %v2166 = vadd.f32 0.0, %v2165
    %2167 = vmatmul.bf16.gmra.mxu0 %v2049
    %v2168 = vpop.f32.mrf.mxu0
    %v2169 = vadd.f32 0.0, %v2168
    %v2170 = vpop.f32.mrf.mxu0
    %v2171 = vadd.f32 0.0, %v2170
    %2172 = vmatmul.bf16.gmra.mxu0 %v2051
    %v2173 = vpop.f32.mrf.mxu0
    %v2174 = vadd.f32 0.0, %v2173
    %v2175 = vpop.f32.mrf.mxu0
    %v2176 = vadd.f32 0.0, %v2175
    %2177 = vmatmul.bf16.gmra.mxu0 %v2053
    %v2178 = vpop.f32.mrf.mxu0
    %v2179 = vadd.f32 0.0, %v2178
    %v2180 = vpop.f32.mrf.mxu0
    %v2181 = vadd.f32 0.0, %v2180
    %2182 = vmatmul.bf16.gmra.mxu0 %v2055
    %v2183 = vpop.f32.mrf.mxu0
    %v2184 = vadd.f32 0.0, %v2183
    %v2185 = vpop.f32.mrf.mxu0
    %v2186 = vadd.f32 0.0, %v2185
    %2187 = vmatmul.bf16.gmra.mxu0 %v2057
    %v2188 = vpop.f32.mrf.mxu0
    %v2189 = vadd.f32 0.0, %v2188
    %v2190 = vpop.f32.mrf.mxu0
    %v2191 = vadd.f32 0.0, %v2190
    %2192 = vmatmul.bf16.gmra.mxu0 %v2059
    %v2193 = vpop.f32.mrf.mxu0
    %v2194 = vadd.f32 0.0, %v2193
    %v2195 = vpop.f32.mrf.mxu0
    %v2196 = vadd.f32 0.0, %v2195
    %2197 = vmatmul.bf16.gmra.mxu0 %v2061
    %v2198 = vpop.f32.mrf.mxu0
    %v2199 = vadd.f32 0.0, %v2198
    %v2200 = vpop.f32.mrf.mxu0
    %v2201 = vadd.f32 0.0, %v2200
    %2202 = vmatmul.bf16.gmra.mxu0 %v2063
    %v2203 = vpop.f32.mrf.mxu0
    %v2204 = vadd.f32 0.0, %v2203
    %v2205 = vpop.f32.mrf.mxu0
    %v2206 = vadd.f32 0.0, %v2205
    %2207 = vmatmul.bf16.gmra.mxu0 %v2065
    %v2208 = vpop.f32.mrf.mxu0
    %v2209 = vadd.f32 0.0, %v2208
    %v2210 = vpop.f32.mrf.mxu0
    %v2211 = vadd.f32 0.0, %v2210
    %2212 = vmatmul.bf16.gmra.mxu0 %v2067
    %v2213 = vpop.f32.mrf.mxu0
    %v2214 = vadd.f32 0.0, %v2213
    %v2215 = vpop.f32.mrf.mxu0
    %v2216 = vadd.f32 0.0, %v2215
    %2217 = vmatmul.bf16.gmra.mxu0 %v2069
    %v2218 = vpop.f32.mrf.mxu0
    %v2219 = vadd.f32 0.0, %v2218
    %v2220 = vpop.f32.mrf.mxu0
    %v2221 = vadd.f32 0.0, %v2220
    %2222 = vmatmul.bf16.gmra.mxu0 %v2071
    %v2223 = vpop.f32.mrf.mxu0
    %v2224 = vadd.f32 0.0, %v2223
    %v2225 = vpop.f32.mrf.mxu0
    %v2226 = vadd.f32 0.0, %v2225
    %2227 = vmatmul.bf16.gmra.mxu0 %v2073
    %v2228 = vpop.f32.mrf.mxu0
    %v2229 = vadd.f32 0.0, %v2228
    %v2230 = vpop.f32.mrf.mxu0
    %v2231 = vadd.f32 0.0, %v2230
    %2232 = vmatmul.bf16.gmra.mxu0 %v2075
    %v2233 = vpop.f32.mrf.mxu0
    %v2234 = vadd.f32 0.0, %v2233
    %v2235 = vpop.f32.mrf.mxu0
    %v2236 = vadd.f32 0.0, %v2235
    %2237 = vmatmul.bf16.gmra.mxu0 %v2077
    %v2238 = vpop.f32.mrf.mxu0
    %v2239 = vadd.f32 0.0, %v2238
    %v2240 = vpop.f32.mrf.mxu0
    %v2241 = vadd.f32 0.0, %v2240
    %2242 = vmatmul.bf16.gmra.mxu0 %v2079
    %v2243 = vpop.f32.mrf.mxu0
    %v2244 = vadd.f32 0.0, %v2243
    %v2245 = vpop.f32.mrf.mxu0
    %v2246 = vadd.f32 0.0, %v2245
    %2247 = vmatmul.bf16.gmra.mxu0 %v2081
    %v2248 = vpop.f32.mrf.mxu0
    %v2249 = vadd.f32 0.0, %v2248
    %v2250 = vpop.f32.mrf.mxu0
    %v2251 = vadd.f32 0.0, %v2250
    %2252 = vmatmul.bf16.gmra.mxu0 %v2083
    %v2253 = vpop.f32.mrf.mxu0
    %v2254 = vadd.f32 0.0, %v2253
    %v2255 = vpop.f32.mrf.mxu0
    %v2256 = vadd.f32 0.0, %v2255
    %2257 = vmatmul.bf16.gmra.mxu0 %v2085
    %v2258 = vpop.f32.mrf.mxu0
    %v2259 = vadd.f32 0.0, %v2258
    %v2260 = vpop.f32.mrf.mxu0
    %v2261 = vadd.f32 0.0, %v2260
    %2262 = vmatmul.bf16.gmra.mxu0 %v2087
    %v2263 = vpop.f32.mrf.mxu0
    %v2264 = vadd.f32 0.0, %v2263
    %v2265 = vpop.f32.mrf.mxu0
    %v2266 = vadd.f32 0.0, %v2265
    %2267 = vmatmul.bf16.gmra.mxu0 %v2089
    %v2268 = vpop.f32.mrf.mxu0
    %v2269 = vadd.f32 0.0, %v2268
    %v2270 = vpop.f32.mrf.mxu0
    %v2271 = vadd.f32 0.0, %v2270
    %2272 = vmatmul.bf16.gmra.mxu0 %v2091
    %v2273 = vpop.f32.mrf.mxu0
    %v2274 = vadd.f32 0.0, %v2273
    %v2275 = vpop.f32.mrf.mxu0
    %v2276 = vadd.f32 0.0, %v2275
    %2277 = vmatmul.bf16.gmra.mxu0 %v2093
    %v2278 = vpop.f32.mrf.mxu0
    %v2279 = vadd.f32 0.0, %v2278
    %v2280 = vpop.f32.mrf.mxu0
    %v2281 = vadd.f32 0.0, %v2280
    %2282 = vmatmul.bf16.gmra.mxu0 %v2095
    %v2283 = vpop.f32.mrf.mxu0
    %v2284 = vadd.f32 0.0, %v2283
    %v2285 = vpop.f32.mrf.mxu0
    %v2286 = vadd.f32 0.0, %v2285
    %2287 = vmatmul.bf16.gmra.mxu0 %v2097
    %v2288 = vpop.f32.mrf.mxu0
    %v2289 = vadd.f32 0.0, %v2288
    %v2290 = vpop.f32.mrf.mxu0
    %v2291 = vadd.f32 0.0, %v2290
    %2292 = vmatmul.bf16.gmra.mxu0 %v2099
    %v2293 = vpop.f32.mrf.mxu0
    %v2294 = vadd.f32 0.0, %v2293
    %v2295 = vpop.f32.mrf.mxu0
    %v2296 = vadd.f32 0.0, %v2295
    %2297 = vmatmul.bf16.gmra.mxu0 %v2101
    %v2298 = vpop.f32.mrf.mxu0
    %v2299 = vadd.f32 0.0, %v2298
    %v2300 = vpop.f32.mrf.mxu0
    %v2301 = vadd.f32 0.0, %v2300
    %2302 = vmatmul.bf16.gmra.mxu0 %v2103
    %v2303 = vpop.f32.mrf.mxu0
    %v2304 = vadd.f32 0.0, %v2303
    %v2305 = vpop.f32.mrf.mxu0
    %v2306 = vadd.f32 0.0, %v2305
    %2307 = vmatmul.bf16.gmra.mxu0 %v2105
    %v2308 = vpop.f32.mrf.mxu0
    %v2309 = vadd.f32 0.0, %v2308
    %v2310 = vpop.f32.mrf.mxu0
    %v2311 = vadd.f32 0.0, %v2310
    %2312 = vmatmul.bf16.gmra.mxu0 %v2107
    %v2313 = vpop.f32.mrf.mxu0
    %v2314 = vadd.f32 0.0, %v2313
    %v2315 = vpop.f32.mrf.mxu0
    %v2316 = vadd.f32 0.0, %v2315
    %2317 = vmatmul.bf16.gmra.mxu0 %v2109
    %v2318 = vpop.f32.mrf.mxu0
    %v2319 = vadd.f32 0.0, %v2318
    %v2320 = vpop.f32.mrf.mxu0
    %v2321 = vadd.f32 0.0, %v2320
    %2322 = vmatmul.bf16.gmra.mxu0 %v2111
    %v2323 = vpop.f32.mrf.mxu0
    %v2324 = vadd.f32 0.0, %v2323
    %v2325 = vpop.f32.mrf.mxu0
    %v2326 = vadd.f32 0.0, %v2325
    %2327 = vmatmul.bf16.gmra.mxu0 %v2113
    %v2328 = vpop.f32.mrf.mxu0
    %v2329 = vadd.f32 0.0, %v2328
    %v2330 = vpop.f32.mrf.mxu0
    %2331 = vdwg.mxu0
    %2333 = vset.pattern.permute.xlu0 0
    %2334 = vperm.xlu0 %2333, %v43
    %v2335 = vpop.permute.xlu0 %2334
    %2338 = vset.pattern.permute.xlu0 0
    %2339 = vperm.xlu0 %2338, %v44
    %v2340 = vpop.permute.xlu0 %2339
    %2343 = vset.pattern.permute.xlu0 0
    %2344 = vperm.xlu0 %2343, %v45
    %v2345 = vpop.permute.xlu0 %2344
    %2348 = vset.pattern.permute.xlu0 0
    %2349 = vperm.xlu0 %2348, %v46
    %v2350 = vpop.permute.xlu0 %2349
    %2353 = vset.pattern.permute.xlu0 0
    %2354 = vperm.xlu0 %2353, %v47
    %v2355 = vpop.permute.xlu0 %2354
    %2358 = vset.pattern.permute.xlu0 0
    %2359 = vperm.xlu0 %2358, %v48
    %v2360 = vpop.permute.xlu0 %2359
    %2363 = vset.pattern.permute.xlu0 0
    %2364 = vperm.xlu0 %2363, %v49
    %v2365 = vpop.permute.xlu0 %2364
    %2368 = vset.pattern.permute.xlu0 0
    %2369 = vperm.xlu0 %2368, %v50
    %v2370 = vpop.permute.xlu0 %2369
    %2373 = vset.pattern.permute.xlu0 0
    %2374 = vperm.xlu0 %2373, %v51
    %v2375 = vpop.permute.xlu0 %2374
    %2378 = vset.pattern.permute.xlu0 0
    %2379 = vperm.xlu0 %2378, %v52
    %v2380 = vpop.permute.xlu0 %2379
    %2383 = vset.pattern.permute.xlu0 0
    %2384 = vperm.xlu0 %2383, %v53
    %v2385 = vpop.permute.xlu0 %2384
    %2388 = vset.pattern.permute.xlu0 0
    %2389 = vperm.xlu0 %2388, %v54
    %v2390 = vpop.permute.xlu0 %2389
    %2393 = vset.pattern.permute.xlu0 0
    %2394 = vperm.xlu0 %2393, %v55
    %v2395 = vpop.permute.xlu0 %2394
    %2398 = vset.pattern.permute.xlu0 0
    %2399 = vperm.xlu0 %2398, %v56
    %v2400 = vpop.permute.xlu0 %2399
    %2403 = vset.pattern.permute.xlu0 0
    %2404 = vperm.xlu0 %2403, %v57
    %v2405 = vpop.permute.xlu0 %2404
    %2408 = vset.pattern.permute.xlu0 0
    %2409 = vperm.xlu0 %2408, %v58
    %v2410 = vpop.permute.xlu0 %2409
    %2413 = vset.pattern.permute.xlu0 0
    %2414 = vperm.xlu0 %2413, %v59
    %v2415 = vpop.permute.xlu0 %2414
    %2418 = vset.pattern.permute.xlu0 0
    %2419 = vperm.xlu0 %2418, %v60
    %v2420 = vpop.permute.xlu0 %2419
    %2423 = vset.pattern.permute.xlu0 0
    %2424 = vperm.xlu0 %2423, %v61
    %v2425 = vpop.permute.xlu0 %2424
    %2428 = vset.pattern.permute.xlu0 0
    %2429 = vperm.xlu0 %2428, %v62
    %v2430 = vpop.permute.xlu0 %2429
    %2433 = vset.pattern.permute.xlu0 0
    %2434 = vperm.xlu0 %2433, %v63
    %v2435 = vpop.permute.xlu0 %2434
    %2438 = vset.pattern.permute.xlu0 0
    %2439 = vperm.xlu0 %2438, %v64
    %v2440 = vpop.permute.xlu0 %2439
    %2443 = vset.pattern.permute.xlu0 0
    %2444 = vperm.xlu0 %2443, %v65
    %v2445 = vpop.permute.xlu0 %2444
    %2448 = vset.pattern.permute.xlu0 0
    %2449 = vperm.xlu0 %2448, %v66
    %v2450 = vpop.permute.xlu0 %2449
    %2453 = vset.pattern.permute.xlu0 0
    %2454 = vperm.xlu0 %2453, %v67
    %v2455 = vpop.permute.xlu0 %2454
    %2458 = vset.pattern.permute.xlu0 0
    %2459 = vperm.xlu0 %2458, %v68
    %v2460 = vpop.permute.xlu0 %2459
    %2463 = vset.pattern.permute.xlu0 0
    %2464 = vperm.xlu0 %2463, %v69
    %v2465 = vpop.permute.xlu0 %2464
    %2468 = vset.pattern.permute.xlu0 0
    %2469 = vperm.xlu0 %2468, %v70
    %v2470 = vpop.permute.xlu0 %2469
    %2473 = vset.pattern.permute.xlu0 0
    %2474 = vperm.xlu0 %2473, %v71
    %v2475 = vpop.permute.xlu0 %2474
    %2478 = vset.pattern.permute.xlu0 0
    %2479 = vperm.xlu0 %2478, %v72
    %v2480 = vpop.permute.xlu0 %2479
    %2483 = vset.pattern.permute.xlu0 0
    %2484 = vperm.xlu0 %2483, %v73
    %v2485 = vpop.permute.xlu0 %2484
    %2488 = vset.pattern.permute.xlu0 0
    %2489 = vperm.xlu0 %2488, %v74
    %v2490 = vpop.permute.xlu0 %2489
    %2493 = vset.pattern.permute.xlu0 0
    %2494 = vperm.xlu0 %2493, %v75
    %v2495 = vpop.permute.xlu0 %2494
    %2498 = vset.pattern.permute.xlu0 0
    %2499 = vperm.xlu0 %2498, %v76
    %v2500 = vpop.permute.xlu0 %2499
    %2503 = vset.pattern.permute.xlu0 0
    %2504 = vperm.xlu0 %2503, %v77
    %v2505 = vpop.permute.xlu0 %2504
    %2508 = vset.pattern.permute.xlu0 0
    %2509 = vperm.xlu0 %2508, %v78
    %v2510 = vpop.permute.xlu0 %2509
    %2513 = vset.pattern.permute.xlu0 0
    %2514 = vperm.xlu0 %2513, %v79
    %v2515 = vpop.permute.xlu0 %2514
    %2518 = vset.pattern.permute.xlu0 0
    %2519 = vperm.xlu0 %2518, %v80
    %v2520 = vpop.permute.xlu0 %2519
    %2523 = vset.pattern.permute.xlu0 0
    %2524 = vperm.xlu0 %2523, %v81
    %v2525 = vpop.permute.xlu0 %2524
    %2528 = vset.pattern.permute.xlu0 0
    %2529 = vperm.xlu0 %2528, %v82
    %v2530 = vpop.permute.xlu0 %2529
    %2533 = vset.pattern.permute.xlu0 0
    %2534 = vperm.xlu0 %2533, %v83
    %v2535 = vpop.permute.xlu0 %2534
    %2538 = vset.pattern.permute.xlu0 0
    %2539 = vperm.xlu0 %2538, %v84
    %v2540 = vpop.permute.xlu0 %2539
    %2543 = vset.pattern.permute.xlu0 0
    %2544 = vperm.xlu0 %2543, %v85
    %v2545 = vpop.permute.xlu0 %2544
    %2548 = vset.pattern.permute.xlu0 0
    %2549 = vperm.xlu0 %2548, %v86
    %v2550 = vpop.permute.xlu0 %2549
    %2553 = vset.pattern.permute.xlu0 0
    %2554 = vperm.xlu0 %2553, %v87
    %v2555 = vpop.permute.xlu0 %2554
    %2558 = vset.pattern.permute.xlu0 0
    %2559 = vperm.xlu0 %2558, %v88
    %v2560 = vpop.permute.xlu0 %2559
    %2563 = vset.pattern.permute.xlu0 0
    %2564 = vperm.xlu0 %2563, %v89
    %v2565 = vpop.permute.xlu0 %2564
    %2568 = vset.pattern.permute.xlu0 0
    %2569 = vperm.xlu0 %2568, %v90
    %v2570 = vpop.permute.xlu0 %2569
    %2573 = vset.pattern.permute.xlu0 0
    %2574 = vperm.xlu0 %2573, %v91
    %v2575 = vpop.permute.xlu0 %2574
    %2578 = vset.pattern.permute.xlu0 0
    %2579 = vperm.xlu0 %2578, %v92
    %v2580 = vpop.permute.xlu0 %2579
    %2583 = vset.pattern.permute.xlu0 0
    %2584 = vperm.xlu0 %2583, %v93
    %v2585 = vpop.permute.xlu0 %2584
    %2588 = vset.pattern.permute.xlu0 0
    %2589 = vperm.xlu0 %2588, %v94
    %v2590 = vpop.permute.xlu0 %2589
    %2593 = vset.pattern.permute.xlu0 0
    %2594 = vperm.xlu0 %2593, %v95
    %v2595 = vpop.permute.xlu0 %2594
    %2598 = vset.pattern.permute.xlu0 0
    %2599 = vperm.xlu0 %2598, %v96
    %v2600 = vpop.permute.xlu0 %2599
    %2603 = vset.pattern.permute.xlu0 0
    %2604 = vperm.xlu0 %2603, %v97
    %v2605 = vpop.permute.xlu0 %2604
    %2608 = vset.pattern.permute.xlu0 0
    %2609 = vperm.xlu0 %2608, %v98
    %v2610 = vpop.permute.xlu0 %2609
    %2613 = vset.pattern.permute.xlu0 0
    %2614 = vperm.xlu0 %2613, %v99
    %v2615 = vpop.permute.xlu0 %2614
    %2618 = vset.pattern.permute.xlu0 0
    %2619 = vperm.xlu0 %2618, %v100
    %v2620 = vpop.permute.xlu0 %2619
    %2623 = vset.pattern.permute.xlu0 0
    %2624 = vperm.xlu0 %2623, %v101
    %v2625 = vpop.permute.xlu0 %2624
    %2628 = vset.pattern.permute.xlu0 0
    %2629 = vperm.xlu0 %2628, %v102
    %v2630 = vpop.permute.xlu0 %2629
    %2633 = vset.pattern.permute.xlu0 0
    %2634 = vperm.xlu0 %2633, %v103
    %v2635 = vpop.permute.xlu0 %2634
    %2638 = vset.pattern.permute.xlu0 0
    %2639 = vperm.xlu0 %2638, %v104
    %v2640 = vpop.permute.xlu0 %2639
    %2643 = vset.pattern.permute.xlu0 0
    %2644 = vperm.xlu0 %2643, %v105
    %v2645 = vpop.permute.xlu0 %2644
    %2648 = vset.pattern.permute.xlu0 0
    %2649 = vperm.xlu0 %2648, %v106
    %v2650 = vpop.permute.xlu0 %2649
    %2653 = vset.pattern.permute.xlu0 0
    %2654 = vperm.xlu0 %2653, %v107
    %v2655 = vpop.permute.xlu0 %2654
    %2658 = vset.pattern.permute.xlu0 0
    %2659 = vperm.xlu0 %2658, %v108
    %v2660 = vpop.permute.xlu0 %2659
    %2663 = vset.pattern.permute.xlu0 0
    %2664 = vperm.xlu0 %2663, %v109
    %v2665 = vpop.permute.xlu0 %2664
    %2668 = vset.pattern.permute.xlu0 0
    %2669 = vperm.xlu0 %2668, %v110
    %v2670 = vpop.permute.xlu0 %2669
    %2673 = vset.pattern.permute.xlu0 0
    %2674 = vperm.xlu0 %2673, %v111
    %v2675 = vpop.permute.xlu0 %2674
    %2678 = vset.pattern.permute.xlu0 0
    %2679 = vperm.xlu0 %2678, %v112
    %v2680 = vpop.permute.xlu0 %2679
    %2683 = vset.pattern.permute.xlu0 0
    %2684 = vperm.xlu0 %2683, %v113
    %v2685 = vpop.permute.xlu0 %2684
    %2688 = vset.pattern.permute.xlu0 0
    %2689 = vperm.xlu0 %2688, %v114
    %v2690 = vpop.permute.xlu0 %2689
    %2693 = vset.pattern.permute.xlu0 0
    %2694 = vperm.xlu0 %2693, %v115
    %v2695 = vpop.permute.xlu0 %2694
    %2698 = vset.pattern.permute.xlu0 0
    %2699 = vperm.xlu0 %2698, %v116
    %v2700 = vpop.permute.xlu0 %2699
    %2703 = vset.pattern.permute.xlu0 0
    %2704 = vperm.xlu0 %2703, %v117
    %v2705 = vpop.permute.xlu0 %2704
    %2708 = vset.pattern.permute.xlu0 0
    %2709 = vperm.xlu0 %2708, %v118
    %v2710 = vpop.permute.xlu0 %2709
    %2713 = vset.pattern.permute.xlu0 0
    %2714 = vperm.xlu0 %2713, %v119
    %v2715 = vpop.permute.xlu0 %2714
    %2718 = vset.pattern.permute.xlu0 0
    %2719 = vperm.xlu0 %2718, %v120
    %v2720 = vpop.permute.xlu0 %2719
    %2723 = vset.pattern.permute.xlu0 0
    %2724 = vperm.xlu0 %2723, %v121
    %v2725 = vpop.permute.xlu0 %2724
    %2728 = vset.pattern.permute.xlu0 0
    %2729 = vperm.xlu0 %2728, %v122
    %v2730 = vpop.permute.xlu0 %2729
    %2733 = vset.pattern.permute.xlu0 0
    %2734 = vperm.xlu0 %2733, %v123
    %v2735 = vpop.permute.xlu0 %2734
    %v2737 = vmul.f32 %v2129, %v2335
    %v2738 = vmul.f32 %v2131, %v2340
    %v2739 = vmul.f32 %v2134, %v2345
    %v2740 = vmul.f32 %v2136, %v2350
    %v2741 = vmul.f32 %v2139, %v2355
    %v2742 = vmul.f32 %v2141, %v2360
    %v2743 = vmul.f32 %v2144, %v2365
    %v2744 = vmul.f32 %v2146, %v2370
    %v2745 = vmul.f32 %v2149, %v2375
    %v2746 = vmul.f32 %v2151, %v2380
    %v2747 = vmul.f32 %v2154, %v2385
    %v2748 = vmul.f32 %v2156, %v2390
    %v2749 = vmul.f32 %v2159, %v2395
    %v2750 = vmul.f32 %v2161, %v2400
    %v2751 = vmul.f32 %v2164, %v2405
    %v2752 = vmul.f32 %v2166, %v2410
    %v2753 = vmul.f32 %v2169, %v2415
    %v2754 = vmul.f32 %v2171, %v2420
    %v2755 = vmul.f32 %v2174, %v2425
    %v2756 = vmul.f32 %v2176, %v2430
    %v2757 = vmul.f32 %v2179, %v2435
    %v2758 = vmul.f32 %v2181, %v2440
    %v2759 = vmul.f32 %v2184, %v2445
    %v2760 = vmul.f32 %v2186, %v2450
    %v2761 = vmul.f32 %v2189, %v2455
    %v2762 = vmul.f32 %v2191, %v2460
    %v2763 = vmul.f32 %v2194, %v2465
    %v2764 = vmul.f32 %v2196, %v2470
    %v2765 = vmul.f32 %v2199, %v2475
    %v2766 = vmul.f32 %v2201, %v2480
    %v2767 = vmul.f32 %v2204, %v2485
    %v2768 = vmul.f32 %v2206, %v2490
    %v2769 = vmul.f32 %v2209, %v2495
    %v2770 = vmul.f32 %v2211, %v2500
    %v2771 = vmul.f32 %v2214, %v2505
    %v2772 = vmul.f32 %v2216, %v2510
    %v2773 = vmul.f32 %v2219, %v2515
    %v2774 = vmul.f32 %v2221, %v2520
    %v2775 = vmul.f32 %v2224, %v2525
    %v2776 = vmul.f32 %v2226, %v2530
    %v2777 = vmul.f32 %v2229, %v2535
    %v2778 = vmul.f32 %v2231, %v2540
    %v2779 = vmul.f32 %v2234, %v2545
    %v2780 = vmul.f32 %v2236, %v2550
    %v2781 = vmul.f32 %v2239, %v2555
    %v2782 = vmul.f32 %v2241, %v2560
    %v2783 = vmul.f32 %v2244, %v2565
    %v2784 = vmul.f32 %v2246, %v2570
    %v2785 = vmul.f32 %v2249, %v2575
    %v2786 = vmul.f32 %v2251, %v2580
    %v2787 = vmul.f32 %v2254, %v2585
    %v2788 = vmul.f32 %v2256, %v2590
    %v2789 = vmul.f32 %v2259, %v2595
    %v2790 = vmul.f32 %v2261, %v2600
    %v2791 = vmul.f32 %v2264, %v2605
    %v2792 = vmul.f32 %v2266, %v2610
    %v2793 = vmul.f32 %v2269, %v2615
    %v2794 = vmul.f32 %v2271, %v2620
    %v2795 = vmul.f32 %v2274, %v2625
    %v2796 = vmul.f32 %v2276, %v2630
    %v2797 = vmul.f32 %v2279, %v2635
    %v2798 = vmul.f32 %v2281, %v2640
    %v2799 = vmul.f32 %v2284, %v2645
    %v2800 = vmul.f32 %v2286, %v2650
    %v2801 = vmul.f32 %v2289, %v2655
    %v2802 = vmul.f32 %v2291, %v2660
    %v2803 = vmul.f32 %v2294, %v2665
    %v2804 = vmul.f32 %v2296, %v2670
    %v2805 = vmul.f32 %v2299, %v2675
    %v2806 = vmul.f32 %v2301, %v2680
    %v2807 = vmul.f32 %v2304, %v2685
    %v2808 = vmul.f32 %v2306, %v2690
    %v2809 = vmul.f32 %v2309, %v2695
    %v2810 = vmul.f32 %v2311, %v2700
    %v2811 = vmul.f32 %v2314, %v2705
    %v2812 = vmul.f32 %v2316, %v2710
    %v2813 = vmul.f32 %v2319, %v2715
    %v2814 = vmul.f32 %v2321, %v2720
    %v2815 = vmul.f32 %v2324, %v2725
    %v2816 = vmul.f32 %v2326, %v2730
    %v2817 = vmul.f32 %v2329, %v2735
    %v2818 = vadd.f32 %v2737, %v2738
    %v2819 = vadd.f32 %v2818, %v2739
    %v2820 = vadd.f32 %v2819, %v2740
    %v2821 = vadd.f32 %v2820, %v2741
    %v2822 = vadd.f32 %v2821, %v2742
    %v2823 = vadd.f32 %v2822, %v2743
    %v2824 = vadd.f32 %v2823, %v2744
    %v2825 = vadd.f32 %v2824, %v2745
    %v2826 = vadd.f32 %v2825, %v2746
    %v2827 = vadd.f32 %v2826, %v2747
    %v2828 = vadd.f32 %v2827, %v2748
    %v2829 = vadd.f32 %v2828, %v2749
    %v2830 = vadd.f32 %v2829, %v2750
    %v2831 = vadd.f32 %v2830, %v2751
    %v2832 = vadd.f32 %v2831, %v2752
    %v2833 = vadd.f32 %v2832, %v2753
    %v2834 = vadd.f32 %v2833, %v2754
    %v2835 = vadd.f32 %v2834, %v2755
    %v2836 = vadd.f32 %v2835, %v2756
    %v2837 = vadd.f32 %v2836, %v2757
    %v2838 = vadd.f32 %v2837, %v2758
    %v2839 = vadd.f32 %v2838, %v2759
    %v2840 = vadd.f32 %v2839, %v2760
    %v2841 = vadd.f32 %v2840, %v2761
    %v2842 = vadd.f32 %v2841, %v2762
    %v2843 = vadd.f32 %v2842, %v2763
    %v2844 = vadd.f32 %v2843, %v2764
    %v2845 = vadd.f32 %v2844, %v2765
    %v2846 = vadd.f32 %v2845, %v2766
    %v2847 = vadd.f32 %v2846, %v2767
    %v2848 = vadd.f32 %v2847, %v2768
    %v2849 = vadd.f32 %v2848, %v2769
    %v2850 = vadd.f32 %v2849, %v2770
    %v2851 = vadd.f32 %v2850, %v2771
    %v2852 = vadd.f32 %v2851, %v2772
    %v2853 = vadd.f32 %v2852, %v2773
    %v2854 = vadd.f32 %v2853, %v2774
    %v2855 = vadd.f32 %v2854, %v2775
    %v2856 = vadd.f32 %v2855, %v2776
    %v2857 = vadd.f32 %v2856, %v2777
    %v2858 = vadd.f32 %v2857, %v2778
    %v2859 = vadd.f32 %v2858, %v2779
    %v2860 = vadd.f32 %v2859, %v2780
    %v2861 = vadd.f32 %v2860, %v2781
    %v2862 = vadd.f32 %v2861, %v2782
    %v2863 = vadd.f32 %v2862, %v2783
    %v2864 = vadd.f32 %v2863, %v2784
    %v2865 = vadd.f32 %v2864, %v2785
    %v2866 = vadd.f32 %v2865, %v2786
    %v2867 = vadd.f32 %v2866, %v2787
    %v2868 = vadd.f32 %v2867, %v2788
    %v2869 = vadd.f32 %v2868, %v2789
    %v2870 = vadd.f32 %v2869, %v2790
    %v2871 = vadd.f32 %v2870, %v2791
    %v2872 = vadd.f32 %v2871, %v2792
    %v2873 = vadd.f32 %v2872, %v2793
    %v2874 = vadd.f32 %v2873, %v2794
    %v2875 = vadd.f32 %v2874, %v2795
    %v2876 = vadd.f32 %v2875, %v2796
    %v2877 = vadd.f32 %v2876, %v2797
    %v2878 = vadd.f32 %v2877, %v2798
    %v2879 = vadd.f32 %v2878, %v2799
    %v2880 = vadd.f32 %v2879, %v2800
    %v2881 = vadd.f32 %v2880, %v2801
    %v2882 = vadd.f32 %v2881, %v2802
    %v2883 = vadd.f32 %v2882, %v2803
    %v2884 = vadd.f32 %v2883, %v2804
    %v2885 = vadd.f32 %v2884, %v2805
    %v2886 = vadd.f32 %v2885, %v2806
    %v2887 = vadd.f32 %v2886, %v2807
    %v2888 = vadd.f32 %v2887, %v2808
    %v2889 = vadd.f32 %v2888, %v2809
    %v2890 = vadd.f32 %v2889, %v2810
    %v2891 = vadd.f32 %v2890, %v2811
    %v2892 = vadd.f32 %v2891, %v2812
    %v2893 = vadd.f32 %v2892, %v2813
    %v2894 = vadd.f32 %v2893, %v2814
    %v2895 = vadd.f32 %v2894, %v2815
    %v2896 = vadd.f32 %v2895, %v2816
    %v2897 = vadd.f32 %v2896, %v2817
    %v2898 = vrot.slane %v2897, 4
    %v2899 = vadd.f32 %v2897, %v2898
    %v2900 = vrot.slane %v2899, 2
    %v2901 = vadd.f32 %v2899, %v2900
    %v2902 = vrot.slane %v2901, 1
    %v2903 = vadd.f32 %v2901, %v2902
    %v2904 = vmul.f32 %v2129, %v2129
    %v2905 = vmul.f32 %v2131, %v2131
    %v2906 = vmul.f32 %v2134, %v2134
    %v2907 = vmul.f32 %v2136, %v2136
    %v2908 = vmul.f32 %v2139, %v2139
    %v2909 = vmul.f32 %v2141, %v2141
    %v2910 = vmul.f32 %v2144, %v2144
    %v2911 = vmul.f32 %v2146, %v2146
    %v2912 = vmul.f32 %v2149, %v2149
    %v2913 = vmul.f32 %v2151, %v2151
    %v2914 = vmul.f32 %v2154, %v2154
    %v2915 = vmul.f32 %v2156, %v2156
    %v2916 = vmul.f32 %v2159, %v2159
    %v2917 = vmul.f32 %v2161, %v2161
    %v2918 = vmul.f32 %v2164, %v2164
    %v2919 = vmul.f32 %v2166, %v2166
    %v2920 = vmul.f32 %v2169, %v2169
    %v2921 = vmul.f32 %v2171, %v2171
    %v2922 = vmul.f32 %v2174, %v2174
    %v2923 = vmul.f32 %v2176, %v2176
    %v2924 = vmul.f32 %v2179, %v2179
    %v2925 = vmul.f32 %v2181, %v2181
    %v2926 = vmul.f32 %v2184, %v2184
    %v2927 = vmul.f32 %v2186, %v2186
    %v2928 = vmul.f32 %v2189, %v2189
    %v2929 = vmul.f32 %v2191, %v2191
    %v2930 = vmul.f32 %v2194, %v2194
    %v2931 = vmul.f32 %v2196, %v2196
    %v2932 = vmul.f32 %v2199, %v2199
    %v2933 = vmul.f32 %v2201, %v2201
    %v2934 = vmul.f32 %v2204, %v2204
    %v2935 = vmul.f32 %v2206, %v2206
    %v2936 = vmul.f32 %v2209, %v2209
    %v2937 = vmul.f32 %v2211, %v2211
    %v2938 = vmul.f32 %v2214, %v2214
    %v2939 = vmul.f32 %v2216, %v2216
    %v2940 = vmul.f32 %v2219, %v2219
    %v2941 = vmul.f32 %v2221, %v2221
    %v2942 = vmul.f32 %v2224, %v2224
    %v2943 = vmul.f32 %v2226, %v2226
    %v2944 = vmul.f32 %v2229, %v2229
    %v2945 = vmul.f32 %v2231, %v2231
    %v2946 = vmul.f32 %v2234, %v2234
    %v2947 = vmul.f32 %v2236, %v2236
    %v2948 = vmul.f32 %v2239, %v2239
    %v2949 = vmul.f32 %v2241, %v2241
    %v2950 = vmul.f32 %v2244, %v2244
    %v2951 = vmul.f32 %v2246, %v2246
    %v2952 = vmul.f32 %v2249, %v2249
    %v2953 = vmul.f32 %v2251, %v2251
    %v2954 = vmul.f32 %v2254, %v2254
    %v2955 = vmul.f32 %v2256, %v2256
    %v2956 = vmul.f32 %v2259, %v2259
    %v2957 = vmul.f32 %v2261, %v2261
    %v2958 = vmul.f32 %v2264, %v2264
    %v2959 = vmul.f32 %v2266, %v2266
    %v2960 = vmul.f32 %v2269, %v2269
    %v2961 = vmul.f32 %v2271, %v2271
    %v2962 = vmul.f32 %v2274, %v2274
    %v2963 = vmul.f32 %v2276, %v2276
    %v2964 = vmul.f32 %v2279, %v2279
    %v2965 = vmul.f32 %v2281, %v2281
    %v2966 = vmul.f32 %v2284, %v2284
    %v2967 = vmul.f32 %v2286, %v2286
    %v2968 = vmul.f32 %v2289, %v2289
    %v2969 = vmul.f32 %v2291, %v2291
    %v2970 = vmul.f32 %v2294, %v2294
    %v2971 = vmul.f32 %v2296, %v2296
    %v2972 = vmul.f32 %v2299, %v2299
    %v2973 = vmul.f32 %v2301, %v2301
    %v2974 = vmul.f32 %v2304, %v2304
    %v2975 = vmul.f32 %v2306, %v2306
    %v2976 = vmul.f32 %v2309, %v2309
    %v2977 = vmul.f32 %v2311, %v2311
    %v2978 = vmul.f32 %v2314, %v2314
    %v2979 = vmul.f32 %v2316, %v2316
    %v2980 = vmul.f32 %v2319, %v2319
    %v2981 = vmul.f32 %v2321, %v2321
    %v2982 = vmul.f32 %v2324, %v2324
    %v2983 = vmul.f32 %v2326, %v2326
    %v2984 = vmul.f32 %v2329, %v2329
    %v2985 = vmul.f32 %v2904, %v2335
    %v2986 = vmul.f32 %v2905, %v2340
    %v2987 = vmul.f32 %v2906, %v2345
    %v2988 = vmul.f32 %v2907, %v2350
    %v2989 = vmul.f32 %v2908, %v2355
    %v2990 = vmul.f32 %v2909, %v2360
    %v2991 = vmul.f32 %v2910, %v2365
    %v2992 = vmul.f32 %v2911, %v2370
    %v2993 = vmul.f32 %v2912, %v2375
    %v2994 = vmul.f32 %v2913, %v2380
    %v2995 = vmul.f32 %v2914, %v2385
    %v2996 = vmul.f32 %v2915, %v2390
    %v2997 = vmul.f32 %v2916, %v2395
    %v2998 = vmul.f32 %v2917, %v2400
    %v2999 = vmul.f32 %v2918, %v2405
    %v3000 = vmul.f32 %v2919, %v2410
    %v3001 = vmul.f32 %v2920, %v2415
    %v3002 = vmul.f32 %v2921, %v2420
    %v3003 = vmul.f32 %v2922, %v2425
    %v3004 = vmul.f32 %v2923, %v2430
    %v3005 = vmul.f32 %v2924, %v2435
    %v3006 = vmul.f32 %v2925, %v2440
    %v3007 = vmul.f32 %v2926, %v2445
    %v3008 = vmul.f32 %v2927, %v2450
    %v3009 = vmul.f32 %v2928, %v2455
    %v3010 = vmul.f32 %v2929, %v2460
    %v3011 = vmul.f32 %v2930, %v2465
    %v3012 = vmul.f32 %v2931, %v2470
    %v3013 = vmul.f32 %v2932, %v2475
    %v3014 = vmul.f32 %v2933, %v2480
    %v3015 = vmul.f32 %v2934, %v2485
    %v3016 = vmul.f32 %v2935, %v2490
    %v3017 = vmul.f32 %v2936, %v2495
    %v3018 = vmul.f32 %v2937, %v2500
    %v3019 = vmul.f32 %v2938, %v2505
    %v3020 = vmul.f32 %v2939, %v2510
    %v3021 = vmul.f32 %v2940, %v2515
    %v3022 = vmul.f32 %v2941, %v2520
    %v3023 = vmul.f32 %v2942, %v2525
    %v3024 = vmul.f32 %v2943, %v2530
    %v3025 = vmul.f32 %v2944, %v2535
    %v3026 = vmul.f32 %v2945, %v2540
    %v3027 = vmul.f32 %v2946, %v2545
    %v3028 = vmul.f32 %v2947, %v2550
    %v3029 = vmul.f32 %v2948, %v2555
    %v3030 = vmul.f32 %v2949, %v2560
    %v3031 = vmul.f32 %v2950, %v2565
    %v3032 = vmul.f32 %v2951, %v2570
    %v3033 = vmul.f32 %v2952, %v2575
    %v3034 = vmul.f32 %v2953, %v2580
    %v3035 = vmul.f32 %v2954, %v2585
    %v3036 = vmul.f32 %v2955, %v2590
    %v3037 = vmul.f32 %v2956, %v2595
    %v3038 = vmul.f32 %v2957, %v2600
    %v3039 = vmul.f32 %v2958, %v2605
    %v3040 = vmul.f32 %v2959, %v2610
    %v3041 = vmul.f32 %v2960, %v2615
    %v3042 = vmul.f32 %v2961, %v2620
    %v3043 = vmul.f32 %v2962, %v2625
    %v3044 = vmul.f32 %v2963, %v2630
    %v3045 = vmul.f32 %v2964, %v2635
    %v3046 = vmul.f32 %v2965, %v2640
    %v3047 = vmul.f32 %v2966, %v2645
    %v3048 = vmul.f32 %v2967, %v2650
    %v3049 = vmul.f32 %v2968, %v2655
    %v3050 = vmul.f32 %v2969, %v2660
    %v3051 = vmul.f32 %v2970, %v2665
    %v3052 = vmul.f32 %v2971, %v2670
    %v3053 = vmul.f32 %v2972, %v2675
    %v3054 = vmul.f32 %v2973, %v2680
    %v3055 = vmul.f32 %v2974, %v2685
    %v3056 = vmul.f32 %v2975, %v2690
    %v3057 = vmul.f32 %v2976, %v2695
    %v3058 = vmul.f32 %v2977, %v2700
    %v3059 = vmul.f32 %v2978, %v2705
    %v3060 = vmul.f32 %v2979, %v2710
    %v3061 = vmul.f32 %v2980, %v2715
    %v3062 = vmul.f32 %v2981, %v2720
    %v3063 = vmul.f32 %v2982, %v2725
    %v3064 = vmul.f32 %v2983, %v2730
    %v3065 = vmul.f32 %v2984, %v2735
    %v3066 = vadd.f32 %v2985, %v2986
    %v3067 = vadd.f32 %v3066, %v2987
    %v3068 = vadd.f32 %v3067, %v2988
    %v3069 = vadd.f32 %v3068, %v2989
    %v3070 = vadd.f32 %v3069, %v2990
    %v3071 = vadd.f32 %v3070, %v2991
    %v3072 = vadd.f32 %v3071, %v2992
    %v3073 = vadd.f32 %v3072, %v2993
    %v3074 = vadd.f32 %v3073, %v2994
    %v3075 = vadd.f32 %v3074, %v2995
    %v3076 = vadd.f32 %v3075, %v2996
    %v3077 = vadd.f32 %v3076, %v2997
    %v3078 = vadd.f32 %v3077, %v2998
    %v3079 = vadd.f32 %v3078, %v2999
    %v3080 = vadd.f32 %v3079, %v3000
    %v3081 = vadd.f32 %v3080, %v3001
    %v3082 = vadd.f32 %v3081, %v3002
    %v3083 = vadd.f32 %v3082, %v3003
    %v3084 = vadd.f32 %v3083, %v3004
    %v3085 = vadd.f32 %v3084, %v3005
    %v3086 = vadd.f32 %v3085, %v3006
    %v3087 = vadd.f32 %v3086, %v3007
    %v3088 = vadd.f32 %v3087, %v3008
    %v3089 = vadd.f32 %v3088, %v3009
    %v3090 = vadd.f32 %v3089, %v3010
    %v3091 = vadd.f32 %v3090, %v3011
    %v3092 = vadd.f32 %v3091, %v3012
    %v3093 = vadd.f32 %v3092, %v3013
    %v3094 = vadd.f32 %v3093, %v3014
    %v3095 = vadd.f32 %v3094, %v3015
    %v3096 = vadd.f32 %v3095, %v3016
    %v3097 = vadd.f32 %v3096, %v3017
    %v3098 = vadd.f32 %v3097, %v3018
    %v3099 = vadd.f32 %v3098, %v3019
    %v3100 = vadd.f32 %v3099, %v3020
    %v3101 = vadd.f32 %v3100, %v3021
    %v3102 = vadd.f32 %v3101, %v3022
    %v3103 = vadd.f32 %v3102, %v3023
    %v3104 = vadd.f32 %v3103, %v3024
    %v3105 = vadd.f32 %v3104, %v3025
    %v3106 = vadd.f32 %v3105, %v3026
    %v3107 = vadd.f32 %v3106, %v3027
    %v3108 = vadd.f32 %v3107, %v3028
    %v3109 = vadd.f32 %v3108, %v3029
    %v3110 = vadd.f32 %v3109, %v3030
    %v3111 = vadd.f32 %v3110, %v3031
    %v3112 = vadd.f32 %v3111, %v3032
    %v3113 = vadd.f32 %v3112, %v3033
    %v3114 = vadd.f32 %v3113, %v3034
    %v3115 = vadd.f32 %v3114, %v3035
    %v3116 = vadd.f32 %v3115, %v3036
    %v3117 = vadd.f32 %v3116, %v3037
    %v3118 = vadd.f32 %v3117, %v3038
    %v3119 = vadd.f32 %v3118, %v3039
    %v3120 = vadd.f32 %v3119, %v3040
    %v3121 = vadd.f32 %v3120, %v3041
    %v3122 = vadd.f32 %v3121, %v3042
    %v3123 = vadd.f32 %v3122, %v3043
    %v3124 = vadd.f32 %v3123, %v3044
    %v3125 = vadd.f32 %v3124, %v3045
    %v3126 = vadd.f32 %v3125, %v3046
    %v3127 = vadd.f32 %v3126, %v3047
    %v3128 = vadd.f32 %v3127, %v3048
    %v3129 = vadd.f32 %v3128, %v3049
    %v3130 = vadd.f32 %v3129, %v3050
    %v3131 = vadd.f32 %v3130, %v3051
    %v3132 = vadd.f32 %v3131, %v3052
    %v3133 = vadd.f32 %v3132, %v3053
    %v3134 = vadd.f32 %v3133, %v3054
    %v3135 = vadd.f32 %v3134, %v3055
    %v3136 = vadd.f32 %v3135, %v3056
    %v3137 = vadd.f32 %v3136, %v3057
    %v3138 = vadd.f32 %v3137, %v3058
    %v3139 = vadd.f32 %v3138, %v3059
    %v3140 = vadd.f32 %v3139, %v3060
    %v3141 = vadd.f32 %v3140, %v3061
    %v3142 = vadd.f32 %v3141, %v3062
    %v3143 = vadd.f32 %v3142, %v3063
    %v3144 = vadd.f32 %v3143, %v3064
    %v3145 = vadd.f32 %v3144, %v3065
    %v3146 = vrot.slane %v3145, 4
    %v3147 = vadd.f32 %v3145, %v3146
    %v3148 = vrot.slane %v3147, 2
    %v3149 = vadd.f32 %v3147, %v3148
    %v3150 = vrot.slane %v3149, 1
    %v3151 = vadd.f32 %v3149, %v3150
    %v3152 = vmul.f32 %v2903, 0.001953125
    %v3153 = vmul.f32 %v3151, 0.001953125
    %v3154 = vmul.f32 %v3152, %v3152
    %v3155 = vsub.f32 %v3153, %v3154
    %v3156 = vld [vmem:[%s6] sm:$0x1]
    %v3157 = vadd.f32 %v3155, 1e-05
    %v3158 = vrsqrt.pop %v3157
    %v3159 = vmul.f32 %v3158, %v3157
    %v3160 = vmul.f32 %v3159, %v3158
    %v3161 = vmul.f32 0.5, %v3160
    %v3162 = vsub.f32 1.5, %v3161
    %v3163 = vmul.f32 %v3158, %v3162
    %vm3164 = vweird.f32 %v3157
    %vm3165 = vweird.f32 %v3158
    %vm3166 = vmor %vm3164, %vm3165
    %v3167 = vsel %vm3166, %v3158, %v3163
    %v3168 = vmul.f32 %v3156, %v3167
    %v3169 = vld [vmem:[%s7] sm:$0x1]
    %v3170 = vmul.f32 %v3152, %v3168
    %v3171 = vsub.f32 %v3169, %v3170
    %v3173 = vperm.slane %v3168, 0
    %v3175 = vmul.f32 %v2129, %v3173
    %v3176 = vmul.f32 %v2131, %v3173
    %v3177 = vmul.f32 %v2134, %v3173
    %v3178 = vmul.f32 %v2136, %v3173
    %v3179 = vmul.f32 %v2139, %v3173
    %v3180 = vmul.f32 %v2141, %v3173
    %v3181 = vmul.f32 %v2144, %v3173
    %v3182 = vmul.f32 %v2146, %v3173
    %v3183 = vmul.f32 %v2149, %v3173
    %v3184 = vmul.f32 %v2151, %v3173
    %v3185 = vmul.f32 %v2154, %v3173
    %v3186 = vmul.f32 %v2156, %v3173
    %v3187 = vmul.f32 %v2159, %v3173
    %v3188 = vmul.f32 %v2161, %v3173
    %v3189 = vmul.f32 %v2164, %v3173
    %v3190 = vmul.f32 %v2166, %v3173
    %v3191 = vmul.f32 %v2169, %v3173
    %v3192 = vmul.f32 %v2171, %v3173
    %v3193 = vmul.f32 %v2174, %v3173
    %v3194 = vmul.f32 %v2176, %v3173
    %v3195 = vmul.f32 %v2179, %v3173
    %v3196 = vmul.f32 %v2181, %v3173
    %v3197 = vmul.f32 %v2184, %v3173
    %v3198 = vmul.f32 %v2186, %v3173
    %v3199 = vmul.f32 %v2189, %v3173
    %v3200 = vmul.f32 %v2191, %v3173
    %v3201 = vmul.f32 %v2194, %v3173
    %v3202 = vmul.f32 %v2196, %v3173
    %v3203 = vmul.f32 %v2199, %v3173
    %v3204 = vmul.f32 %v2201, %v3173
    %v3205 = vmul.f32 %v2204, %v3173
    %v3206 = vmul.f32 %v2206, %v3173
    %v3207 = vmul.f32 %v2209, %v3173
    %v3208 = vmul.f32 %v2211, %v3173
    %v3209 = vmul.f32 %v2214, %v3173
    %v3210 = vmul.f32 %v2216, %v3173
    %v3211 = vmul.f32 %v2219, %v3173
    %v3212 = vmul.f32 %v2221, %v3173
    %v3213 = vmul.f32 %v2224, %v3173
    %v3214 = vmul.f32 %v2226, %v3173
    %v3215 = vmul.f32 %v2229, %v3173
    %v3216 = vmul.f32 %v2231, %v3173
    %v3217 = vmul.f32 %v2234, %v3173
    %v3218 = vmul.f32 %v2236, %v3173
    %v3219 = vmul.f32 %v2239, %v3173
    %v3220 = vmul.f32 %v2241, %v3173
    %v3221 = vmul.f32 %v2244, %v3173
    %v3222 = vmul.f32 %v2246, %v3173
    %v3223 = vmul.f32 %v2249, %v3173
    %v3224 = vmul.f32 %v2251, %v3173
    %v3225 = vmul.f32 %v2254, %v3173
    %v3226 = vmul.f32 %v2256, %v3173
    %v3227 = vmul.f32 %v2259, %v3173
    %v3228 = vmul.f32 %v2261, %v3173
    %v3229 = vmul.f32 %v2264, %v3173
    %v3230 = vmul.f32 %v2266, %v3173
    %v3231 = vmul.f32 %v2269, %v3173
    %v3232 = vmul.f32 %v2271, %v3173
    %v3233 = vmul.f32 %v2274, %v3173
    %v3234 = vmul.f32 %v2276, %v3173
    %v3235 = vmul.f32 %v2279, %v3173
    %v3236 = vmul.f32 %v2281, %v3173
    %v3237 = vmul.f32 %v2284, %v3173
    %v3238 = vmul.f32 %v2286, %v3173
    %v3239 = vmul.f32 %v2289, %v3173
    %v3240 = vmul.f32 %v2291, %v3173
    %v3241 = vmul.f32 %v2294, %v3173
    %v3242 = vmul.f32 %v2296, %v3173
    %v3243 = vmul.f32 %v2299, %v3173
    %v3244 = vmul.f32 %v2301, %v3173
    %v3245 = vmul.f32 %v2304, %v3173
    %v3246 = vmul.f32 %v2306, %v3173
    %v3247 = vmul.f32 %v2309, %v3173
    %v3248 = vmul.f32 %v2311, %v3173
    %v3249 = vmul.f32 %v2314, %v3173
    %v3250 = vmul.f32 %v2316, %v3173
    %v3251 = vmul.f32 %v2319, %v3173
    %v3252 = vmul.f32 %v2321, %v3173
    %v3253 = vmul.f32 %v2324, %v3173
    %v3254 = vmul.f32 %v2326, %v3173
    %v3255 = vmul.f32 %v2329, %v3173
    %v3257 = vperm.slane %v3171, 0
    %v3259 = vadd.f32 %v3175, %v3257
    %v3260 = vadd.f32 %v3176, %v3257
    %v3261 = vadd.f32 %v3177, %v3257
    %v3262 = vadd.f32 %v3178, %v3257
    %v3263 = vadd.f32 %v3179, %v3257
    %v3264 = vadd.f32 %v3180, %v3257
    %v3265 = vadd.f32 %v3181, %v3257
    %v3266 = vadd.f32 %v3182, %v3257
    %v3267 = vadd.f32 %v3183, %v3257
    %v3268 = vadd.f32 %v3184, %v3257
    %v3269 = vadd.f32 %v3185, %v3257
    %v3270 = vadd.f32 %v3186, %v3257
    %v3271 = vadd.f32 %v3187, %v3257
    %v3272 = vadd.f32 %v3188, %v3257
    %v3273 = vadd.f32 %v3189, %v3257
    %v3274 = vadd.f32 %v3190, %v3257
    %v3275 = vadd.f32 %v3191, %v3257
    %v3276 = vadd.f32 %v3192, %v3257
    %v3277 = vadd.f32 %v3193, %v3257
    %v3278 = vadd.f32 %v3194, %v3257
    %v3279 = vadd.f32 %v3195, %v3257
    %v3280 = vadd.f32 %v3196, %v3257
    %v3281 = vadd.f32 %v3197, %v3257
    %v3282 = vadd.f32 %v3198, %v3257
    %v3283 = vadd.f32 %v3199, %v3257
    %v3284 = vadd.f32 %v3200, %v3257
    %v3285 = vadd.f32 %v3201, %v3257
    %v3286 = vadd.f32 %v3202, %v3257
    %v3287 = vadd.f32 %v3203, %v3257
    %v3288 = vadd.f32 %v3204, %v3257
    %v3289 = vadd.f32 %v3205, %v3257
    %v3290 = vadd.f32 %v3206, %v3257
    %v3291 = vadd.f32 %v3207, %v3257
    %v3292 = vadd.f32 %v3208, %v3257
    %v3293 = vadd.f32 %v3209, %v3257
    %v3294 = vadd.f32 %v3210, %v3257
    %v3295 = vadd.f32 %v3211, %v3257
    %v3296 = vadd.f32 %v3212, %v3257
    %v3297 = vadd.f32 %v3213, %v3257
    %v3298 = vadd.f32 %v3214, %v3257
    %v3299 = vadd.f32 %v3215, %v3257
    %v3300 = vadd.f32 %v3216, %v3257
    %v3301 = vadd.f32 %v3217, %v3257
    %v3302 = vadd.f32 %v3218, %v3257
    %v3303 = vadd.f32 %v3219, %v3257
    %v3304 = vadd.f32 %v3220, %v3257
    %v3305 = vadd.f32 %v3221, %v3257
    %v3306 = vadd.f32 %v3222, %v3257
    %v3307 = vadd.f32 %v3223, %v3257
    %v3308 = vadd.f32 %v3224, %v3257
    %v3309 = vadd.f32 %v3225, %v3257
    %v3310 = vadd.f32 %v3226, %v3257
    %v3311 = vadd.f32 %v3227, %v3257
    %v3312 = vadd.f32 %v3228, %v3257
    %v3313 = vadd.f32 %v3229, %v3257
    %v3314 = vadd.f32 %v3230, %v3257
    %v3315 = vadd.f32 %v3231, %v3257
    %v3316 = vadd.f32 %v3232, %v3257
    %v3317 = vadd.f32 %v3233, %v3257
    %v3318 = vadd.f32 %v3234, %v3257
    %v3319 = vadd.f32 %v3235, %v3257
    %v3320 = vadd.f32 %v3236, %v3257
    %v3321 = vadd.f32 %v3237, %v3257
    %v3322 = vadd.f32 %v3238, %v3257
    %v3323 = vadd.f32 %v3239, %v3257
    %v3324 = vadd.f32 %v3240, %v3257
    %v3325 = vadd.f32 %v3241, %v3257
    %v3326 = vadd.f32 %v3242, %v3257
    %v3327 = vadd.f32 %v3243, %v3257
    %v3328 = vadd.f32 %v3244, %v3257
    %v3329 = vadd.f32 %v3245, %v3257
    %v3330 = vadd.f32 %v3246, %v3257
    %v3331 = vadd.f32 %v3247, %v3257
    %v3332 = vadd.f32 %v3248, %v3257
    %v3333 = vadd.f32 %v3249, %v3257
    %v3334 = vadd.f32 %v3250, %v3257
    %v3335 = vadd.f32 %v3251, %v3257
    %v3336 = vadd.f32 %v3252, %v3257
    %v3337 = vadd.f32 %v3253, %v3257
    %v3338 = vadd.f32 %v3254, %v3257
    %v3339 = vadd.f32 %v3255, %v3257
    %v3340 = vmax.f32 %v3259, 0.0
    %v3341 = vmax.f32 %v3260, 0.0
    %v3342 = vmax.f32 %v3261, 0.0
    %v3343 = vmax.f32 %v3262, 0.0
    %v3344 = vmax.f32 %v3263, 0.0
    %v3345 = vmax.f32 %v3264, 0.0
    %v3346 = vmax.f32 %v3265, 0.0
    %v3347 = vmax.f32 %v3266, 0.0
    %v3348 = vmax.f32 %v3267, 0.0
    %v3349 = vmax.f32 %v3268, 0.0
    %v3350 = vmax.f32 %v3269, 0.0
    %v3351 = vmax.f32 %v3270, 0.0
    %v3352 = vmax.f32 %v3271, 0.0
    %v3353 = vmax.f32 %v3272, 0.0
    %v3354 = vmax.f32 %v3273, 0.0
    %v3355 = vmax.f32 %v3274, 0.0
    %v3356 = vmax.f32 %v3275, 0.0
    %v3357 = vmax.f32 %v3276, 0.0
    %v3358 = vmax.f32 %v3277, 0.0
    %v3359 = vmax.f32 %v3278, 0.0
    %v3360 = vmax.f32 %v3279, 0.0
    %v3361 = vmax.f32 %v3280, 0.0
    %v3362 = vmax.f32 %v3281, 0.0
    %v3363 = vmax.f32 %v3282, 0.0
    %v3364 = vmax.f32 %v3283, 0.0
    %v3365 = vmax.f32 %v3284, 0.0
    %v3366 = vmax.f32 %v3285, 0.0
    %v3367 = vmax.f32 %v3286, 0.0
    %v3368 = vmax.f32 %v3287, 0.0
    %v3369 = vmax.f32 %v3288, 0.0
    %v3370 = vmax.f32 %v3289, 0.0
    %v3371 = vmax.f32 %v3290, 0.0
    %v3372 = vmax.f32 %v3291, 0.0
    %v3373 = vmax.f32 %v3292, 0.0
    %v3374 = vmax.f32 %v3293, 0.0
    %v3375 = vmax.f32 %v3294, 0.0
    %v3376 = vmax.f32 %v3295, 0.0
    %v3377 = vmax.f32 %v3296, 0.0
    %v3378 = vmax.f32 %v3297, 0.0
    %v3379 = vmax.f32 %v3298, 0.0
    %v3380 = vmax.f32 %v3299, 0.0
    %v3381 = vmax.f32 %v3300, 0.0
    %v3382 = vmax.f32 %v3301, 0.0
    %v3383 = vmax.f32 %v3302, 0.0
    %v3384 = vmax.f32 %v3303, 0.0
    %v3385 = vmax.f32 %v3304, 0.0
    %v3386 = vmax.f32 %v3305, 0.0
    %v3387 = vmax.f32 %v3306, 0.0
    %v3388 = vmax.f32 %v3307, 0.0
    %v3389 = vmax.f32 %v3308, 0.0
    %v3390 = vmax.f32 %v3309, 0.0
    %v3391 = vmax.f32 %v3310, 0.0
    %v3392 = vmax.f32 %v3311, 0.0
    %v3393 = vmax.f32 %v3312, 0.0
    %v3394 = vmax.f32 %v3313, 0.0
    %v3395 = vmax.f32 %v3314, 0.0
    %v3396 = vmax.f32 %v3315, 0.0
    %v3397 = vmax.f32 %v3316, 0.0
    %v3398 = vmax.f32 %v3317, 0.0
    %v3399 = vmax.f32 %v3318, 0.0
    %v3400 = vmax.f32 %v3319, 0.0
    %v3401 = vmax.f32 %v3320, 0.0
    %v3402 = vmax.f32 %v3321, 0.0
    %v3403 = vmax.f32 %v3322, 0.0
    %v3404 = vmax.f32 %v3323, 0.0
    %v3405 = vmax.f32 %v3324, 0.0
    %v3406 = vmax.f32 %v3325, 0.0
    %v3407 = vmax.f32 %v3326, 0.0
    %v3408 = vmax.f32 %v3327, 0.0
    %v3409 = vmax.f32 %v3328, 0.0
    %v3410 = vmax.f32 %v3329, 0.0
    %v3411 = vmax.f32 %v3330, 0.0
    %v3412 = vmax.f32 %v3331, 0.0
    %v3413 = vmax.f32 %v3332, 0.0
    %v3414 = vmax.f32 %v3333, 0.0
    %v3415 = vmax.f32 %v3334, 0.0
    %v3416 = vmax.f32 %v3335, 0.0
    %v3417 = vmax.f32 %v3336, 0.0
    %v3418 = vmax.f32 %v3337, 0.0
    %v3419 = vmax.f32 %v3338, 0.0
    %v3420 = vmax.f32 %v3339, 0.0
    %v3421 = vmul.f32 %v3340, %v2335
    %v3422 = vmul.f32 %v3341, %v2340
    %v3423 = vmul.f32 %v3342, %v2345
    %v3424 = vmul.f32 %v3343, %v2350
    %v3425 = vmul.f32 %v3344, %v2355
    %v3426 = vmul.f32 %v3345, %v2360
    %v3427 = vmul.f32 %v3346, %v2365
    %v3428 = vmul.f32 %v3347, %v2370
    %v3429 = vmul.f32 %v3348, %v2375
    %v3430 = vmul.f32 %v3349, %v2380
    %v3431 = vmul.f32 %v3350, %v2385
    %v3432 = vmul.f32 %v3351, %v2390
    %v3433 = vmul.f32 %v3352, %v2395
    %v3434 = vmul.f32 %v3353, %v2400
    %v3435 = vmul.f32 %v3354, %v2405
    %v3436 = vmul.f32 %v3355, %v2410
    %v3437 = vmul.f32 %v3356, %v2415
    %v3438 = vmul.f32 %v3357, %v2420
    %v3439 = vmul.f32 %v3358, %v2425
    %v3440 = vmul.f32 %v3359, %v2430
    %v3441 = vmul.f32 %v3360, %v2435
    %v3442 = vmul.f32 %v3361, %v2440
    %v3443 = vmul.f32 %v3362, %v2445
    %v3444 = vmul.f32 %v3363, %v2450
    %v3445 = vmul.f32 %v3364, %v2455
    %v3446 = vmul.f32 %v3365, %v2460
    %v3447 = vmul.f32 %v3366, %v2465
    %v3448 = vmul.f32 %v3367, %v2470
    %v3449 = vmul.f32 %v3368, %v2475
    %v3450 = vmul.f32 %v3369, %v2480
    %v3451 = vmul.f32 %v3370, %v2485
    %v3452 = vmul.f32 %v3371, %v2490
    %v3453 = vmul.f32 %v3372, %v2495
    %v3454 = vmul.f32 %v3373, %v2500
    %v3455 = vmul.f32 %v3374, %v2505
    %v3456 = vmul.f32 %v3375, %v2510
    %v3457 = vmul.f32 %v3376, %v2515
    %v3458 = vmul.f32 %v3377, %v2520
    %v3459 = vmul.f32 %v3378, %v2525
    %v3460 = vmul.f32 %v3379, %v2530
    %v3461 = vmul.f32 %v3380, %v2535
    %v3462 = vmul.f32 %v3381, %v2540
    %v3463 = vmul.f32 %v3382, %v2545
    %v3464 = vmul.f32 %v3383, %v2550
    %v3465 = vmul.f32 %v3384, %v2555
    %v3466 = vmul.f32 %v3385, %v2560
    %v3467 = vmul.f32 %v3386, %v2565
    %v3468 = vmul.f32 %v3387, %v2570
    %v3469 = vmul.f32 %v3388, %v2575
    %v3470 = vmul.f32 %v3389, %v2580
    %v3471 = vmul.f32 %v3390, %v2585
    %v3472 = vmul.f32 %v3391, %v2590
    %v3473 = vmul.f32 %v3392, %v2595
    %v3474 = vmul.f32 %v3393, %v2600
    %v3475 = vmul.f32 %v3394, %v2605
    %v3476 = vmul.f32 %v3395, %v2610
    %v3477 = vmul.f32 %v3396, %v2615
    %v3478 = vmul.f32 %v3397, %v2620
    %v3479 = vmul.f32 %v3398, %v2625
    %v3480 = vmul.f32 %v3399, %v2630
    %v3481 = vmul.f32 %v3400, %v2635
    %v3482 = vmul.f32 %v3401, %v2640
    %v3483 = vmul.f32 %v3402, %v2645
    %v3484 = vmul.f32 %v3403, %v2650
    %v3485 = vmul.f32 %v3404, %v2655
    %v3486 = vmul.f32 %v3405, %v2660
    %v3487 = vmul.f32 %v3406, %v2665
    %v3488 = vmul.f32 %v3407, %v2670
    %v3489 = vmul.f32 %v3408, %v2675
    %v3490 = vmul.f32 %v3409, %v2680
    %v3491 = vmul.f32 %v3410, %v2685
    %v3492 = vmul.f32 %v3411, %v2690
    %v3493 = vmul.f32 %v3412, %v2695
    %v3494 = vmul.f32 %v3413, %v2700
    %v3495 = vmul.f32 %v3414, %v2705
    %v3496 = vmul.f32 %v3415, %v2710
    %v3497 = vmul.f32 %v3416, %v2715
    %v3498 = vmul.f32 %v3417, %v2720
    %v3499 = vmul.f32 %v3418, %v2725
    %v3500 = vmul.f32 %v3419, %v2730
    %v3501 = vmul.f32 %v3420, %v2735
    %v3502 = vpack.c.bf16 %v3421, %v3421
    %v3503 = vpack.c.bf16 %v3422, %v3422
    %v3504 = vpack.c.bf16 %v3423, %v3423
    %v3505 = vpack.c.bf16 %v3424, %v3424
    %v3506 = vpack.c.bf16 %v3425, %v3425
    %v3507 = vpack.c.bf16 %v3426, %v3426
    %v3508 = vpack.c.bf16 %v3427, %v3427
    %v3509 = vpack.c.bf16 %v3428, %v3428
    %v3510 = vpack.c.bf16 %v3429, %v3429
    %v3511 = vpack.c.bf16 %v3430, %v3430
    %v3512 = vpack.c.bf16 %v3431, %v3431
    %v3513 = vpack.c.bf16 %v3432, %v3432
    %v3514 = vpack.c.bf16 %v3433, %v3433
    %v3515 = vpack.c.bf16 %v3434, %v3434
    %v3516 = vpack.c.bf16 %v3435, %v3435
    %v3517 = vpack.c.bf16 %v3436, %v3436
    %v3518 = vpack.c.bf16 %v3437, %v3437
    %v3519 = vpack.c.bf16 %v3438, %v3438
    %v3520 = vpack.c.bf16 %v3439, %v3439
    %v3521 = vpack.c.bf16 %v3440, %v3440
    %v3522 = vpack.c.bf16 %v3441, %v3441
    %v3523 = vpack.c.bf16 %v3442, %v3442
    %v3524 = vpack.c.bf16 %v3443, %v3443
    %v3525 = vpack.c.bf16 %v3444, %v3444
    %v3526 = vpack.c.bf16 %v3445, %v3445
    %v3527 = vpack.c.bf16 %v3446, %v3446
    %v3528 = vpack.c.bf16 %v3447, %v3447
    %v3529 = vpack.c.bf16 %v3448, %v3448
    %v3530 = vpack.c.bf16 %v3449, %v3449
    %v3531 = vpack.c.bf16 %v3450, %v3450
    %v3532 = vpack.c.bf16 %v3451, %v3451
    %v3533 = vpack.c.bf16 %v3452, %v3452
    %v3534 = vpack.c.bf16 %v3453, %v3453
    %v3535 = vpack.c.bf16 %v3454, %v3454
    %v3536 = vpack.c.bf16 %v3455, %v3455
    %v3537 = vpack.c.bf16 %v3456, %v3456
    %v3538 = vpack.c.bf16 %v3457, %v3457
    %v3539 = vpack.c.bf16 %v3458, %v3458
    %v3540 = vpack.c.bf16 %v3459, %v3459
    %v3541 = vpack.c.bf16 %v3460, %v3460
    %v3542 = vpack.c.bf16 %v3461, %v3461
    %v3543 = vpack.c.bf16 %v3462, %v3462
    %v3544 = vpack.c.bf16 %v3463, %v3463
    %v3545 = vpack.c.bf16 %v3464, %v3464
    %v3546 = vpack.c.bf16 %v3465, %v3465
    %v3547 = vpack.c.bf16 %v3466, %v3466
    %v3548 = vpack.c.bf16 %v3467, %v3467
    %v3549 = vpack.c.bf16 %v3468, %v3468
    %v3550 = vpack.c.bf16 %v3469, %v3469
    %v3551 = vpack.c.bf16 %v3470, %v3470
    %v3552 = vpack.c.bf16 %v3471, %v3471
    %v3553 = vpack.c.bf16 %v3472, %v3472
    %v3554 = vpack.c.bf16 %v3473, %v3473
    %v3555 = vpack.c.bf16 %v3474, %v3474
    %v3556 = vpack.c.bf16 %v3475, %v3475
    %v3557 = vpack.c.bf16 %v3476, %v3476
    %v3558 = vpack.c.bf16 %v3477, %v3477
    %v3559 = vpack.c.bf16 %v3478, %v3478
    %v3560 = vpack.c.bf16 %v3479, %v3479
    %v3561 = vpack.c.bf16 %v3480, %v3480
    %v3562 = vpack.c.bf16 %v3481, %v3481
    %v3563 = vpack.c.bf16 %v3482, %v3482
    %v3564 = vpack.c.bf16 %v3483, %v3483
    %v3565 = vpack.c.bf16 %v3484, %v3484
    %v3566 = vpack.c.bf16 %v3485, %v3485
    %v3567 = vpack.c.bf16 %v3486, %v3486
    %v3568 = vpack.c.bf16 %v3487, %v3487
    %v3569 = vpack.c.bf16 %v3488, %v3488
    %v3570 = vpack.c.bf16 %v3489, %v3489
    %v3571 = vpack.c.bf16 %v3490, %v3490
    %v3572 = vpack.c.bf16 %v3491, %v3491
    %v3573 = vpack.c.bf16 %v3492, %v3492
    %v3574 = vpack.c.bf16 %v3493, %v3493
    %v3575 = vpack.c.bf16 %v3494, %v3494
    %v3576 = vpack.c.bf16 %v3495, %v3495
    %v3577 = vpack.c.bf16 %v3496, %v3496
    %v3578 = vpack.c.bf16 %v3497, %v3497
    %v3579 = vpack.c.bf16 %v3498, %v3498
    %v3580 = vpack.c.bf16 %v3499, %v3499
    %v3581 = vpack.c.bf16 %v3500, %v3500
    %v3582 = vpack.c.bf16 %v3501, %v3501
    %v3664 = vrot.slane %v3502, 3
    %v3665 = vrot.slane %v3503, 3
    %v3666 = vrot.slane %v3504, 3
    %v3667 = vrot.slane %v3505, 3
    %v3668 = vrot.slane %v3506, 3
    %v3669 = vrot.slane %v3507, 3
    %v3670 = vrot.slane %v3508, 3
    %v3671 = vrot.slane %v3509, 3
    %v3672 = vrot.slane %v3510, 3
    %v3673 = vrot.slane %v3511, 3
    %v3674 = vrot.slane %v3512, 3
    %v3675 = vrot.slane %v3513, 3
    %v3676 = vrot.slane %v3514, 3
    %v3677 = vrot.slane %v3515, 3
    %v3678 = vrot.slane %v3516, 3
    %v3679 = vrot.slane %v3517, 3
    %v3680 = vrot.slane %v3518, 3
    %v3681 = vrot.slane %v3519, 3
    %v3682 = vrot.slane %v3520, 3
    %v3683 = vrot.slane %v3521, 3
    %v3684 = vrot.slane %v3522, 3
    %v3685 = vrot.slane %v3523, 3
    %v3686 = vrot.slane %v3524, 3
    %v3687 = vrot.slane %v3525, 3
    %v3688 = vrot.slane %v3526, 3
    %v3689 = vrot.slane %v3527, 3
    %v3690 = vrot.slane %v3528, 3
    %v3691 = vrot.slane %v3529, 3
    %v3692 = vrot.slane %v3530, 3
    %v3693 = vrot.slane %v3531, 3
    %v3694 = vrot.slane %v3532, 3
    %v3695 = vrot.slane %v3533, 3
    %v3696 = vrot.slane %v3534, 3
    %v3697 = vrot.slane %v3535, 3
    %v3698 = vrot.slane %v3536, 3
    %v3699 = vrot.slane %v3537, 3
    %v3700 = vrot.slane %v3538, 3
    %v3701 = vrot.slane %v3539, 3
    %v3702 = vrot.slane %v3540, 3
    %v3703 = vrot.slane %v3541, 3
    %v3704 = vrot.slane %v3542, 3
    %v3705 = vrot.slane %v3543, 3
    %v3706 = vrot.slane %v3544, 3
    %v3707 = vrot.slane %v3545, 3
    %v3708 = vrot.slane %v3546, 3
    %v3709 = vrot.slane %v3547, 3
    %v3710 = vrot.slane %v3548, 3
    %v3711 = vrot.slane %v3549, 3
    %v3712 = vrot.slane %v3550, 3
    %v3713 = vrot.slane %v3551, 3
    %v3714 = vrot.slane %v3552, 3
    %v3715 = vrot.slane %v3553, 3
    %v3716 = vrot.slane %v3554, 3
    %v3717 = vrot.slane %v3555, 3
    %v3718 = vrot.slane %v3556, 3
    %v3719 = vrot.slane %v3557, 3
    %v3720 = vrot.slane %v3558, 3
    %v3721 = vrot.slane %v3559, 3
    %v3722 = vrot.slane %v3560, 3
    %v3723 = vrot.slane %v3561, 3
    %v3724 = vrot.slane %v3562, 3
    %v3725 = vrot.slane %v3563, 3
    %v3726 = vrot.slane %v3564, 3
    %v3727 = vrot.slane %v3565, 3
    %v3728 = vrot.slane %v3566, 3
    %v3729 = vrot.slane %v3567, 3
    %v3730 = vrot.slane %v3568, 3
    %v3731 = vrot.slane %v3569, 3
    %v3732 = vrot.slane %v3570, 3
    %v3733 = vrot.slane %v3571, 3
    %v3734 = vrot.slane %v3572, 3
    %v3735 = vrot.slane %v3573, 3
    %v3736 = vrot.slane %v3574, 3
    %v3737 = vrot.slane %v3575, 3
    %v3738 = vrot.slane %v3576, 3
    %v3739 = vrot.slane %v3577, 3
    %v3740 = vrot.slane %v3578, 3
    %v3741 = vrot.slane %v3579, 3
    %v3742 = vrot.slane %v3580, 3
    %v3743 = vrot.slane %v3581, 3
    %v3744 = vrot.slane %v3582, 3
    %v3747 = vsel %vm448, %v3502, %v3664
    %v3748 = vsel %vm452, %v3502, %v3664
    %v3750 = vrot.slane %v3748, 1
    %v3751 = vsel %vm456, %v3502, %v3664
    %v3753 = vrot.slane %v3751, 2
    %v3754 = vsel %vm460, %v3502, %v3664
    %v3756 = vrot.slane %v3754, 3
    %v3759 = vsel %vm448, %v3503, %v3665
    %v3760 = vsel %vm452, %v3503, %v3665
    %v3762 = vrot.slane %v3760, 1
    %v3763 = vsel %vm456, %v3503, %v3665
    %v3765 = vrot.slane %v3763, 2
    %v3766 = vsel %vm460, %v3503, %v3665
    %v3768 = vrot.slane %v3766, 3
    %v3771 = vsel %vm448, %v3504, %v3666
    %v3772 = vsel %vm452, %v3504, %v3666
    %v3774 = vrot.slane %v3772, 1
    %v3775 = vsel %vm456, %v3504, %v3666
    %v3777 = vrot.slane %v3775, 2
    %v3778 = vsel %vm460, %v3504, %v3666
    %v3780 = vrot.slane %v3778, 3
    %v3783 = vsel %vm448, %v3505, %v3667
    %v3784 = vsel %vm452, %v3505, %v3667
    %v3786 = vrot.slane %v3784, 1
    %v3787 = vsel %vm456, %v3505, %v3667
    %v3789 = vrot.slane %v3787, 2
    %v3790 = vsel %vm460, %v3505, %v3667
    %v3792 = vrot.slane %v3790, 3
    %v3795 = vsel %vm448, %v3506, %v3668
    %v3796 = vsel %vm452, %v3506, %v3668
    %v3798 = vrot.slane %v3796, 1
    %v3799 = vsel %vm456, %v3506, %v3668
    %v3801 = vrot.slane %v3799, 2
    %v3802 = vsel %vm460, %v3506, %v3668
    %v3804 = vrot.slane %v3802, 3
    %v3807 = vsel %vm448, %v3507, %v3669
    %v3808 = vsel %vm452, %v3507, %v3669
    %v3810 = vrot.slane %v3808, 1
    %v3811 = vsel %vm456, %v3507, %v3669
    %v3813 = vrot.slane %v3811, 2
    %v3814 = vsel %vm460, %v3507, %v3669
    %v3816 = vrot.slane %v3814, 3
    %v3819 = vsel %vm448, %v3508, %v3670
    %v3820 = vsel %vm452, %v3508, %v3670
    %v3822 = vrot.slane %v3820, 1
    %v3823 = vsel %vm456, %v3508, %v3670
    %v3825 = vrot.slane %v3823, 2
    %v3826 = vsel %vm460, %v3508, %v3670
    %v3828 = vrot.slane %v3826, 3
    %v3831 = vsel %vm448, %v3509, %v3671
    %v3832 = vsel %vm452, %v3509, %v3671
    %v3834 = vrot.slane %v3832, 1
    %v3835 = vsel %vm456, %v3509, %v3671
    %v3837 = vrot.slane %v3835, 2
    %v3838 = vsel %vm460, %v3509, %v3671
    %v3840 = vrot.slane %v3838, 3
    %v3843 = vsel %vm448, %v3510, %v3672
    %v3844 = vsel %vm452, %v3510, %v3672
    %v3846 = vrot.slane %v3844, 1
    %v3847 = vsel %vm456, %v3510, %v3672
    %v3849 = vrot.slane %v3847, 2
    %v3850 = vsel %vm460, %v3510, %v3672
    %v3852 = vrot.slane %v3850, 3
    %v3855 = vsel %vm448, %v3511, %v3673
    %v3856 = vsel %vm452, %v3511, %v3673
    %v3858 = vrot.slane %v3856, 1
    %v3859 = vsel %vm456, %v3511, %v3673
    %v3861 = vrot.slane %v3859, 2
    %v3862 = vsel %vm460, %v3511, %v3673
    %v3864 = vrot.slane %v3862, 3
    %v3867 = vsel %vm448, %v3512, %v3674
    %v3868 = vsel %vm452, %v3512, %v3674
    %v3870 = vrot.slane %v3868, 1
    %v3871 = vsel %vm456, %v3512, %v3674
    %v3873 = vrot.slane %v3871, 2
    %v3874 = vsel %vm460, %v3512, %v3674
    %v3876 = vrot.slane %v3874, 3
    %v3879 = vsel %vm448, %v3513, %v3675
    %v3880 = vsel %vm452, %v3513, %v3675
    %v3882 = vrot.slane %v3880, 1
    %v3883 = vsel %vm456, %v3513, %v3675
    %v3885 = vrot.slane %v3883, 2
    %v3886 = vsel %vm460, %v3513, %v3675
    %v3888 = vrot.slane %v3886, 3
    %v3891 = vsel %vm448, %v3514, %v3676
    %v3892 = vsel %vm452, %v3514, %v3676
    %v3894 = vrot.slane %v3892, 1
    %v3895 = vsel %vm456, %v3514, %v3676
    %v3897 = vrot.slane %v3895, 2
    %v3898 = vsel %vm460, %v3514, %v3676
    %v3900 = vrot.slane %v3898, 3
    %v3903 = vsel %vm448, %v3515, %v3677
    %v3904 = vsel %vm452, %v3515, %v3677
    %v3906 = vrot.slane %v3904, 1
    %v3907 = vsel %vm456, %v3515, %v3677
    %v3909 = vrot.slane %v3907, 2
    %v3910 = vsel %vm460, %v3515, %v3677
    %v3912 = vrot.slane %v3910, 3
    %v3915 = vsel %vm448, %v3516, %v3678
    %v3916 = vsel %vm452, %v3516, %v3678
    %v3918 = vrot.slane %v3916, 1
    %v3919 = vsel %vm456, %v3516, %v3678
    %v3921 = vrot.slane %v3919, 2
    %v3922 = vsel %vm460, %v3516, %v3678
    %v3924 = vrot.slane %v3922, 3
    %v3927 = vsel %vm448, %v3517, %v3679
    %v3928 = vsel %vm452, %v3517, %v3679
    %v3930 = vrot.slane %v3928, 1
    %v3931 = vsel %vm456, %v3517, %v3679
    %v3933 = vrot.slane %v3931, 2
    %v3934 = vsel %vm460, %v3517, %v3679
    %v3936 = vrot.slane %v3934, 3
    %v3939 = vsel %vm448, %v3518, %v3680
    %v3940 = vsel %vm452, %v3518, %v3680
    %v3942 = vrot.slane %v3940, 1
    %v3943 = vsel %vm456, %v3518, %v3680
    %v3945 = vrot.slane %v3943, 2
    %v3946 = vsel %vm460, %v3518, %v3680
    %v3948 = vrot.slane %v3946, 3
    %v3951 = vsel %vm448, %v3519, %v3681
    %v3952 = vsel %vm452, %v3519, %v3681
    %v3954 = vrot.slane %v3952, 1
    %v3955 = vsel %vm456, %v3519, %v3681
    %v3957 = vrot.slane %v3955, 2
    %v3958 = vsel %vm460, %v3519, %v3681
    %v3960 = vrot.slane %v3958, 3
    %v3963 = vsel %vm448, %v3520, %v3682
    %v3964 = vsel %vm452, %v3520, %v3682
    %v3966 = vrot.slane %v3964, 1
    %v3967 = vsel %vm456, %v3520, %v3682
    %v3969 = vrot.slane %v3967, 2
    %v3970 = vsel %vm460, %v3520, %v3682
    %v3972 = vrot.slane %v3970, 3
    %v3975 = vsel %vm448, %v3521, %v3683
    %v3976 = vsel %vm452, %v3521, %v3683
    %v3978 = vrot.slane %v3976, 1
    %v3979 = vsel %vm456, %v3521, %v3683
    %v3981 = vrot.slane %v3979, 2
    %v3982 = vsel %vm460, %v3521, %v3683
    %v3984 = vrot.slane %v3982, 3
    %v3987 = vsel %vm448, %v3522, %v3684
    %v3988 = vsel %vm452, %v3522, %v3684
    %v3990 = vrot.slane %v3988, 1
    %v3991 = vsel %vm456, %v3522, %v3684
    %v3993 = vrot.slane %v3991, 2
    %v3994 = vsel %vm460, %v3522, %v3684
    %v3996 = vrot.slane %v3994, 3
    %v3999 = vsel %vm448, %v3523, %v3685
    %v4000 = vsel %vm452, %v3523, %v3685
    %v4002 = vrot.slane %v4000, 1
    %v4003 = vsel %vm456, %v3523, %v3685
    %v4005 = vrot.slane %v4003, 2
    %v4006 = vsel %vm460, %v3523, %v3685
    %v4008 = vrot.slane %v4006, 3
    %v4011 = vsel %vm448, %v3524, %v3686
    %v4012 = vsel %vm452, %v3524, %v3686
    %v4014 = vrot.slane %v4012, 1
    %v4015 = vsel %vm456, %v3524, %v3686
    %v4017 = vrot.slane %v4015, 2
    %v4018 = vsel %vm460, %v3524, %v3686
    %v4020 = vrot.slane %v4018, 3
    %v4023 = vsel %vm448, %v3525, %v3687
    %v4024 = vsel %vm452, %v3525, %v3687
    %v4026 = vrot.slane %v4024, 1
    %v4027 = vsel %vm456, %v3525, %v3687
    %v4029 = vrot.slane %v4027, 2
    %v4030 = vsel %vm460, %v3525, %v3687
    %v4032 = vrot.slane %v4030, 3
    %v4035 = vsel %vm448, %v3526, %v3688
    %v4036 = vsel %vm452, %v3526, %v3688
    %v4038 = vrot.slane %v4036, 1
    %v4039 = vsel %vm456, %v3526, %v3688
    %v4041 = vrot.slane %v4039, 2
    %v4042 = vsel %vm460, %v3526, %v3688
    %v4044 = vrot.slane %v4042, 3
    %v4047 = vsel %vm448, %v3527, %v3689
    %v4048 = vsel %vm452, %v3527, %v3689
    %v4050 = vrot.slane %v4048, 1
    %v4051 = vsel %vm456, %v3527, %v3689
    %v4053 = vrot.slane %v4051, 2
    %v4054 = vsel %vm460, %v3527, %v3689
    %v4056 = vrot.slane %v4054, 3
    %v4059 = vsel %vm448, %v3528, %v3690
    %v4060 = vsel %vm452, %v3528, %v3690
    %v4062 = vrot.slane %v4060, 1
    %v4063 = vsel %vm456, %v3528, %v3690
    %v4065 = vrot.slane %v4063, 2
    %v4066 = vsel %vm460, %v3528, %v3690
    %v4068 = vrot.slane %v4066, 3
    %v4071 = vsel %vm448, %v3529, %v3691
    %v4072 = vsel %vm452, %v3529, %v3691
    %v4074 = vrot.slane %v4072, 1
    %v4075 = vsel %vm456, %v3529, %v3691
    %v4077 = vrot.slane %v4075, 2
    %v4078 = vsel %vm460, %v3529, %v3691
    %v4080 = vrot.slane %v4078, 3
    %v4083 = vsel %vm448, %v3530, %v3692
    %v4084 = vsel %vm452, %v3530, %v3692
    %v4086 = vrot.slane %v4084, 1
    %v4087 = vsel %vm456, %v3530, %v3692
    %v4089 = vrot.slane %v4087, 2
    %v4090 = vsel %vm460, %v3530, %v3692
    %v4092 = vrot.slane %v4090, 3
    %v4095 = vsel %vm448, %v3531, %v3693
    %v4096 = vsel %vm452, %v3531, %v3693
    %v4098 = vrot.slane %v4096, 1
    %v4099 = vsel %vm456, %v3531, %v3693
    %v4101 = vrot.slane %v4099, 2
    %v4102 = vsel %vm460, %v3531, %v3693
    %v4104 = vrot.slane %v4102, 3
    %v4107 = vsel %vm448, %v3532, %v3694
    %v4108 = vsel %vm452, %v3532, %v3694
    %v4110 = vrot.slane %v4108, 1
    %v4111 = vsel %vm456, %v3532, %v3694
    %v4113 = vrot.slane %v4111, 2
    %v4114 = vsel %vm460, %v3532, %v3694
    %v4116 = vrot.slane %v4114, 3
    %v4119 = vsel %vm448, %v3533, %v3695
    %v4120 = vsel %vm452, %v3533, %v3695
    %v4122 = vrot.slane %v4120, 1
    %v4123 = vsel %vm456, %v3533, %v3695
    %v4125 = vrot.slane %v4123, 2
    %v4126 = vsel %vm460, %v3533, %v3695
    %v4128 = vrot.slane %v4126, 3
    %v4131 = vsel %vm448, %v3534, %v3696
    %v4132 = vsel %vm452, %v3534, %v3696
    %v4134 = vrot.slane %v4132, 1
    %v4135 = vsel %vm456, %v3534, %v3696
    %v4137 = vrot.slane %v4135, 2
    %v4138 = vsel %vm460, %v3534, %v3696
    %v4140 = vrot.slane %v4138, 3
    %v4143 = vsel %vm448, %v3535, %v3697
    %v4144 = vsel %vm452, %v3535, %v3697
    %v4146 = vrot.slane %v4144, 1
    %v4147 = vsel %vm456, %v3535, %v3697
    %v4149 = vrot.slane %v4147, 2
    %v4150 = vsel %vm460, %v3535, %v3697
    %v4152 = vrot.slane %v4150, 3
    %v4155 = vsel %vm448, %v3536, %v3698
    %v4156 = vsel %vm452, %v3536, %v3698
    %v4158 = vrot.slane %v4156, 1
    %v4159 = vsel %vm456, %v3536, %v3698
    %v4161 = vrot.slane %v4159, 2
    %v4162 = vsel %vm460, %v3536, %v3698
    %v4164 = vrot.slane %v4162, 3
    %v4167 = vsel %vm448, %v3537, %v3699
    %v4168 = vsel %vm452, %v3537, %v3699
    %v4170 = vrot.slane %v4168, 1
    %v4171 = vsel %vm456, %v3537, %v3699
    %v4173 = vrot.slane %v4171, 2
    %v4174 = vsel %vm460, %v3537, %v3699
    %v4176 = vrot.slane %v4174, 3
    %v4179 = vsel %vm448, %v3538, %v3700
    %v4180 = vsel %vm452, %v3538, %v3700
    %v4182 = vrot.slane %v4180, 1
    %v4183 = vsel %vm456, %v3538, %v3700
    %v4185 = vrot.slane %v4183, 2
    %v4186 = vsel %vm460, %v3538, %v3700
    %v4188 = vrot.slane %v4186, 3
    %v4191 = vsel %vm448, %v3539, %v3701
    %v4192 = vsel %vm452, %v3539, %v3701
    %v4194 = vrot.slane %v4192, 1
    %v4195 = vsel %vm456, %v3539, %v3701
    %v4197 = vrot.slane %v4195, 2
    %v4198 = vsel %vm460, %v3539, %v3701
    %v4200 = vrot.slane %v4198, 3
    %v4203 = vsel %vm448, %v3540, %v3702
    %v4204 = vsel %vm452, %v3540, %v3702
    %v4206 = vrot.slane %v4204, 1
    %v4207 = vsel %vm456, %v3540, %v3702
    %v4209 = vrot.slane %v4207, 2
    %v4210 = vsel %vm460, %v3540, %v3702
    %v4212 = vrot.slane %v4210, 3
    %v4215 = vsel %vm448, %v3541, %v3703
    %v4216 = vsel %vm452, %v3541, %v3703
    %v4218 = vrot.slane %v4216, 1
    %v4219 = vsel %vm456, %v3541, %v3703
    %v4221 = vrot.slane %v4219, 2
    %v4222 = vsel %vm460, %v3541, %v3703
    %v4224 = vrot.slane %v4222, 3
    %v4227 = vsel %vm448, %v3542, %v3704
    %v4228 = vsel %vm452, %v3542, %v3704
    %v4230 = vrot.slane %v4228, 1
    %v4231 = vsel %vm456, %v3542, %v3704
    %v4233 = vrot.slane %v4231, 2
    %v4234 = vsel %vm460, %v3542, %v3704
    %v4236 = vrot.slane %v4234, 3
    %v4239 = vsel %vm448, %v3543, %v3705
    %v4240 = vsel %vm452, %v3543, %v3705
    %v4242 = vrot.slane %v4240, 1
    %v4243 = vsel %vm456, %v3543, %v3705
    %v4245 = vrot.slane %v4243, 2
    %v4246 = vsel %vm460, %v3543, %v3705
    %v4248 = vrot.slane %v4246, 3
    %v4251 = vsel %vm448, %v3544, %v3706
    %v4252 = vsel %vm452, %v3544, %v3706
    %v4254 = vrot.slane %v4252, 1
    %v4255 = vsel %vm456, %v3544, %v3706
    %v4257 = vrot.slane %v4255, 2
    %v4258 = vsel %vm460, %v3544, %v3706
    %v4260 = vrot.slane %v4258, 3
    %v4263 = vsel %vm448, %v3545, %v3707
    %v4264 = vsel %vm452, %v3545, %v3707
    %v4266 = vrot.slane %v4264, 1
    %v4267 = vsel %vm456, %v3545, %v3707
    %v4269 = vrot.slane %v4267, 2
    %v4270 = vsel %vm460, %v3545, %v3707
    %v4272 = vrot.slane %v4270, 3
    %v4275 = vsel %vm448, %v3546, %v3708
    %v4276 = vsel %vm452, %v3546, %v3708
    %v4278 = vrot.slane %v4276, 1
    %v4279 = vsel %vm456, %v3546, %v3708
    %v4281 = vrot.slane %v4279, 2
    %v4282 = vsel %vm460, %v3546, %v3708
    %v4284 = vrot.slane %v4282, 3
    %v4287 = vsel %vm448, %v3547, %v3709
    %v4288 = vsel %vm452, %v3547, %v3709
    %v4290 = vrot.slane %v4288, 1
    %v4291 = vsel %vm456, %v3547, %v3709
    %v4293 = vrot.slane %v4291, 2
    %v4294 = vsel %vm460, %v3547, %v3709
    %v4296 = vrot.slane %v4294, 3
    %v4299 = vsel %vm448, %v3548, %v3710
    %v4300 = vsel %vm452, %v3548, %v3710
    %v4302 = vrot.slane %v4300, 1
    %v4303 = vsel %vm456, %v3548, %v3710
    %v4305 = vrot.slane %v4303, 2
    %v4306 = vsel %vm460, %v3548, %v3710
    %v4308 = vrot.slane %v4306, 3
    %v4311 = vsel %vm448, %v3549, %v3711
    %v4312 = vsel %vm452, %v3549, %v3711
    %v4314 = vrot.slane %v4312, 1
    %v4315 = vsel %vm456, %v3549, %v3711
    %v4317 = vrot.slane %v4315, 2
    %v4318 = vsel %vm460, %v3549, %v3711
    %v4320 = vrot.slane %v4318, 3
    %v4323 = vsel %vm448, %v3550, %v3712
    %v4324 = vsel %vm452, %v3550, %v3712
    %v4326 = vrot.slane %v4324, 1
    %v4327 = vsel %vm456, %v3550, %v3712
    %v4329 = vrot.slane %v4327, 2
    %v4330 = vsel %vm460, %v3550, %v3712
    %v4332 = vrot.slane %v4330, 3
    %v4335 = vsel %vm448, %v3551, %v3713
    %v4336 = vsel %vm452, %v3551, %v3713
    %v4338 = vrot.slane %v4336, 1
    %v4339 = vsel %vm456, %v3551, %v3713
    %v4341 = vrot.slane %v4339, 2
    %v4342 = vsel %vm460, %v3551, %v3713
    %v4344 = vrot.slane %v4342, 3
    %v4347 = vsel %vm448, %v3552, %v3714
    %v4348 = vsel %vm452, %v3552, %v3714
    %v4350 = vrot.slane %v4348, 1
    %v4351 = vsel %vm456, %v3552, %v3714
    %v4353 = vrot.slane %v4351, 2
    %v4354 = vsel %vm460, %v3552, %v3714
    %v4356 = vrot.slane %v4354, 3
    %v4359 = vsel %vm448, %v3553, %v3715
    %v4360 = vsel %vm452, %v3553, %v3715
    %v4362 = vrot.slane %v4360, 1
    %v4363 = vsel %vm456, %v3553, %v3715
    %v4365 = vrot.slane %v4363, 2
    %v4366 = vsel %vm460, %v3553, %v3715
    %v4368 = vrot.slane %v4366, 3
    %v4371 = vsel %vm448, %v3554, %v3716
    %v4372 = vsel %vm452, %v3554, %v3716
    %v4374 = vrot.slane %v4372, 1
    %v4375 = vsel %vm456, %v3554, %v3716
    %v4377 = vrot.slane %v4375, 2
    %v4378 = vsel %vm460, %v3554, %v3716
    %v4380 = vrot.slane %v4378, 3
    %v4383 = vsel %vm448, %v3555, %v3717
    %v4384 = vsel %vm452, %v3555, %v3717
    %v4386 = vrot.slane %v4384, 1
    %v4387 = vsel %vm456, %v3555, %v3717
    %v4389 = vrot.slane %v4387, 2
    %v4390 = vsel %vm460, %v3555, %v3717
    %v4392 = vrot.slane %v4390, 3
    %v4395 = vsel %vm448, %v3556, %v3718
    %v4396 = vsel %vm452, %v3556, %v3718
    %v4398 = vrot.slane %v4396, 1
    %v4399 = vsel %vm456, %v3556, %v3718
    %v4401 = vrot.slane %v4399, 2
    %v4402 = vsel %vm460, %v3556, %v3718
    %v4404 = vrot.slane %v4402, 3
    %v4407 = vsel %vm448, %v3557, %v3719
    %v4408 = vsel %vm452, %v3557, %v3719
    %v4410 = vrot.slane %v4408, 1
    %v4411 = vsel %vm456, %v3557, %v3719
    %v4413 = vrot.slane %v4411, 2
    %v4414 = vsel %vm460, %v3557, %v3719
    %v4416 = vrot.slane %v4414, 3
    %v4419 = vsel %vm448, %v3558, %v3720
    %v4420 = vsel %vm452, %v3558, %v3720
    %v4422 = vrot.slane %v4420, 1
    %v4423 = vsel %vm456, %v3558, %v3720
    %v4425 = vrot.slane %v4423, 2
    %v4426 = vsel %vm460, %v3558, %v3720
    %v4428 = vrot.slane %v4426, 3
    %v4431 = vsel %vm448, %v3559, %v3721
    %v4432 = vsel %vm452, %v3559, %v3721
    %v4434 = vrot.slane %v4432, 1
    %v4435 = vsel %vm456, %v3559, %v3721
    %v4437 = vrot.slane %v4435, 2
    %v4438 = vsel %vm460, %v3559, %v3721
    %v4440 = vrot.slane %v4438, 3
    %v4443 = vsel %vm448, %v3560, %v3722
    %v4444 = vsel %vm452, %v3560, %v3722
    %v4446 = vrot.slane %v4444, 1
    %v4447 = vsel %vm456, %v3560, %v3722
    %v4449 = vrot.slane %v4447, 2
    %v4450 = vsel %vm460, %v3560, %v3722
    %v4452 = vrot.slane %v4450, 3
    %v4455 = vsel %vm448, %v3561, %v3723
    %v4456 = vsel %vm452, %v3561, %v3723
    %v4458 = vrot.slane %v4456, 1
    %v4459 = vsel %vm456, %v3561, %v3723
    %v4461 = vrot.slane %v4459, 2
    %v4462 = vsel %vm460, %v3561, %v3723
    %v4464 = vrot.slane %v4462, 3
    %v4467 = vsel %vm448, %v3562, %v3724
    %v4468 = vsel %vm452, %v3562, %v3724
    %v4470 = vrot.slane %v4468, 1
    %v4471 = vsel %vm456, %v3562, %v3724
    %v4473 = vrot.slane %v4471, 2
    %v4474 = vsel %vm460, %v3562, %v3724
    %v4476 = vrot.slane %v4474, 3
    %v4479 = vsel %vm448, %v3563, %v3725
    %v4480 = vsel %vm452, %v3563, %v3725
    %v4482 = vrot.slane %v4480, 1
    %v4483 = vsel %vm456, %v3563, %v3725
    %v4485 = vrot.slane %v4483, 2
    %v4486 = vsel %vm460, %v3563, %v3725
    %v4488 = vrot.slane %v4486, 3
    %v4491 = vsel %vm448, %v3564, %v3726
    %v4492 = vsel %vm452, %v3564, %v3726
    %v4494 = vrot.slane %v4492, 1
    %v4495 = vsel %vm456, %v3564, %v3726
    %v4497 = vrot.slane %v4495, 2
    %v4498 = vsel %vm460, %v3564, %v3726
    %v4500 = vrot.slane %v4498, 3
    %v4503 = vsel %vm448, %v3565, %v3727
    %v4504 = vsel %vm452, %v3565, %v3727
    %v4506 = vrot.slane %v4504, 1
    %v4507 = vsel %vm456, %v3565, %v3727
    %v4509 = vrot.slane %v4507, 2
    %v4510 = vsel %vm460, %v3565, %v3727
    %v4512 = vrot.slane %v4510, 3
    %v4515 = vsel %vm448, %v3566, %v3728
    %v4516 = vsel %vm452, %v3566, %v3728
    %v4518 = vrot.slane %v4516, 1
    %v4519 = vsel %vm456, %v3566, %v3728
    %v4521 = vrot.slane %v4519, 2
    %v4522 = vsel %vm460, %v3566, %v3728
    %v4524 = vrot.slane %v4522, 3
    %v4527 = vsel %vm448, %v3567, %v3729
    %v4528 = vsel %vm452, %v3567, %v3729
    %v4530 = vrot.slane %v4528, 1
    %v4531 = vsel %vm456, %v3567, %v3729
    %v4533 = vrot.slane %v4531, 2
    %v4534 = vsel %vm460, %v3567, %v3729
    %v4536 = vrot.slane %v4534, 3
    %v4539 = vsel %vm448, %v3568, %v3730
    %v4540 = vsel %vm452, %v3568, %v3730
    %v4542 = vrot.slane %v4540, 1
    %v4543 = vsel %vm456, %v3568, %v3730
    %v4545 = vrot.slane %v4543, 2
    %v4546 = vsel %vm460, %v3568, %v3730
    %v4548 = vrot.slane %v4546, 3
    %v4551 = vsel %vm448, %v3569, %v3731
    %v4552 = vsel %vm452, %v3569, %v3731
    %v4554 = vrot.slane %v4552, 1
    %v4555 = vsel %vm456, %v3569, %v3731
    %v4557 = vrot.slane %v4555, 2
    %v4558 = vsel %vm460, %v3569, %v3731
    %v4560 = vrot.slane %v4558, 3
    %v4563 = vsel %vm448, %v3570, %v3732
    %v4564 = vsel %vm452, %v3570, %v3732
    %v4566 = vrot.slane %v4564, 1
    %v4567 = vsel %vm456, %v3570, %v3732
    %v4569 = vrot.slane %v4567, 2
    %v4570 = vsel %vm460, %v3570, %v3732
    %v4572 = vrot.slane %v4570, 3
    %v4575 = vsel %vm448, %v3571, %v3733
    %v4576 = vsel %vm452, %v3571, %v3733
    %v4578 = vrot.slane %v4576, 1
    %v4579 = vsel %vm456, %v3571, %v3733
    %v4581 = vrot.slane %v4579, 2
    %v4582 = vsel %vm460, %v3571, %v3733
    %v4584 = vrot.slane %v4582, 3
    %v4587 = vsel %vm448, %v3572, %v3734
    %v4588 = vsel %vm452, %v3572, %v3734
    %v4590 = vrot.slane %v4588, 1
    %v4591 = vsel %vm456, %v3572, %v3734
    %v4593 = vrot.slane %v4591, 2
    %v4594 = vsel %vm460, %v3572, %v3734
    %v4596 = vrot.slane %v4594, 3
    %v4599 = vsel %vm448, %v3573, %v3735
    %v4600 = vsel %vm452, %v3573, %v3735
    %v4602 = vrot.slane %v4600, 1
    %v4603 = vsel %vm456, %v3573, %v3735
    %v4605 = vrot.slane %v4603, 2
    %v4606 = vsel %vm460, %v3573, %v3735
    %v4608 = vrot.slane %v4606, 3
    %v4611 = vsel %vm448, %v3574, %v3736
    %v4612 = vsel %vm452, %v3574, %v3736
    %v4614 = vrot.slane %v4612, 1
    %v4615 = vsel %vm456, %v3574, %v3736
    %v4617 = vrot.slane %v4615, 2
    %v4618 = vsel %vm460, %v3574, %v3736
    %v4620 = vrot.slane %v4618, 3
    %v4623 = vsel %vm448, %v3575, %v3737
    %v4624 = vsel %vm452, %v3575, %v3737
    %v4626 = vrot.slane %v4624, 1
    %v4627 = vsel %vm456, %v3575, %v3737
    %v4629 = vrot.slane %v4627, 2
    %v4630 = vsel %vm460, %v3575, %v3737
    %v4632 = vrot.slane %v4630, 3
    %v4635 = vsel %vm448, %v3576, %v3738
    %v4636 = vsel %vm452, %v3576, %v3738
    %v4638 = vrot.slane %v4636, 1
    %v4639 = vsel %vm456, %v3576, %v3738
    %v4641 = vrot.slane %v4639, 2
    %v4642 = vsel %vm460, %v3576, %v3738
    %v4644 = vrot.slane %v4642, 3
    %v4647 = vsel %vm448, %v3577, %v3739
    %v4648 = vsel %vm452, %v3577, %v3739
    %v4650 = vrot.slane %v4648, 1
    %v4651 = vsel %vm456, %v3577, %v3739
    %v4653 = vrot.slane %v4651, 2
    %v4654 = vsel %vm460, %v3577, %v3739
    %v4656 = vrot.slane %v4654, 3
    %v4659 = vsel %vm448, %v3578, %v3740
    %v4660 = vsel %vm452, %v3578, %v3740
    %v4662 = vrot.slane %v4660, 1
    %v4663 = vsel %vm456, %v3578, %v3740
    %v4665 = vrot.slane %v4663, 2
    %v4666 = vsel %vm460, %v3578, %v3740
    %v4668 = vrot.slane %v4666, 3
    %v4671 = vsel %vm448, %v3579, %v3741
    %v4672 = vsel %vm452, %v3579, %v3741
    %v4674 = vrot.slane %v4672, 1
    %v4675 = vsel %vm456, %v3579, %v3741
    %v4677 = vrot.slane %v4675, 2
    %v4678 = vsel %vm460, %v3579, %v3741
    %v4680 = vrot.slane %v4678, 3
    %v4683 = vsel %vm448, %v3580, %v3742
    %v4684 = vsel %vm452, %v3580, %v3742
    %v4686 = vrot.slane %v4684, 1
    %v4687 = vsel %vm456, %v3580, %v3742
    %v4689 = vrot.slane %v4687, 2
    %v4690 = vsel %vm460, %v3580, %v3742
    %v4692 = vrot.slane %v4690, 3
    %v4695 = vsel %vm448, %v3581, %v3743
    %v4696 = vsel %vm452, %v3581, %v3743
    %v4698 = vrot.slane %v4696, 1
    %v4699 = vsel %vm456, %v3581, %v3743
    %v4701 = vrot.slane %v4699, 2
    %v4702 = vsel %vm460, %v3581, %v3743
    %v4704 = vrot.slane %v4702, 3
    %v4707 = vsel %vm448, %v3582, %v3744
    %v4708 = vsel %vm452, %v3582, %v3744
    %v4710 = vrot.slane %v4708, 1
    %v4711 = vsel %vm456, %v3582, %v3744
    %v4713 = vrot.slane %v4711, 2
    %v4714 = vsel %vm460, %v3582, %v3744
    %v4716 = vrot.slane %v4714, 3
    %4717 = vst [vmem:[#allocation1] ss:$9 sm:$0xff] %v3747
    %s4719 = scalar_lea.vmem [#allocation1], 1
    %4720 = vst [vmem:[%s4719] ss:$9 sm:$0xff] %v3750
    %s4722 = scalar_lea.vmem [#allocation1], 2
    %4723 = vst [vmem:[%s4722] ss:$9 sm:$0xff] %v3753
    %s4725 = scalar_lea.vmem [#allocation1], 3
    %4726 = vst [vmem:[%s4725] ss:$9 sm:$0xff] %v3756
    %s4727 = scalar_lea.vmem [#allocation1], 4
    %4728 = vst [vmem:[%s4727] ss:$9 sm:$0xff] %v3759
    %s4730 = scalar_lea.vmem [#allocation1], 5
    %4731 = vst [vmem:[%s4730] ss:$9 sm:$0xff] %v3762
    %s4733 = scalar_lea.vmem [#allocation1], 6
    %4734 = vst [vmem:[%s4733] ss:$9 sm:$0xff] %v3765
    %s4736 = scalar_lea.vmem [#allocation1], 7
    %4737 = vst [vmem:[%s4736] ss:$9 sm:$0xff] %v3768
    %v4738 = vld [vmem:[#allocation1] sm:$0xff]
    %4740 = vst [vmem:[#allocation1] ss:$9 sm:$0xff] %v3774
    %4742 = vst [vmem:[%s4719] ss:$9 sm:$0xff] %v3777
    %4744 = vst [vmem:[%s4722] ss:$9 sm:$0xff] %v3780
    %4745 = vst [vmem:[%s4725] ss:$9 sm:$0xff] %v3783
    %4747 = vst [vmem:[%s4727] ss:$9 sm:$0xff] %v3786
    %4749 = vst [vmem:[%s4730] ss:$9 sm:$0xff] %v3789
    %4751 = vst [vmem:[%s4733] ss:$9 sm:$0xff] %v3792
    %4752 = vst [vmem:[%s4736] ss:$9 sm:$0xff] %v3795
    %v4753 = vld [vmem:[#allocation1] sm:$0xff]
    %4755 = vst [vmem:[#allocation1] ss:$9 sm:$0xff] %v3801
    %4757 = vst [vmem:[%s4719] ss:$9 sm:$0xff] %v3804
    %4758 = vst [vmem:[%s4722] ss:$9 sm:$0xff] %v3807
    %4760 = vst [vmem:[%s4725] ss:$9 sm:$0xff] %v3810
    %4762 = vst [vmem:[%s4727] ss:$9 sm:$0xff] %v3813
    %4764 = vst [vmem:[%s4730] ss:$9 sm:$0xff] %v3816
    %4765 = vst [vmem:[%s4733] ss:$9 sm:$0xff] %v3819
    %4767 = vst [vmem:[%s4736] ss:$9 sm:$0xff] %v3822
    %v4768 = vld [vmem:[#allocation1] sm:$0xff]
    %4770 = vst [vmem:[#allocation1] ss:$9 sm:$0xff] %v3828
    %4771 = vst [vmem:[%s4719] ss:$9 sm:$0xff] %v3831
    %4773 = vst [vmem:[%s4722] ss:$9 sm:$0xff] %v3834
    %4775 = vst [vmem:[%s4725] ss:$9 sm:$0xff] %v3837
    %4777 = vst [vmem:[%s4727] ss:$9 sm:$0xff] %v3840
    %4778 = vst [vmem:[%s4730] ss:$9 sm:$0xff] %v3843
    %4780 = vst [vmem:[%s4733] ss:$9 sm:$0xff] %v3846
    %4782 = vst [vmem:[%s4736] ss:$9 sm:$0xff] %v3849
    %v4783 = vld [vmem:[#allocation1] sm:$0xff]
    %4784 = vst [vmem:[#allocation1] ss:$9 sm:$0xff] %v3855
    %4786 = vst [vmem:[%s4719] ss:$9 sm:$0xff] %v3858
    %4788 = vst [vmem:[%s4722] ss:$9 sm:$0xff] %v3861
    %4790 = vst [vmem:[%s4725] ss:$9 sm:$0xff] %v3864
    %4791 = vst [vmem:[%s4727] ss:$9 sm:$0xff] %v3867
    %4793 = vst [vmem:[%s4730] ss:$9 sm:$0xff] %v3870
    %4795 = vst [vmem:[%s4733] ss:$9 sm:$0xff] %v3873
    %4797 = vst [vmem:[%s4736] ss:$9 sm:$0xff] %v3876
    %v4798 = vld [vmem:[#allocation1] sm:$0xff]
    %4800 = vst [vmem:[#allocation1] ss:$9 sm:$0xff] %v3882
    %4802 = vst [vmem:[%s4719] ss:$9 sm:$0xff] %v3885
    %4804 = vst [vmem:[%s4722] ss:$9 sm:$0xff] %v3888
    %4805 = vst [vmem:[%s4725] ss:$9 sm:$0xff] %v3891
    %4807 = vst [vmem:[%s4727] ss:$9 sm:$0xff] %v3894
    %4809 = vst [vmem:[%s4730] ss:$9 sm:$0xff] %v3897
    %4811 = vst [vmem:[%s4733] ss:$9 sm:$0xff] %v3900
    %4812 = vst [vmem:[%s4736] ss:$9 sm:$0xff] %v3903
    %v4813 = vld [vmem:[#allocation1] sm:$0xff]
    %4815 = vst [vmem:[#allocation1] ss:$9 sm:$0xff] %v3909
    %4817 = vst [vmem:[%s4719] ss:$9 sm:$0xff] %v3912
    %4818 = vst [vmem:[%s4722] ss:$9 sm:$0xff] %v3915
    %4820 = vst [vmem:[%s4725] ss:$9 sm:$0xff] %v3918
    %4822 = vst [vmem:[%s4727] ss:$9 sm:$0xff] %v3921
    %4824 = vst [vmem:[%s4730] ss:$9 sm:$0xff] %v3924
    %4825 = vst [vmem:[%s4733] ss:$9 sm:$0xff] %v3927
    %4827 = vst [vmem:[%s4736] ss:$9 sm:$0xff] %v3930
    %v4828 = vld [vmem:[#allocation1] sm:$0xff]
    %4830 = vst [vmem:[#allocation1] ss:$9 sm:$0xff] %v3936
    %4831 = vst [vmem:[%s4719] ss:$9 sm:$0xff] %v3939
    %4833 = vst [vmem:[%s4722] ss:$9 sm:$0xff] %v3942
    %4835 = vst [vmem:[%s4725] ss:$9 sm:$0xff] %v3945
    %4837 = vst [vmem:[%s4727] ss:$9 sm:$0xff] %v3948
    %4838 = vst [vmem:[%s4730] ss:$9 sm:$0xff] %v3951
    %4840 = vst [vmem:[%s4733] ss:$9 sm:$0xff] %v3954
    %4842 = vst [vmem:[%s4736] ss:$9 sm:$0xff] %v3957
    %v4843 = vld [vmem:[#allocation1] sm:$0xff]
    %4844 = vst [vmem:[#allocation1] ss:$9 sm:$0xff] %v3963
    %4846 = vst [vmem:[%s4719] ss:$9 sm:$0xff] %v3966
    %4848 = vst [vmem:[%s4722] ss:$9 sm:$0xff] %v3969
    %4850 = vst [vmem:[%s4725] ss:$9 sm:$0xff] %v3972
    %4851 = vst [vmem:[%s4727] ss:$9 sm:$0xff] %v3975
    %4853 = vst [vmem:[%s4730] ss:$9 sm:$0xff] %v3978
    %4855 = vst [vmem:[%s4733] ss:$9 sm:$0xff] %v3981
    %4857 = vst [vmem:[%s4736] ss:$9 sm:$0xff] %v3984
    %v4858 = vld [vmem:[#allocation1] sm:$0xff]
    %4860 = vst [vmem:[#allocation1] ss:$9 sm:$0xff] %v3990
    %4862 = vst [vmem:[%s4719] ss:$9 sm:$0xff] %v3993
    %4864 = vst [vmem:[%s4722] ss:$9 sm:$0xff] %v3996
    %4865 = vst [vmem:[%s4725] ss:$9 sm:$0xff] %v3999
    %4867 = vst [vmem:[%s4727] ss:$9 sm:$0xff] %v4002
    %4869 = vst [vmem:[%s4730] ss:$9 sm:$0xff] %v4005
    %4871 = vst [vmem:[%s4733] ss:$9 sm:$0xff] %v4008
    %4872 = vst [vmem:[%s4736] ss:$9 sm:$0xff] %v4011
    %v4873 = vld [vmem:[#allocation1] sm:$0xff]
    %4875 = vst [vmem:[#allocation1] ss:$9 sm:$0xff] %v4017
    %4877 = vst [vmem:[%s4719] ss:$9 sm:$0xff] %v4020
    %4878 = vst [vmem:[%s4722] ss:$9 sm:$0xff] %v4023
    %4880 = vst [vmem:[%s4725] ss:$9 sm:$0xff] %v4026
    %4882 = vst [vmem:[%s4727] ss:$9 sm:$0xff] %v4029
    %4884 = vst [vmem:[%s4730] ss:$9 sm:$0xff] %v4032
    %4885 = vst [vmem:[%s4733] ss:$9 sm:$0xff] %v4035
    %4887 = vst [vmem:[%s4736] ss:$9 sm:$0xff] %v4038
    %v4888 = vld [vmem:[#allocation1] sm:$0xff]
    %4890 = vst [vmem:[#allocation1] ss:$9 sm:$0xff] %v4044
    %4891 = vst [vmem:[%s4719] ss:$9 sm:$0xff] %v4047
    %4893 = vst [vmem:[%s4722] ss:$9 sm:$0xff] %v4050
    %4895 = vst [vmem:[%s4725] ss:$9 sm:$0xff] %v4053
    %4897 = vst [vmem:[%s4727] ss:$9 sm:$0xff] %v4056
    %4898 = vst [vmem:[%s4730] ss:$9 sm:$0xff] %v4059
    %4900 = vst [vmem:[%s4733] ss:$9 sm:$0xff] %v4062
    %4902 = vst [vmem:[%s4736] ss:$9 sm:$0xff] %v4065
    %v4903 = vld [vmem:[#allocation1] sm:$0xff]
    %4904 = vst [vmem:[#allocation1] ss:$9 sm:$0xff] %v4071
    %4906 = vst [vmem:[%s4719] ss:$9 sm:$0xff] %v4074
    %4908 = vst [vmem:[%s4722] ss:$9 sm:$0xff] %v4077
    %4910 = vst [vmem:[%s4725] ss:$9 sm:$0xff] %v4080
    %4911 = vst [vmem:[%s4727] ss:$9 sm:$0xff] %v4083
    %4913 = vst [vmem:[%s4730] ss:$9 sm:$0xff] %v4086
    %4915 = vst [vmem:[%s4733] ss:$9 sm:$0xff] %v4089
    %4917 = vst [vmem:[%s4736] ss:$9 sm:$0xff] %v4092
    %v4918 = vld [vmem:[#allocation1] sm:$0xff]
    %4920 = vst [vmem:[#allocation1] ss:$9 sm:$0xff] %v4098
    %4922 = vst [vmem:[%s4719] ss:$9 sm:$0xff] %v4101
    %4924 = vst [vmem:[%s4722] ss:$9 sm:$0xff] %v4104
    %4925 = vst [vmem:[%s4725] ss:$9 sm:$0xff] %v4107
    %4927 = vst [vmem:[%s4727] ss:$9 sm:$0xff] %v4110
    %4929 = vst [vmem:[%s4730] ss:$9 sm:$0xff] %v4113
    %4931 = vst [vmem:[%s4733] ss:$9 sm:$0xff] %v4116
    %4932 = vst [vmem:[%s4736] ss:$9 sm:$0xff] %v4119
    %v4933 = vld [vmem:[#allocation1] sm:$0xff]
    %4935 = vst [vmem:[#allocation1] ss:$9 sm:$0xff] %v4125
    %4937 = vst [vmem:[%s4719] ss:$9 sm:$0xff] %v4128
    %4938 = vst [vmem:[%s4722] ss:$9 sm:$0xff] %v4131
    %4940 = vst [vmem:[%s4725] ss:$9 sm:$0xff] %v4134
    %4942 = vst [vmem:[%s4727] ss:$9 sm:$0xff] %v4137
    %4944 = vst [vmem:[%s4730] ss:$9 sm:$0xff] %v4140
    %4945 = vst [vmem:[%s4733] ss:$9 sm:$0xff] %v4143
    %4947 = vst [vmem:[%s4736] ss:$9 sm:$0xff] %v4146
    %v4948 = vld [vmem:[#allocation1] sm:$0xff]
    %4950 = vst [vmem:[#allocation1] ss:$9 sm:$0xff] %v4152
    %4951 = vst [vmem:[%s4719] ss:$9 sm:$0xff] %v4155
    %4953 = vst [vmem:[%s4722] ss:$9 sm:$0xff] %v4158
    %4955 = vst [vmem:[%s4725] ss:$9 sm:$0xff] %v4161
    %4957 = vst [vmem:[%s4727] ss:$9 sm:$0xff] %v4164
    %4958 = vst [vmem:[%s4730] ss:$9 sm:$0xff] %v4167
    %4960 = vst [vmem:[%s4733] ss:$9 sm:$0xff] %v4170
    %4962 = vst [vmem:[%s4736] ss:$9 sm:$0xff] %v4173
    %v4963 = vld [vmem:[#allocation1] sm:$0xff]
    %4965 = vst [vmem:[#allocation1] ss:$9 sm:$0xff] %v4233
    %4967 = vst [vmem:[%s4719] ss:$9 sm:$0xff] %v4236
    %4968 = vst [vmem:[%s4722] ss:$9 sm:$0xff] %v4239
    %4970 = vst [vmem:[%s4725] ss:$9 sm:$0xff] %v4242
    %4972 = vst [vmem:[%s4727] ss:$9 sm:$0xff] %v4245
    %4974 = vst [vmem:[%s4730] ss:$9 sm:$0xff] %v4248
    %4975 = vst [vmem:[%s4733] ss:$9 sm:$0xff] %v4251
    %4977 = vst [vmem:[%s4736] ss:$9 sm:$0xff] %v4254
    %v4978 = vld [vmem:[#allocation1] sm:$0xff]
    %4980 = vst [vmem:[#allocation1] ss:$9 sm:$0xff] %v4260
    %4981 = vst [vmem:[%s4719] ss:$9 sm:$0xff] %v4263
    %4983 = vst [vmem:[%s4722] ss:$9 sm:$0xff] %v4266
    %4985 = vst [vmem:[%s4725] ss:$9 sm:$0xff] %v4269
    %4987 = vst [vmem:[%s4727] ss:$9 sm:$0xff] %v4272
    %4988 = vst [vmem:[%s4730] ss:$9 sm:$0xff] %v4275
    %4990 = vst [vmem:[%s4733] ss:$9 sm:$0xff] %v4278
    %4992 = vst [vmem:[%s4736] ss:$9 sm:$0xff] %v4281
    %v4993 = vld [vmem:[#allocation1] sm:$0xff]
    %4994 = vst [vmem:[#allocation1] ss:$9 sm:$0xff] %v4287
    %4996 = vst [vmem:[%s4719] ss:$9 sm:$0xff] %v4290
    %4998 = vst [vmem:[%s4722] ss:$9 sm:$0xff] %v4293
    %5000 = vst [vmem:[%s4725] ss:$9 sm:$0xff] %v4296
    %5001 = vst [vmem:[%s4727] ss:$9 sm:$0xff] %v4299
    %5003 = vst [vmem:[%s4730] ss:$9 sm:$0xff] %v4302
    %5005 = vst [vmem:[%s4733] ss:$9 sm:$0xff] %v4305
    %5007 = vst [vmem:[%s4736] ss:$9 sm:$0xff] %v4308
    %v5008 = vld [vmem:[#allocation1] sm:$0xff]
    %5010 = vst [vmem:[#allocation1] ss:$9 sm:$0xff] %v4314
    %5012 = vst [vmem:[%s4719] ss:$9 sm:$0xff] %v4317
    %5014 = vst [vmem:[%s4722] ss:$9 sm:$0xff] %v4320
    %5015 = vst [vmem:[%s4725] ss:$9 sm:$0xff] %v4323
    %5017 = vst [vmem:[%s4727] ss:$9 sm:$0xff] %v4326
    %5019 = vst [vmem:[%s4730] ss:$9 sm:$0xff] %v4329
    %5021 = vst [vmem:[%s4733] ss:$9 sm:$0xff] %v4332
    %5022 = vst [vmem:[%s4736] ss:$9 sm:$0xff] %v4335
    %v5023 = vld [vmem:[#allocation1] sm:$0xff]
    %5025 = vst [vmem:[#allocation1] ss:$9 sm:$0xff] %v4341
    %5027 = vst [vmem:[%s4719] ss:$9 sm:$0xff] %v4344
    %5028 = vst [vmem:[%s4722] ss:$9 sm:$0xff] %v4347
    %5030 = vst [vmem:[%s4725] ss:$9 sm:$0xff] %v4350
    %5032 = vst [vmem:[%s4727] ss:$9 sm:$0xff] %v4353
    %5034 = vst [vmem:[%s4730] ss:$9 sm:$0xff] %v4356
    %5035 = vst [vmem:[%s4733] ss:$9 sm:$0xff] %v4359
    %5037 = vst [vmem:[%s4736] ss:$9 sm:$0xff] %v4362
    %v5038 = vld [vmem:[#allocation1] sm:$0xff]
    %5040 = vst [vmem:[#allocation1] ss:$9 sm:$0xff] %v4368
    %5041 = vst [vmem:[%s4719] ss:$9 sm:$0xff] %v4371
    %5043 = vst [vmem:[%s4722] ss:$9 sm:$0xff] %v4374
    %5045 = vst [vmem:[%s4725] ss:$9 sm:$0xff] %v4377
    %5047 = vst [vmem:[%s4727] ss:$9 sm:$0xff] %v4380
    %5048 = vst [vmem:[%s4730] ss:$9 sm:$0xff] %v4383
    %5050 = vst [vmem:[%s4733] ss:$9 sm:$0xff] %v4386
    %5052 = vst [vmem:[%s4736] ss:$9 sm:$0xff] %v4389
    %v5053 = vld [vmem:[#allocation1] sm:$0xff]
    %5054 = vst [vmem:[#allocation1] ss:$9 sm:$0xff] %v4395
    %5056 = vst [vmem:[%s4719] ss:$9 sm:$0xff] %v4398
    %5058 = vst [vmem:[%s4722] ss:$9 sm:$0xff] %v4401
    %5060 = vst [vmem:[%s4725] ss:$9 sm:$0xff] %v4404
    %5061 = vst [vmem:[%s4727] ss:$9 sm:$0xff] %v4407
    %5063 = vst [vmem:[%s4730] ss:$9 sm:$0xff] %v4410
    %5065 = vst [vmem:[%s4733] ss:$9 sm:$0xff] %v4413
    %5067 = vst [vmem:[%s4736] ss:$9 sm:$0xff] %v4416
    %v5068 = vld [vmem:[#allocation1] sm:$0xff]
    %5070 = vst [vmem:[#allocation1] ss:$9 sm:$0xff] %v4422
    %5072 = vst [vmem:[%s4719] ss:$9 sm:$0xff] %v4425
    %5074 = vst [vmem:[%s4722] ss:$9 sm:$0xff] %v4428
    %5075 = vst [vmem:[%s4725] ss:$9 sm:$0xff] %v4431
    %5077 = vst [vmem:[%s4727] ss:$9 sm:$0xff] %v4434
    %5079 = vst [vmem:[%s4730] ss:$9 sm:$0xff] %v4437
    %5081 = vst [vmem:[%s4733] ss:$9 sm:$0xff] %v4440
    %5082 = vst [vmem:[%s4736] ss:$9 sm:$0xff] %v4443
    %v5083 = vld [vmem:[#allocation1] sm:$0xff]
    %5085 = vst [vmem:[#allocation1] ss:$9 sm:$0xff] %v4449
    %5087 = vst [vmem:[%s4719] ss:$9 sm:$0xff] %v4452
    %5088 = vst [vmem:[%s4722] ss:$9 sm:$0xff] %v4455
    %5090 = vst [vmem:[%s4725] ss:$9 sm:$0xff] %v4458
    %5092 = vst [vmem:[%s4727] ss:$9 sm:$0xff] %v4461
    %5094 = vst [vmem:[%s4730] ss:$9 sm:$0xff] %v4464
    %5095 = vst [vmem:[%s4733] ss:$9 sm:$0xff] %v4467
    %5097 = vst [vmem:[%s4736] ss:$9 sm:$0xff] %v4470
    %v5098 = vld [vmem:[#allocation1] sm:$0xff]
    %5100 = vst [vmem:[#allocation1] ss:$9 sm:$0xff] %v4476
    %5101 = vst [vmem:[%s4719] ss:$9 sm:$0xff] %v4479
    %5103 = vst [vmem:[%s4722] ss:$9 sm:$0xff] %v4482
    %5105 = vst [vmem:[%s4725] ss:$9 sm:$0xff] %v4485
    %5107 = vst [vmem:[%s4727] ss:$9 sm:$0xff] %v4488
    %5108 = vst [vmem:[%s4730] ss:$9 sm:$0xff] %v4491
    %5110 = vst [vmem:[%s4733] ss:$9 sm:$0xff] %v4494
    %5112 = vst [vmem:[%s4736] ss:$9 sm:$0xff] %v4497
    %v5113 = vld [vmem:[#allocation1] sm:$0xff]
    %5114 = vst [vmem:[#allocation1] ss:$9 sm:$0xff] %v4503
    %5116 = vst [vmem:[%s4719] ss:$9 sm:$0xff] %v4506
    %5118 = vst [vmem:[%s4722] ss:$9 sm:$0xff] %v4509
    %5120 = vst [vmem:[%s4725] ss:$9 sm:$0xff] %v4512
    %5121 = vst [vmem:[%s4727] ss:$9 sm:$0xff] %v4515
    %5123 = vst [vmem:[%s4730] ss:$9 sm:$0xff] %v4518
    %5125 = vst [vmem:[%s4733] ss:$9 sm:$0xff] %v4521
    %5127 = vst [vmem:[%s4736] ss:$9 sm:$0xff] %v4524
    %v5128 = vld [vmem:[#allocation1] sm:$0xff]
    %5130 = vst [vmem:[#allocation1] ss:$9 sm:$0xff] %v4530
    %5132 = vst [vmem:[%s4719] ss:$9 sm:$0xff] %v4533
    %5134 = vst [vmem:[%s4722] ss:$9 sm:$0xff] %v4536
    %5135 = vst [vmem:[%s4725] ss:$9 sm:$0xff] %v4539
    %5137 = vst [vmem:[%s4727] ss:$9 sm:$0xff] %v4542
    %5139 = vst [vmem:[%s4730] ss:$9 sm:$0xff] %v4545
    %5141 = vst [vmem:[%s4733] ss:$9 sm:$0xff] %v4548
    %5142 = vst [vmem:[%s4736] ss:$9 sm:$0xff] %v4551
    %v5143 = vld [vmem:[#allocation1] sm:$0xff]
    %5145 = vst [vmem:[#allocation1] ss:$9 sm:$0xff] %v4557
    %5147 = vst [vmem:[%s4719] ss:$9 sm:$0xff] %v4560
    %5148 = vst [vmem:[%s4722] ss:$9 sm:$0xff] %v4563
    %5150 = vst [vmem:[%s4725] ss:$9 sm:$0xff] %v4566
    %5152 = vst [vmem:[%s4727] ss:$9 sm:$0xff] %v4569
    %5154 = vst [vmem:[%s4730] ss:$9 sm:$0xff] %v4572
    %5155 = vst [vmem:[%s4733] ss:$9 sm:$0xff] %v4575
    %5157 = vst [vmem:[%s4736] ss:$9 sm:$0xff] %v4578
    %v5158 = vld [vmem:[#allocation1] sm:$0xff]
    %5160 = vst [vmem:[#allocation1] ss:$9 sm:$0xff] %v4584
    %5161 = vst [vmem:[%s4719] ss:$9 sm:$0xff] %v4587
    %5163 = vst [vmem:[%s4722] ss:$9 sm:$0xff] %v4590
    %5165 = vst [vmem:[%s4725] ss:$9 sm:$0xff] %v4593
    %5167 = vst [vmem:[%s4727] ss:$9 sm:$0xff] %v4596
    %5168 = vst [vmem:[%s4730] ss:$9 sm:$0xff] %v4599
    %5170 = vst [vmem:[%s4733] ss:$9 sm:$0xff] %v4602
    %5172 = vst [vmem:[%s4736] ss:$9 sm:$0xff] %v4605
    %v5173 = vld [vmem:[#allocation1] sm:$0xff]
    %5174 = vst [vmem:[#allocation1] ss:$9 sm:$0xff] %v4611
    %5176 = vst [vmem:[%s4719] ss:$9 sm:$0xff] %v4614
    %5178 = vst [vmem:[%s4722] ss:$9 sm:$0xff] %v4617
    %5180 = vst [vmem:[%s4725] ss:$9 sm:$0xff] %v4620
    %5181 = vst [vmem:[%s4727] ss:$9 sm:$0xff] %v4623
    %5183 = vst [vmem:[%s4730] ss:$9 sm:$0xff] %v4626
    %5185 = vst [vmem:[%s4733] ss:$9 sm:$0xff] %v4629
    %5187 = vst [vmem:[%s4736] ss:$9 sm:$0xff] %v4632
    %v5188 = vld [vmem:[#allocation1] sm:$0xff]
    %5190 = vst [vmem:[#allocation1] ss:$9 sm:$0xff] %v4638
    %5192 = vst [vmem:[%s4719] ss:$9 sm:$0xff] %v4641
    %5194 = vst [vmem:[%s4722] ss:$9 sm:$0xff] %v4644
    %5195 = vst [vmem:[%s4725] ss:$9 sm:$0xff] %v4647
    %5197 = vst [vmem:[%s4727] ss:$9 sm:$0xff] %v4650
    %5199 = vst [vmem:[%s4730] ss:$9 sm:$0xff] %v4653
    %5201 = vst [vmem:[%s4733] ss:$9 sm:$0xff] %v4656
    %5202 = vst [vmem:[%s4736] ss:$9 sm:$0xff] %v4659
    %v5203 = vld [vmem:[#allocation1] sm:$0xff]
    %5236 = vst [vmem:[#allocation1] ss:$9 sm:$0xff] %v3747
    %s5237 = scalar_lea.vmem [#allocation1], 1
    %5238 = vst [vmem:[%s5237] ss:$9 sm:$0xff] %v3750
    %s5239 = scalar_lea.vmem [#allocation1], 2
    %5240 = vst [vmem:[%s5239] ss:$9 sm:$0xff] %v3753
    %s5241 = scalar_lea.vmem [#allocation1], 3
    %5242 = vst [vmem:[%s5241] ss:$9 sm:$0xff] %v3756
    %s5243 = scalar_lea.vmem [#allocation1], 4
    %5244 = vst [vmem:[%s5243] ss:$9 sm:$0xff] %v3759
    %s5245 = scalar_lea.vmem [#allocation1], 5
    %5246 = vst [vmem:[%s5245] ss:$9 sm:$0xff] %v3762
    %s5247 = scalar_lea.vmem [#allocation1], 6
    %5248 = vst [vmem:[%s5247] ss:$9 sm:$0xff] %v3765
    %s5249 = scalar_lea.vmem [#allocation1], 7
    %5250 = vst [vmem:[%s5249] ss:$9 sm:$0xff] %v3768
    %v5251 = vld [vmem:[#allocation1] sm:$0xff]
    %5252 = vst [vmem:[#allocation1] ss:$9 sm:$0xff] %v3771
    %v5253 = vld [vmem:[#allocation1] sm:$0xff]
    %5254 = vst [vmem:[#allocation1] ss:$9 sm:$0xff] %v3774
    %5255 = vst [vmem:[%s5237] ss:$9 sm:$0xff] %v3777
    %5256 = vst [vmem:[%s5239] ss:$9 sm:$0xff] %v3780
    %5257 = vst [vmem:[%s5241] ss:$9 sm:$0xff] %v3783
    %5258 = vst [vmem:[%s5243] ss:$9 sm:$0xff] %v3786
    %5259 = vst [vmem:[%s5245] ss:$9 sm:$0xff] %v3789
    %5260 = vst [vmem:[%s5247] ss:$9 sm:$0xff] %v3792
    %5261 = vst [vmem:[%s5249] ss:$9 sm:$0xff] %v3795
    %v5262 = vld [vmem:[#allocation1] sm:$0xff]
    %5264 = vst [vmem:[#allocation1] ss:$9 sm:$0xff] %v3798
    %v5265 = vld [vmem:[#allocation1] sm:$0xff]
    %5266 = vst [vmem:[#allocation1] ss:$9 sm:$0xff] %v3801
    %5267 = vst [vmem:[%s5237] ss:$9 sm:$0xff] %v3804
    %5268 = vst [vmem:[%s5239] ss:$9 sm:$0xff] %v3807
    %5269 = vst [vmem:[%s5241] ss:$9 sm:$0xff] %v3810
    %5270 = vst [vmem:[%s5243] ss:$9 sm:$0xff] %v3813
    %5271 = vst [vmem:[%s5245] ss:$9 sm:$0xff] %v3816
    %5272 = vst [vmem:[%s5247] ss:$9 sm:$0xff] %v3819
    %5273 = vst [vmem:[%s5249] ss:$9 sm:$0xff] %v3822
    %v5274 = vld [vmem:[#allocation1] sm:$0xff]
    %5276 = vst [vmem:[#allocation1] ss:$9 sm:$0xff] %v3825
    %v5277 = vld [vmem:[#allocation1] sm:$0xff]
    %5278 = vst [vmem:[#allocation1] ss:$9 sm:$0xff] %v3828
    %5279 = vst [vmem:[%s5237] ss:$9 sm:$0xff] %v3831
    %5280 = vst [vmem:[%s5239] ss:$9 sm:$0xff] %v3834
    %5281 = vst [vmem:[%s5241] ss:$9 sm:$0xff] %v3837
    %5282 = vst [vmem:[%s5243] ss:$9 sm:$0xff] %v3840
    %5283 = vst [vmem:[%s5245] ss:$9 sm:$0xff] %v3843
    %5284 = vst [vmem:[%s5247] ss:$9 sm:$0xff] %v3846
    %5285 = vst [vmem:[%s5249] ss:$9 sm:$0xff] %v3849
    %v5286 = vld [vmem:[#allocation1] sm:$0xff]
    %5288 = vst [vmem:[#allocation1] ss:$9 sm:$0xff] %v3852
    %v5289 = vld [vmem:[#allocation1] sm:$0xff]
    %5290 = vst [vmem:[#allocation1] ss:$9 sm:$0xff] %v3855
    %5291 = vst [vmem:[%s5237] ss:$9 sm:$0xff] %v3858
    %5292 = vst [vmem:[%s5239] ss:$9 sm:$0xff] %v3861
    %5293 = vst [vmem:[%s5241] ss:$9 sm:$0xff] %v3864
    %5294 = vst [vmem:[%s5243] ss:$9 sm:$0xff] %v3867
    %5295 = vst [vmem:[%s5245] ss:$9 sm:$0xff] %v3870
    %5296 = vst [vmem:[%s5247] ss:$9 sm:$0xff] %v3873
    %5297 = vst [vmem:[%s5249] ss:$9 sm:$0xff] %v3876
    %v5298 = vld [vmem:[#allocation1] sm:$0xff]
    %5299 = vst [vmem:[#allocation1] ss:$9 sm:$0xff] %v3879
    %v5300 = vld [vmem:[#allocation1] sm:$0xff]
    %5301 = vst [vmem:[#allocation1] ss:$9 sm:$0xff] %v3882
    %5302 = vst [vmem:[%s5237] ss:$9 sm:$0xff] %v3885
    %5303 = vst [vmem:[%s5239] ss:$9 sm:$0xff] %v3888
    %5304 = vst [vmem:[%s5241] ss:$9 sm:$0xff] %v3891
    %5305 = vst [vmem:[%s5243] ss:$9 sm:$0xff] %v3894
    %5306 = vst [vmem:[%s5245] ss:$9 sm:$0xff] %v3897
    %5307 = vst [vmem:[%s5247] ss:$9 sm:$0xff] %v3900
    %5308 = vst [vmem:[%s5249] ss:$9 sm:$0xff] %v3903
    %v5309 = vld [vmem:[#allocation1] sm:$0xff]
    %5311 = vst [vmem:[#allocation1] ss:$9 sm:$0xff] %v3906
    %v5312 = vld [vmem:[#allocation1] sm:$0xff]
    %5313 = vst [vmem:[#allocation1] ss:$9 sm:$0xff] %v3909
    %5314 = vst [vmem:[%s5237] ss:$9 sm:$0xff] %v3912
    %5315 = vst [vmem:[%s5239] ss:$9 sm:$0xff] %v3915
    %5316 = vst [vmem:[%s5241] ss:$9 sm:$0xff] %v3918
    %5317 = vst [vmem:[%s5243] ss:$9 sm:$0xff] %v3921
    %5318 = vst [vmem:[%s5245] ss:$9 sm:$0xff] %v3924
    %5319 = vst [vmem:[%s5247] ss:$9 sm:$0xff] %v3927
    %5320 = vst [vmem:[%s5249] ss:$9 sm:$0xff] %v3930
    %v5321 = vld [vmem:[#allocation1] sm:$0xff]
    %5323 = vst [vmem:[#allocation1] ss:$9 sm:$0xff] %v3933
    %v5324 = vld [vmem:[#allocation1] sm:$0xff]
    %5325 = vst [vmem:[#allocation1] ss:$9 sm:$0xff] %v3936
    %5326 = vst [vmem:[%s5237] ss:$9 sm:$0xff] %v3939
    %5327 = vst [vmem:[%s5239] ss:$9 sm:$0xff] %v3942
    %5328 = vst [vmem:[%s5241] ss:$9 sm:$0xff] %v3945
    %5329 = vst [vmem:[%s5243] ss:$9 sm:$0xff] %v3948
    %5330 = vst [vmem:[%s5245] ss:$9 sm:$0xff] %v3951
    %5331 = vst [vmem:[%s5247] ss:$9 sm:$0xff] %v3954
    %5332 = vst [vmem:[%s5249] ss:$9 sm:$0xff] %v3957
    %v5333 = vld [vmem:[#allocation1] sm:$0xff]
    %5335 = vst [vmem:[#allocation1] ss:$9 sm:$0xff] %v3960
    %v5336 = vld [vmem:[#allocation1] sm:$0xff]
    %5337 = vst [vmem:[#allocation1] ss:$9 sm:$0xff] %v3963
    %5338 = vst [vmem:[%s5237] ss:$9 sm:$0xff] %v3966
    %5339 = vst [vmem:[%s5239] ss:$9 sm:$0xff] %v3969
    %5340 = vst [vmem:[%s5241] ss:$9 sm:$0xff] %v3972
    %5341 = vst [vmem:[%s5243] ss:$9 sm:$0xff] %v3975
    %5342 = vst [vmem:[%s5245] ss:$9 sm:$0xff] %v3978
    %5343 = vst [vmem:[%s5247] ss:$9 sm:$0xff] %v3981
    %5344 = vst [vmem:[%s5249] ss:$9 sm:$0xff] %v3984
    %v5345 = vld [vmem:[#allocation1] sm:$0xff]
    %5346 = vst [vmem:[#allocation1] ss:$9 sm:$0xff] %v3987
    %v5347 = vld [vmem:[#allocation1] sm:$0xff]
    %5348 = vst [vmem:[#allocation1] ss:$9 sm:$0xff] %v3990
    %5349 = vst [vmem:[%s5237] ss:$9 sm:$0xff] %v3993
    %5350 = vst [vmem:[%s5239] ss:$9 sm:$0xff] %v3996
    %5351 = vst [vmem:[%s5241] ss:$9 sm:$0xff] %v3999
    %5352 = vst [vmem:[%s5243] ss:$9 sm:$0xff] %v4002
    %5353 = vst [vmem:[%s5245] ss:$9 sm:$0xff] %v4005
    %5354 = vst [vmem:[%s5247] ss:$9 sm:$0xff] %v4008
    %5355 = vst [vmem:[%s5249] ss:$9 sm:$0xff] %v4011
    %v5356 = vld [vmem:[#allocation1] sm:$0xff]
    %5358 = vst [vmem:[#allocation1] ss:$9 sm:$0xff] %v4014
    %v5359 = vld [vmem:[#allocation1] sm:$0xff]
    %5360 = vst [vmem:[#allocation1] ss:$9 sm:$0xff] %v4017
    %5361 = vst [vmem:[%s5237] ss:$9 sm:$0xff] %v4020
    %5362 = vst [vmem:[%s5239] ss:$9 sm:$0xff] %v4023
    %5363 = vst [vmem:[%s5241] ss:$9 sm:$0xff] %v4026
    %5364 = vst [vmem:[%s5243] ss:$9 sm:$0xff] %v4029
    %5365 = vst [vmem:[%s5245] ss:$9 sm:$0xff] %v4032
    %5366 = vst [vmem:[%s5247] ss:$9 sm:$0xff] %v4035
    %5367 = vst [vmem:[%s5249] ss:$9 sm:$0xff] %v4038
    %v5368 = vld [vmem:[#allocation1] sm:$0xff]
    %5370 = vst [vmem:[#allocation1] ss:$9 sm:$0xff] %v4041
    %v5371 = vld [vmem:[#allocation1] sm:$0xff]
    %5372 = vst [vmem:[#allocation1] ss:$9 sm:$0xff] %v4044
    %5373 = vst [vmem:[%s5237] ss:$9 sm:$0xff] %v4047
    %5374 = vst [vmem:[%s5239] ss:$9 sm:$0xff] %v4050
    %5375 = vst [vmem:[%s5241] ss:$9 sm:$0xff] %v4053
    %5376 = vst [vmem:[%s5243] ss:$9 sm:$0xff] %v4056
    %5377 = vst [vmem:[%s5245] ss:$9 sm:$0xff] %v4059
    %5378 = vst [vmem:[%s5247] ss:$9 sm:$0xff] %v4062
    %5379 = vst [vmem:[%s5249] ss:$9 sm:$0xff] %v4065
    %v5380 = vld [vmem:[#allocation1] sm:$0xff]
    %5382 = vst [vmem:[#allocation1] ss:$9 sm:$0xff] %v4068
    %v5383 = vld [vmem:[#allocation1] sm:$0xff]
    %5384 = vst [vmem:[#allocation1] ss:$9 sm:$0xff] %v4071
    %5385 = vst [vmem:[%s5237] ss:$9 sm:$0xff] %v4074
    %5386 = vst [vmem:[%s5239] ss:$9 sm:$0xff] %v4077
    %5387 = vst [vmem:[%s5241] ss:$9 sm:$0xff] %v4080
    %5388 = vst [vmem:[%s5243] ss:$9 sm:$0xff] %v4083
    %5389 = vst [vmem:[%s5245] ss:$9 sm:$0xff] %v4086
    %5390 = vst [vmem:[%s5247] ss:$9 sm:$0xff] %v4089
    %5391 = vst [vmem:[%s5249] ss:$9 sm:$0xff] %v4092
    %v5392 = vld [vmem:[#allocation1] sm:$0xff]
    %5393 = vst [vmem:[#allocation1] ss:$9 sm:$0xff] %v4095
    %v5394 = vld [vmem:[#allocation1] sm:$0xff]
    %5395 = vst [vmem:[#allocation1] ss:$9 sm:$0xff] %v4098
    %5396 = vst [vmem:[%s5237] ss:$9 sm:$0xff] %v4101
    %5397 = vst [vmem:[%s5239] ss:$9 sm:$0xff] %v4104
    %5398 = vst [vmem:[%s5241] ss:$9 sm:$0xff] %v4107
    %5399 = vst [vmem:[%s5243] ss:$9 sm:$0xff] %v4110
    %5400 = vst [vmem:[%s5245] ss:$9 sm:$0xff] %v4113
    %5401 = vst [vmem:[%s5247] ss:$9 sm:$0xff] %v4116
    %5402 = vst [vmem:[%s5249] ss:$9 sm:$0xff] %v4119
    %v5403 = vld [vmem:[#allocation1] sm:$0xff]
    %5405 = vst [vmem:[#allocation1] ss:$9 sm:$0xff] %v4122
    %v5406 = vld [vmem:[#allocation1] sm:$0xff]
    %5407 = vst [vmem:[#allocation1] ss:$9 sm:$0xff] %v4125
    %5408 = vst [vmem:[%s5237] ss:$9 sm:$0xff] %v4128
    %5409 = vst [vmem:[%s5239] ss:$9 sm:$0xff] %v4131
    %5410 = vst [vmem:[%s5241] ss:$9 sm:$0xff] %v4134
    %5411 = vst [vmem:[%s5243] ss:$9 sm:$0xff] %v4137
    %5412 = vst [vmem:[%s5245] ss:$9 sm:$0xff] %v4140
    %5413 = vst [vmem:[%s5247] ss:$9 sm:$0xff] %v4143
    %5414 = vst [vmem:[%s5249] ss:$9 sm:$0xff] %v4146
    %v5415 = vld [vmem:[#allocation1] sm:$0xff]
    %5417 = vst [vmem:[#allocation1] ss:$9 sm:$0xff] %v4149
    %v5418 = vld [vmem:[#allocation1] sm:$0xff]
    %5419 = vst [vmem:[#allocation1] ss:$9 sm:$0xff] %v4152
    %5420 = vst [vmem:[%s5237] ss:$9 sm:$0xff] %v4155
    %5421 = vst [vmem:[%s5239] ss:$9 sm:$0xff] %v4158
    %5422 = vst [vmem:[%s5241] ss:$9 sm:$0xff] %v4161
    %5423 = vst [vmem:[%s5243] ss:$9 sm:$0xff] %v4164
    %5424 = vst [vmem:[%s5245] ss:$9 sm:$0xff] %v4167
    %5425 = vst [vmem:[%s5247] ss:$9 sm:$0xff] %v4170
    %5426 = vst [vmem:[%s5249] ss:$9 sm:$0xff] %v4173
    %v5427 = vld [vmem:[#allocation1] sm:$0xff]
    %5429 = vst [vmem:[#allocation1] ss:$9 sm:$0xff] %v4176
    %v5430 = vld [vmem:[#allocation1] sm:$0xff]
    %5431 = vst [vmem:[#allocation1] ss:$9 sm:$0xff] %v4233
    %5432 = vst [vmem:[%s5237] ss:$9 sm:$0xff] %v4236
    %5433 = vst [vmem:[%s5239] ss:$9 sm:$0xff] %v4239
    %5434 = vst [vmem:[%s5241] ss:$9 sm:$0xff] %v4242
    %5435 = vst [vmem:[%s5243] ss:$9 sm:$0xff] %v4245
    %5436 = vst [vmem:[%s5245] ss:$9 sm:$0xff] %v4248
    %5437 = vst [vmem:[%s5247] ss:$9 sm:$0xff] %v4251
    %5438 = vst [vmem:[%s5249] ss:$9 sm:$0xff] %v4254
    %v5439 = vld [vmem:[#allocation1] sm:$0xff]
    %5441 = vst [vmem:[#allocation1] ss:$9 sm:$0xff] %v4257
    %v5442 = vld [vmem:[#allocation1] sm:$0xff]
    %5443 = vst [vmem:[#allocation1] ss:$9 sm:$0xff] %v4260
    %5444 = vst [vmem:[%s5237] ss:$9 sm:$0xff] %v4263
    %5445 = vst [vmem:[%s5239] ss:$9 sm:$0xff] %v4266
    %5446 = vst [vmem:[%s5241] ss:$9 sm:$0xff] %v4269
    %5447 = vst [vmem:[%s5243] ss:$9 sm:$0xff] %v4272
    %5448 = vst [vmem:[%s5245] ss:$9 sm:$0xff] %v4275
    %5449 = vst [vmem:[%s5247] ss:$9 sm:$0xff] %v4278
    %5450 = vst [vmem:[%s5249] ss:$9 sm:$0xff] %v4281
    %v5451 = vld [vmem:[#allocation1] sm:$0xff]
    %5453 = vst [vmem:[#allocation1] ss:$9 sm:$0xff] %v4284
    %v5454 = vld [vmem:[#allocation1] sm:$0xff]
    %5455 = vst [vmem:[#allocation1] ss:$9 sm:$0xff] %v4287
    %5456 = vst [vmem:[%s5237] ss:$9 sm:$0xff] %v4290
    %5457 = vst [vmem:[%s5239] ss:$9 sm:$0xff] %v4293
    %5458 = vst [vmem:[%s5241] ss:$9 sm:$0xff] %v4296
    %5459 = vst [vmem:[%s5243] ss:$9 sm:$0xff] %v4299
    %5460 = vst [vmem:[%s5245] ss:$9 sm:$0xff] %v4302
    %5461 = vst [vmem:[%s5247] ss:$9 sm:$0xff] %v4305
    %5462 = vst [vmem:[%s5249] ss:$9 sm:$0xff] %v4308
    %v5463 = vld [vmem:[#allocation1] sm:$0xff]
    %5464 = vst [vmem:[#allocation1] ss:$9 sm:$0xff] %v4311
    %v5465 = vld [vmem:[#allocation1] sm:$0xff]
    %5466 = vst [vmem:[#allocation1] ss:$9 sm:$0xff] %v4314
    %5467 = vst [vmem:[%s5237] ss:$9 sm:$0xff] %v4317
    %5468 = vst [vmem:[%s5239] ss:$9 sm:$0xff] %v4320
    %5469 = vst [vmem:[%s5241] ss:$9 sm:$0xff] %v4323
    %5470 = vst [vmem:[%s5243] ss:$9 sm:$0xff] %v4326
    %5471 = vst [vmem:[%s5245] ss:$9 sm:$0xff] %v4329
    %5472 = vst [vmem:[%s5247] ss:$9 sm:$0xff] %v4332
    %5473 = vst [vmem:[%s5249] ss:$9 sm:$0xff] %v4335
    %v5474 = vld [vmem:[#allocation1] sm:$0xff]
    %5476 = vst [vmem:[#allocation1] ss:$9 sm:$0xff] %v4338
    %v5477 = vld [vmem:[#allocation1] sm:$0xff]
    %5478 = vst [vmem:[#allocation1] ss:$9 sm:$0xff] %v4341
    %5479 = vst [vmem:[%s5237] ss:$9 sm:$0xff] %v4344
    %5480 = vst [vmem:[%s5239] ss:$9 sm:$0xff] %v4347
    %5481 = vst [vmem:[%s5241] ss:$9 sm:$0xff] %v4350
    %5482 = vst [vmem:[%s5243] ss:$9 sm:$0xff] %v4353
    %5483 = vst [vmem:[%s5245] ss:$9 sm:$0xff] %v4356
    %5484 = vst [vmem:[%s5247] ss:$9 sm:$0xff] %v4359
    %5485 = vst [vmem:[%s5249] ss:$9 sm:$0xff] %v4362
    %v5486 = vld [vmem:[#allocation1] sm:$0xff]
    %5488 = vst [vmem:[#allocation1] ss:$9 sm:$0xff] %v4365
    %v5489 = vld [vmem:[#allocation1] sm:$0xff]
    %5490 = vst [vmem:[#allocation1] ss:$9 sm:$0xff] %v4368
    %5491 = vst [vmem:[%s5237] ss:$9 sm:$0xff] %v4371
    %5492 = vst [vmem:[%s5239] ss:$9 sm:$0xff] %v4374
    %5493 = vst [vmem:[%s5241] ss:$9 sm:$0xff] %v4377
    %5494 = vst [vmem:[%s5243] ss:$9 sm:$0xff] %v4380
    %5495 = vst [vmem:[%s5245] ss:$9 sm:$0xff] %v4383
    %5496 = vst [vmem:[%s5247] ss:$9 sm:$0xff] %v4386
    %5497 = vst [vmem:[%s5249] ss:$9 sm:$0xff] %v4389
    %v5498 = vld [vmem:[#allocation1] sm:$0xff]
    %5500 = vst [vmem:[#allocation1] ss:$9 sm:$0xff] %v4392
    %v5501 = vld [vmem:[#allocation1] sm:$0xff]
    %5502 = vst [vmem:[#allocation1] ss:$9 sm:$0xff] %v4395
    %5503 = vst [vmem:[%s5237] ss:$9 sm:$0xff] %v4398
    %5504 = vst [vmem:[%s5239] ss:$9 sm:$0xff] %v4401
    %5505 = vst [vmem:[%s5241] ss:$9 sm:$0xff] %v4404
    %5506 = vst [vmem:[%s5243] ss:$9 sm:$0xff] %v4407
    %5507 = vst [vmem:[%s5245] ss:$9 sm:$0xff] %v4410
    %5508 = vst [vmem:[%s5247] ss:$9 sm:$0xff] %v4413
    %5509 = vst [vmem:[%s5249] ss:$9 sm:$0xff] %v4416
    %v5510 = vld [vmem:[#allocation1] sm:$0xff]
    %5511 = vst [vmem:[#allocation1] ss:$9 sm:$0xff] %v4419
    %v5512 = vld [vmem:[#allocation1] sm:$0xff]
    %5513 = vst [vmem:[#allocation1] ss:$9 sm:$0xff] %v4422
    %5514 = vst [vmem:[%s5237] ss:$9 sm:$0xff] %v4425
    %5515 = vst [vmem:[%s5239] ss:$9 sm:$0xff] %v4428
    %5516 = vst [vmem:[%s5241] ss:$9 sm:$0xff] %v4431
    %5517 = vst [vmem:[%s5243] ss:$9 sm:$0xff] %v4434
    %5518 = vst [vmem:[%s5245] ss:$9 sm:$0xff] %v4437
    %5519 = vst [vmem:[%s5247] ss:$9 sm:$0xff] %v4440
    %5520 = vst [vmem:[%s5249] ss:$9 sm:$0xff] %v4443
    %v5521 = vld [vmem:[#allocation1] sm:$0xff]
    %5523 = vst [vmem:[#allocation1] ss:$9 sm:$0xff] %v4446
    %v5524 = vld [vmem:[#allocation1] sm:$0xff]
    %5525 = vst [vmem:[#allocation1] ss:$9 sm:$0xff] %v4449
    %5526 = vst [vmem:[%s5237] ss:$9 sm:$0xff] %v4452
    %5527 = vst [vmem:[%s5239] ss:$9 sm:$0xff] %v4455
    %5528 = vst [vmem:[%s5241] ss:$9 sm:$0xff] %v4458
    %5529 = vst [vmem:[%s5243] ss:$9 sm:$0xff] %v4461
    %5530 = vst [vmem:[%s5245] ss:$9 sm:$0xff] %v4464
    %5531 = vst [vmem:[%s5247] ss:$9 sm:$0xff] %v4467
    %5532 = vst [vmem:[%s5249] ss:$9 sm:$0xff] %v4470
    %v5533 = vld [vmem:[#allocation1] sm:$0xff]
    %5535 = vst [vmem:[#allocation1] ss:$9 sm:$0xff] %v4473
    %v5536 = vld [vmem:[#allocation1] sm:$0xff]
    %5537 = vst [vmem:[#allocation1] ss:$9 sm:$0xff] %v4476
    %5538 = vst [vmem:[%s5237] ss:$9 sm:$0xff] %v4479
    %5539 = vst [vmem:[%s5239] ss:$9 sm:$0xff] %v4482
    %5540 = vst [vmem:[%s5241] ss:$9 sm:$0xff] %v4485
    %5541 = vst [vmem:[%s5243] ss:$9 sm:$0xff] %v4488
    %5542 = vst [vmem:[%s5245] ss:$9 sm:$0xff] %v4491
    %5543 = vst [vmem:[%s5247] ss:$9 sm:$0xff] %v4494
    %5544 = vst [vmem:[%s5249] ss:$9 sm:$0xff] %v4497
    %v5545 = vld [vmem:[#allocation1] sm:$0xff]
    %5547 = vst [vmem:[#allocation1] ss:$9 sm:$0xff] %v4500
    %v5548 = vld [vmem:[#allocation1] sm:$0xff]
    %5549 = vst [vmem:[#allocation1] ss:$9 sm:$0xff] %v4503
    %5550 = vst [vmem:[%s5237] ss:$9 sm:$0xff] %v4506
    %5551 = vst [vmem:[%s5239] ss:$9 sm:$0xff] %v4509
    %5552 = vst [vmem:[%s5241] ss:$9 sm:$0xff] %v4512
    %5553 = vst [vmem:[%s5243] ss:$9 sm:$0xff] %v4515
    %5554 = vst [vmem:[%s5245] ss:$9 sm:$0xff] %v4518
    %5555 = vst [vmem:[%s5247] ss:$9 sm:$0xff] %v4521
    %5556 = vst [vmem:[%s5249] ss:$9 sm:$0xff] %v4524
    %v5557 = vld [vmem:[#allocation1] sm:$0xff]
    %5558 = vst [vmem:[#allocation1] ss:$9 sm:$0xff] %v4527
    %v5559 = vld [vmem:[#allocation1] sm:$0xff]
    %5560 = vst [vmem:[#allocation1] ss:$9 sm:$0xff] %v4530
    %5561 = vst [vmem:[%s5237] ss:$9 sm:$0xff] %v4533
    %5562 = vst [vmem:[%s5239] ss:$9 sm:$0xff] %v4536
    %5563 = vst [vmem:[%s5241] ss:$9 sm:$0xff] %v4539
    %5564 = vst [vmem:[%s5243] ss:$9 sm:$0xff] %v4542
    %5565 = vst [vmem:[%s5245] ss:$9 sm:$0xff] %v4545
    %5566 = vst [vmem:[%s5247] ss:$9 sm:$0xff] %v4548
    %5567 = vst [vmem:[%s5249] ss:$9 sm:$0xff] %v4551
    %v5568 = vld [vmem:[#allocation1] sm:$0xff]
    %5570 = vst [vmem:[#allocation1] ss:$9 sm:$0xff] %v4554
    %v5571 = vld [vmem:[#allocation1] sm:$0xff]
    %5572 = vst [vmem:[#allocation1] ss:$9 sm:$0xff] %v4557
    %5573 = vst [vmem:[%s5237] ss:$9 sm:$0xff] %v4560
    %5574 = vst [vmem:[%s5239] ss:$9 sm:$0xff] %v4563
    %5575 = vst [vmem:[%s5241] ss:$9 sm:$0xff] %v4566
    %5576 = vst [vmem:[%s5243] ss:$9 sm:$0xff] %v4569
    %5577 = vst [vmem:[%s5245] ss:$9 sm:$0xff] %v4572
    %5578 = vst [vmem:[%s5247] ss:$9 sm:$0xff] %v4575
    %5579 = vst [vmem:[%s5249] ss:$9 sm:$0xff] %v4578
    %v5580 = vld [vmem:[#allocation1] sm:$0xff]
    %5582 = vst [vmem:[#allocation1] ss:$9 sm:$0xff] %v4581
    %v5583 = vld [vmem:[#allocation1] sm:$0xff]
    %5584 = vst [vmem:[#allocation1] ss:$9 sm:$0xff] %v4584
    %5585 = vst [vmem:[%s5237] ss:$9 sm:$0xff] %v4587
    %5586 = vst [vmem:[%s5239] ss:$9 sm:$0xff] %v4590
    %5587 = vst [vmem:[%s5241] ss:$9 sm:$0xff] %v4593
    %5588 = vst [vmem:[%s5243] ss:$9 sm:$0xff] %v4596
    %5589 = vst [vmem:[%s5245] ss:$9 sm:$0xff] %v4599
    %5590 = vst [vmem:[%s5247] ss:$9 sm:$0xff] %v4602
    %5591 = vst [vmem:[%s5249] ss:$9 sm:$0xff] %v4605
    %v5592 = vld [vmem:[#allocation1] sm:$0xff]
    %5594 = vst [vmem:[#allocation1] ss:$9 sm:$0xff] %v4608
    %v5595 = vld [vmem:[#allocation1] sm:$0xff]
    %5596 = vst [vmem:[#allocation1] ss:$9 sm:$0xff] %v4611
    %5597 = vst [vmem:[%s5237] ss:$9 sm:$0xff] %v4614
    %5598 = vst [vmem:[%s5239] ss:$9 sm:$0xff] %v4617
    %5599 = vst [vmem:[%s5241] ss:$9 sm:$0xff] %v4620
    %5600 = vst [vmem:[%s5243] ss:$9 sm:$0xff] %v4623
    %5601 = vst [vmem:[%s5245] ss:$9 sm:$0xff] %v4626
    %5602 = vst [vmem:[%s5247] ss:$9 sm:$0xff] %v4629
    %5603 = vst [vmem:[%s5249] ss:$9 sm:$0xff] %v4632
    %v5604 = vld [vmem:[#allocation1] sm:$0xff]
    %5605 = vst [vmem:[#allocation1] ss:$9 sm:$0xff] %v4635
    %v5606 = vld [vmem:[#allocation1] sm:$0xff]
    %5607 = vst [vmem:[#allocation1] ss:$9 sm:$0xff] %v4638
    %5608 = vst [vmem:[%s5237] ss:$9 sm:$0xff] %v4641
    %5609 = vst [vmem:[%s5239] ss:$9 sm:$0xff] %v4644
    %5610 = vst [vmem:[%s5241] ss:$9 sm:$0xff] %v4647
    %5611 = vst [vmem:[%s5243] ss:$9 sm:$0xff] %v4650
    %5612 = vst [vmem:[%s5245] ss:$9 sm:$0xff] %v4653
    %5613 = vst [vmem:[%s5247] ss:$9 sm:$0xff] %v4656
    %5614 = vst [vmem:[%s5249] ss:$9 sm:$0xff] %v4659
    %v5615 = vld [vmem:[#allocation1] sm:$0xff]
    %5617 = vst [vmem:[#allocation1] ss:$9 sm:$0xff] %v4662
    %v5618 = vld [vmem:[#allocation1] sm:$0xff]
    %vm5619 = vsmask.f32 7424
    %v5620 = vshrl.u32 %v5251, 16
    %v5622 = vshll.u32 %v5251, 16
    %v5624 = vrot.slane %v5622, 1
    %v5625 = vor.u32 %v5620, %v5624
    %v5626 = vshll.u32 %v5253, 16
    %v5628 = vrot.slane %v5626, 1
    %v5629 = vsel %vm5619, %v5625, %v5628
    %v5630 = vshrl.u32 %v5262, 16
    %v5632 = vshll.u32 %v5262, 16
    %v5634 = vrot.slane %v5632, 1
    %v5635 = vor.u32 %v5630, %v5634
    %v5636 = vshll.u32 %v5265, 16
    %v5638 = vrot.slane %v5636, 1
    %v5639 = vsel %vm5619, %v5635, %v5638
    %v5640 = vshrl.u32 %v5274, 16
    %v5642 = vshll.u32 %v5274, 16
    %v5644 = vrot.slane %v5642, 1
    %v5645 = vor.u32 %v5640, %v5644
    %v5646 = vshll.u32 %v5277, 16
    %v5648 = vrot.slane %v5646, 1
    %v5649 = vsel %vm5619, %v5645, %v5648
    %v5650 = vshrl.u32 %v5286, 16
    %v5652 = vshll.u32 %v5286, 16
    %v5654 = vrot.slane %v5652, 1
    %v5655 = vor.u32 %v5650, %v5654
    %v5656 = vshll.u32 %v5289, 16
    %v5658 = vrot.slane %v5656, 1
    %v5659 = vsel %vm5619, %v5655, %v5658
    %v5660 = vshrl.u32 %v5298, 16
    %v5662 = vshll.u32 %v5298, 16
    %v5664 = vrot.slane %v5662, 1
    %v5665 = vor.u32 %v5660, %v5664
    %v5666 = vshll.u32 %v5300, 16
    %v5668 = vrot.slane %v5666, 1
    %v5669 = vsel %vm5619, %v5665, %v5668
    %v5670 = vshrl.u32 %v5309, 16
    %v5672 = vshll.u32 %v5309, 16
    %v5674 = vrot.slane %v5672, 1
    %v5675 = vor.u32 %v5670, %v5674
    %v5676 = vshll.u32 %v5312, 16
    %v5678 = vrot.slane %v5676, 1
    %v5679 = vsel %vm5619, %v5675, %v5678
    %v5680 = vshrl.u32 %v5321, 16
    %v5682 = vshll.u32 %v5321, 16
    %v5684 = vrot.slane %v5682, 1
    %v5685 = vor.u32 %v5680, %v5684
    %v5686 = vshll.u32 %v5324, 16
    %v5688 = vrot.slane %v5686, 1
    %v5689 = vsel %vm5619, %v5685, %v5688
    %v5690 = vshrl.u32 %v5333, 16
    %v5692 = vshll.u32 %v5333, 16
    %v5694 = vrot.slane %v5692, 1
    %v5695 = vor.u32 %v5690, %v5694
    %v5696 = vshll.u32 %v5336, 16
    %v5698 = vrot.slane %v5696, 1
    %v5699 = vsel %vm5619, %v5695, %v5698
    %v5700 = vshrl.u32 %v5345, 16
    %v5702 = vshll.u32 %v5345, 16
    %v5704 = vrot.slane %v5702, 1
    %v5705 = vor.u32 %v5700, %v5704
    %v5706 = vshll.u32 %v5347, 16
    %v5708 = vrot.slane %v5706, 1
    %v5709 = vsel %vm5619, %v5705, %v5708
    %v5710 = vshrl.u32 %v5356, 16
    %v5712 = vshll.u32 %v5356, 16
    %v5714 = vrot.slane %v5712, 1
    %v5715 = vor.u32 %v5710, %v5714
    %v5716 = vshll.u32 %v5359, 16
    %v5718 = vrot.slane %v5716, 1
    %v5719 = vsel %vm5619, %v5715, %v5718
    %v5720 = vshrl.u32 %v5368, 16
    %v5722 = vshll.u32 %v5368, 16
    %v5724 = vrot.slane %v5722, 1
    %v5725 = vor.u32 %v5720, %v5724
    %v5726 = vshll.u32 %v5371, 16
    %v5728 = vrot.slane %v5726, 1
    %v5729 = vsel %vm5619, %v5725, %v5728
    %v5730 = vshrl.u32 %v5380, 16
    %v5732 = vshll.u32 %v5380, 16
    %v5734 = vrot.slane %v5732, 1
    %v5735 = vor.u32 %v5730, %v5734
    %v5736 = vshll.u32 %v5383, 16
    %v5738 = vrot.slane %v5736, 1
    %v5739 = vsel %vm5619, %v5735, %v5738
    %v5740 = vshrl.u32 %v5392, 16
    %v5742 = vshll.u32 %v5392, 16
    %v5744 = vrot.slane %v5742, 1
    %v5745 = vor.u32 %v5740, %v5744
    %v5746 = vshll.u32 %v5394, 16
    %v5748 = vrot.slane %v5746, 1
    %v5749 = vsel %vm5619, %v5745, %v5748
    %v5750 = vshrl.u32 %v5403, 16
    %v5752 = vshll.u32 %v5403, 16
    %v5754 = vrot.slane %v5752, 1
    %v5755 = vor.u32 %v5750, %v5754
    %v5756 = vshll.u32 %v5406, 16
    %v5758 = vrot.slane %v5756, 1
    %v5759 = vsel %vm5619, %v5755, %v5758
    %v5760 = vshrl.u32 %v5415, 16
    %v5762 = vshll.u32 %v5415, 16
    %v5764 = vrot.slane %v5762, 1
    %v5765 = vor.u32 %v5760, %v5764
    %v5766 = vshll.u32 %v5418, 16
    %v5768 = vrot.slane %v5766, 1
    %v5769 = vsel %vm5619, %v5765, %v5768
    %v5770 = vshrl.u32 %v5427, 16
    %v5772 = vshll.u32 %v5427, 16
    %v5774 = vrot.slane %v5772, 1
    %v5775 = vor.u32 %v5770, %v5774
    %v5776 = vshll.u32 %v5430, 16
    %v5778 = vrot.slane %v5776, 1
    %v5779 = vsel %vm5619, %v5775, %v5778
    %v5780 = vshrl.u32 %v5439, 16
    %v5782 = vshll.u32 %v5439, 16
    %v5784 = vrot.slane %v5782, 1
    %v5785 = vor.u32 %v5780, %v5784
    %v5786 = vshll.u32 %v5442, 16
    %v5788 = vrot.slane %v5786, 1
    %v5789 = vsel %vm5619, %v5785, %v5788
    %v5790 = vshrl.u32 %v5451, 16
    %v5792 = vshll.u32 %v5451, 16
    %v5794 = vrot.slane %v5792, 1
    %v5795 = vor.u32 %v5790, %v5794
    %v5796 = vshll.u32 %v5454, 16
    %v5798 = vrot.slane %v5796, 1
    %v5799 = vsel %vm5619, %v5795, %v5798
    %v5800 = vshrl.u32 %v5463, 16
    %v5802 = vshll.u32 %v5463, 16
    %v5804 = vrot.slane %v5802, 1
    %v5805 = vor.u32 %v5800, %v5804
    %v5806 = vshll.u32 %v5465, 16
    %v5808 = vrot.slane %v5806, 1
    %v5809 = vsel %vm5619, %v5805, %v5808
    %v5810 = vshrl.u32 %v5474, 16
    %v5812 = vshll.u32 %v5474, 16
    %v5814 = vrot.slane %v5812, 1
    %v5815 = vor.u32 %v5810, %v5814
    %v5816 = vshll.u32 %v5477, 16
    %v5818 = vrot.slane %v5816, 1
    %v5819 = vsel %vm5619, %v5815, %v5818
    %v5820 = vshrl.u32 %v5486, 16
    %v5822 = vshll.u32 %v5486, 16
    %v5824 = vrot.slane %v5822, 1
    %v5825 = vor.u32 %v5820, %v5824
    %v5826 = vshll.u32 %v5489, 16
    %v5828 = vrot.slane %v5826, 1
    %v5829 = vsel %vm5619, %v5825, %v5828
    %v5830 = vshrl.u32 %v5498, 16
    %v5832 = vshll.u32 %v5498, 16
    %v5834 = vrot.slane %v5832, 1
    %v5835 = vor.u32 %v5830, %v5834
    %v5836 = vshll.u32 %v5501, 16
    %v5838 = vrot.slane %v5836, 1
    %v5839 = vsel %vm5619, %v5835, %v5838
    %v5840 = vshrl.u32 %v5510, 16
    %v5842 = vshll.u32 %v5510, 16
    %v5844 = vrot.slane %v5842, 1
    %v5845 = vor.u32 %v5840, %v5844
    %v5846 = vshll.u32 %v5512, 16
    %v5848 = vrot.slane %v5846, 1
    %v5849 = vsel %vm5619, %v5845, %v5848
    %v5850 = vshrl.u32 %v5521, 16
    %v5852 = vshll.u32 %v5521, 16
    %v5854 = vrot.slane %v5852, 1
    %v5855 = vor.u32 %v5850, %v5854
    %v5856 = vshll.u32 %v5524, 16
    %v5858 = vrot.slane %v5856, 1
    %v5859 = vsel %vm5619, %v5855, %v5858
    %v5860 = vshrl.u32 %v5533, 16
    %v5862 = vshll.u32 %v5533, 16
    %v5864 = vrot.slane %v5862, 1
    %v5865 = vor.u32 %v5860, %v5864
    %v5866 = vshll.u32 %v5536, 16
    %v5868 = vrot.slane %v5866, 1
    %v5869 = vsel %vm5619, %v5865, %v5868
    %v5870 = vshrl.u32 %v5545, 16
    %v5872 = vshll.u32 %v5545, 16
    %v5874 = vrot.slane %v5872, 1
    %v5875 = vor.u32 %v5870, %v5874
    %v5876 = vshll.u32 %v5548, 16
    %v5878 = vrot.slane %v5876, 1
    %v5879 = vsel %vm5619, %v5875, %v5878
    %v5880 = vshrl.u32 %v5557, 16
    %v5882 = vshll.u32 %v5557, 16
    %v5884 = vrot.slane %v5882, 1
    %v5885 = vor.u32 %v5880, %v5884
    %v5886 = vshll.u32 %v5559, 16
    %v5888 = vrot.slane %v5886, 1
    %v5889 = vsel %vm5619, %v5885, %v5888
    %v5890 = vshrl.u32 %v5568, 16
    %v5892 = vshll.u32 %v5568, 16
    %v5894 = vrot.slane %v5892, 1
    %v5895 = vor.u32 %v5890, %v5894
    %v5896 = vshll.u32 %v5571, 16
    %v5898 = vrot.slane %v5896, 1
    %v5899 = vsel %vm5619, %v5895, %v5898
    %v5900 = vshrl.u32 %v5580, 16
    %v5902 = vshll.u32 %v5580, 16
    %v5904 = vrot.slane %v5902, 1
    %v5905 = vor.u32 %v5900, %v5904
    %v5906 = vshll.u32 %v5583, 16
    %v5908 = vrot.slane %v5906, 1
    %v5909 = vsel %vm5619, %v5905, %v5908
    %v5910 = vshrl.u32 %v5592, 16
    %v5912 = vshll.u32 %v5592, 16
    %v5914 = vrot.slane %v5912, 1
    %v5915 = vor.u32 %v5910, %v5914
    %v5916 = vshll.u32 %v5595, 16
    %v5918 = vrot.slane %v5916, 1
    %v5919 = vsel %vm5619, %v5915, %v5918
    %v5920 = vshrl.u32 %v5604, 16
    %v5922 = vshll.u32 %v5604, 16
    %v5924 = vrot.slane %v5922, 1
    %v5925 = vor.u32 %v5920, %v5924
    %v5926 = vshll.u32 %v5606, 16
    %v5928 = vrot.slane %v5926, 1
    %v5929 = vsel %vm5619, %v5925, %v5928
    %v5930 = vshrl.u32 %v5615, 16
    %v5932 = vshll.u32 %v5615, 16
    %v5934 = vrot.slane %v5932, 1
    %v5935 = vor.u32 %v5930, %v5934
    %v5936 = vshll.u32 %v5618, 16
    %v5938 = vrot.slane %v5936, 1
    %v5939 = vsel %vm5619, %v5935, %v5938
    %5972 = vst [vmem:[#allocation1] ss:$9 sm:$0xff] %v3750
    %s5973 = scalar_lea.vmem [#allocation1], 1
    %5974 = vst [vmem:[%s5973] ss:$9 sm:$0xff] %v3753
    %s5975 = scalar_lea.vmem [#allocation1], 2
    %5976 = vst [vmem:[%s5975] ss:$9 sm:$0xff] %v3756
    %s5977 = scalar_lea.vmem [#allocation1], 3
    %5978 = vst [vmem:[%s5977] ss:$9 sm:$0xff] %v3759
    %s5979 = scalar_lea.vmem [#allocation1], 4
    %5980 = vst [vmem:[%s5979] ss:$9 sm:$0xff] %v3762
    %s5981 = scalar_lea.vmem [#allocation1], 5
    %5982 = vst [vmem:[%s5981] ss:$9 sm:$0xff] %v3765
    %s5983 = scalar_lea.vmem [#allocation1], 6
    %5984 = vst [vmem:[%s5983] ss:$9 sm:$0xff] %v3768
    %s5985 = scalar_lea.vmem [#allocation1], 7
    %5986 = vst [vmem:[%s5985] ss:$9 sm:$0xff] %v3771
    %v5987 = vld [vmem:[#allocation1] sm:$0xff]
    %5988 = vst [vmem:[#allocation1] ss:$9 sm:$0xff] %v3777
    %5989 = vst [vmem:[%s5973] ss:$9 sm:$0xff] %v3780
    %5990 = vst [vmem:[%s5975] ss:$9 sm:$0xff] %v3783
    %5991 = vst [vmem:[%s5977] ss:$9 sm:$0xff] %v3786
    %5992 = vst [vmem:[%s5979] ss:$9 sm:$0xff] %v3789
    %5993 = vst [vmem:[%s5981] ss:$9 sm:$0xff] %v3792
    %5994 = vst [vmem:[%s5983] ss:$9 sm:$0xff] %v3795
    %5995 = vst [vmem:[%s5985] ss:$9 sm:$0xff] %v3798
    %v5996 = vld [vmem:[#allocation1] sm:$0xff]
    %5997 = vst [vmem:[#allocation1] ss:$9 sm:$0xff] %v3804
    %5998 = vst [vmem:[%s5973] ss:$9 sm:$0xff] %v3807
    %5999 = vst [vmem:[%s5975] ss:$9 sm:$0xff] %v3810
    %6000 = vst [vmem:[%s5977] ss:$9 sm:$0xff] %v3813
    %6001 = vst [vmem:[%s5979] ss:$9 sm:$0xff] %v3816
    %6002 = vst [vmem:[%s5981] ss:$9 sm:$0xff] %v3819
    %6003 = vst [vmem:[%s5983] ss:$9 sm:$0xff] %v3822
    %6004 = vst [vmem:[%s5985] ss:$9 sm:$0xff] %v3825
    %v6005 = vld [vmem:[#allocation1] sm:$0xff]
    %6006 = vst [vmem:[#allocation1] ss:$9 sm:$0xff] %v3831
    %6007 = vst [vmem:[%s5973] ss:$9 sm:$0xff] %v3834
    %6008 = vst [vmem:[%s5975] ss:$9 sm:$0xff] %v3837
    %6009 = vst [vmem:[%s5977] ss:$9 sm:$0xff] %v3840
    %6010 = vst [vmem:[%s5979] ss:$9 sm:$0xff] %v3843
    %6011 = vst [vmem:[%s5981] ss:$9 sm:$0xff] %v3846
    %6012 = vst [vmem:[%s5983] ss:$9 sm:$0xff] %v3849
    %6013 = vst [vmem:[%s5985] ss:$9 sm:$0xff] %v3852
    %v6014 = vld [vmem:[#allocation1] sm:$0xff]
    %6015 = vst [vmem:[#allocation1] ss:$9 sm:$0xff] %v3858
    %6016 = vst [vmem:[%s5973] ss:$9 sm:$0xff] %v3861
    %6017 = vst [vmem:[%s5975] ss:$9 sm:$0xff] %v3864
    %6018 = vst [vmem:[%s5977] ss:$9 sm:$0xff] %v3867
    %6019 = vst [vmem:[%s5979] ss:$9 sm:$0xff] %v3870
    %6020 = vst [vmem:[%s5981] ss:$9 sm:$0xff] %v3873
    %6021 = vst [vmem:[%s5983] ss:$9 sm:$0xff] %v3876
    %6022 = vst [vmem:[%s5985] ss:$9 sm:$0xff] %v3879
    %v6023 = vld [vmem:[#allocation1] sm:$0xff]
    %6024 = vst [vmem:[#allocation1] ss:$9 sm:$0xff] %v3885
    %6025 = vst [vmem:[%s5973] ss:$9 sm:$0xff] %v3888
    %6026 = vst [vmem:[%s5975] ss:$9 sm:$0xff] %v3891
    %6027 = vst [vmem:[%s5977] ss:$9 sm:$0xff] %v3894
    %6028 = vst [vmem:[%s5979] ss:$9 sm:$0xff] %v3897
    %6029 = vst [vmem:[%s5981] ss:$9 sm:$0xff] %v3900
    %6030 = vst [vmem:[%s5983] ss:$9 sm:$0xff] %v3903
    %6031 = vst [vmem:[%s5985] ss:$9 sm:$0xff] %v3906
    %v6032 = vld [vmem:[#allocation1] sm:$0xff]
    %6033 = vst [vmem:[#allocation1] ss:$9 sm:$0xff] %v3912
    %6034 = vst [vmem:[%s5973] ss:$9 sm:$0xff] %v3915
    %6035 = vst [vmem:[%s5975] ss:$9 sm:$0xff] %v3918
    %6036 = vst [vmem:[%s5977] ss:$9 sm:$0xff] %v3921
    %6037 = vst [vmem:[%s5979] ss:$9 sm:$0xff] %v3924
    %6038 = vst [vmem:[%s5981] ss:$9 sm:$0xff] %v3927
    %6039 = vst [vmem:[%s5983] ss:$9 sm:$0xff] %v3930
    %6040 = vst [vmem:[%s5985] ss:$9 sm:$0xff] %v3933
    %v6041 = vld [vmem:[#allocation1] sm:$0xff]
    %6042 = vst [vmem:[#allocation1] ss:$9 sm:$0xff] %v3939
    %6043 = vst [vmem:[%s5973] ss:$9 sm:$0xff] %v3942
    %6044 = vst [vmem:[%s5975] ss:$9 sm:$0xff] %v3945
    %6045 = vst [vmem:[%s5977] ss:$9 sm:$0xff] %v3948
    %6046 = vst [vmem:[%s5979] ss:$9 sm:$0xff] %v3951
    %6047 = vst [vmem:[%s5981] ss:$9 sm:$0xff] %v3954
    %6048 = vst [vmem:[%s5983] ss:$9 sm:$0xff] %v3957
    %6049 = vst [vmem:[%s5985] ss:$9 sm:$0xff] %v3960
    %v6050 = vld [vmem:[#allocation1] sm:$0xff]
    %6051 = vst [vmem:[#allocation1] ss:$9 sm:$0xff] %v3966
    %6052 = vst [vmem:[%s5973] ss:$9 sm:$0xff] %v3969
    %6053 = vst [vmem:[%s5975] ss:$9 sm:$0xff] %v3972
    %6054 = vst [vmem:[%s5977] ss:$9 sm:$0xff] %v3975
    %6055 = vst [vmem:[%s5979] ss:$9 sm:$0xff] %v3978
    %6056 = vst [vmem:[%s5981] ss:$9 sm:$0xff] %v3981
    %6057 = vst [vmem:[%s5983] ss:$9 sm:$0xff] %v3984
    %6058 = vst [vmem:[%s5985] ss:$9 sm:$0xff] %v3987
    %v6059 = vld [vmem:[#allocation1] sm:$0xff]
    %6060 = vst [vmem:[#allocation1] ss:$9 sm:$0xff] %v3993
    %6061 = vst [vmem:[%s5973] ss:$9 sm:$0xff] %v3996
    %6062 = vst [vmem:[%s5975] ss:$9 sm:$0xff] %v3999
    %6063 = vst [vmem:[%s5977] ss:$9 sm:$0xff] %v4002
    %6064 = vst [vmem:[%s5979] ss:$9 sm:$0xff] %v4005
    %6065 = vst [vmem:[%s5981] ss:$9 sm:$0xff] %v4008
    %6066 = vst [vmem:[%s5983] ss:$9 sm:$0xff] %v4011
    %6067 = vst [vmem:[%s5985] ss:$9 sm:$0xff] %v4014
    %v6068 = vld [vmem:[#allocation1] sm:$0xff]
    %6069 = vst [vmem:[#allocation1] ss:$9 sm:$0xff] %v4020
    %6070 = vst [vmem:[%s5973] ss:$9 sm:$0xff] %v4023
    %6071 = vst [vmem:[%s5975] ss:$9 sm:$0xff] %v4026
    %6072 = vst [vmem:[%s5977] ss:$9 sm:$0xff] %v4029
    %6073 = vst [vmem:[%s5979] ss:$9 sm:$0xff] %v4032
    %6074 = vst [vmem:[%s5981] ss:$9 sm:$0xff] %v4035
    %6075 = vst [vmem:[%s5983] ss:$9 sm:$0xff] %v4038
    %6076 = vst [vmem:[%s5985] ss:$9 sm:$0xff] %v4041
    %v6077 = vld [vmem:[#allocation1] sm:$0xff]
    %6078 = vst [vmem:[#allocation1] ss:$9 sm:$0xff] %v4047
    %6079 = vst [vmem:[%s5973] ss:$9 sm:$0xff] %v4050
    %6080 = vst [vmem:[%s5975] ss:$9 sm:$0xff] %v4053
    %6081 = vst [vmem:[%s5977] ss:$9 sm:$0xff] %v4056
    %6082 = vst [vmem:[%s5979] ss:$9 sm:$0xff] %v4059
    %6083 = vst [vmem:[%s5981] ss:$9 sm:$0xff] %v4062
    %6084 = vst [vmem:[%s5983] ss:$9 sm:$0xff] %v4065
    %6085 = vst [vmem:[%s5985] ss:$9 sm:$0xff] %v4068
    %v6086 = vld [vmem:[#allocation1] sm:$0xff]
    %6087 = vst [vmem:[#allocation1] ss:$9 sm:$0xff] %v4074
    %6088 = vst [vmem:[%s5973] ss:$9 sm:$0xff] %v4077
    %6089 = vst [vmem:[%s5975] ss:$9 sm:$0xff] %v4080
    %6090 = vst [vmem:[%s5977] ss:$9 sm:$0xff] %v4083
    %6091 = vst [vmem:[%s5979] ss:$9 sm:$0xff] %v4086
    %6092 = vst [vmem:[%s5981] ss:$9 sm:$0xff] %v4089
    %6093 = vst [vmem:[%s5983] ss:$9 sm:$0xff] %v4092
    %6094 = vst [vmem:[%s5985] ss:$9 sm:$0xff] %v4095
    %v6095 = vld [vmem:[#allocation1] sm:$0xff]
    %6096 = vst [vmem:[#allocation1] ss:$9 sm:$0xff] %v4101
    %6097 = vst [vmem:[%s5973] ss:$9 sm:$0xff] %v4104
    %6098 = vst [vmem:[%s5975] ss:$9 sm:$0xff] %v4107
    %6099 = vst [vmem:[%s5977] ss:$9 sm:$0xff] %v4110
    %6100 = vst [vmem:[%s5979] ss:$9 sm:$0xff] %v4113
    %6101 = vst [vmem:[%s5981] ss:$9 sm:$0xff] %v4116
    %6102 = vst [vmem:[%s5983] ss:$9 sm:$0xff] %v4119
    %6103 = vst [vmem:[%s5985] ss:$9 sm:$0xff] %v4122
    %v6104 = vld [vmem:[#allocation1] sm:$0xff]
    %6105 = vst [vmem:[#allocation1] ss:$9 sm:$0xff] %v4128
    %6106 = vst [vmem:[%s5973] ss:$9 sm:$0xff] %v4131
    %6107 = vst [vmem:[%s5975] ss:$9 sm:$0xff] %v4134
    %6108 = vst [vmem:[%s5977] ss:$9 sm:$0xff] %v4137
    %6109 = vst [vmem:[%s5979] ss:$9 sm:$0xff] %v4140
    %6110 = vst [vmem:[%s5981] ss:$9 sm:$0xff] %v4143
    %6111 = vst [vmem:[%s5983] ss:$9 sm:$0xff] %v4146
    %6112 = vst [vmem:[%s5985] ss:$9 sm:$0xff] %v4149
    %v6113 = vld [vmem:[#allocation1] sm:$0xff]
    %6114 = vst [vmem:[#allocation1] ss:$9 sm:$0xff] %v4155
    %6115 = vst [vmem:[%s5973] ss:$9 sm:$0xff] %v4158
    %6116 = vst [vmem:[%s5975] ss:$9 sm:$0xff] %v4161
    %6117 = vst [vmem:[%s5977] ss:$9 sm:$0xff] %v4164
    %6118 = vst [vmem:[%s5979] ss:$9 sm:$0xff] %v4167
    %6119 = vst [vmem:[%s5981] ss:$9 sm:$0xff] %v4170
    %6120 = vst [vmem:[%s5983] ss:$9 sm:$0xff] %v4173
    %6121 = vst [vmem:[%s5985] ss:$9 sm:$0xff] %v4176
    %v6122 = vld [vmem:[#allocation1] sm:$0xff]
    %6123 = vst [vmem:[#allocation1] ss:$9 sm:$0xff] %v4236
    %6124 = vst [vmem:[%s5973] ss:$9 sm:$0xff] %v4239
    %6125 = vst [vmem:[%s5975] ss:$9 sm:$0xff] %v4242
    %6126 = vst [vmem:[%s5977] ss:$9 sm:$0xff] %v4245
    %6127 = vst [vmem:[%s5979] ss:$9 sm:$0xff] %v4248
    %6128 = vst [vmem:[%s5981] ss:$9 sm:$0xff] %v4251
    %6129 = vst [vmem:[%s5983] ss:$9 sm:$0xff] %v4254
    %6130 = vst [vmem:[%s5985] ss:$9 sm:$0xff] %v4257
    %v6131 = vld [vmem:[#allocation1] sm:$0xff]
    %6132 = vst [vmem:[#allocation1] ss:$9 sm:$0xff] %v4263
    %6133 = vst [vmem:[%s5973] ss:$9 sm:$0xff] %v4266
    %6134 = vst [vmem:[%s5975] ss:$9 sm:$0xff] %v4269
    %6135 = vst [vmem:[%s5977] ss:$9 sm:$0xff] %v4272
    %6136 = vst [vmem:[%s5979] ss:$9 sm:$0xff] %v4275
    %6137 = vst [vmem:[%s5981] ss:$9 sm:$0xff] %v4278
    %6138 = vst [vmem:[%s5983] ss:$9 sm:$0xff] %v4281
    %6139 = vst [vmem:[%s5985] ss:$9 sm:$0xff] %v4284
    %v6140 = vld [vmem:[#allocation1] sm:$0xff]
    %6141 = vst [vmem:[#allocation1] ss:$9 sm:$0xff] %v4290
    %6142 = vst [vmem:[%s5973] ss:$9 sm:$0xff] %v4293
    %6143 = vst [vmem:[%s5975] ss:$9 sm:$0xff] %v4296
    %6144 = vst [vmem:[%s5977] ss:$9 sm:$0xff] %v4299
    %6145 = vst [vmem:[%s5979] ss:$9 sm:$0xff] %v4302
    %6146 = vst [vmem:[%s5981] ss:$9 sm:$0xff] %v4305
    %6147 = vst [vmem:[%s5983] ss:$9 sm:$0xff] %v4308
    %6148 = vst [vmem:[%s5985] ss:$9 sm:$0xff] %v4311
    %v6149 = vld [vmem:[#allocation1] sm:$0xff]
    %6150 = vst [vmem:[#allocation1] ss:$9 sm:$0xff] %v4317
    %6151 = vst [vmem:[%s5973] ss:$9 sm:$0xff] %v4320
    %6152 = vst [vmem:[%s5975] ss:$9 sm:$0xff] %v4323
    %6153 = vst [vmem:[%s5977] ss:$9 sm:$0xff] %v4326
    %6154 = vst [vmem:[%s5979] ss:$9 sm:$0xff] %v4329
    %6155 = vst [vmem:[%s5981] ss:$9 sm:$0xff] %v4332
    %6156 = vst [vmem:[%s5983] ss:$9 sm:$0xff] %v4335
    %6157 = vst [vmem:[%s5985] ss:$9 sm:$0xff] %v4338
    %v6158 = vld [vmem:[#allocation1] sm:$0xff]
    %6159 = vst [vmem:[#allocation1] ss:$9 sm:$0xff] %v4344
    %6160 = vst [vmem:[%s5973] ss:$9 sm:$0xff] %v4347
    %6161 = vst [vmem:[%s5975] ss:$9 sm:$0xff] %v4350
    %6162 = vst [vmem:[%s5977] ss:$9 sm:$0xff] %v4353
    %6163 = vst [vmem:[%s5979] ss:$9 sm:$0xff] %v4356
    %6164 = vst [vmem:[%s5981] ss:$9 sm:$0xff] %v4359
    %6165 = vst [vmem:[%s5983] ss:$9 sm:$0xff] %v4362
    %6166 = vst [vmem:[%s5985] ss:$9 sm:$0xff] %v4365
    %v6167 = vld [vmem:[#allocation1] sm:$0xff]
    %6168 = vst [vmem:[#allocation1] ss:$9 sm:$0xff] %v4371
    %6169 = vst [vmem:[%s5973] ss:$9 sm:$0xff] %v4374
    %6170 = vst [vmem:[%s5975] ss:$9 sm:$0xff] %v4377
    %6171 = vst [vmem:[%s5977] ss:$9 sm:$0xff] %v4380
    %6172 = vst [vmem:[%s5979] ss:$9 sm:$0xff] %v4383
    %6173 = vst [vmem:[%s5981] ss:$9 sm:$0xff] %v4386
    %6174 = vst [vmem:[%s5983] ss:$9 sm:$0xff] %v4389
    %6175 = vst [vmem:[%s5985] ss:$9 sm:$0xff] %v4392
    %v6176 = vld [vmem:[#allocation1] sm:$0xff]
    %6177 = vst [vmem:[#allocation1] ss:$9 sm:$0xff] %v4398
    %6178 = vst [vmem:[%s5973] ss:$9 sm:$0xff] %v4401
    %6179 = vst [vmem:[%s5975] ss:$9 sm:$0xff] %v4404
    %6180 = vst [vmem:[%s5977] ss:$9 sm:$0xff] %v4407
    %6181 = vst [vmem:[%s5979] ss:$9 sm:$0xff] %v4410
    %6182 = vst [vmem:[%s5981] ss:$9 sm:$0xff] %v4413
    %6183 = vst [vmem:[%s5983] ss:$9 sm:$0xff] %v4416
    %6184 = vst [vmem:[%s5985] ss:$9 sm:$0xff] %v4419
    %v6185 = vld [vmem:[#allocation1] sm:$0xff]
    %6186 = vst [vmem:[#allocation1] ss:$9 sm:$0xff] %v4425
    %6187 = vst [vmem:[%s5973] ss:$9 sm:$0xff] %v4428
    %6188 = vst [vmem:[%s5975] ss:$9 sm:$0xff] %v4431
    %6189 = vst [vmem:[%s5977] ss:$9 sm:$0xff] %v4434
    %6190 = vst [vmem:[%s5979] ss:$9 sm:$0xff] %v4437
    %6191 = vst [vmem:[%s5981] ss:$9 sm:$0xff] %v4440
    %6192 = vst [vmem:[%s5983] ss:$9 sm:$0xff] %v4443
    %6193 = vst [vmem:[%s5985] ss:$9 sm:$0xff] %v4446
    %v6194 = vld [vmem:[#allocation1] sm:$0xff]
    %6195 = vst [vmem:[#allocation1] ss:$9 sm:$0xff] %v4452
    %6196 = vst [vmem:[%s5973] ss:$9 sm:$0xff] %v4455
    %6197 = vst [vmem:[%s5975] ss:$9 sm:$0xff] %v4458
    %6198 = vst [vmem:[%s5977] ss:$9 sm:$0xff] %v4461
    %6199 = vst [vmem:[%s5979] ss:$9 sm:$0xff] %v4464
    %6200 = vst [vmem:[%s5981] ss:$9 sm:$0xff] %v4467
    %6201 = vst [vmem:[%s5983] ss:$9 sm:$0xff] %v4470
    %6202 = vst [vmem:[%s5985] ss:$9 sm:$0xff] %v4473
    %v6203 = vld [vmem:[#allocation1] sm:$0xff]
    %6204 = vst [vmem:[#allocation1] ss:$9 sm:$0xff] %v4479
    %6205 = vst [vmem:[%s5973] ss:$9 sm:$0xff] %v4482
    %6206 = vst [vmem:[%s5975] ss:$9 sm:$0xff] %v4485
    %6207 = vst [vmem:[%s5977] ss:$9 sm:$0xff] %v4488
    %6208 = vst [vmem:[%s5979] ss:$9 sm:$0xff] %v4491
    %6209 = vst [vmem:[%s5981] ss:$9 sm:$0xff] %v4494
    %6210 = vst [vmem:[%s5983] ss:$9 sm:$0xff] %v4497
    %6211 = vst [vmem:[%s5985] ss:$9 sm:$0xff] %v4500
    %v6212 = vld [vmem:[#allocation1] sm:$0xff]
    %6213 = vst [vmem:[#allocation1] ss:$9 sm:$0xff] %v4506
    %6214 = vst [vmem:[%s5973] ss:$9 sm:$0xff] %v4509
    %6215 = vst [vmem:[%s5975] ss:$9 sm:$0xff] %v4512
    %6216 = vst [vmem:[%s5977] ss:$9 sm:$0xff] %v4515
    %6217 = vst [vmem:[%s5979] ss:$9 sm:$0xff] %v4518
    %6218 = vst [vmem:[%s5981] ss:$9 sm:$0xff] %v4521
    %6219 = vst [vmem:[%s5983] ss:$9 sm:$0xff] %v4524
    %6220 = vst [vmem:[%s5985] ss:$9 sm:$0xff] %v4527
    %v6221 = vld [vmem:[#allocation1] sm:$0xff]
    %6222 = vst [vmem:[#allocation1] ss:$9 sm:$0xff] %v4533
    %6223 = vst [vmem:[%s5973] ss:$9 sm:$0xff] %v4536
    %6224 = vst [vmem:[%s5975] ss:$9 sm:$0xff] %v4539
    %6225 = vst [vmem:[%s5977] ss:$9 sm:$0xff] %v4542
    %6226 = vst [vmem:[%s5979] ss:$9 sm:$0xff] %v4545
    %6227 = vst [vmem:[%s5981] ss:$9 sm:$0xff] %v4548
    %6228 = vst [vmem:[%s5983] ss:$9 sm:$0xff] %v4551
    %6229 = vst [vmem:[%s5985] ss:$9 sm:$0xff] %v4554
    %v6230 = vld [vmem:[#allocation1] sm:$0xff]
    %6231 = vst [vmem:[#allocation1] ss:$9 sm:$0xff] %v4560
    %6232 = vst [vmem:[%s5973] ss:$9 sm:$0xff] %v4563
    %6233 = vst [vmem:[%s5975] ss:$9 sm:$0xff] %v4566
    %6234 = vst [vmem:[%s5977] ss:$9 sm:$0xff] %v4569
    %6235 = vst [vmem:[%s5979] ss:$9 sm:$0xff] %v4572
    %6236 = vst [vmem:[%s5981] ss:$9 sm:$0xff] %v4575
    %6237 = vst [vmem:[%s5983] ss:$9 sm:$0xff] %v4578
    %6238 = vst [vmem:[%s5985] ss:$9 sm:$0xff] %v4581
    %v6239 = vld [vmem:[#allocation1] sm:$0xff]
    %6240 = vst [vmem:[#allocation1] ss:$9 sm:$0xff] %v4587
    %6241 = vst [vmem:[%s5973] ss:$9 sm:$0xff] %v4590
    %6242 = vst [vmem:[%s5975] ss:$9 sm:$0xff] %v4593
    %6243 = vst [vmem:[%s5977] ss:$9 sm:$0xff] %v4596
    %6244 = vst [vmem:[%s5979] ss:$9 sm:$0xff] %v4599
    %6245 = vst [vmem:[%s5981] ss:$9 sm:$0xff] %v4602
    %6246 = vst [vmem:[%s5983] ss:$9 sm:$0xff] %v4605
    %6247 = vst [vmem:[%s5985] ss:$9 sm:$0xff] %v4608
    %v6248 = vld [vmem:[#allocation1] sm:$0xff]
    %6249 = vst [vmem:[#allocation1] ss:$9 sm:$0xff] %v4614
    %6250 = vst [vmem:[%s5973] ss:$9 sm:$0xff] %v4617
    %6251 = vst [vmem:[%s5975] ss:$9 sm:$0xff] %v4620
    %6252 = vst [vmem:[%s5977] ss:$9 sm:$0xff] %v4623
    %6253 = vst [vmem:[%s5979] ss:$9 sm:$0xff] %v4626
    %6254 = vst [vmem:[%s5981] ss:$9 sm:$0xff] %v4629
    %6255 = vst [vmem:[%s5983] ss:$9 sm:$0xff] %v4632
    %6256 = vst [vmem:[%s5985] ss:$9 sm:$0xff] %v4635
    %v6257 = vld [vmem:[#allocation1] sm:$0xff]
    %6258 = vst [vmem:[#allocation1] ss:$9 sm:$0xff] %v4641
    %6259 = vst [vmem:[%s5973] ss:$9 sm:$0xff] %v4644
    %6260 = vst [vmem:[%s5975] ss:$9 sm:$0xff] %v4647
    %6261 = vst [vmem:[%s5977] ss:$9 sm:$0xff] %v4650
    %6262 = vst [vmem:[%s5979] ss:$9 sm:$0xff] %v4653
    %6263 = vst [vmem:[%s5981] ss:$9 sm:$0xff] %v4656
    %6264 = vst [vmem:[%s5983] ss:$9 sm:$0xff] %v4659
    %6265 = vst [vmem:[%s5985] ss:$9 sm:$0xff] %v4662
    %v6266 = vld [vmem:[#allocation1] sm:$0xff]
    %6299 = vst [vmem:[#allocation1] ss:$9 sm:$0xff] %v3774
    %s6300 = scalar_lea.vmem [#allocation1], 1
    %6301 = vst [vmem:[%s6300] ss:$9 sm:$0xff] %v3777
    %s6302 = scalar_lea.vmem [#allocation1], 2
    %6303 = vst [vmem:[%s6302] ss:$9 sm:$0xff] %v3780
    %s6304 = scalar_lea.vmem [#allocation1], 3
    %6305 = vst [vmem:[%s6304] ss:$9 sm:$0xff] %v3783
    %s6306 = scalar_lea.vmem [#allocation1], 4
    %6307 = vst [vmem:[%s6306] ss:$9 sm:$0xff] %v3786
    %s6308 = scalar_lea.vmem [#allocation1], 5
    %6309 = vst [vmem:[%s6308] ss:$9 sm:$0xff] %v3789
    %s6310 = scalar_lea.vmem [#allocation1], 6
    %6311 = vst [vmem:[%s6310] ss:$9 sm:$0xff] %v3792
    %s6312 = scalar_lea.vmem [#allocation1], 7
    %6313 = vst [vmem:[%s6312] ss:$9 sm:$0xff] %v3795
    %v6314 = vld [vmem:[#allocation1] sm:$0xff]
    %6315 = vst [vmem:[#allocation1] ss:$9 sm:$0xff] %v3801
    %6316 = vst [vmem:[%s6300] ss:$9 sm:$0xff] %v3804
    %6317 = vst [vmem:[%s6302] ss:$9 sm:$0xff] %v3807
    %6318 = vst [vmem:[%s6304] ss:$9 sm:$0xff] %v3810
    %6319 = vst [vmem:[%s6306] ss:$9 sm:$0xff] %v3813
    %6320 = vst [vmem:[%s6308] ss:$9 sm:$0xff] %v3816
    %6321 = vst [vmem:[%s6310] ss:$9 sm:$0xff] %v3819
    %6322 = vst [vmem:[%s6312] ss:$9 sm:$0xff] %v3822
    %v6323 = vld [vmem:[#allocation1] sm:$0xff]
    %6324 = vst [vmem:[#allocation1] ss:$9 sm:$0xff] %v3828
    %6325 = vst [vmem:[%s6300] ss:$9 sm:$0xff] %v3831
    %6326 = vst [vmem:[%s6302] ss:$9 sm:$0xff] %v3834
    %6327 = vst [vmem:[%s6304] ss:$9 sm:$0xff] %v3837
    %6328 = vst [vmem:[%s6306] ss:$9 sm:$0xff] %v3840
    %6329 = vst [vmem:[%s6308] ss:$9 sm:$0xff] %v3843
    %6330 = vst [vmem:[%s6310] ss:$9 sm:$0xff] %v3846
    %6331 = vst [vmem:[%s6312] ss:$9 sm:$0xff] %v3849
    %v6332 = vld [vmem:[#allocation1] sm:$0xff]
    %6333 = vst [vmem:[#allocation1] ss:$9 sm:$0xff] %v3855
    %6334 = vst [vmem:[%s6300] ss:$9 sm:$0xff] %v3858
    %6335 = vst [vmem:[%s6302] ss:$9 sm:$0xff] %v3861
    %6336 = vst [vmem:[%s6304] ss:$9 sm:$0xff] %v3864
    %6337 = vst [vmem:[%s6306] ss:$9 sm:$0xff] %v3867
    %6338 = vst [vmem:[%s6308] ss:$9 sm:$0xff] %v3870
    %6339 = vst [vmem:[%s6310] ss:$9 sm:$0xff] %v3873
    %6340 = vst [vmem:[%s6312] ss:$9 sm:$0xff] %v3876
    %v6341 = vld [vmem:[#allocation1] sm:$0xff]
    %6342 = vst [vmem:[#allocation1] ss:$9 sm:$0xff] %v3882
    %6343 = vst [vmem:[%s6300] ss:$9 sm:$0xff] %v3885
    %6344 = vst [vmem:[%s6302] ss:$9 sm:$0xff] %v3888
    %6345 = vst [vmem:[%s6304] ss:$9 sm:$0xff] %v3891
    %6346 = vst [vmem:[%s6306] ss:$9 sm:$0xff] %v3894
    %6347 = vst [vmem:[%s6308] ss:$9 sm:$0xff] %v3897
    %6348 = vst [vmem:[%s6310] ss:$9 sm:$0xff] %v3900
    %6349 = vst [vmem:[%s6312] ss:$9 sm:$0xff] %v3903
    %v6350 = vld [vmem:[#allocation1] sm:$0xff]
    %6351 = vst [vmem:[#allocation1] ss:$9 sm:$0xff] %v3909
    %6352 = vst [vmem:[%s6300] ss:$9 sm:$0xff] %v3912
    %6353 = vst [vmem:[%s6302] ss:$9 sm:$0xff] %v3915
    %6354 = vst [vmem:[%s6304] ss:$9 sm:$0xff] %v3918
    %6355 = vst [vmem:[%s6306] ss:$9 sm:$0xff] %v3921
    %6356 = vst [vmem:[%s6308] ss:$9 sm:$0xff] %v3924
    %6357 = vst [vmem:[%s6310] ss:$9 sm:$0xff] %v3927
    %6358 = vst [vmem:[%s6312] ss:$9 sm:$0xff] %v3930
    %v6359 = vld [vmem:[#allocation1] sm:$0xff]
    %6360 = vst [vmem:[#allocation1] ss:$9 sm:$0xff] %v3936
    %6361 = vst [vmem:[%s6300] ss:$9 sm:$0xff] %v3939
    %6362 = vst [vmem:[%s6302] ss:$9 sm:$0xff] %v3942
    %6363 = vst [vmem:[%s6304] ss:$9 sm:$0xff] %v3945
    %6364 = vst [vmem:[%s6306] ss:$9 sm:$0xff] %v3948
    %6365 = vst [vmem:[%s6308] ss:$9 sm:$0xff] %v3951
    %6366 = vst [vmem:[%s6310] ss:$9 sm:$0xff] %v3954
    %6367 = vst [vmem:[%s6312] ss:$9 sm:$0xff] %v3957
    %v6368 = vld [vmem:[#allocation1] sm:$0xff]
    %6369 = vst [vmem:[#allocation1] ss:$9 sm:$0xff] %v3963
    %6370 = vst [vmem:[%s6300] ss:$9 sm:$0xff] %v3966
    %6371 = vst [vmem:[%s6302] ss:$9 sm:$0xff] %v3969
    %6372 = vst [vmem:[%s6304] ss:$9 sm:$0xff] %v3972
    %6373 = vst [vmem:[%s6306] ss:$9 sm:$0xff] %v3975
    %6374 = vst [vmem:[%s6308] ss:$9 sm:$0xff] %v3978
    %6375 = vst [vmem:[%s6310] ss:$9 sm:$0xff] %v3981
    %6376 = vst [vmem:[%s6312] ss:$9 sm:$0xff] %v3984
    %v6377 = vld [vmem:[#allocation1] sm:$0xff]
    %6378 = vst [vmem:[#allocation1] ss:$9 sm:$0xff] %v3990
    %6379 = vst [vmem:[%s6300] ss:$9 sm:$0xff] %v3993
    %6380 = vst [vmem:[%s6302] ss:$9 sm:$0xff] %v3996
    %6381 = vst [vmem:[%s6304] ss:$9 sm:$0xff] %v3999
    %6382 = vst [vmem:[%s6306] ss:$9 sm:$0xff] %v4002
    %6383 = vst [vmem:[%s6308] ss:$9 sm:$0xff] %v4005
    %6384 = vst [vmem:[%s6310] ss:$9 sm:$0xff] %v4008
    %6385 = vst [vmem:[%s6312] ss:$9 sm:$0xff] %v4011
    %v6386 = vld [vmem:[#allocation1] sm:$0xff]
    %6387 = vst [vmem:[#allocation1] ss:$9 sm:$0xff] %v4017
    %6388 = vst [vmem:[%s6300] ss:$9 sm:$0xff] %v4020
    %6389 = vst [vmem:[%s6302] ss:$9 sm:$0xff] %v4023
    %6390 = vst [vmem:[%s6304] ss:$9 sm:$0xff] %v4026
    %6391 = vst [vmem:[%s6306] ss:$9 sm:$0xff] %v4029
    %6392 = vst [vmem:[%s6308] ss:$9 sm:$0xff] %v4032
    %6393 = vst [vmem:[%s6310] ss:$9 sm:$0xff] %v4035
    %6394 = vst [vmem:[%s6312] ss:$9 sm:$0xff] %v4038
    %v6395 = vld [vmem:[#allocation1] sm:$0xff]
    %6396 = vst [vmem:[#allocation1] ss:$9 sm:$0xff] %v4044
    %6397 = vst [vmem:[%s6300] ss:$9 sm:$0xff] %v4047
    %6398 = vst [vmem:[%s6302] ss:$9 sm:$0xff] %v4050
    %6399 = vst [vmem:[%s6304] ss:$9 sm:$0xff] %v4053
    %6400 = vst [vmem:[%s6306] ss:$9 sm:$0xff] %v4056
    %6401 = vst [vmem:[%s6308] ss:$9 sm:$0xff] %v4059
    %6402 = vst [vmem:[%s6310] ss:$9 sm:$0xff] %v4062
    %6403 = vst [vmem:[%s6312] ss:$9 sm:$0xff] %v4065
    %v6404 = vld [vmem:[#allocation1] sm:$0xff]
    %6405 = vst [vmem:[#allocation1] ss:$9 sm:$0xff] %v4071
    %6406 = vst [vmem:[%s6300] ss:$9 sm:$0xff] %v4074
    %6407 = vst [vmem:[%s6302] ss:$9 sm:$0xff] %v4077
    %6408 = vst [vmem:[%s6304] ss:$9 sm:$0xff] %v4080
    %6409 = vst [vmem:[%s6306] ss:$9 sm:$0xff] %v4083
    %6410 = vst [vmem:[%s6308] ss:$9 sm:$0xff] %v4086
    %6411 = vst [vmem:[%s6310] ss:$9 sm:$0xff] %v4089
    %6412 = vst [vmem:[%s6312] ss:$9 sm:$0xff] %v4092
    %v6413 = vld [vmem:[#allocation1] sm:$0xff]
    %6414 = vst [vmem:[#allocation1] ss:$9 sm:$0xff] %v4098
    %6415 = vst [vmem:[%s6300] ss:$9 sm:$0xff] %v4101
    %6416 = vst [vmem:[%s6302] ss:$9 sm:$0xff] %v4104
    %6417 = vst [vmem:[%s6304] ss:$9 sm:$0xff] %v4107
    %6418 = vst [vmem:[%s6306] ss:$9 sm:$0xff] %v4110
    %6419 = vst [vmem:[%s6308] ss:$9 sm:$0xff] %v4113
    %6420 = vst [vmem:[%s6310] ss:$9 sm:$0xff] %v4116
    %6421 = vst [vmem:[%s6312] ss:$9 sm:$0xff] %v4119
    %v6422 = vld [vmem:[#allocation1] sm:$0xff]
    %6423 = vst [vmem:[#allocation1] ss:$9 sm:$0xff] %v4125
    %6424 = vst [vmem:[%s6300] ss:$9 sm:$0xff] %v4128
    %6425 = vst [vmem:[%s6302] ss:$9 sm:$0xff] %v4131
    %6426 = vst [vmem:[%s6304] ss:$9 sm:$0xff] %v4134
    %6427 = vst [vmem:[%s6306] ss:$9 sm:$0xff] %v4137
    %6428 = vst [vmem:[%s6308] ss:$9 sm:$0xff] %v4140
    %6429 = vst [vmem:[%s6310] ss:$9 sm:$0xff] %v4143
    %6430 = vst [vmem:[%s6312] ss:$9 sm:$0xff] %v4146
    %v6431 = vld [vmem:[#allocation1] sm:$0xff]
    %6432 = vst [vmem:[#allocation1] ss:$9 sm:$0xff] %v4152
    %6433 = vst [vmem:[%s6300] ss:$9 sm:$0xff] %v4155
    %6434 = vst [vmem:[%s6302] ss:$9 sm:$0xff] %v4158
    %6435 = vst [vmem:[%s6304] ss:$9 sm:$0xff] %v4161
    %6436 = vst [vmem:[%s6306] ss:$9 sm:$0xff] %v4164
    %6437 = vst [vmem:[%s6308] ss:$9 sm:$0xff] %v4167
    %6438 = vst [vmem:[%s6310] ss:$9 sm:$0xff] %v4170
    %6439 = vst [vmem:[%s6312] ss:$9 sm:$0xff] %v4173
    %v6440 = vld [vmem:[#allocation1] sm:$0xff]
    %6441 = vst [vmem:[#allocation1] ss:$9 sm:$0xff] %v4179
    %6443 = vst [vmem:[%s6300] ss:$9 sm:$0xff] %v4182
    %6445 = vst [vmem:[%s6302] ss:$9 sm:$0xff] %v4185
    %6447 = vst [vmem:[%s6304] ss:$9 sm:$0xff] %v4188
    %6448 = vst [vmem:[%s6306] ss:$9 sm:$0xff] %v4191
    %6450 = vst [vmem:[%s6308] ss:$9 sm:$0xff] %v4194
    %6452 = vst [vmem:[%s6310] ss:$9 sm:$0xff] %v4197
    %6454 = vst [vmem:[%s6312] ss:$9 sm:$0xff] %v4200
    %v6455 = vld [vmem:[#allocation1] sm:$0xff]
    %6456 = vst [vmem:[#allocation1] ss:$9 sm:$0xff] %v4260
    %6457 = vst [vmem:[%s6300] ss:$9 sm:$0xff] %v4263
    %6458 = vst [vmem:[%s6302] ss:$9 sm:$0xff] %v4266
    %6459 = vst [vmem:[%s6304] ss:$9 sm:$0xff] %v4269
    %6460 = vst [vmem:[%s6306] ss:$9 sm:$0xff] %v4272
    %6461 = vst [vmem:[%s6308] ss:$9 sm:$0xff] %v4275
    %6462 = vst [vmem:[%s6310] ss:$9 sm:$0xff] %v4278
    %6463 = vst [vmem:[%s6312] ss:$9 sm:$0xff] %v4281
    %v6464 = vld [vmem:[#allocation1] sm:$0xff]
    %6465 = vst [vmem:[#allocation1] ss:$9 sm:$0xff] %v4287
    %6466 = vst [vmem:[%s6300] ss:$9 sm:$0xff] %v4290
    %6467 = vst [vmem:[%s6302] ss:$9 sm:$0xff] %v4293
    %6468 = vst [vmem:[%s6304] ss:$9 sm:$0xff] %v4296
    %6469 = vst [vmem:[%s6306] ss:$9 sm:$0xff] %v4299
    %6470 = vst [vmem:[%s6308] ss:$9 sm:$0xff] %v4302
    %6471 = vst [vmem:[%s6310] ss:$9 sm:$0xff] %v4305
    %6472 = vst [vmem:[%s6312] ss:$9 sm:$0xff] %v4308
    %v6473 = vld [vmem:[#allocation1] sm:$0xff]
    %6474 = vst [vmem:[#allocation1] ss:$9 sm:$0xff] %v4314
    %6475 = vst [vmem:[%s6300] ss:$9 sm:$0xff] %v4317
    %6476 = vst [vmem:[%s6302] ss:$9 sm:$0xff] %v4320
    %6477 = vst [vmem:[%s6304] ss:$9 sm:$0xff] %v4323
    %6478 = vst [vmem:[%s6306] ss:$9 sm:$0xff] %v4326
    %6479 = vst [vmem:[%s6308] ss:$9 sm:$0xff] %v4329
    %6480 = vst [vmem:[%s6310] ss:$9 sm:$0xff] %v4332
    %6481 = vst [vmem:[%s6312] ss:$9 sm:$0xff] %v4335
    %v6482 = vld [vmem:[#allocation1] sm:$0xff]
    %6483 = vst [vmem:[#allocation1] ss:$9 sm:$0xff] %v4341
    %6484 = vst [vmem:[%s6300] ss:$9 sm:$0xff] %v4344
    %6485 = vst [vmem:[%s6302] ss:$9 sm:$0xff] %v4347
    %6486 = vst [vmem:[%s6304] ss:$9 sm:$0xff] %v4350
    %6487 = vst [vmem:[%s6306] ss:$9 sm:$0xff] %v4353
    %6488 = vst [vmem:[%s6308] ss:$9 sm:$0xff] %v4356
    %6489 = vst [vmem:[%s6310] ss:$9 sm:$0xff] %v4359
    %6490 = vst [vmem:[%s6312] ss:$9 sm:$0xff] %v4362
    %v6491 = vld [vmem:[#allocation1] sm:$0xff]
    %6492 = vst [vmem:[#allocation1] ss:$9 sm:$0xff] %v4368
    %6493 = vst [vmem:[%s6300] ss:$9 sm:$0xff] %v4371
    %6494 = vst [vmem:[%s6302] ss:$9 sm:$0xff] %v4374
    %6495 = vst [vmem:[%s6304] ss:$9 sm:$0xff] %v4377
    %6496 = vst [vmem:[%s6306] ss:$9 sm:$0xff] %v4380
    %6497 = vst [vmem:[%s6308] ss:$9 sm:$0xff] %v4383
    %6498 = vst [vmem:[%s6310] ss:$9 sm:$0xff] %v4386
    %6499 = vst [vmem:[%s6312] ss:$9 sm:$0xff] %v4389
    %v6500 = vld [vmem:[#allocation1] sm:$0xff]
    %6501 = vst [vmem:[#allocation1] ss:$9 sm:$0xff] %v4395
    %6502 = vst [vmem:[%s6300] ss:$9 sm:$0xff] %v4398
    %6503 = vst [vmem:[%s6302] ss:$9 sm:$0xff] %v4401
    %6504 = vst [vmem:[%s6304] ss:$9 sm:$0xff] %v4404
    %6505 = vst [vmem:[%s6306] ss:$9 sm:$0xff] %v4407
    %6506 = vst [vmem:[%s6308] ss:$9 sm:$0xff] %v4410
    %6507 = vst [vmem:[%s6310] ss:$9 sm:$0xff] %v4413
    %6508 = vst [vmem:[%s6312] ss:$9 sm:$0xff] %v4416
    %v6509 = vld [vmem:[#allocation1] sm:$0xff]
    %6510 = vst [vmem:[#allocation1] ss:$9 sm:$0xff] %v4422
    %6511 = vst [vmem:[%s6300] ss:$9 sm:$0xff] %v4425
    %6512 = vst [vmem:[%s6302] ss:$9 sm:$0xff] %v4428
    %6513 = vst [vmem:[%s6304] ss:$9 sm:$0xff] %v4431
    %6514 = vst [vmem:[%s6306] ss:$9 sm:$0xff] %v4434
    %6515 = vst [vmem:[%s6308] ss:$9 sm:$0xff] %v4437
    %6516 = vst [vmem:[%s6310] ss:$9 sm:$0xff] %v4440
    %6517 = vst [vmem:[%s6312] ss:$9 sm:$0xff] %v4443
    %v6518 = vld [vmem:[#allocation1] sm:$0xff]
    %6519 = vst [vmem:[#allocation1] ss:$9 sm:$0xff] %v4449
    %6520 = vst [vmem:[%s6300] ss:$9 sm:$0xff] %v4452
    %6521 = vst [vmem:[%s6302] ss:$9 sm:$0xff] %v4455
    %6522 = vst [vmem:[%s6304] ss:$9 sm:$0xff] %v4458
    %6523 = vst [vmem:[%s6306] ss:$9 sm:$0xff] %v4461
    %6524 = vst [vmem:[%s6308] ss:$9 sm:$0xff] %v4464
    %6525 = vst [vmem:[%s6310] ss:$9 sm:$0xff] %v4467
    %6526 = vst [vmem:[%s6312] ss:$9 sm:$0xff] %v4470
    %v6527 = vld [vmem:[#allocation1] sm:$0xff]
    %6528 = vst [vmem:[#allocation1] ss:$9 sm:$0xff] %v4476
    %6529 = vst [vmem:[%s6300] ss:$9 sm:$0xff] %v4479
    %6530 = vst [vmem:[%s6302] ss:$9 sm:$0xff] %v4482
    %6531 = vst [vmem:[%s6304] ss:$9 sm:$0xff] %v4485
    %6532 = vst [vmem:[%s6306] ss:$9 sm:$0xff] %v4488
    %6533 = vst [vmem:[%s6308] ss:$9 sm:$0xff] %v4491
    %6534 = vst [vmem:[%s6310] ss:$9 sm:$0xff] %v4494
    %6535 = vst [vmem:[%s6312] ss:$9 sm:$0xff] %v4497
    %v6536 = vld [vmem:[#allocation1] sm:$0xff]
    %6537 = vst [vmem:[#allocation1] ss:$9 sm:$0xff] %v4503
    %6538 = vst [vmem:[%s6300] ss:$9 sm:$0xff] %v4506
    %6539 = vst [vmem:[%s6302] ss:$9 sm:$0xff] %v4509
    %6540 = vst [vmem:[%s6304] ss:$9 sm:$0xff] %v4512
    %6541 = vst [vmem:[%s6306] ss:$9 sm:$0xff] %v4515
    %6542 = vst [vmem:[%s6308] ss:$9 sm:$0xff] %v4518
    %6543 = vst [vmem:[%s6310] ss:$9 sm:$0xff] %v4521
    %6544 = vst [vmem:[%s6312] ss:$9 sm:$0xff] %v4524
    %v6545 = vld [vmem:[#allocation1] sm:$0xff]
    %6546 = vst [vmem:[#allocation1] ss:$9 sm:$0xff] %v4530
    %6547 = vst [vmem:[%s6300] ss:$9 sm:$0xff] %v4533
    %6548 = vst [vmem:[%s6302] ss:$9 sm:$0xff] %v4536
    %6549 = vst [vmem:[%s6304] ss:$9 sm:$0xff] %v4539
    %6550 = vst [vmem:[%s6306] ss:$9 sm:$0xff] %v4542
    %6551 = vst [vmem:[%s6308] ss:$9 sm:$0xff] %v4545
    %6552 = vst [vmem:[%s6310] ss:$9 sm:$0xff] %v4548
    %6553 = vst [vmem:[%s6312] ss:$9 sm:$0xff] %v4551
    %v6554 = vld [vmem:[#allocation1] sm:$0xff]
    %6555 = vst [vmem:[#allocation1] ss:$9 sm:$0xff] %v4557
    %6556 = vst [vmem:[%s6300] ss:$9 sm:$0xff] %v4560
    %6557 = vst [vmem:[%s6302] ss:$9 sm:$0xff] %v4563
    %6558 = vst [vmem:[%s6304] ss:$9 sm:$0xff] %v4566
    %6559 = vst [vmem:[%s6306] ss:$9 sm:$0xff] %v4569
    %6560 = vst [vmem:[%s6308] ss:$9 sm:$0xff] %v4572
    %6561 = vst [vmem:[%s6310] ss:$9 sm:$0xff] %v4575
    %6562 = vst [vmem:[%s6312] ss:$9 sm:$0xff] %v4578
    %v6563 = vld [vmem:[#allocation1] sm:$0xff]
    %6564 = vst [vmem:[#allocation1] ss:$9 sm:$0xff] %v4584
    %6565 = vst [vmem:[%s6300] ss:$9 sm:$0xff] %v4587
    %6566 = vst [vmem:[%s6302] ss:$9 sm:$0xff] %v4590
    %6567 = vst [vmem:[%s6304] ss:$9 sm:$0xff] %v4593
    %6568 = vst [vmem:[%s6306] ss:$9 sm:$0xff] %v4596
    %6569 = vst [vmem:[%s6308] ss:$9 sm:$0xff] %v4599
    %6570 = vst [vmem:[%s6310] ss:$9 sm:$0xff] %v4602
    %6571 = vst [vmem:[%s6312] ss:$9 sm:$0xff] %v4605
    %v6572 = vld [vmem:[#allocation1] sm:$0xff]
    %6573 = vst [vmem:[#allocation1] ss:$9 sm:$0xff] %v4611
    %6574 = vst [vmem:[%s6300] ss:$9 sm:$0xff] %v4614
    %6575 = vst [vmem:[%s6302] ss:$9 sm:$0xff] %v4617
    %6576 = vst [vmem:[%s6304] ss:$9 sm:$0xff] %v4620
    %6577 = vst [vmem:[%s6306] ss:$9 sm:$0xff] %v4623
    %6578 = vst [vmem:[%s6308] ss:$9 sm:$0xff] %v4626
    %6579 = vst [vmem:[%s6310] ss:$9 sm:$0xff] %v4629
    %6580 = vst [vmem:[%s6312] ss:$9 sm:$0xff] %v4632
    %v6581 = vld [vmem:[#allocation1] sm:$0xff]
    %6582 = vst [vmem:[#allocation1] ss:$9 sm:$0xff] %v4638
    %6583 = vst [vmem:[%s6300] ss:$9 sm:$0xff] %v4641
    %6584 = vst [vmem:[%s6302] ss:$9 sm:$0xff] %v4644
    %6585 = vst [vmem:[%s6304] ss:$9 sm:$0xff] %v4647
    %6586 = vst [vmem:[%s6306] ss:$9 sm:$0xff] %v4650
    %6587 = vst [vmem:[%s6308] ss:$9 sm:$0xff] %v4653
    %6588 = vst [vmem:[%s6310] ss:$9 sm:$0xff] %v4656
    %6589 = vst [vmem:[%s6312] ss:$9 sm:$0xff] %v4659
    %v6590 = vld [vmem:[#allocation1] sm:$0xff]
    %6592 = vst [vmem:[#allocation1] ss:$9 sm:$0xff] %v4665
    %6594 = vst [vmem:[%s6300] ss:$9 sm:$0xff] %v4668
    %6595 = vst [vmem:[%s6302] ss:$9 sm:$0xff] %v4671
    %6597 = vst [vmem:[%s6304] ss:$9 sm:$0xff] %v4674
    %6599 = vst [vmem:[%s6306] ss:$9 sm:$0xff] %v4677
    %6601 = vst [vmem:[%s6308] ss:$9 sm:$0xff] %v4680
    %6602 = vst [vmem:[%s6310] ss:$9 sm:$0xff] %v4683
    %6604 = vst [vmem:[%s6312] ss:$9 sm:$0xff] %v4686
    %v6605 = vld [vmem:[#allocation1] sm:$0xff]
    %6638 = vst [vmem:[#allocation1] ss:$9 sm:$0xff] %v3774
    %s6639 = scalar_lea.vmem [#allocation1], 1
    %6640 = vst [vmem:[%s6639] ss:$9 sm:$0xff] %v3777
    %s6641 = scalar_lea.vmem [#allocation1], 2
    %6642 = vst [vmem:[%s6641] ss:$9 sm:$0xff] %v3780
    %s6643 = scalar_lea.vmem [#allocation1], 3
    %6644 = vst [vmem:[%s6643] ss:$9 sm:$0xff] %v3783
    %s6645 = scalar_lea.vmem [#allocation1], 4
    %6646 = vst [vmem:[%s6645] ss:$9 sm:$0xff] %v3786
    %s6647 = scalar_lea.vmem [#allocation1], 5
    %6648 = vst [vmem:[%s6647] ss:$9 sm:$0xff] %v3789
    %s6649 = scalar_lea.vmem [#allocation1], 6
    %6650 = vst [vmem:[%s6649] ss:$9 sm:$0xff] %v3792
    %s6651 = scalar_lea.vmem [#allocation1], 7
    %6652 = vst [vmem:[%s6651] ss:$9 sm:$0xff] %v3795
    %v6653 = vld [vmem:[#allocation1] sm:$0xff]
    %6654 = vst [vmem:[#allocation1] ss:$9 sm:$0xff] %v3798
    %v6655 = vld [vmem:[#allocation1] sm:$0xff]
    %6656 = vst [vmem:[#allocation1] ss:$9 sm:$0xff] %v3801
    %6657 = vst [vmem:[%s6639] ss:$9 sm:$0xff] %v3804
    %6658 = vst [vmem:[%s6641] ss:$9 sm:$0xff] %v3807
    %6659 = vst [vmem:[%s6643] ss:$9 sm:$0xff] %v3810
    %6660 = vst [vmem:[%s6645] ss:$9 sm:$0xff] %v3813
    %6661 = vst [vmem:[%s6647] ss:$9 sm:$0xff] %v3816
    %6662 = vst [vmem:[%s6649] ss:$9 sm:$0xff] %v3819
    %6663 = vst [vmem:[%s6651] ss:$9 sm:$0xff] %v3822
    %v6664 = vld [vmem:[#allocation1] sm:$0xff]
    %6665 = vst [vmem:[#allocation1] ss:$9 sm:$0xff] %v3825
    %v6666 = vld [vmem:[#allocation1] sm:$0xff]
    %6667 = vst [vmem:[#allocation1] ss:$9 sm:$0xff] %v3828
    %6668 = vst [vmem:[%s6639] ss:$9 sm:$0xff] %v3831
    %6669 = vst [vmem:[%s6641] ss:$9 sm:$0xff] %v3834
    %6670 = vst [vmem:[%s6643] ss:$9 sm:$0xff] %v3837
    %6671 = vst [vmem:[%s6645] ss:$9 sm:$0xff] %v3840
    %6672 = vst [vmem:[%s6647] ss:$9 sm:$0xff] %v3843
    %6673 = vst [vmem:[%s6649] ss:$9 sm:$0xff] %v3846
    %6674 = vst [vmem:[%s6651] ss:$9 sm:$0xff] %v3849
    %v6675 = vld [vmem:[#allocation1] sm:$0xff]
    %6676 = vst [vmem:[#allocation1] ss:$9 sm:$0xff] %v3852
    %v6677 = vld [vmem:[#allocation1] sm:$0xff]
    %6678 = vst [vmem:[#allocation1] ss:$9 sm:$0xff] %v3855
    %6679 = vst [vmem:[%s6639] ss:$9 sm:$0xff] %v3858
    %6680 = vst [vmem:[%s6641] ss:$9 sm:$0xff] %v3861
    %6681 = vst [vmem:[%s6643] ss:$9 sm:$0xff] %v3864
    %6682 = vst [vmem:[%s6645] ss:$9 sm:$0xff] %v3867
    %6683 = vst [vmem:[%s6647] ss:$9 sm:$0xff] %v3870
    %6684 = vst [vmem:[%s6649] ss:$9 sm:$0xff] %v3873
    %6685 = vst [vmem:[%s6651] ss:$9 sm:$0xff] %v3876
    %v6686 = vld [vmem:[#allocation1] sm:$0xff]
    %6687 = vst [vmem:[#allocation1] ss:$9 sm:$0xff] %v3879
    %v6688 = vld [vmem:[#allocation1] sm:$0xff]
    %6689 = vst [vmem:[#allocation1] ss:$9 sm:$0xff] %v3882
    %6690 = vst [vmem:[%s6639] ss:$9 sm:$0xff] %v3885
    %6691 = vst [vmem:[%s6641] ss:$9 sm:$0xff] %v3888
    %6692 = vst [vmem:[%s6643] ss:$9 sm:$0xff] %v3891
    %6693 = vst [vmem:[%s6645] ss:$9 sm:$0xff] %v3894
    %6694 = vst [vmem:[%s6647] ss:$9 sm:$0xff] %v3897
    %6695 = vst [vmem:[%s6649] ss:$9 sm:$0xff] %v3900
    %6696 = vst [vmem:[%s6651] ss:$9 sm:$0xff] %v3903
    %v6697 = vld [vmem:[#allocation1] sm:$0xff]
    %6698 = vst [vmem:[#allocation1] ss:$9 sm:$0xff] %v3906
    %v6699 = vld [vmem:[#allocation1] sm:$0xff]
    %6700 = vst [vmem:[#allocation1] ss:$9 sm:$0xff] %v3909
    %6701 = vst [vmem:[%s6639] ss:$9 sm:$0xff] %v3912
    %6702 = vst [vmem:[%s6641] ss:$9 sm:$0xff] %v3915
    %6703 = vst [vmem:[%s6643] ss:$9 sm:$0xff] %v3918
    %6704 = vst [vmem:[%s6645] ss:$9 sm:$0xff] %v3921
    %6705 = vst [vmem:[%s6647] ss:$9 sm:$0xff] %v3924
    %6706 = vst [vmem:[%s6649] ss:$9 sm:$0xff] %v3927
    %6707 = vst [vmem:[%s6651] ss:$9 sm:$0xff] %v3930
    %v6708 = vld [vmem:[#allocation1] sm:$0xff]
    %6709 = vst [vmem:[#allocation1] ss:$9 sm:$0xff] %v3933
    %v6710 = vld [vmem:[#allocation1] sm:$0xff]
    %6711 = vst [vmem:[#allocation1] ss:$9 sm:$0xff] %v3936
    %6712 = vst [vmem:[%s6639] ss:$9 sm:$0xff] %v3939
    %6713 = vst [vmem:[%s6641] ss:$9 sm:$0xff] %v3942
    %6714 = vst [vmem:[%s6643] ss:$9 sm:$0xff] %v3945
    %6715 = vst [vmem:[%s6645] ss:$9 sm:$0xff] %v3948
    %6716 = vst [vmem:[%s6647] ss:$9 sm:$0xff] %v3951
    %6717 = vst [vmem:[%s6649] ss:$9 sm:$0xff] %v3954
    %6718 = vst [vmem:[%s6651] ss:$9 sm:$0xff] %v3957
    %v6719 = vld [vmem:[#allocation1] sm:$0xff]
    %6720 = vst [vmem:[#allocation1] ss:$9 sm:$0xff] %v3960
    %v6721 = vld [vmem:[#allocation1] sm:$0xff]
    %6722 = vst [vmem:[#allocation1] ss:$9 sm:$0xff] %v3963
    %6723 = vst [vmem:[%s6639] ss:$9 sm:$0xff] %v3966
    %6724 = vst [vmem:[%s6641] ss:$9 sm:$0xff] %v3969
    %6725 = vst [vmem:[%s6643] ss:$9 sm:$0xff] %v3972
    %6726 = vst [vmem:[%s6645] ss:$9 sm:$0xff] %v3975
    %6727 = vst [vmem:[%s6647] ss:$9 sm:$0xff] %v3978
    %6728 = vst [vmem:[%s6649] ss:$9 sm:$0xff] %v3981
    %6729 = vst [vmem:[%s6651] ss:$9 sm:$0xff] %v3984
    %v6730 = vld [vmem:[#allocation1] sm:$0xff]
    %6731 = vst [vmem:[#allocation1] ss:$9 sm:$0xff] %v3987
    %v6732 = vld [vmem:[#allocation1] sm:$0xff]
    %6733 = vst [vmem:[#allocation1] ss:$9 sm:$0xff] %v3990
    %6734 = vst [vmem:[%s6639] ss:$9 sm:$0xff] %v3993
    %6735 = vst [vmem:[%s6641] ss:$9 sm:$0xff] %v3996
    %6736 = vst [vmem:[%s6643] ss:$9 sm:$0xff] %v3999
    %6737 = vst [vmem:[%s6645] ss:$9 sm:$0xff] %v4002
    %6738 = vst [vmem:[%s6647] ss:$9 sm:$0xff] %v4005
    %6739 = vst [vmem:[%s6649] ss:$9 sm:$0xff] %v4008
    %6740 = vst [vmem:[%s6651] ss:$9 sm:$0xff] %v4011
    %v6741 = vld [vmem:[#allocation1] sm:$0xff]
    %6742 = vst [vmem:[#allocation1] ss:$9 sm:$0xff] %v4014
    %v6743 = vld [vmem:[#allocation1] sm:$0xff]
    %6744 = vst [vmem:[#allocation1] ss:$9 sm:$0xff] %v4017
    %6745 = vst [vmem:[%s6639] ss:$9 sm:$0xff] %v4020
    %6746 = vst [vmem:[%s6641] ss:$9 sm:$0xff] %v4023
    %6747 = vst [vmem:[%s6643] ss:$9 sm:$0xff] %v4026
    %6748 = vst [vmem:[%s6645] ss:$9 sm:$0xff] %v4029
    %6749 = vst [vmem:[%s6647] ss:$9 sm:$0xff] %v4032
    %6750 = vst [vmem:[%s6649] ss:$9 sm:$0xff] %v4035
    %6751 = vst [vmem:[%s6651] ss:$9 sm:$0xff] %v4038
    %v6752 = vld [vmem:[#allocation1] sm:$0xff]
    %6753 = vst [vmem:[#allocation1] ss:$9 sm:$0xff] %v4041
    %v6754 = vld [vmem:[#allocation1] sm:$0xff]
    %6755 = vst [vmem:[#allocation1] ss:$9 sm:$0xff] %v4044
    %6756 = vst [vmem:[%s6639] ss:$9 sm:$0xff] %v4047
    %6757 = vst [vmem:[%s6641] ss:$9 sm:$0xff] %v4050
    %6758 = vst [vmem:[%s6643] ss:$9 sm:$0xff] %v4053
    %6759 = vst [vmem:[%s6645] ss:$9 sm:$0xff] %v4056
    %6760 = vst [vmem:[%s6647] ss:$9 sm:$0xff] %v4059
    %6761 = vst [vmem:[%s6649] ss:$9 sm:$0xff] %v4062
    %6762 = vst [vmem:[%s6651] ss:$9 sm:$0xff] %v4065
    %v6763 = vld [vmem:[#allocation1] sm:$0xff]
    %6764 = vst [vmem:[#allocation1] ss:$9 sm:$0xff] %v4068
    %v6765 = vld [vmem:[#allocation1] sm:$0xff]
    %6766 = vst [vmem:[#allocation1] ss:$9 sm:$0xff] %v4071
    %6767 = vst [vmem:[%s6639] ss:$9 sm:$0xff] %v4074
    %6768 = vst [vmem:[%s6641] ss:$9 sm:$0xff] %v4077
    %6769 = vst [vmem:[%s6643] ss:$9 sm:$0xff] %v4080
    %6770 = vst [vmem:[%s6645] ss:$9 sm:$0xff] %v4083
    %6771 = vst [vmem:[%s6647] ss:$9 sm:$0xff] %v4086
    %6772 = vst [vmem:[%s6649] ss:$9 sm:$0xff] %v4089
    %6773 = vst [vmem:[%s6651] ss:$9 sm:$0xff] %v4092
    %v6774 = vld [vmem:[#allocation1] sm:$0xff]
    %6775 = vst [vmem:[#allocation1] ss:$9 sm:$0xff] %v4095
    %v6776 = vld [vmem:[#allocation1] sm:$0xff]
    %6777 = vst [vmem:[#allocation1] ss:$9 sm:$0xff] %v4098
    %6778 = vst [vmem:[%s6639] ss:$9 sm:$0xff] %v4101
    %6779 = vst [vmem:[%s6641] ss:$9 sm:$0xff] %v4104
    %6780 = vst [vmem:[%s6643] ss:$9 sm:$0xff] %v4107
    %6781 = vst [vmem:[%s6645] ss:$9 sm:$0xff] %v4110
    %6782 = vst [vmem:[%s6647] ss:$9 sm:$0xff] %v4113
    %6783 = vst [vmem:[%s6649] ss:$9 sm:$0xff] %v4116
    %6784 = vst [vmem:[%s6651] ss:$9 sm:$0xff] %v4119
    %v6785 = vld [vmem:[#allocation1] sm:$0xff]
    %6786 = vst [vmem:[#allocation1] ss:$9 sm:$0xff] %v4122
    %v6787 = vld [vmem:[#allocation1] sm:$0xff]
    %6788 = vst [vmem:[#allocation1] ss:$9 sm:$0xff] %v4125
    %6789 = vst [vmem:[%s6639] ss:$9 sm:$0xff] %v4128
    %6790 = vst [vmem:[%s6641] ss:$9 sm:$0xff] %v4131
    %6791 = vst [vmem:[%s6643] ss:$9 sm:$0xff] %v4134
    %6792 = vst [vmem:[%s6645] ss:$9 sm:$0xff] %v4137
    %6793 = vst [vmem:[%s6647] ss:$9 sm:$0xff] %v4140
    %6794 = vst [vmem:[%s6649] ss:$9 sm:$0xff] %v4143
    %6795 = vst [vmem:[%s6651] ss:$9 sm:$0xff] %v4146
    %v6796 = vld [vmem:[#allocation1] sm:$0xff]
    %6797 = vst [vmem:[#allocation1] ss:$9 sm:$0xff] %v4149
    %v6798 = vld [vmem:[#allocation1] sm:$0xff]
    %6799 = vst [vmem:[#allocation1] ss:$9 sm:$0xff] %v4152
    %6800 = vst [vmem:[%s6639] ss:$9 sm:$0xff] %v4155
    %6801 = vst [vmem:[%s6641] ss:$9 sm:$0xff] %v4158
    %6802 = vst [vmem:[%s6643] ss:$9 sm:$0xff] %v4161
    %6803 = vst [vmem:[%s6645] ss:$9 sm:$0xff] %v4164
    %6804 = vst [vmem:[%s6647] ss:$9 sm:$0xff] %v4167
    %6805 = vst [vmem:[%s6649] ss:$9 sm:$0xff] %v4170
    %6806 = vst [vmem:[%s6651] ss:$9 sm:$0xff] %v4173
    %v6807 = vld [vmem:[#allocation1] sm:$0xff]
    %6808 = vst [vmem:[#allocation1] ss:$9 sm:$0xff] %v4176
    %v6809 = vld [vmem:[#allocation1] sm:$0xff]
    %6810 = vst [vmem:[#allocation1] ss:$9 sm:$0xff] %v4179
    %6811 = vst [vmem:[%s6639] ss:$9 sm:$0xff] %v4182
    %6812 = vst [vmem:[%s6641] ss:$9 sm:$0xff] %v4185
    %6813 = vst [vmem:[%s6643] ss:$9 sm:$0xff] %v4188
    %6814 = vst [vmem:[%s6645] ss:$9 sm:$0xff] %v4191
    %6815 = vst [vmem:[%s6647] ss:$9 sm:$0xff] %v4194
    %6816 = vst [vmem:[%s6649] ss:$9 sm:$0xff] %v4197
    %6817 = vst [vmem:[%s6651] ss:$9 sm:$0xff] %v4200
    %v6818 = vld [vmem:[#allocation1] sm:$0xff]
    %6819 = vst [vmem:[#allocation1] ss:$9 sm:$0xff] %v4203
    %v6820 = vld [vmem:[#allocation1] sm:$0xff]
    %6821 = vst [vmem:[#allocation1] ss:$9 sm:$0xff] %v4260
    %6822 = vst [vmem:[%s6639] ss:$9 sm:$0xff] %v4263
    %6823 = vst [vmem:[%s6641] ss:$9 sm:$0xff] %v4266
    %6824 = vst [vmem:[%s6643] ss:$9 sm:$0xff] %v4269
    %6825 = vst [vmem:[%s6645] ss:$9 sm:$0xff] %v4272
    %6826 = vst [vmem:[%s6647] ss:$9 sm:$0xff] %v4275
    %6827 = vst [vmem:[%s6649] ss:$9 sm:$0xff] %v4278
    %6828 = vst [vmem:[%s6651] ss:$9 sm:$0xff] %v4281
    %v6829 = vld [vmem:[#allocation1] sm:$0xff]
    %6830 = vst [vmem:[#allocation1] ss:$9 sm:$0xff] %v4284
    %v6831 = vld [vmem:[#allocation1] sm:$0xff]
    %6832 = vst [vmem:[#allocation1] ss:$9 sm:$0xff] %v4287
    %6833 = vst [vmem:[%s6639] ss:$9 sm:$0xff] %v4290
    %6834 = vst [vmem:[%s6641] ss:$9 sm:$0xff] %v4293
    %6835 = vst [vmem:[%s6643] ss:$9 sm:$0xff] %v4296
    %6836 = vst [vmem:[%s6645] ss:$9 sm:$0xff] %v4299
    %6837 = vst [vmem:[%s6647] ss:$9 sm:$0xff] %v4302
    %6838 = vst [vmem:[%s6649] ss:$9 sm:$0xff] %v4305
    %6839 = vst [vmem:[%s6651] ss:$9 sm:$0xff] %v4308
    %v6840 = vld [vmem:[#allocation1] sm:$0xff]
    %6841 = vst [vmem:[#allocation1] ss:$9 sm:$0xff] %v4311
    %v6842 = vld [vmem:[#allocation1] sm:$0xff]
    %6843 = vst [vmem:[#allocation1] ss:$9 sm:$0xff] %v4314
    %6844 = vst [vmem:[%s6639] ss:$9 sm:$0xff] %v4317
    %6845 = vst [vmem:[%s6641] ss:$9 sm:$0xff] %v4320
    %6846 = vst [vmem:[%s6643] ss:$9 sm:$0xff] %v4323
    %6847 = vst [vmem:[%s6645] ss:$9 sm:$0xff] %v4326
    %6848 = vst [vmem:[%s6647] ss:$9 sm:$0xff] %v4329
    %6849 = vst [vmem:[%s6649] ss:$9 sm:$0xff] %v4332
    %6850 = vst [vmem:[%s6651] ss:$9 sm:$0xff] %v4335
    %v6851 = vld [vmem:[#allocation1] sm:$0xff]
    %6852 = vst [vmem:[#allocation1] ss:$9 sm:$0xff] %v4338
    %v6853 = vld [vmem:[#allocation1] sm:$0xff]
    %6854 = vst [vmem:[#allocation1] ss:$9 sm:$0xff] %v4341
    %6855 = vst [vmem:[%s6639] ss:$9 sm:$0xff] %v4344
    %6856 = vst [vmem:[%s6641] ss:$9 sm:$0xff] %v4347
    %6857 = vst [vmem:[%s6643] ss:$9 sm:$0xff] %v4350
    %6858 = vst [vmem:[%s6645] ss:$9 sm:$0xff] %v4353
    %6859 = vst [vmem:[%s6647] ss:$9 sm:$0xff] %v4356
    %6860 = vst [vmem:[%s6649] ss:$9 sm:$0xff] %v4359
    %6861 = vst [vmem:[%s6651] ss:$9 sm:$0xff] %v4362
    %v6862 = vld [vmem:[#allocation1] sm:$0xff]
    %6863 = vst [vmem:[#allocation1] ss:$9 sm:$0xff] %v4365
    %v6864 = vld [vmem:[#allocation1] sm:$0xff]
    %6865 = vst [vmem:[#allocation1] ss:$9 sm:$0xff] %v4368
    %6866 = vst [vmem:[%s6639] ss:$9 sm:$0xff] %v4371
    %6867 = vst [vmem:[%s6641] ss:$9 sm:$0xff] %v4374
    %6868 = vst [vmem:[%s6643] ss:$9 sm:$0xff] %v4377
    %6869 = vst [vmem:[%s6645] ss:$9 sm:$0xff] %v4380
    %6870 = vst [vmem:[%s6647] ss:$9 sm:$0xff] %v4383
    %6871 = vst [vmem:[%s6649] ss:$9 sm:$0xff] %v4386
    %6872 = vst [vmem:[%s6651] ss:$9 sm:$0xff] %v4389
    %v6873 = vld [vmem:[#allocation1] sm:$0xff]
    %6874 = vst [vmem:[#allocation1] ss:$9 sm:$0xff] %v4392
    %v6875 = vld [vmem:[#allocation1] sm:$0xff]
    %6876 = vst [vmem:[#allocation1] ss:$9 sm:$0xff] %v4395
    %6877 = vst [vmem:[%s6639] ss:$9 sm:$0xff] %v4398
    %6878 = vst [vmem:[%s6641] ss:$9 sm:$0xff] %v4401
    %6879 = vst [vmem:[%s6643] ss:$9 sm:$0xff] %v4404
    %6880 = vst [vmem:[%s6645] ss:$9 sm:$0xff] %v4407
    %6881 = vst [vmem:[%s6647] ss:$9 sm:$0xff] %v4410
    %6882 = vst [vmem:[%s6649] ss:$9 sm:$0xff] %v4413
    %6883 = vst [vmem:[%s6651] ss:$9 sm:$0xff] %v4416
    %v6884 = vld [vmem:[#allocation1] sm:$0xff]
    %6885 = vst [vmem:[#allocation1] ss:$9 sm:$0xff] %v4419
    %v6886 = vld [vmem:[#allocation1] sm:$0xff]
    %6887 = vst [vmem:[#allocation1] ss:$9 sm:$0xff] %v4422
    %6888 = vst [vmem:[%s6639] ss:$9 sm:$0xff] %v4425
    %6889 = vst [vmem:[%s6641] ss:$9 sm:$0xff] %v4428
    %6890 = vst [vmem:[%s6643] ss:$9 sm:$0xff] %v4431
    %6891 = vst [vmem:[%s6645] ss:$9 sm:$0xff] %v4434
    %6892 = vst [vmem:[%s6647] ss:$9 sm:$0xff] %v4437
    %6893 = vst [vmem:[%s6649] ss:$9 sm:$0xff] %v4440
    %6894 = vst [vmem:[%s6651] ss:$9 sm:$0xff] %v4443
    %v6895 = vld [vmem:[#allocation1] sm:$0xff]
    %6896 = vst [vmem:[#allocation1] ss:$9 sm:$0xff] %v4446
    %v6897 = vld [vmem:[#allocation1] sm:$0xff]
    %6898 = vst [vmem:[#allocation1] ss:$9 sm:$0xff] %v4449
    %6899 = vst [vmem:[%s6639] ss:$9 sm:$0xff] %v4452
    %6900 = vst [vmem:[%s6641] ss:$9 sm:$0xff] %v4455
    %6901 = vst [vmem:[%s6643] ss:$9 sm:$0xff] %v4458
    %6902 = vst [vmem:[%s6645] ss:$9 sm:$0xff] %v4461
    %6903 = vst [vmem:[%s6647] ss:$9 sm:$0xff] %v4464
    %6904 = vst [vmem:[%s6649] ss:$9 sm:$0xff] %v4467
    %6905 = vst [vmem:[%s6651] ss:$9 sm:$0xff] %v4470
    %v6906 = vld [vmem:[#allocation1] sm:$0xff]
    %6907 = vst [vmem:[#allocation1] ss:$9 sm:$0xff] %v4473
    %v6908 = vld [vmem:[#allocation1] sm:$0xff]
    %6909 = vst [vmem:[#allocation1] ss:$9 sm:$0xff] %v4476
    %6910 = vst [vmem:[%s6639] ss:$9 sm:$0xff] %v4479
    %6911 = vst [vmem:[%s6641] ss:$9 sm:$0xff] %v4482
    %6912 = vst [vmem:[%s6643] ss:$9 sm:$0xff] %v4485
    %6913 = vst [vmem:[%s6645] ss:$9 sm:$0xff] %v4488
    %6914 = vst [vmem:[%s6647] ss:$9 sm:$0xff] %v4491
    %6915 = vst [vmem:[%s6649] ss:$9 sm:$0xff] %v4494
    %6916 = vst [vmem:[%s6651] ss:$9 sm:$0xff] %v4497
    %v6917 = vld [vmem:[#allocation1] sm:$0xff]
    %6918 = vst [vmem:[#allocation1] ss:$9 sm:$0xff] %v4500
    %v6919 = vld [vmem:[#allocation1] sm:$0xff]
    %6920 = vst [vmem:[#allocation1] ss:$9 sm:$0xff] %v4503
    %6921 = vst [vmem:[%s6639] ss:$9 sm:$0xff] %v4506
    %6922 = vst [vmem:[%s6641] ss:$9 sm:$0xff] %v4509
    %6923 = vst [vmem:[%s6643] ss:$9 sm:$0xff] %v4512
    %6924 = vst [vmem:[%s6645] ss:$9 sm:$0xff] %v4515
    %6925 = vst [vmem:[%s6647] ss:$9 sm:$0xff] %v4518
    %6926 = vst [vmem:[%s6649] ss:$9 sm:$0xff] %v4521
    %6927 = vst [vmem:[%s6651] ss:$9 sm:$0xff] %v4524
    %v6928 = vld [vmem:[#allocation1] sm:$0xff]
    %6929 = vst [vmem:[#allocation1] ss:$9 sm:$0xff] %v4527
    %v6930 = vld [vmem:[#allocation1] sm:$0xff]
    %6931 = vst [vmem:[#allocation1] ss:$9 sm:$0xff] %v4530
    %6932 = vst [vmem:[%s6639] ss:$9 sm:$0xff] %v4533
    %6933 = vst [vmem:[%s6641] ss:$9 sm:$0xff] %v4536
    %6934 = vst [vmem:[%s6643] ss:$9 sm:$0xff] %v4539
    %6935 = vst [vmem:[%s6645] ss:$9 sm:$0xff] %v4542
    %6936 = vst [vmem:[%s6647] ss:$9 sm:$0xff] %v4545
    %6937 = vst [vmem:[%s6649] ss:$9 sm:$0xff] %v4548
    %6938 = vst [vmem:[%s6651] ss:$9 sm:$0xff] %v4551
    %v6939 = vld [vmem:[#allocation1] sm:$0xff]
    %6940 = vst [vmem:[#allocation1] ss:$9 sm:$0xff] %v4554
    %v6941 = vld [vmem:[#allocation1] sm:$0xff]
    %6942 = vst [vmem:[#allocation1] ss:$9 sm:$0xff] %v4557
    %6943 = vst [vmem:[%s6639] ss:$9 sm:$0xff] %v4560
    %6944 = vst [vmem:[%s6641] ss:$9 sm:$0xff] %v4563
    %6945 = vst [vmem:[%s6643] ss:$9 sm:$0xff] %v4566
    %6946 = vst [vmem:[%s6645] ss:$9 sm:$0xff] %v4569
    %6947 = vst [vmem:[%s6647] ss:$9 sm:$0xff] %v4572
    %6948 = vst [vmem:[%s6649] ss:$9 sm:$0xff] %v4575
    %6949 = vst [vmem:[%s6651] ss:$9 sm:$0xff] %v4578
    %v6950 = vld [vmem:[#allocation1] sm:$0xff]
    %6951 = vst [vmem:[#allocation1] ss:$9 sm:$0xff] %v4581
    %v6952 = vld [vmem:[#allocation1] sm:$0xff]
    %6953 = vst [vmem:[#allocation1] ss:$9 sm:$0xff] %v4584
    %6954 = vst [vmem:[%s6639] ss:$9 sm:$0xff] %v4587
    %6955 = vst [vmem:[%s6641] ss:$9 sm:$0xff] %v4590
    %6956 = vst [vmem:[%s6643] ss:$9 sm:$0xff] %v4593
    %6957 = vst [vmem:[%s6645] ss:$9 sm:$0xff] %v4596
    %6958 = vst [vmem:[%s6647] ss:$9 sm:$0xff] %v4599
    %6959 = vst [vmem:[%s6649] ss:$9 sm:$0xff] %v4602
    %6960 = vst [vmem:[%s6651] ss:$9 sm:$0xff] %v4605
    %v6961 = vld [vmem:[#allocation1] sm:$0xff]
    %6962 = vst [vmem:[#allocation1] ss:$9 sm:$0xff] %v4608
    %v6963 = vld [vmem:[#allocation1] sm:$0xff]
    %6964 = vst [vmem:[#allocation1] ss:$9 sm:$0xff] %v4611
    %6965 = vst [vmem:[%s6639] ss:$9 sm:$0xff] %v4614
    %6966 = vst [vmem:[%s6641] ss:$9 sm:$0xff] %v4617
    %6967 = vst [vmem:[%s6643] ss:$9 sm:$0xff] %v4620
    %6968 = vst [vmem:[%s6645] ss:$9 sm:$0xff] %v4623
    %6969 = vst [vmem:[%s6647] ss:$9 sm:$0xff] %v4626
    %6970 = vst [vmem:[%s6649] ss:$9 sm:$0xff] %v4629
    %6971 = vst [vmem:[%s6651] ss:$9 sm:$0xff] %v4632
    %v6972 = vld [vmem:[#allocation1] sm:$0xff]
    %6973 = vst [vmem:[#allocation1] ss:$9 sm:$0xff] %v4635
    %v6974 = vld [vmem:[#allocation1] sm:$0xff]
    %6975 = vst [vmem:[#allocation1] ss:$9 sm:$0xff] %v4638
    %6976 = vst [vmem:[%s6639] ss:$9 sm:$0xff] %v4641
    %6977 = vst [vmem:[%s6641] ss:$9 sm:$0xff] %v4644
    %6978 = vst [vmem:[%s6643] ss:$9 sm:$0xff] %v4647
    %6979 = vst [vmem:[%s6645] ss:$9 sm:$0xff] %v4650
    %6980 = vst [vmem:[%s6647] ss:$9 sm:$0xff] %v4653
    %6981 = vst [vmem:[%s6649] ss:$9 sm:$0xff] %v4656
    %6982 = vst [vmem:[%s6651] ss:$9 sm:$0xff] %v4659
    %v6983 = vld [vmem:[#allocation1] sm:$0xff]
    %6984 = vst [vmem:[#allocation1] ss:$9 sm:$0xff] %v4662
    %v6985 = vld [vmem:[#allocation1] sm:$0xff]
    %6986 = vst [vmem:[#allocation1] ss:$9 sm:$0xff] %v4665
    %6987 = vst [vmem:[%s6639] ss:$9 sm:$0xff] %v4668
    %6988 = vst [vmem:[%s6641] ss:$9 sm:$0xff] %v4671
    %6989 = vst [vmem:[%s6643] ss:$9 sm:$0xff] %v4674
    %6990 = vst [vmem:[%s6645] ss:$9 sm:$0xff] %v4677
    %6991 = vst [vmem:[%s6647] ss:$9 sm:$0xff] %v4680
    %6992 = vst [vmem:[%s6649] ss:$9 sm:$0xff] %v4683
    %6993 = vst [vmem:[%s6651] ss:$9 sm:$0xff] %v4686
    %v6994 = vld [vmem:[#allocation1] sm:$0xff]
    %6996 = vst [vmem:[#allocation1] ss:$9 sm:$0xff] %v4689
    %v6997 = vld [vmem:[#allocation1] sm:$0xff]
    %v6998 = vshrl.u32 %v6653, 16
    %v7000 = vshll.u32 %v6653, 16
    %v7002 = vrot.slane %v7000, 1
    %v7003 = vor.u32 %v6998, %v7002
    %v7004 = vshll.u32 %v6655, 16
    %v7006 = vrot.slane %v7004, 1
    %v7007 = vsel %vm5619, %v7003, %v7006
    %v7008 = vshrl.u32 %v6664, 16
    %v7010 = vshll.u32 %v6664, 16
    %v7012 = vrot.slane %v7010, 1
    %v7013 = vor.u32 %v7008, %v7012
    %v7014 = vshll.u32 %v6666, 16
    %v7016 = vrot.slane %v7014, 1
    %v7017 = vsel %vm5619, %v7013, %v7016
    %v7018 = vshrl.u32 %v6675, 16
    %v7020 = vshll.u32 %v6675, 16
    %v7022 = vrot.slane %v7020, 1
    %v7023 = vor.u32 %v7018, %v7022
    %v7024 = vshll.u32 %v6677, 16
    %v7026 = vrot.slane %v7024, 1
    %v7027 = vsel %vm5619, %v7023, %v7026
    %v7028 = vshrl.u32 %v6686, 16
    %v7030 = vshll.u32 %v6686, 16
    %v7032 = vrot.slane %v7030, 1
    %v7033 = vor.u32 %v7028, %v7032
    %v7034 = vshll.u32 %v6688, 16
    %v7036 = vrot.slane %v7034, 1
    %v7037 = vsel %vm5619, %v7033, %v7036
    %v7038 = vshrl.u32 %v6697, 16
    %v7040 = vshll.u32 %v6697, 16
    %v7042 = vrot.slane %v7040, 1
    %v7043 = vor.u32 %v7038, %v7042
    %v7044 = vshll.u32 %v6699, 16
    %v7046 = vrot.slane %v7044, 1
    %v7047 = vsel %vm5619, %v7043, %v7046
    %v7048 = vshrl.u32 %v6708, 16
    %v7050 = vshll.u32 %v6708, 16
    %v7052 = vrot.slane %v7050, 1
    %v7053 = vor.u32 %v7048, %v7052
    %v7054 = vshll.u32 %v6710, 16
    %v7056 = vrot.slane %v7054, 1
    %v7057 = vsel %vm5619, %v7053, %v7056
    %v7058 = vshrl.u32 %v6719, 16
    %v7060 = vshll.u32 %v6719, 16
    %v7062 = vrot.slane %v7060, 1
    %v7063 = vor.u32 %v7058, %v7062
    %v7064 = vshll.u32 %v6721, 16
    %v7066 = vrot.slane %v7064, 1
    %v7067 = vsel %vm5619, %v7063, %v7066
    %v7068 = vshrl.u32 %v6730, 16
    %v7070 = vshll.u32 %v6730, 16
    %v7072 = vrot.slane %v7070, 1
    %v7073 = vor.u32 %v7068, %v7072
    %v7074 = vshll.u32 %v6732, 16
    %v7076 = vrot.slane %v7074, 1
    %v7077 = vsel %vm5619, %v7073, %v7076
    %v7078 = vshrl.u32 %v6741, 16
    %v7080 = vshll.u32 %v6741, 16
    %v7082 = vrot.slane %v7080, 1
    %v7083 = vor.u32 %v7078, %v7082
    %v7084 = vshll.u32 %v6743, 16
    %v7086 = vrot.slane %v7084, 1
    %v7087 = vsel %vm5619, %v7083, %v7086
    %v7088 = vshrl.u32 %v6752, 16
    %v7090 = vshll.u32 %v6752, 16
    %v7092 = vrot.slane %v7090, 1
    %v7093 = vor.u32 %v7088, %v7092
    %v7094 = vshll.u32 %v6754, 16
    %v7096 = vrot.slane %v7094, 1
    %v7097 = vsel %vm5619, %v7093, %v7096
    %v7098 = vshrl.u32 %v6763, 16
    %v7100 = vshll.u32 %v6763, 16
    %v7102 = vrot.slane %v7100, 1
    %v7103 = vor.u32 %v7098, %v7102
    %v7104 = vshll.u32 %v6765, 16
    %v7106 = vrot.slane %v7104, 1
    %v7107 = vsel %vm5619, %v7103, %v7106
    %v7108 = vshrl.u32 %v6774, 16
    %v7110 = vshll.u32 %v6774, 16
    %v7112 = vrot.slane %v7110, 1
    %v7113 = vor.u32 %v7108, %v7112
    %v7114 = vshll.u32 %v6776, 16
    %v7116 = vrot.slane %v7114, 1
    %v7117 = vsel %vm5619, %v7113, %v7116
    %v7118 = vshrl.u32 %v6785, 16
    %v7120 = vshll.u32 %v6785, 16
    %v7122 = vrot.slane %v7120, 1
    %v7123 = vor.u32 %v7118, %v7122
    %v7124 = vshll.u32 %v6787, 16
    %v7126 = vrot.slane %v7124, 1
    %v7127 = vsel %vm5619, %v7123, %v7126
    %v7128 = vshrl.u32 %v6796, 16
    %v7130 = vshll.u32 %v6796, 16
    %v7132 = vrot.slane %v7130, 1
    %v7133 = vor.u32 %v7128, %v7132
    %v7134 = vshll.u32 %v6798, 16
    %v7136 = vrot.slane %v7134, 1
    %v7137 = vsel %vm5619, %v7133, %v7136
    %v7138 = vshrl.u32 %v6807, 16
    %v7140 = vshll.u32 %v6807, 16
    %v7142 = vrot.slane %v7140, 1
    %v7143 = vor.u32 %v7138, %v7142
    %v7144 = vshll.u32 %v6809, 16
    %v7146 = vrot.slane %v7144, 1
    %v7147 = vsel %vm5619, %v7143, %v7146
    %v7148 = vshrl.u32 %v6818, 16
    %v7150 = vshll.u32 %v6818, 16
    %v7152 = vrot.slane %v7150, 1
    %v7153 = vor.u32 %v7148, %v7152
    %v7154 = vshll.u32 %v6820, 16
    %v7156 = vrot.slane %v7154, 1
    %v7157 = vsel %vm5619, %v7153, %v7156
    %v7158 = vshrl.u32 %v6829, 16
    %v7160 = vshll.u32 %v6829, 16
    %v7162 = vrot.slane %v7160, 1
    %v7163 = vor.u32 %v7158, %v7162
    %v7164 = vshll.u32 %v6831, 16
    %v7166 = vrot.slane %v7164, 1
    %v7167 = vsel %vm5619, %v7163, %v7166
    %v7168 = vshrl.u32 %v6840, 16
    %v7170 = vshll.u32 %v6840, 16
    %v7172 = vrot.slane %v7170, 1
    %v7173 = vor.u32 %v7168, %v7172
    %v7174 = vshll.u32 %v6842, 16
    %v7176 = vrot.slane %v7174, 1
    %v7177 = vsel %vm5619, %v7173, %v7176
    %v7178 = vshrl.u32 %v6851, 16
    %v7180 = vshll.u32 %v6851, 16
    %v7182 = vrot.slane %v7180, 1
    %v7183 = vor.u32 %v7178, %v7182
    %v7184 = vshll.u32 %v6853, 16
    %v7186 = vrot.slane %v7184, 1
    %v7187 = vsel %vm5619, %v7183, %v7186
    %v7188 = vshrl.u32 %v6862, 16
    %v7190 = vshll.u32 %v6862, 16
    %v7192 = vrot.slane %v7190, 1
    %v7193 = vor.u32 %v7188, %v7192
    %v7194 = vshll.u32 %v6864, 16
    %v7196 = vrot.slane %v7194, 1
    %v7197 = vsel %vm5619, %v7193, %v7196
    %v7198 = vshrl.u32 %v6873, 16
    %v7200 = vshll.u32 %v6873, 16
    %v7202 = vrot.slane %v7200, 1
    %v7203 = vor.u32 %v7198, %v7202
    %v7204 = vshll.u32 %v6875, 16
    %v7206 = vrot.slane %v7204, 1
    %v7207 = vsel %vm5619, %v7203, %v7206
    %v7208 = vshrl.u32 %v6884, 16
    %v7210 = vshll.u32 %v6884, 16
    %v7212 = vrot.slane %v7210, 1
    %v7213 = vor.u32 %v7208, %v7212
    %v7214 = vshll.u32 %v6886, 16
    %v7216 = vrot.slane %v7214, 1
    %v7217 = vsel %vm5619, %v7213, %v7216
    %v7218 = vshrl.u32 %v6895, 16
    %v7220 = vshll.u32 %v6895, 16
    %v7222 = vrot.slane %v7220, 1
    %v7223 = vor.u32 %v7218, %v7222
    %v7224 = vshll.u32 %v6897, 16
    %v7226 = vrot.slane %v7224, 1
    %v7227 = vsel %vm5619, %v7223, %v7226
    %v7228 = vshrl.u32 %v6906, 16
    %v7230 = vshll.u32 %v6906, 16
    %v7232 = vrot.slane %v7230, 1
    %v7233 = vor.u32 %v7228, %v7232
    %v7234 = vshll.u32 %v6908, 16
    %v7236 = vrot.slane %v7234, 1
    %v7237 = vsel %vm5619, %v7233, %v7236
    %v7238 = vshrl.u32 %v6917, 16
    %v7240 = vshll.u32 %v6917, 16
    %v7242 = vrot.slane %v7240, 1
    %v7243 = vor.u32 %v7238, %v7242
    %v7244 = vshll.u32 %v6919, 16
    %v7246 = vrot.slane %v7244, 1
    %v7247 = vsel %vm5619, %v7243, %v7246
    %v7248 = vshrl.u32 %v6928, 16
    %v7250 = vshll.u32 %v6928, 16
    %v7252 = vrot.slane %v7250, 1
    %v7253 = vor.u32 %v7248, %v7252
    %v7254 = vshll.u32 %v6930, 16
    %v7256 = vrot.slane %v7254, 1
    %v7257 = vsel %vm5619, %v7253, %v7256
    %v7258 = vshrl.u32 %v6939, 16
    %v7260 = vshll.u32 %v6939, 16
    %v7262 = vrot.slane %v7260, 1
    %v7263 = vor.u32 %v7258, %v7262
    %v7264 = vshll.u32 %v6941, 16
    %v7266 = vrot.slane %v7264, 1
    %v7267 = vsel %vm5619, %v7263, %v7266
    %v7268 = vshrl.u32 %v6950, 16
    %v7270 = vshll.u32 %v6950, 16
    %v7272 = vrot.slane %v7270, 1
    %v7273 = vor.u32 %v7268, %v7272
    %v7274 = vshll.u32 %v6952, 16
    %v7276 = vrot.slane %v7274, 1
    %v7277 = vsel %vm5619, %v7273, %v7276
    %v7278 = vshrl.u32 %v6961, 16
    %v7280 = vshll.u32 %v6961, 16
    %v7282 = vrot.slane %v7280, 1
    %v7283 = vor.u32 %v7278, %v7282
    %v7284 = vshll.u32 %v6963, 16
    %v7286 = vrot.slane %v7284, 1
    %v7287 = vsel %vm5619, %v7283, %v7286
    %v7288 = vshrl.u32 %v6972, 16
    %v7290 = vshll.u32 %v6972, 16
    %v7292 = vrot.slane %v7290, 1
    %v7293 = vor.u32 %v7288, %v7292
    %v7294 = vshll.u32 %v6974, 16
    %v7296 = vrot.slane %v7294, 1
    %v7297 = vsel %vm5619, %v7293, %v7296
    %v7298 = vshrl.u32 %v6983, 16
    %v7300 = vshll.u32 %v6983, 16
    %v7302 = vrot.slane %v7300, 1
    %v7303 = vor.u32 %v7298, %v7302
    %v7304 = vshll.u32 %v6985, 16
    %v7306 = vrot.slane %v7304, 1
    %v7307 = vsel %vm5619, %v7303, %v7306
    %v7308 = vshrl.u32 %v6994, 16
    %v7310 = vshll.u32 %v6994, 16
    %v7312 = vrot.slane %v7310, 1
    %v7313 = vor.u32 %v7308, %v7312
    %v7314 = vshll.u32 %v6997, 16
    %v7316 = vrot.slane %v7314, 1
    %v7317 = vsel %vm5619, %v7313, %v7316
    %7350 = vst [vmem:[#allocation1] ss:$9 sm:$0xff] %v3777
    %s7351 = scalar_lea.vmem [#allocation1], 1
    %7352 = vst [vmem:[%s7351] ss:$9 sm:$0xff] %v3780
    %s7353 = scalar_lea.vmem [#allocation1], 2
    %7354 = vst [vmem:[%s7353] ss:$9 sm:$0xff] %v3783
    %s7355 = scalar_lea.vmem [#allocation1], 3
    %7356 = vst [vmem:[%s7355] ss:$9 sm:$0xff] %v3786
    %s7357 = scalar_lea.vmem [#allocation1], 4
    %7358 = vst [vmem:[%s7357] ss:$9 sm:$0xff] %v3789
    %s7359 = scalar_lea.vmem [#allocation1], 5
    %7360 = vst [vmem:[%s7359] ss:$9 sm:$0xff] %v3792
    %s7361 = scalar_lea.vmem [#allocation1], 6
    %7362 = vst [vmem:[%s7361] ss:$9 sm:$0xff] %v3795
    %s7363 = scalar_lea.vmem [#allocation1], 7
    %7364 = vst [vmem:[%s7363] ss:$9 sm:$0xff] %v3798
    %v7365 = vld [vmem:[#allocation1] sm:$0xff]
    %7366 = vst [vmem:[#allocation1] ss:$9 sm:$0xff] %v3804
    %7367 = vst [vmem:[%s7351] ss:$9 sm:$0xff] %v3807
    %7368 = vst [vmem:[%s7353] ss:$9 sm:$0xff] %v3810
    %7369 = vst [vmem:[%s7355] ss:$9 sm:$0xff] %v3813
    %7370 = vst [vmem:[%s7357] ss:$9 sm:$0xff] %v3816
    %7371 = vst [vmem:[%s7359] ss:$9 sm:$0xff] %v3819
    %7372 = vst [vmem:[%s7361] ss:$9 sm:$0xff] %v3822
    %7373 = vst [vmem:[%s7363] ss:$9 sm:$0xff] %v3825
    %v7374 = vld [vmem:[#allocation1] sm:$0xff]
    %7375 = vst [vmem:[#allocation1] ss:$9 sm:$0xff] %v3831
    %7376 = vst [vmem:[%s7351] ss:$9 sm:$0xff] %v3834
    %7377 = vst [vmem:[%s7353] ss:$9 sm:$0xff] %v3837
    %7378 = vst [vmem:[%s7355] ss:$9 sm:$0xff] %v3840
    %7379 = vst [vmem:[%s7357] ss:$9 sm:$0xff] %v3843
    %7380 = vst [vmem:[%s7359] ss:$9 sm:$0xff] %v3846
    %7381 = vst [vmem:[%s7361] ss:$9 sm:$0xff] %v3849
    %7382 = vst [vmem:[%s7363] ss:$9 sm:$0xff] %v3852
    %v7383 = vld [vmem:[#allocation1] sm:$0xff]
    %7384 = vst [vmem:[#allocation1] ss:$9 sm:$0xff] %v3858
    %7385 = vst [vmem:[%s7351] ss:$9 sm:$0xff] %v3861
    %7386 = vst [vmem:[%s7353] ss:$9 sm:$0xff] %v3864
    %7387 = vst [vmem:[%s7355] ss:$9 sm:$0xff] %v3867
    %7388 = vst [vmem:[%s7357] ss:$9 sm:$0xff] %v3870
    %7389 = vst [vmem:[%s7359] ss:$9 sm:$0xff] %v3873
    %7390 = vst [vmem:[%s7361] ss:$9 sm:$0xff] %v3876
    %7391 = vst [vmem:[%s7363] ss:$9 sm:$0xff] %v3879
    %v7392 = vld [vmem:[#allocation1] sm:$0xff]
    %7393 = vst [vmem:[#allocation1] ss:$9 sm:$0xff] %v3885
    %7394 = vst [vmem:[%s7351] ss:$9 sm:$0xff] %v3888
    %7395 = vst [vmem:[%s7353] ss:$9 sm:$0xff] %v3891
    %7396 = vst [vmem:[%s7355] ss:$9 sm:$0xff] %v3894
    %7397 = vst [vmem:[%s7357] ss:$9 sm:$0xff] %v3897
    %7398 = vst [vmem:[%s7359] ss:$9 sm:$0xff] %v3900
    %7399 = vst [vmem:[%s7361] ss:$9 sm:$0xff] %v3903
    %7400 = vst [vmem:[%s7363] ss:$9 sm:$0xff] %v3906
    %v7401 = vld [vmem:[#allocation1] sm:$0xff]
    %7402 = vst [vmem:[#allocation1] ss:$9 sm:$0xff] %v3912
    %7403 = vst [vmem:[%s7351] ss:$9 sm:$0xff] %v3915
    %7404 = vst [vmem:[%s7353] ss:$9 sm:$0xff] %v3918
    %7405 = vst [vmem:[%s7355] ss:$9 sm:$0xff] %v3921
    %7406 = vst [vmem:[%s7357] ss:$9 sm:$0xff] %v3924
    %7407 = vst [vmem:[%s7359] ss:$9 sm:$0xff] %v3927
    %7408 = vst [vmem:[%s7361] ss:$9 sm:$0xff] %v3930
    %7409 = vst [vmem:[%s7363] ss:$9 sm:$0xff] %v3933
    %v7410 = vld [vmem:[#allocation1] sm:$0xff]
    %7411 = vst [vmem:[#allocation1] ss:$9 sm:$0xff] %v3939
    %7412 = vst [vmem:[%s7351] ss:$9 sm:$0xff] %v3942
    %7413 = vst [vmem:[%s7353] ss:$9 sm:$0xff] %v3945
    %7414 = vst [vmem:[%s7355] ss:$9 sm:$0xff] %v3948
    %7415 = vst [vmem:[%s7357] ss:$9 sm:$0xff] %v3951
    %7416 = vst [vmem:[%s7359] ss:$9 sm:$0xff] %v3954
    %7417 = vst [vmem:[%s7361] ss:$9 sm:$0xff] %v3957
    %7418 = vst [vmem:[%s7363] ss:$9 sm:$0xff] %v3960
    %v7419 = vld [vmem:[#allocation1] sm:$0xff]
    %7420 = vst [vmem:[#allocation1] ss:$9 sm:$0xff] %v3966
    %7421 = vst [vmem:[%s7351] ss:$9 sm:$0xff] %v3969
    %7422 = vst [vmem:[%s7353] ss:$9 sm:$0xff] %v3972
    %7423 = vst [vmem:[%s7355] ss:$9 sm:$0xff] %v3975
    %7424 = vst [vmem:[%s7357] ss:$9 sm:$0xff] %v3978
    %7425 = vst [vmem:[%s7359] ss:$9 sm:$0xff] %v3981
    %7426 = vst [vmem:[%s7361] ss:$9 sm:$0xff] %v3984
    %7427 = vst [vmem:[%s7363] ss:$9 sm:$0xff] %v3987
    %v7428 = vld [vmem:[#allocation1] sm:$0xff]
    %7429 = vst [vmem:[#allocation1] ss:$9 sm:$0xff] %v3993
    %7430 = vst [vmem:[%s7351] ss:$9 sm:$0xff] %v3996
    %7431 = vst [vmem:[%s7353] ss:$9 sm:$0xff] %v3999
    %7432 = vst [vmem:[%s7355] ss:$9 sm:$0xff] %v4002
    %7433 = vst [vmem:[%s7357] ss:$9 sm:$0xff] %v4005
    %7434 = vst [vmem:[%s7359] ss:$9 sm:$0xff] %v4008
    %7435 = vst [vmem:[%s7361] ss:$9 sm:$0xff] %v4011
    %7436 = vst [vmem:[%s7363] ss:$9 sm:$0xff] %v4014
    %v7437 = vld [vmem:[#allocation1] sm:$0xff]
    %7438 = vst [vmem:[#allocation1] ss:$9 sm:$0xff] %v4020
    %7439 = vst [vmem:[%s7351] ss:$9 sm:$0xff] %v4023
    %7440 = vst [vmem:[%s7353] ss:$9 sm:$0xff] %v4026
    %7441 = vst [vmem:[%s7355] ss:$9 sm:$0xff] %v4029
    %7442 = vst [vmem:[%s7357] ss:$9 sm:$0xff] %v4032
    %7443 = vst [vmem:[%s7359] ss:$9 sm:$0xff] %v4035
    %7444 = vst [vmem:[%s7361] ss:$9 sm:$0xff] %v4038
    %7445 = vst [vmem:[%s7363] ss:$9 sm:$0xff] %v4041
    %v7446 = vld [vmem:[#allocation1] sm:$0xff]
    %7447 = vst [vmem:[#allocation1] ss:$9 sm:$0xff] %v4047
    %7448 = vst [vmem:[%s7351] ss:$9 sm:$0xff] %v4050
    %7449 = vst [vmem:[%s7353] ss:$9 sm:$0xff] %v4053
    %7450 = vst [vmem:[%s7355] ss:$9 sm:$0xff] %v4056
    %7451 = vst [vmem:[%s7357] ss:$9 sm:$0xff] %v4059
    %7452 = vst [vmem:[%s7359] ss:$9 sm:$0xff] %v4062
    %7453 = vst [vmem:[%s7361] ss:$9 sm:$0xff] %v4065
    %7454 = vst [vmem:[%s7363] ss:$9 sm:$0xff] %v4068
    %v7455 = vld [vmem:[#allocation1] sm:$0xff]
    %7456 = vst [vmem:[#allocation1] ss:$9 sm:$0xff] %v4074
    %7457 = vst [vmem:[%s7351] ss:$9 sm:$0xff] %v4077
    %7458 = vst [vmem:[%s7353] ss:$9 sm:$0xff] %v4080
    %7459 = vst [vmem:[%s7355] ss:$9 sm:$0xff] %v4083
    %7460 = vst [vmem:[%s7357] ss:$9 sm:$0xff] %v4086
    %7461 = vst [vmem:[%s7359] ss:$9 sm:$0xff] %v4089
    %7462 = vst [vmem:[%s7361] ss:$9 sm:$0xff] %v4092
    %7463 = vst [vmem:[%s7363] ss:$9 sm:$0xff] %v4095
    %v7464 = vld [vmem:[#allocation1] sm:$0xff]
    %7465 = vst [vmem:[#allocation1] ss:$9 sm:$0xff] %v4101
    %7466 = vst [vmem:[%s7351] ss:$9 sm:$0xff] %v4104
    %7467 = vst [vmem:[%s7353] ss:$9 sm:$0xff] %v4107
    %7468 = vst [vmem:[%s7355] ss:$9 sm:$0xff] %v4110
    %7469 = vst [vmem:[%s7357] ss:$9 sm:$0xff] %v4113
    %7470 = vst [vmem:[%s7359] ss:$9 sm:$0xff] %v4116
    %7471 = vst [vmem:[%s7361] ss:$9 sm:$0xff] %v4119
    %7472 = vst [vmem:[%s7363] ss:$9 sm:$0xff] %v4122
    %v7473 = vld [vmem:[#allocation1] sm:$0xff]
    %7474 = vst [vmem:[#allocation1] ss:$9 sm:$0xff] %v4128
    %7475 = vst [vmem:[%s7351] ss:$9 sm:$0xff] %v4131
    %7476 = vst [vmem:[%s7353] ss:$9 sm:$0xff] %v4134
    %7477 = vst [vmem:[%s7355] ss:$9 sm:$0xff] %v4137
    %7478 = vst [vmem:[%s7357] ss:$9 sm:$0xff] %v4140
    %7479 = vst [vmem:[%s7359] ss:$9 sm:$0xff] %v4143
    %7480 = vst [vmem:[%s7361] ss:$9 sm:$0xff] %v4146
    %7481 = vst [vmem:[%s7363] ss:$9 sm:$0xff] %v4149
    %v7482 = vld [vmem:[#allocation1] sm:$0xff]
    %7483 = vst [vmem:[#allocation1] ss:$9 sm:$0xff] %v4155
    %7484 = vst [vmem:[%s7351] ss:$9 sm:$0xff] %v4158
    %7485 = vst [vmem:[%s7353] ss:$9 sm:$0xff] %v4161
    %7486 = vst [vmem:[%s7355] ss:$9 sm:$0xff] %v4164
    %7487 = vst [vmem:[%s7357] ss:$9 sm:$0xff] %v4167
    %7488 = vst [vmem:[%s7359] ss:$9 sm:$0xff] %v4170
    %7489 = vst [vmem:[%s7361] ss:$9 sm:$0xff] %v4173
    %7490 = vst [vmem:[%s7363] ss:$9 sm:$0xff] %v4176
    %v7491 = vld [vmem:[#allocation1] sm:$0xff]
    %7492 = vst [vmem:[#allocation1] ss:$9 sm:$0xff] %v4182
    %7493 = vst [vmem:[%s7351] ss:$9 sm:$0xff] %v4185
    %7494 = vst [vmem:[%s7353] ss:$9 sm:$0xff] %v4188
    %7495 = vst [vmem:[%s7355] ss:$9 sm:$0xff] %v4191
    %7496 = vst [vmem:[%s7357] ss:$9 sm:$0xff] %v4194
    %7497 = vst [vmem:[%s7359] ss:$9 sm:$0xff] %v4197
    %7498 = vst [vmem:[%s7361] ss:$9 sm:$0xff] %v4200
    %7499 = vst [vmem:[%s7363] ss:$9 sm:$0xff] %v4203
    %v7500 = vld [vmem:[#allocation1] sm:$0xff]
    %7501 = vst [vmem:[#allocation1] ss:$9 sm:$0xff] %v4263
    %7502 = vst [vmem:[%s7351] ss:$9 sm:$0xff] %v4266
    %7503 = vst [vmem:[%s7353] ss:$9 sm:$0xff] %v4269
    %7504 = vst [vmem:[%s7355] ss:$9 sm:$0xff] %v4272
    %7505 = vst [vmem:[%s7357] ss:$9 sm:$0xff] %v4275
    %7506 = vst [vmem:[%s7359] ss:$9 sm:$0xff] %v4278
    %7507 = vst [vmem:[%s7361] ss:$9 sm:$0xff] %v4281
    %7508 = vst [vmem:[%s7363] ss:$9 sm:$0xff] %v4284
    %v7509 = vld [vmem:[#allocation1] sm:$0xff]
    %7510 = vst [vmem:[#allocation1] ss:$9 sm:$0xff] %v4290
    %7511 = vst [vmem:[%s7351] ss:$9 sm:$0xff] %v4293
    %7512 = vst [vmem:[%s7353] ss:$9 sm:$0xff] %v4296
    %7513 = vst [vmem:[%s7355] ss:$9 sm:$0xff] %v4299
    %7514 = vst [vmem:[%s7357] ss:$9 sm:$0xff] %v4302
    %7515 = vst [vmem:[%s7359] ss:$9 sm:$0xff] %v4305
    %7516 = vst [vmem:[%s7361] ss:$9 sm:$0xff] %v4308
    %7517 = vst [vmem:[%s7363] ss:$9 sm:$0xff] %v4311
    %v7518 = vld [vmem:[#allocation1] sm:$0xff]
    %7519 = vst [vmem:[#allocation1] ss:$9 sm:$0xff] %v4317
    %7520 = vst [vmem:[%s7351] ss:$9 sm:$0xff] %v4320
    %7521 = vst [vmem:[%s7353] ss:$9 sm:$0xff] %v4323
    %7522 = vst [vmem:[%s7355] ss:$9 sm:$0xff] %v4326
    %7523 = vst [vmem:[%s7357] ss:$9 sm:$0xff] %v4329
    %7524 = vst [vmem:[%s7359] ss:$9 sm:$0xff] %v4332
    %7525 = vst [vmem:[%s7361] ss:$9 sm:$0xff] %v4335
    %7526 = vst [vmem:[%s7363] ss:$9 sm:$0xff] %v4338
    %v7527 = vld [vmem:[#allocation1] sm:$0xff]
    %7528 = vst [vmem:[#allocation1] ss:$9 sm:$0xff] %v4344
    %7529 = vst [vmem:[%s7351] ss:$9 sm:$0xff] %v4347
    %7530 = vst [vmem:[%s7353] ss:$9 sm:$0xff] %v4350
    %7531 = vst [vmem:[%s7355] ss:$9 sm:$0xff] %v4353
    %7532 = vst [vmem:[%s7357] ss:$9 sm:$0xff] %v4356
    %7533 = vst [vmem:[%s7359] ss:$9 sm:$0xff] %v4359
    %7534 = vst [vmem:[%s7361] ss:$9 sm:$0xff] %v4362
    %7535 = vst [vmem:[%s7363] ss:$9 sm:$0xff] %v4365
    %v7536 = vld [vmem:[#allocation1] sm:$0xff]
    %7537 = vst [vmem:[#allocation1] ss:$9 sm:$0xff] %v4371
    %7538 = vst [vmem:[%s7351] ss:$9 sm:$0xff] %v4374
    %7539 = vst [vmem:[%s7353] ss:$9 sm:$0xff] %v4377
    %7540 = vst [vmem:[%s7355] ss:$9 sm:$0xff] %v4380
    %7541 = vst [vmem:[%s7357] ss:$9 sm:$0xff] %v4383
    %7542 = vst [vmem:[%s7359] ss:$9 sm:$0xff] %v4386
    %7543 = vst [vmem:[%s7361] ss:$9 sm:$0xff] %v4389
    %7544 = vst [vmem:[%s7363] ss:$9 sm:$0xff] %v4392
    %v7545 = vld [vmem:[#allocation1] sm:$0xff]
    %7546 = vst [vmem:[#allocation1] ss:$9 sm:$0xff] %v4398
    %7547 = vst [vmem:[%s7351] ss:$9 sm:$0xff] %v4401
    %7548 = vst [vmem:[%s7353] ss:$9 sm:$0xff] %v4404
    %7549 = vst [vmem:[%s7355] ss:$9 sm:$0xff] %v4407
    %7550 = vst [vmem:[%s7357] ss:$9 sm:$0xff] %v4410
    %7551 = vst [vmem:[%s7359] ss:$9 sm:$0xff] %v4413
    %7552 = vst [vmem:[%s7361] ss:$9 sm:$0xff] %v4416
    %7553 = vst [vmem:[%s7363] ss:$9 sm:$0xff] %v4419
    %v7554 = vld [vmem:[#allocation1] sm:$0xff]
    %7555 = vst [vmem:[#allocation1] ss:$9 sm:$0xff] %v4425
    %7556 = vst [vmem:[%s7351] ss:$9 sm:$0xff] %v4428
    %7557 = vst [vmem:[%s7353] ss:$9 sm:$0xff] %v4431
    %7558 = vst [vmem:[%s7355] ss:$9 sm:$0xff] %v4434
    %7559 = vst [vmem:[%s7357] ss:$9 sm:$0xff] %v4437
    %7560 = vst [vmem:[%s7359] ss:$9 sm:$0xff] %v4440
    %7561 = vst [vmem:[%s7361] ss:$9 sm:$0xff] %v4443
    %7562 = vst [vmem:[%s7363] ss:$9 sm:$0xff] %v4446
    %v7563 = vld [vmem:[#allocation1] sm:$0xff]
    %7564 = vst [vmem:[#allocation1] ss:$9 sm:$0xff] %v4452
    %7565 = vst [vmem:[%s7351] ss:$9 sm:$0xff] %v4455
    %7566 = vst [vmem:[%s7353] ss:$9 sm:$0xff] %v4458
    %7567 = vst [vmem:[%s7355] ss:$9 sm:$0xff] %v4461
    %7568 = vst [vmem:[%s7357] ss:$9 sm:$0xff] %v4464
    %7569 = vst [vmem:[%s7359] ss:$9 sm:$0xff] %v4467
    %7570 = vst [vmem:[%s7361] ss:$9 sm:$0xff] %v4470
    %7571 = vst [vmem:[%s7363] ss:$9 sm:$0xff] %v4473
    %v7572 = vld [vmem:[#allocation1] sm:$0xff]
    %7573 = vst [vmem:[#allocation1] ss:$9 sm:$0xff] %v4479
    %7574 = vst [vmem:[%s7351] ss:$9 sm:$0xff] %v4482
    %7575 = vst [vmem:[%s7353] ss:$9 sm:$0xff] %v4485
    %7576 = vst [vmem:[%s7355] ss:$9 sm:$0xff] %v4488
    %7577 = vst [vmem:[%s7357] ss:$9 sm:$0xff] %v4491
    %7578 = vst [vmem:[%s7359] ss:$9 sm:$0xff] %v4494
    %7579 = vst [vmem:[%s7361] ss:$9 sm:$0xff] %v4497
    %7580 = vst [vmem:[%s7363] ss:$9 sm:$0xff] %v4500
    %v7581 = vld [vmem:[#allocation1] sm:$0xff]
    %7582 = vst [vmem:[#allocation1] ss:$9 sm:$0xff] %v4506
    %7583 = vst [vmem:[%s7351] ss:$9 sm:$0xff] %v4509
    %7584 = vst [vmem:[%s7353] ss:$9 sm:$0xff] %v4512
    %7585 = vst [vmem:[%s7355] ss:$9 sm:$0xff] %v4515
    %7586 = vst [vmem:[%s7357] ss:$9 sm:$0xff] %v4518
    %7587 = vst [vmem:[%s7359] ss:$9 sm:$0xff] %v4521
    %7588 = vst [vmem:[%s7361] ss:$9 sm:$0xff] %v4524
    %7589 = vst [vmem:[%s7363] ss:$9 sm:$0xff] %v4527
    %v7590 = vld [vmem:[#allocation1] sm:$0xff]
    %7591 = vst [vmem:[#allocation1] ss:$9 sm:$0xff] %v4533
    %7592 = vst [vmem:[%s7351] ss:$9 sm:$0xff] %v4536
    %7593 = vst [vmem:[%s7353] ss:$9 sm:$0xff] %v4539
    %7594 = vst [vmem:[%s7355] ss:$9 sm:$0xff] %v4542
    %7595 = vst [vmem:[%s7357] ss:$9 sm:$0xff] %v4545
    %7596 = vst [vmem:[%s7359] ss:$9 sm:$0xff] %v4548
    %7597 = vst [vmem:[%s7361] ss:$9 sm:$0xff] %v4551
    %7598 = vst [vmem:[%s7363] ss:$9 sm:$0xff] %v4554
    %v7599 = vld [vmem:[#allocation1] sm:$0xff]
    %7600 = vst [vmem:[#allocation1] ss:$9 sm:$0xff] %v4560
    %7601 = vst [vmem:[%s7351] ss:$9 sm:$0xff] %v4563
    %7602 = vst [vmem:[%s7353] ss:$9 sm:$0xff] %v4566
    %7603 = vst [vmem:[%s7355] ss:$9 sm:$0xff] %v4569
    %7604 = vst [vmem:[%s7357] ss:$9 sm:$0xff] %v4572
    %7605 = vst [vmem:[%s7359] ss:$9 sm:$0xff] %v4575
    %7606 = vst [vmem:[%s7361] ss:$9 sm:$0xff] %v4578
    %7607 = vst [vmem:[%s7363] ss:$9 sm:$0xff] %v4581
    %v7608 = vld [vmem:[#allocation1] sm:$0xff]
    %7609 = vst [vmem:[#allocation1] ss:$9 sm:$0xff] %v4587
    %7610 = vst [vmem:[%s7351] ss:$9 sm:$0xff] %v4590
    %7611 = vst [vmem:[%s7353] ss:$9 sm:$0xff] %v4593
    %7612 = vst [vmem:[%s7355] ss:$9 sm:$0xff] %v4596
    %7613 = vst [vmem:[%s7357] ss:$9 sm:$0xff] %v4599
    %7614 = vst [vmem:[%s7359] ss:$9 sm:$0xff] %v4602
    %7615 = vst [vmem:[%s7361] ss:$9 sm:$0xff] %v4605
    %7616 = vst [vmem:[%s7363] ss:$9 sm:$0xff] %v4608
    %v7617 = vld [vmem:[#allocation1] sm:$0xff]
    %7618 = vst [vmem:[#allocation1] ss:$9 sm:$0xff] %v4614
    %7619 = vst [vmem:[%s7351] ss:$9 sm:$0xff] %v4617
    %7620 = vst [vmem:[%s7353] ss:$9 sm:$0xff] %v4620
    %7621 = vst [vmem:[%s7355] ss:$9 sm:$0xff] %v4623
    %7622 = vst [vmem:[%s7357] ss:$9 sm:$0xff] %v4626
    %7623 = vst [vmem:[%s7359] ss:$9 sm:$0xff] %v4629
    %7624 = vst [vmem:[%s7361] ss:$9 sm:$0xff] %v4632
    %7625 = vst [vmem:[%s7363] ss:$9 sm:$0xff] %v4635
    %v7626 = vld [vmem:[#allocation1] sm:$0xff]
    %7627 = vst [vmem:[#allocation1] ss:$9 sm:$0xff] %v4641
    %7628 = vst [vmem:[%s7351] ss:$9 sm:$0xff] %v4644
    %7629 = vst [vmem:[%s7353] ss:$9 sm:$0xff] %v4647
    %7630 = vst [vmem:[%s7355] ss:$9 sm:$0xff] %v4650
    %7631 = vst [vmem:[%s7357] ss:$9 sm:$0xff] %v4653
    %7632 = vst [vmem:[%s7359] ss:$9 sm:$0xff] %v4656
    %7633 = vst [vmem:[%s7361] ss:$9 sm:$0xff] %v4659
    %7634 = vst [vmem:[%s7363] ss:$9 sm:$0xff] %v4662
    %v7635 = vld [vmem:[#allocation1] sm:$0xff]
    %7636 = vst [vmem:[#allocation1] ss:$9 sm:$0xff] %v4668
    %7637 = vst [vmem:[%s7351] ss:$9 sm:$0xff] %v4671
    %7638 = vst [vmem:[%s7353] ss:$9 sm:$0xff] %v4674
    %7639 = vst [vmem:[%s7355] ss:$9 sm:$0xff] %v4677
    %7640 = vst [vmem:[%s7357] ss:$9 sm:$0xff] %v4680
    %7641 = vst [vmem:[%s7359] ss:$9 sm:$0xff] %v4683
    %7642 = vst [vmem:[%s7361] ss:$9 sm:$0xff] %v4686
    %7643 = vst [vmem:[%s7363] ss:$9 sm:$0xff] %v4689
    %v7644 = vld [vmem:[#allocation1] sm:$0xff]
    %7677 = vst [vmem:[#allocation1] ss:$9 sm:$0xff] %v3801
    %s7678 = scalar_lea.vmem [#allocation1], 1
    %7679 = vst [vmem:[%s7678] ss:$9 sm:$0xff] %v3804
    %s7680 = scalar_lea.vmem [#allocation1], 2
    %7681 = vst [vmem:[%s7680] ss:$9 sm:$0xff] %v3807
    %s7682 = scalar_lea.vmem [#allocation1], 3
    %7683 = vst [vmem:[%s7682] ss:$9 sm:$0xff] %v3810
    %s7684 = scalar_lea.vmem [#allocation1], 4
    %7685 = vst [vmem:[%s7684] ss:$9 sm:$0xff] %v3813
    %s7686 = scalar_lea.vmem [#allocation1], 5
    %7687 = vst [vmem:[%s7686] ss:$9 sm:$0xff] %v3816
    %s7688 = scalar_lea.vmem [#allocation1], 6
    %7689 = vst [vmem:[%s7688] ss:$9 sm:$0xff] %v3819
    %s7690 = scalar_lea.vmem [#allocation1], 7
    %7691 = vst [vmem:[%s7690] ss:$9 sm:$0xff] %v3822
    %v7692 = vld [vmem:[#allocation1] sm:$0xff]
    %7693 = vst [vmem:[#allocation1] ss:$9 sm:$0xff] %v3828
    %7694 = vst [vmem:[%s7678] ss:$9 sm:$0xff] %v3831
    %7695 = vst [vmem:[%s7680] ss:$9 sm:$0xff] %v3834
    %7696 = vst [vmem:[%s7682] ss:$9 sm:$0xff] %v3837
    %7697 = vst [vmem:[%s7684] ss:$9 sm:$0xff] %v3840
    %7698 = vst [vmem:[%s7686] ss:$9 sm:$0xff] %v3843
    %7699 = vst [vmem:[%s7688] ss:$9 sm:$0xff] %v3846
    %7700 = vst [vmem:[%s7690] ss:$9 sm:$0xff] %v3849
    %v7701 = vld [vmem:[#allocation1] sm:$0xff]
    %7702 = vst [vmem:[#allocation1] ss:$9 sm:$0xff] %v3855
    %7703 = vst [vmem:[%s7678] ss:$9 sm:$0xff] %v3858
    %7704 = vst [vmem:[%s7680] ss:$9 sm:$0xff] %v3861
    %7705 = vst [vmem:[%s7682] ss:$9 sm:$0xff] %v3864
    %7706 = vst [vmem:[%s7684] ss:$9 sm:$0xff] %v3867
    %7707 = vst [vmem:[%s7686] ss:$9 sm:$0xff] %v3870
    %7708 = vst [vmem:[%s7688] ss:$9 sm:$0xff] %v3873
    %7709 = vst [vmem:[%s7690] ss:$9 sm:$0xff] %v3876
    %v7710 = vld [vmem:[#allocation1] sm:$0xff]
    %7711 = vst [vmem:[#allocation1] ss:$9 sm:$0xff] %v3882
    %7712 = vst [vmem:[%s7678] ss:$9 sm:$0xff] %v3885
    %7713 = vst [vmem:[%s7680] ss:$9 sm:$0xff] %v3888
    %7714 = vst [vmem:[%s7682] ss:$9 sm:$0xff] %v3891
    %7715 = vst [vmem:[%s7684] ss:$9 sm:$0xff] %v3894
    %7716 = vst [vmem:[%s7686] ss:$9 sm:$0xff] %v3897
    %7717 = vst [vmem:[%s7688] ss:$9 sm:$0xff] %v3900
    %7718 = vst [vmem:[%s7690] ss:$9 sm:$0xff] %v3903
    %v7719 = vld [vmem:[#allocation1] sm:$0xff]
    %7720 = vst [vmem:[#allocation1] ss:$9 sm:$0xff] %v3909
    %7721 = vst [vmem:[%s7678] ss:$9 sm:$0xff] %v3912
    %7722 = vst [vmem:[%s7680] ss:$9 sm:$0xff] %v3915
    %7723 = vst [vmem:[%s7682] ss:$9 sm:$0xff] %v3918
    %7724 = vst [vmem:[%s7684] ss:$9 sm:$0xff] %v3921
    %7725 = vst [vmem:[%s7686] ss:$9 sm:$0xff] %v3924
    %7726 = vst [vmem:[%s7688] ss:$9 sm:$0xff] %v3927
    %7727 = vst [vmem:[%s7690] ss:$9 sm:$0xff] %v3930
    %v7728 = vld [vmem:[#allocation1] sm:$0xff]
    %7729 = vst [vmem:[#allocation1] ss:$9 sm:$0xff] %v3936
    %7730 = vst [vmem:[%s7678] ss:$9 sm:$0xff] %v3939
    %7731 = vst [vmem:[%s7680] ss:$9 sm:$0xff] %v3942
    %7732 = vst [vmem:[%s7682] ss:$9 sm:$0xff] %v3945
    %7733 = vst [vmem:[%s7684] ss:$9 sm:$0xff] %v3948
    %7734 = vst [vmem:[%s7686] ss:$9 sm:$0xff] %v3951
    %7735 = vst [vmem:[%s7688] ss:$9 sm:$0xff] %v3954
    %7736 = vst [vmem:[%s7690] ss:$9 sm:$0xff] %v3957
    %v7737 = vld [vmem:[#allocation1] sm:$0xff]
    %7738 = vst [vmem:[#allocation1] ss:$9 sm:$0xff] %v3963
    %7739 = vst [vmem:[%s7678] ss:$9 sm:$0xff] %v3966
    %7740 = vst [vmem:[%s7680] ss:$9 sm:$0xff] %v3969
    %7741 = vst [vmem:[%s7682] ss:$9 sm:$0xff] %v3972
    %7742 = vst [vmem:[%s7684] ss:$9 sm:$0xff] %v3975
    %7743 = vst [vmem:[%s7686] ss:$9 sm:$0xff] %v3978
    %7744 = vst [vmem:[%s7688] ss:$9 sm:$0xff] %v3981
    %7745 = vst [vmem:[%s7690] ss:$9 sm:$0xff] %v3984
    %v7746 = vld [vmem:[#allocation1] sm:$0xff]
    %7747 = vst [vmem:[#allocation1] ss:$9 sm:$0xff] %v3990
    %7748 = vst [vmem:[%s7678] ss:$9 sm:$0xff] %v3993
    %7749 = vst [vmem:[%s7680] ss:$9 sm:$0xff] %v3996
    %7750 = vst [vmem:[%s7682] ss:$9 sm:$0xff] %v3999
    %7751 = vst [vmem:[%s7684] ss:$9 sm:$0xff] %v4002
    %7752 = vst [vmem:[%s7686] ss:$9 sm:$0xff] %v4005
    %7753 = vst [vmem:[%s7688] ss:$9 sm:$0xff] %v4008
    %7754 = vst [vmem:[%s7690] ss:$9 sm:$0xff] %v4011
    %v7755 = vld [vmem:[#allocation1] sm:$0xff]
    %7756 = vst [vmem:[#allocation1] ss:$9 sm:$0xff] %v4017
    %7757 = vst [vmem:[%s7678] ss:$9 sm:$0xff] %v4020
    %7758 = vst [vmem:[%s7680] ss:$9 sm:$0xff] %v4023
    %7759 = vst [vmem:[%s7682] ss:$9 sm:$0xff] %v4026
    %7760 = vst [vmem:[%s7684] ss:$9 sm:$0xff] %v4029
    %7761 = vst [vmem:[%s7686] ss:$9 sm:$0xff] %v4032
    %7762 = vst [vmem:[%s7688] ss:$9 sm:$0xff] %v4035
    %7763 = vst [vmem:[%s7690] ss:$9 sm:$0xff] %v4038
    %v7764 = vld [vmem:[#allocation1] sm:$0xff]
    %7765 = vst [vmem:[#allocation1] ss:$9 sm:$0xff] %v4044
    %7766 = vst [vmem:[%s7678] ss:$9 sm:$0xff] %v4047
    %7767 = vst [vmem:[%s7680] ss:$9 sm:$0xff] %v4050
    %7768 = vst [vmem:[%s7682] ss:$9 sm:$0xff] %v4053
    %7769 = vst [vmem:[%s7684] ss:$9 sm:$0xff] %v4056
    %7770 = vst [vmem:[%s7686] ss:$9 sm:$0xff] %v4059
    %7771 = vst [vmem:[%s7688] ss:$9 sm:$0xff] %v4062
    %7772 = vst [vmem:[%s7690] ss:$9 sm:$0xff] %v4065
    %v7773 = vld [vmem:[#allocation1] sm:$0xff]
    %7774 = vst [vmem:[#allocation1] ss:$9 sm:$0xff] %v4071
    %7775 = vst [vmem:[%s7678] ss:$9 sm:$0xff] %v4074
    %7776 = vst [vmem:[%s7680] ss:$9 sm:$0xff] %v4077
    %7777 = vst [vmem:[%s7682] ss:$9 sm:$0xff] %v4080
    %7778 = vst [vmem:[%s7684] ss:$9 sm:$0xff] %v4083
    %7779 = vst [vmem:[%s7686] ss:$9 sm:$0xff] %v4086
    %7780 = vst [vmem:[%s7688] ss:$9 sm:$0xff] %v4089
    %7781 = vst [vmem:[%s7690] ss:$9 sm:$0xff] %v4092
    %v7782 = vld [vmem:[#allocation1] sm:$0xff]
    %7783 = vst [vmem:[#allocation1] ss:$9 sm:$0xff] %v4098
    %7784 = vst [vmem:[%s7678] ss:$9 sm:$0xff] %v4101
    %7785 = vst [vmem:[%s7680] ss:$9 sm:$0xff] %v4104
    %7786 = vst [vmem:[%s7682] ss:$9 sm:$0xff] %v4107
    %7787 = vst [vmem:[%s7684] ss:$9 sm:$0xff] %v4110
    %7788 = vst [vmem:[%s7686] ss:$9 sm:$0xff] %v4113
    %7789 = vst [vmem:[%s7688] ss:$9 sm:$0xff] %v4116
    %7790 = vst [vmem:[%s7690] ss:$9 sm:$0xff] %v4119
    %v7791 = vld [vmem:[#allocation1] sm:$0xff]
    %7792 = vst [vmem:[#allocation1] ss:$9 sm:$0xff] %v4125
    %7793 = vst [vmem:[%s7678] ss:$9 sm:$0xff] %v4128
    %7794 = vst [vmem:[%s7680] ss:$9 sm:$0xff] %v4131
    %7795 = vst [vmem:[%s7682] ss:$9 sm:$0xff] %v4134
    %7796 = vst [vmem:[%s7684] ss:$9 sm:$0xff] %v4137
    %7797 = vst [vmem:[%s7686] ss:$9 sm:$0xff] %v4140
    %7798 = vst [vmem:[%s7688] ss:$9 sm:$0xff] %v4143
    %7799 = vst [vmem:[%s7690] ss:$9 sm:$0xff] %v4146
    %v7800 = vld [vmem:[#allocation1] sm:$0xff]
    %7801 = vst [vmem:[#allocation1] ss:$9 sm:$0xff] %v4152
    %7802 = vst [vmem:[%s7678] ss:$9 sm:$0xff] %v4155
    %7803 = vst [vmem:[%s7680] ss:$9 sm:$0xff] %v4158
    %7804 = vst [vmem:[%s7682] ss:$9 sm:$0xff] %v4161
    %7805 = vst [vmem:[%s7684] ss:$9 sm:$0xff] %v4164
    %7806 = vst [vmem:[%s7686] ss:$9 sm:$0xff] %v4167
    %7807 = vst [vmem:[%s7688] ss:$9 sm:$0xff] %v4170
    %7808 = vst [vmem:[%s7690] ss:$9 sm:$0xff] %v4173
    %v7809 = vld [vmem:[#allocation1] sm:$0xff]
    %7810 = vst [vmem:[#allocation1] ss:$9 sm:$0xff] %v4179
    %7811 = vst [vmem:[%s7678] ss:$9 sm:$0xff] %v4182
    %7812 = vst [vmem:[%s7680] ss:$9 sm:$0xff] %v4185
    %7813 = vst [vmem:[%s7682] ss:$9 sm:$0xff] %v4188
    %7814 = vst [vmem:[%s7684] ss:$9 sm:$0xff] %v4191
    %7815 = vst [vmem:[%s7686] ss:$9 sm:$0xff] %v4194
    %7816 = vst [vmem:[%s7688] ss:$9 sm:$0xff] %v4197
    %7817 = vst [vmem:[%s7690] ss:$9 sm:$0xff] %v4200
    %v7818 = vld [vmem:[#allocation1] sm:$0xff]
    %7820 = vst [vmem:[#allocation1] ss:$9 sm:$0xff] %v4206
    %7822 = vst [vmem:[%s7678] ss:$9 sm:$0xff] %v4209
    %7824 = vst [vmem:[%s7680] ss:$9 sm:$0xff] %v4212
    %7825 = vst [vmem:[%s7682] ss:$9 sm:$0xff] %v4215
    %7827 = vst [vmem:[%s7684] ss:$9 sm:$0xff] %v4218
    %7829 = vst [vmem:[%s7686] ss:$9 sm:$0xff] %v4221
    %7831 = vst [vmem:[%s7688] ss:$9 sm:$0xff] %v4224
    %7832 = vst [vmem:[%s7690] ss:$9 sm:$0xff] %v4227
    %v7833 = vld [vmem:[#allocation1] sm:$0xff]
    %7834 = vst [vmem:[#allocation1] ss:$9 sm:$0xff] %v4287
    %7835 = vst [vmem:[%s7678] ss:$9 sm:$0xff] %v4290
    %7836 = vst [vmem:[%s7680] ss:$9 sm:$0xff] %v4293
    %7837 = vst [vmem:[%s7682] ss:$9 sm:$0xff] %v4296
    %7838 = vst [vmem:[%s7684] ss:$9 sm:$0xff] %v4299
    %7839 = vst [vmem:[%s7686] ss:$9 sm:$0xff] %v4302
    %7840 = vst [vmem:[%s7688] ss:$9 sm:$0xff] %v4305
    %7841 = vst [vmem:[%s7690] ss:$9 sm:$0xff] %v4308
    %v7842 = vld [vmem:[#allocation1] sm:$0xff]
    %7843 = vst [vmem:[#allocation1] ss:$9 sm:$0xff] %v4314
    %7844 = vst [vmem:[%s7678] ss:$9 sm:$0xff] %v4317
    %7845 = vst [vmem:[%s7680] ss:$9 sm:$0xff] %v4320
    %7846 = vst [vmem:[%s7682] ss:$9 sm:$0xff] %v4323
    %7847 = vst [vmem:[%s7684] ss:$9 sm:$0xff] %v4326
    %7848 = vst [vmem:[%s7686] ss:$9 sm:$0xff] %v4329
    %7849 = vst [vmem:[%s7688] ss:$9 sm:$0xff] %v4332
    %7850 = vst [vmem:[%s7690] ss:$9 sm:$0xff] %v4335
    %v7851 = vld [vmem:[#allocation1] sm:$0xff]
    %7852 = vst [vmem:[#allocation1] ss:$9 sm:$0xff] %v4341
    %7853 = vst [vmem:[%s7678] ss:$9 sm:$0xff] %v4344
    %7854 = vst [vmem:[%s7680] ss:$9 sm:$0xff] %v4347
    %7855 = vst [vmem:[%s7682] ss:$9 sm:$0xff] %v4350
    %7856 = vst [vmem:[%s7684] ss:$9 sm:$0xff] %v4353
    %7857 = vst [vmem:[%s7686] ss:$9 sm:$0xff] %v4356
    %7858 = vst [vmem:[%s7688] ss:$9 sm:$0xff] %v4359
    %7859 = vst [vmem:[%s7690] ss:$9 sm:$0xff] %v4362
    %v7860 = vld [vmem:[#allocation1] sm:$0xff]
    %7861 = vst [vmem:[#allocation1] ss:$9 sm:$0xff] %v4368
    %7862 = vst [vmem:[%s7678] ss:$9 sm:$0xff] %v4371
    %7863 = vst [vmem:[%s7680] ss:$9 sm:$0xff] %v4374
    %7864 = vst [vmem:[%s7682] ss:$9 sm:$0xff] %v4377
    %7865 = vst [vmem:[%s7684] ss:$9 sm:$0xff] %v4380
    %7866 = vst [vmem:[%s7686] ss:$9 sm:$0xff] %v4383
    %7867 = vst [vmem:[%s7688] ss:$9 sm:$0xff] %v4386
    %7868 = vst [vmem:[%s7690] ss:$9 sm:$0xff] %v4389
    %v7869 = vld [vmem:[#allocation1] sm:$0xff]
    %7870 = vst [vmem:[#allocation1] ss:$9 sm:$0xff] %v4395
    %7871 = vst [vmem:[%s7678] ss:$9 sm:$0xff] %v4398
    %7872 = vst [vmem:[%s7680] ss:$9 sm:$0xff] %v4401
    %7873 = vst [vmem:[%s7682] ss:$9 sm:$0xff] %v4404
    %7874 = vst [vmem:[%s7684] ss:$9 sm:$0xff] %v4407
    %7875 = vst [vmem:[%s7686] ss:$9 sm:$0xff] %v4410
    %7876 = vst [vmem:[%s7688] ss:$9 sm:$0xff] %v4413
    %7877 = vst [vmem:[%s7690] ss:$9 sm:$0xff] %v4416
    %v7878 = vld [vmem:[#allocation1] sm:$0xff]
    %7879 = vst [vmem:[#allocation1] ss:$9 sm:$0xff] %v4422
    %7880 = vst [vmem:[%s7678] ss:$9 sm:$0xff] %v4425
    %7881 = vst [vmem:[%s7680] ss:$9 sm:$0xff] %v4428
    %7882 = vst [vmem:[%s7682] ss:$9 sm:$0xff] %v4431
    %7883 = vst [vmem:[%s7684] ss:$9 sm:$0xff] %v4434
    %7884 = vst [vmem:[%s7686] ss:$9 sm:$0xff] %v4437
    %7885 = vst [vmem:[%s7688] ss:$9 sm:$0xff] %v4440
    %7886 = vst [vmem:[%s7690] ss:$9 sm:$0xff] %v4443
    %v7887 = vld [vmem:[#allocation1] sm:$0xff]
    %7888 = vst [vmem:[#allocation1] ss:$9 sm:$0xff] %v4449
    %7889 = vst [vmem:[%s7678] ss:$9 sm:$0xff] %v4452
    %7890 = vst [vmem:[%s7680] ss:$9 sm:$0xff] %v4455
    %7891 = vst [vmem:[%s7682] ss:$9 sm:$0xff] %v4458
    %7892 = vst [vmem:[%s7684] ss:$9 sm:$0xff] %v4461
    %7893 = vst [vmem:[%s7686] ss:$9 sm:$0xff] %v4464
    %7894 = vst [vmem:[%s7688] ss:$9 sm:$0xff] %v4467
    %7895 = vst [vmem:[%s7690] ss:$9 sm:$0xff] %v4470
    %v7896 = vld [vmem:[#allocation1] sm:$0xff]
    %7897 = vst [vmem:[#allocation1] ss:$9 sm:$0xff] %v4476
    %7898 = vst [vmem:[%s7678] ss:$9 sm:$0xff] %v4479
    %7899 = vst [vmem:[%s7680] ss:$9 sm:$0xff] %v4482
    %7900 = vst [vmem:[%s7682] ss:$9 sm:$0xff] %v4485
    %7901 = vst [vmem:[%s7684] ss:$9 sm:$0xff] %v4488
    %7902 = vst [vmem:[%s7686] ss:$9 sm:$0xff] %v4491
    %7903 = vst [vmem:[%s7688] ss:$9 sm:$0xff] %v4494
    %7904 = vst [vmem:[%s7690] ss:$9 sm:$0xff] %v4497
    %v7905 = vld [vmem:[#allocation1] sm:$0xff]
    %7906 = vst [vmem:[#allocation1] ss:$9 sm:$0xff] %v4503
    %7907 = vst [vmem:[%s7678] ss:$9 sm:$0xff] %v4506
    %7908 = vst [vmem:[%s7680] ss:$9 sm:$0xff] %v4509
    %7909 = vst [vmem:[%s7682] ss:$9 sm:$0xff] %v4512
    %7910 = vst [vmem:[%s7684] ss:$9 sm:$0xff] %v4515
    %7911 = vst [vmem:[%s7686] ss:$9 sm:$0xff] %v4518
    %7912 = vst [vmem:[%s7688] ss:$9 sm:$0xff] %v4521
    %7913 = vst [vmem:[%s7690] ss:$9 sm:$0xff] %v4524
    %v7914 = vld [vmem:[#allocation1] sm:$0xff]
    %7915 = vst [vmem:[#allocation1] ss:$9 sm:$0xff] %v4530
    %7916 = vst [vmem:[%s7678] ss:$9 sm:$0xff] %v4533
    %7917 = vst [vmem:[%s7680] ss:$9 sm:$0xff] %v4536
    %7918 = vst [vmem:[%s7682] ss:$9 sm:$0xff] %v4539
    %7919 = vst [vmem:[%s7684] ss:$9 sm:$0xff] %v4542
    %7920 = vst [vmem:[%s7686] ss:$9 sm:$0xff] %v4545
    %7921 = vst [vmem:[%s7688] ss:$9 sm:$0xff] %v4548
    %7922 = vst [vmem:[%s7690] ss:$9 sm:$0xff] %v4551
    %v7923 = vld [vmem:[#allocation1] sm:$0xff]
    %7924 = vst [vmem:[#allocation1] ss:$9 sm:$0xff] %v4557
    %7925 = vst [vmem:[%s7678] ss:$9 sm:$0xff] %v4560
    %7926 = vst [vmem:[%s7680] ss:$9 sm:$0xff] %v4563
    %7927 = vst [vmem:[%s7682] ss:$9 sm:$0xff] %v4566
    %7928 = vst [vmem:[%s7684] ss:$9 sm:$0xff] %v4569
    %7929 = vst [vmem:[%s7686] ss:$9 sm:$0xff] %v4572
    %7930 = vst [vmem:[%s7688] ss:$9 sm:$0xff] %v4575
    %7931 = vst [vmem:[%s7690] ss:$9 sm:$0xff] %v4578
    %v7932 = vld [vmem:[#allocation1] sm:$0xff]
    %7933 = vst [vmem:[#allocation1] ss:$9 sm:$0xff] %v4584
    %7934 = vst [vmem:[%s7678] ss:$9 sm:$0xff] %v4587
    %7935 = vst [vmem:[%s7680] ss:$9 sm:$0xff] %v4590
    %7936 = vst [vmem:[%s7682] ss:$9 sm:$0xff] %v4593
    %7937 = vst [vmem:[%s7684] ss:$9 sm:$0xff] %v4596
    %7938 = vst [vmem:[%s7686] ss:$9 sm:$0xff] %v4599
    %7939 = vst [vmem:[%s7688] ss:$9 sm:$0xff] %v4602
    %7940 = vst [vmem:[%s7690] ss:$9 sm:$0xff] %v4605
    %v7941 = vld [vmem:[#allocation1] sm:$0xff]
    %7942 = vst [vmem:[#allocation1] ss:$9 sm:$0xff] %v4611
    %7943 = vst [vmem:[%s7678] ss:$9 sm:$0xff] %v4614
    %7944 = vst [vmem:[%s7680] ss:$9 sm:$0xff] %v4617
    %7945 = vst [vmem:[%s7682] ss:$9 sm:$0xff] %v4620
    %7946 = vst [vmem:[%s7684] ss:$9 sm:$0xff] %v4623
    %7947 = vst [vmem:[%s7686] ss:$9 sm:$0xff] %v4626
    %7948 = vst [vmem:[%s7688] ss:$9 sm:$0xff] %v4629
    %7949 = vst [vmem:[%s7690] ss:$9 sm:$0xff] %v4632
    %v7950 = vld [vmem:[#allocation1] sm:$0xff]
    %7951 = vst [vmem:[#allocation1] ss:$9 sm:$0xff] %v4638
    %7952 = vst [vmem:[%s7678] ss:$9 sm:$0xff] %v4641
    %7953 = vst [vmem:[%s7680] ss:$9 sm:$0xff] %v4644
    %7954 = vst [vmem:[%s7682] ss:$9 sm:$0xff] %v4647
    %7955 = vst [vmem:[%s7684] ss:$9 sm:$0xff] %v4650
    %7956 = vst [vmem:[%s7686] ss:$9 sm:$0xff] %v4653
    %7957 = vst [vmem:[%s7688] ss:$9 sm:$0xff] %v4656
    %7958 = vst [vmem:[%s7690] ss:$9 sm:$0xff] %v4659
    %v7959 = vld [vmem:[#allocation1] sm:$0xff]
    %7960 = vst [vmem:[#allocation1] ss:$9 sm:$0xff] %v4665
    %7961 = vst [vmem:[%s7678] ss:$9 sm:$0xff] %v4668
    %7962 = vst [vmem:[%s7680] ss:$9 sm:$0xff] %v4671
    %7963 = vst [vmem:[%s7682] ss:$9 sm:$0xff] %v4674
    %7964 = vst [vmem:[%s7684] ss:$9 sm:$0xff] %v4677
    %7965 = vst [vmem:[%s7686] ss:$9 sm:$0xff] %v4680
    %7966 = vst [vmem:[%s7688] ss:$9 sm:$0xff] %v4683
    %7967 = vst [vmem:[%s7690] ss:$9 sm:$0xff] %v4686
    %v7968 = vld [vmem:[#allocation1] sm:$0xff]
    %7970 = vst [vmem:[#allocation1] ss:$9 sm:$0xff] %v4692
    %7971 = vst [vmem:[%s7678] ss:$9 sm:$0xff] %v4695
    %7973 = vst [vmem:[%s7680] ss:$9 sm:$0xff] %v4698
    %7975 = vst [vmem:[%s7682] ss:$9 sm:$0xff] %v4701
    %7977 = vst [vmem:[%s7684] ss:$9 sm:$0xff] %v4704
    %7978 = vst [vmem:[%s7686] ss:$9 sm:$0xff] %v4707
    %7980 = vst [vmem:[%s7688] ss:$9 sm:$0xff] %v4710
    %7982 = vst [vmem:[%s7690] ss:$9 sm:$0xff] %v4713
    %v7983 = vld [vmem:[#allocation1] sm:$0xff]
    %8016 = vst [vmem:[#allocation1] ss:$9 sm:$0xff] %v3801
    %s8017 = scalar_lea.vmem [#allocation1], 1
    %8018 = vst [vmem:[%s8017] ss:$9 sm:$0xff] %v3804
    %s8019 = scalar_lea.vmem [#allocation1], 2
    %8020 = vst [vmem:[%s8019] ss:$9 sm:$0xff] %v3807
    %s8021 = scalar_lea.vmem [#allocation1], 3
    %8022 = vst [vmem:[%s8021] ss:$9 sm:$0xff] %v3810
    %s8023 = scalar_lea.vmem [#allocation1], 4
    %8024 = vst [vmem:[%s8023] ss:$9 sm:$0xff] %v3813
    %s8025 = scalar_lea.vmem [#allocation1], 5
    %8026 = vst [vmem:[%s8025] ss:$9 sm:$0xff] %v3816
    %s8027 = scalar_lea.vmem [#allocation1], 6
    %8028 = vst [vmem:[%s8027] ss:$9 sm:$0xff] %v3819
    %s8029 = scalar_lea.vmem [#allocation1], 7
    %8030 = vst [vmem:[%s8029] ss:$9 sm:$0xff] %v3822
    %v8031 = vld [vmem:[#allocation1] sm:$0xff]
    %8032 = vst [vmem:[#allocation1] ss:$9 sm:$0xff] %v3825
    %v8033 = vld [vmem:[#allocation1] sm:$0xff]
    %8034 = vst [vmem:[#allocation1] ss:$9 sm:$0xff] %v3828
    %8035 = vst [vmem:[%s8017] ss:$9 sm:$0xff] %v3831
    %8036 = vst [vmem:[%s8019] ss:$9 sm:$0xff] %v3834
    %8037 = vst [vmem:[%s8021] ss:$9 sm:$0xff] %v3837
    %8038 = vst [vmem:[%s8023] ss:$9 sm:$0xff] %v3840
    %8039 = vst [vmem:[%s8025] ss:$9 sm:$0xff] %v3843
    %8040 = vst [vmem:[%s8027] ss:$9 sm:$0xff] %v3846
    %8041 = vst [vmem:[%s8029] ss:$9 sm:$0xff] %v3849
    %v8042 = vld [vmem:[#allocation1] sm:$0xff]
    %8043 = vst [vmem:[#allocation1] ss:$9 sm:$0xff] %v3852
    %v8044 = vld [vmem:[#allocation1] sm:$0xff]
    %8045 = vst [vmem:[#allocation1] ss:$9 sm:$0xff] %v3855
    %8046 = vst [vmem:[%s8017] ss:$9 sm:$0xff] %v3858
    %8047 = vst [vmem:[%s8019] ss:$9 sm:$0xff] %v3861
    %8048 = vst [vmem:[%s8021] ss:$9 sm:$0xff] %v3864
    %8049 = vst [vmem:[%s8023] ss:$9 sm:$0xff] %v3867
    %8050 = vst [vmem:[%s8025] ss:$9 sm:$0xff] %v3870
    %8051 = vst [vmem:[%s8027] ss:$9 sm:$0xff] %v3873
    %8052 = vst [vmem:[%s8029] ss:$9 sm:$0xff] %v3876
    %v8053 = vld [vmem:[#allocation1] sm:$0xff]
    %8054 = vst [vmem:[#allocation1] ss:$9 sm:$0xff] %v3879
    %v8055 = vld [vmem:[#allocation1] sm:$0xff]
    %8056 = vst [vmem:[#allocation1] ss:$9 sm:$0xff] %v3882
    %8057 = vst [vmem:[%s8017] ss:$9 sm:$0xff] %v3885
    %8058 = vst [vmem:[%s8019] ss:$9 sm:$0xff] %v3888
    %8059 = vst [vmem:[%s8021] ss:$9 sm:$0xff] %v3891
    %8060 = vst [vmem:[%s8023] ss:$9 sm:$0xff] %v3894
    %8061 = vst [vmem:[%s8025] ss:$9 sm:$0xff] %v3897
    %8062 = vst [vmem:[%s8027] ss:$9 sm:$0xff] %v3900
    %8063 = vst [vmem:[%s8029] ss:$9 sm:$0xff] %v3903
    %v8064 = vld [vmem:[#allocation1] sm:$0xff]
    %8065 = vst [vmem:[#allocation1] ss:$9 sm:$0xff] %v3906
    %v8066 = vld [vmem:[#allocation1] sm:$0xff]
    %8067 = vst [vmem:[#allocation1] ss:$9 sm:$0xff] %v3909
    %8068 = vst [vmem:[%s8017] ss:$9 sm:$0xff] %v3912
    %8069 = vst [vmem:[%s8019] ss:$9 sm:$0xff] %v3915
    %8070 = vst [vmem:[%s8021] ss:$9 sm:$0xff] %v3918
    %8071 = vst [vmem:[%s8023] ss:$9 sm:$0xff] %v3921
    %8072 = vst [vmem:[%s8025] ss:$9 sm:$0xff] %v3924
    %8073 = vst [vmem:[%s8027] ss:$9 sm:$0xff] %v3927
    %8074 = vst [vmem:[%s8029] ss:$9 sm:$0xff] %v3930
    %v8075 = vld [vmem:[#allocation1] sm:$0xff]
    %8076 = vst [vmem:[#allocation1] ss:$9 sm:$0xff] %v3933
    %v8077 = vld [vmem:[#allocation1] sm:$0xff]
    %8078 = vst [vmem:[#allocation1] ss:$9 sm:$0xff] %v3936
    %8079 = vst [vmem:[%s8017] ss:$9 sm:$0xff] %v3939
    %8080 = vst [vmem:[%s8019] ss:$9 sm:$0xff] %v3942
    %8081 = vst [vmem:[%s8021] ss:$9 sm:$0xff] %v3945
    %8082 = vst [vmem:[%s8023] ss:$9 sm:$0xff] %v3948
    %8083 = vst [vmem:[%s8025] ss:$9 sm:$0xff] %v3951
    %8084 = vst [vmem:[%s8027] ss:$9 sm:$0xff] %v3954
    %8085 = vst [vmem:[%s8029] ss:$9 sm:$0xff] %v3957
    %v8086 = vld [vmem:[#allocation1] sm:$0xff]
    %8087 = vst [vmem:[#allocation1] ss:$9 sm:$0xff] %v3960
    %v8088 = vld [vmem:[#allocation1] sm:$0xff]
    %8089 = vst [vmem:[#allocation1] ss:$9 sm:$0xff] %v3963
    %8090 = vst [vmem:[%s8017] ss:$9 sm:$0xff] %v3966
    %8091 = vst [vmem:[%s8019] ss:$9 sm:$0xff] %v3969
    %8092 = vst [vmem:[%s8021] ss:$9 sm:$0xff] %v3972
    %8093 = vst [vmem:[%s8023] ss:$9 sm:$0xff] %v3975
    %8094 = vst [vmem:[%s8025] ss:$9 sm:$0xff] %v3978
    %8095 = vst [vmem:[%s8027] ss:$9 sm:$0xff] %v3981
    %8096 = vst [vmem:[%s8029] ss:$9 sm:$0xff] %v3984
    %v8097 = vld [vmem:[#allocation1] sm:$0xff]
    %8098 = vst [vmem:[#allocation1] ss:$9 sm:$0xff] %v3987
    %v8099 = vld [vmem:[#allocation1] sm:$0xff]
    %8100 = vst [vmem:[#allocation1] ss:$9 sm:$0xff] %v3990
    %8101 = vst [vmem:[%s8017] ss:$9 sm:$0xff] %v3993
    %8102 = vst [vmem:[%s8019] ss:$9 sm:$0xff] %v3996
    %8103 = vst [vmem:[%s8021] ss:$9 sm:$0xff] %v3999
    %8104 = vst [vmem:[%s8023] ss:$9 sm:$0xff] %v4002
    %8105 = vst [vmem:[%s8025] ss:$9 sm:$0xff] %v4005
    %8106 = vst [vmem:[%s8027] ss:$9 sm:$0xff] %v4008
    %8107 = vst [vmem:[%s8029] ss:$9 sm:$0xff] %v4011
    %v8108 = vld [vmem:[#allocation1] sm:$0xff]
    %8109 = vst [vmem:[#allocation1] ss:$9 sm:$0xff] %v4014
    %v8110 = vld [vmem:[#allocation1] sm:$0xff]
    %8111 = vst [vmem:[#allocation1] ss:$9 sm:$0xff] %v4017
    %8112 = vst [vmem:[%s8017] ss:$9 sm:$0xff] %v4020
    %8113 = vst [vmem:[%s8019] ss:$9 sm:$0xff] %v4023
    %8114 = vst [vmem:[%s8021] ss:$9 sm:$0xff] %v4026
    %8115 = vst [vmem:[%s8023] ss:$9 sm:$0xff] %v4029
    %8116 = vst [vmem:[%s8025] ss:$9 sm:$0xff] %v4032
    %8117 = vst [vmem:[%s8027] ss:$9 sm:$0xff] %v4035
    %8118 = vst [vmem:[%s8029] ss:$9 sm:$0xff] %v4038
    %v8119 = vld [vmem:[#allocation1] sm:$0xff]
    %8120 = vst [vmem:[#allocation1] ss:$9 sm:$0xff] %v4041
    %v8121 = vld [vmem:[#allocation1] sm:$0xff]
    %8122 = vst [vmem:[#allocation1] ss:$9 sm:$0xff] %v4044
    %8123 = vst [vmem:[%s8017] ss:$9 sm:$0xff] %v4047
    %8124 = vst [vmem:[%s8019] ss:$9 sm:$0xff] %v4050
    %8125 = vst [vmem:[%s8021] ss:$9 sm:$0xff] %v4053
    %8126 = vst [vmem:[%s8023] ss:$9 sm:$0xff] %v4056
    %8127 = vst [vmem:[%s8025] ss:$9 sm:$0xff] %v4059
    %8128 = vst [vmem:[%s8027] ss:$9 sm:$0xff] %v4062
    %8129 = vst [vmem:[%s8029] ss:$9 sm:$0xff] %v4065
    %v8130 = vld [vmem:[#allocation1] sm:$0xff]
    %8131 = vst [vmem:[#allocation1] ss:$9 sm:$0xff] %v4068
    %v8132 = vld [vmem:[#allocation1] sm:$0xff]
    %8133 = vst [vmem:[#allocation1] ss:$9 sm:$0xff] %v4071
    %8134 = vst [vmem:[%s8017] ss:$9 sm:$0xff] %v4074
    %8135 = vst [vmem:[%s8019] ss:$9 sm:$0xff] %v4077
    %8136 = vst [vmem:[%s8021] ss:$9 sm:$0xff] %v4080
    %8137 = vst [vmem:[%s8023] ss:$9 sm:$0xff] %v4083
    %8138 = vst [vmem:[%s8025] ss:$9 sm:$0xff] %v4086
    %8139 = vst [vmem:[%s8027] ss:$9 sm:$0xff] %v4089
    %8140 = vst [vmem:[%s8029] ss:$9 sm:$0xff] %v4092
    %v8141 = vld [vmem:[#allocation1] sm:$0xff]
    %8142 = vst [vmem:[#allocation1] ss:$9 sm:$0xff] %v4095
    %v8143 = vld [vmem:[#allocation1] sm:$0xff]
    %8144 = vst [vmem:[#allocation1] ss:$9 sm:$0xff] %v4098
    %8145 = vst [vmem:[%s8017] ss:$9 sm:$0xff] %v4101
    %8146 = vst [vmem:[%s8019] ss:$9 sm:$0xff] %v4104
    %8147 = vst [vmem:[%s8021] ss:$9 sm:$0xff] %v4107
    %8148 = vst [vmem:[%s8023] ss:$9 sm:$0xff] %v4110
    %8149 = vst [vmem:[%s8025] ss:$9 sm:$0xff] %v4113
    %8150 = vst [vmem:[%s8027] ss:$9 sm:$0xff] %v4116
    %8151 = vst [vmem:[%s8029] ss:$9 sm:$0xff] %v4119
    %v8152 = vld [vmem:[#allocation1] sm:$0xff]
    %8153 = vst [vmem:[#allocation1] ss:$9 sm:$0xff] %v4122
    %v8154 = vld [vmem:[#allocation1] sm:$0xff]
    %8155 = vst [vmem:[#allocation1] ss:$9 sm:$0xff] %v4125
    %8156 = vst [vmem:[%s8017] ss:$9 sm:$0xff] %v4128
    %8157 = vst [vmem:[%s8019] ss:$9 sm:$0xff] %v4131
    %8158 = vst [vmem:[%s8021] ss:$9 sm:$0xff] %v4134
    %8159 = vst [vmem:[%s8023] ss:$9 sm:$0xff] %v4137
    %8160 = vst [vmem:[%s8025] ss:$9 sm:$0xff] %v4140
    %8161 = vst [vmem:[%s8027] ss:$9 sm:$0xff] %v4143
    %8162 = vst [vmem:[%s8029] ss:$9 sm:$0xff] %v4146
    %v8163 = vld [vmem:[#allocation1] sm:$0xff]
    %8164 = vst [vmem:[#allocation1] ss:$9 sm:$0xff] %v4149
    %v8165 = vld [vmem:[#allocation1] sm:$0xff]
    %8166 = vst [vmem:[#allocation1] ss:$9 sm:$0xff] %v4152
    %8167 = vst [vmem:[%s8017] ss:$9 sm:$0xff] %v4155
    %8168 = vst [vmem:[%s8019] ss:$9 sm:$0xff] %v4158
    %8169 = vst [vmem:[%s8021] ss:$9 sm:$0xff] %v4161
    %8170 = vst [vmem:[%s8023] ss:$9 sm:$0xff] %v4164
    %8171 = vst [vmem:[%s8025] ss:$9 sm:$0xff] %v4167
    %8172 = vst [vmem:[%s8027] ss:$9 sm:$0xff] %v4170
    %8173 = vst [vmem:[%s8029] ss:$9 sm:$0xff] %v4173
    %v8174 = vld [vmem:[#allocation1] sm:$0xff]
    %8175 = vst [vmem:[#allocation1] ss:$9 sm:$0xff] %v4176
    %v8176 = vld [vmem:[#allocation1] sm:$0xff]
    %8177 = vst [vmem:[#allocation1] ss:$9 sm:$0xff] %v4179
    %8178 = vst [vmem:[%s8017] ss:$9 sm:$0xff] %v4182
    %8179 = vst [vmem:[%s8019] ss:$9 sm:$0xff] %v4185
    %8180 = vst [vmem:[%s8021] ss:$9 sm:$0xff] %v4188
    %8181 = vst [vmem:[%s8023] ss:$9 sm:$0xff] %v4191
    %8182 = vst [vmem:[%s8025] ss:$9 sm:$0xff] %v4194
    %8183 = vst [vmem:[%s8027] ss:$9 sm:$0xff] %v4197
    %8184 = vst [vmem:[%s8029] ss:$9 sm:$0xff] %v4200
    %v8185 = vld [vmem:[#allocation1] sm:$0xff]
    %8186 = vst [vmem:[#allocation1] ss:$9 sm:$0xff] %v4203
    %v8187 = vld [vmem:[#allocation1] sm:$0xff]
    %8188 = vst [vmem:[#allocation1] ss:$9 sm:$0xff] %v4206
    %8189 = vst [vmem:[%s8017] ss:$9 sm:$0xff] %v4209
    %8190 = vst [vmem:[%s8019] ss:$9 sm:$0xff] %v4212
    %8191 = vst [vmem:[%s8021] ss:$9 sm:$0xff] %v4215
    %8192 = vst [vmem:[%s8023] ss:$9 sm:$0xff] %v4218
    %8193 = vst [vmem:[%s8025] ss:$9 sm:$0xff] %v4221
    %8194 = vst [vmem:[%s8027] ss:$9 sm:$0xff] %v4224
    %8195 = vst [vmem:[%s8029] ss:$9 sm:$0xff] %v4227
    %v8196 = vld [vmem:[#allocation1] sm:$0xff]
    %8198 = vst [vmem:[#allocation1] ss:$9 sm:$0xff] %v4230
    %v8199 = vld [vmem:[#allocation1] sm:$0xff]
    %8200 = vst [vmem:[#allocation1] ss:$9 sm:$0xff] %v4287
    %8201 = vst [vmem:[%s8017] ss:$9 sm:$0xff] %v4290
    %8202 = vst [vmem:[%s8019] ss:$9 sm:$0xff] %v4293
    %8203 = vst [vmem:[%s8021] ss:$9 sm:$0xff] %v4296
    %8204 = vst [vmem:[%s8023] ss:$9 sm:$0xff] %v4299
    %8205 = vst [vmem:[%s8025] ss:$9 sm:$0xff] %v4302
    %8206 = vst [vmem:[%s8027] ss:$9 sm:$0xff] %v4305
    %8207 = vst [vmem:[%s8029] ss:$9 sm:$0xff] %v4308
    %v8208 = vld [vmem:[#allocation1] sm:$0xff]
    %8209 = vst [vmem:[#allocation1] ss:$9 sm:$0xff] %v4311
    %v8210 = vld [vmem:[#allocation1] sm:$0xff]
    %8211 = vst [vmem:[#allocation1] ss:$9 sm:$0xff] %v4314
    %8212 = vst [vmem:[%s8017] ss:$9 sm:$0xff] %v4317
    %8213 = vst [vmem:[%s8019] ss:$9 sm:$0xff] %v4320
    %8214 = vst [vmem:[%s8021] ss:$9 sm:$0xff] %v4323
    %8215 = vst [vmem:[%s8023] ss:$9 sm:$0xff] %v4326
    %8216 = vst [vmem:[%s8025] ss:$9 sm:$0xff] %v4329
    %8217 = vst [vmem:[%s8027] ss:$9 sm:$0xff] %v4332
    %8218 = vst [vmem:[%s8029] ss:$9 sm:$0xff] %v4335
    %v8219 = vld [vmem:[#allocation1] sm:$0xff]
    %8220 = vst [vmem:[#allocation1] ss:$9 sm:$0xff] %v4338
    %v8221 = vld [vmem:[#allocation1] sm:$0xff]
    %8222 = vst [vmem:[#allocation1] ss:$9 sm:$0xff] %v4341
    %8223 = vst [vmem:[%s8017] ss:$9 sm:$0xff] %v4344
    %8224 = vst [vmem:[%s8019] ss:$9 sm:$0xff] %v4347
    %8225 = vst [vmem:[%s8021] ss:$9 sm:$0xff] %v4350
    %8226 = vst [vmem:[%s8023] ss:$9 sm:$0xff] %v4353
    %8227 = vst [vmem:[%s8025] ss:$9 sm:$0xff] %v4356
    %8228 = vst [vmem:[%s8027] ss:$9 sm:$0xff] %v4359
    %8229 = vst [vmem:[%s8029] ss:$9 sm:$0xff] %v4362
    %v8230 = vld [vmem:[#allocation1] sm:$0xff]
    %8231 = vst [vmem:[#allocation1] ss:$9 sm:$0xff] %v4365
    %v8232 = vld [vmem:[#allocation1] sm:$0xff]
    %8233 = vst [vmem:[#allocation1] ss:$9 sm:$0xff] %v4368
    %8234 = vst [vmem:[%s8017] ss:$9 sm:$0xff] %v4371
    %8235 = vst [vmem:[%s8019] ss:$9 sm:$0xff] %v4374
    %8236 = vst [vmem:[%s8021] ss:$9 sm:$0xff] %v4377
    %8237 = vst [vmem:[%s8023] ss:$9 sm:$0xff] %v4380
    %8238 = vst [vmem:[%s8025] ss:$9 sm:$0xff] %v4383
    %8239 = vst [vmem:[%s8027] ss:$9 sm:$0xff] %v4386
    %8240 = vst [vmem:[%s8029] ss:$9 sm:$0xff] %v4389
    %v8241 = vld [vmem:[#allocation1] sm:$0xff]
    %8242 = vst [vmem:[#allocation1] ss:$9 sm:$0xff] %v4392
    %v8243 = vld [vmem:[#allocation1] sm:$0xff]
    %8244 = vst [vmem:[#allocation1] ss:$9 sm:$0xff] %v4395
    %8245 = vst [vmem:[%s8017] ss:$9 sm:$0xff] %v4398
    %8246 = vst [vmem:[%s8019] ss:$9 sm:$0xff] %v4401
    %8247 = vst [vmem:[%s8021] ss:$9 sm:$0xff] %v4404
    %8248 = vst [vmem:[%s8023] ss:$9 sm:$0xff] %v4407
    %8249 = vst [vmem:[%s8025] ss:$9 sm:$0xff] %v4410
    %8250 = vst [vmem:[%s8027] ss:$9 sm:$0xff] %v4413
    %8251 = vst [vmem:[%s8029] ss:$9 sm:$0xff] %v4416
    %v8252 = vld [vmem:[#allocation1] sm:$0xff]
    %8253 = vst [vmem:[#allocation1] ss:$9 sm:$0xff] %v4419
    %v8254 = vld [vmem:[#allocation1] sm:$0xff]
    %8255 = vst [vmem:[#allocation1] ss:$9 sm:$0xff] %v4422
    %8256 = vst [vmem:[%s8017] ss:$9 sm:$0xff] %v4425
    %8257 = vst [vmem:[%s8019] ss:$9 sm:$0xff] %v4428
    %8258 = vst [vmem:[%s8021] ss:$9 sm:$0xff] %v4431
    %8259 = vst [vmem:[%s8023] ss:$9 sm:$0xff] %v4434
    %8260 = vst [vmem:[%s8025] ss:$9 sm:$0xff] %v4437
    %8261 = vst [vmem:[%s8027] ss:$9 sm:$0xff] %v4440
    %8262 = vst [vmem:[%s8029] ss:$9 sm:$0xff] %v4443
    %v8263 = vld [vmem:[#allocation1] sm:$0xff]
    %8264 = vst [vmem:[#allocation1] ss:$9 sm:$0xff] %v4446
    %v8265 = vld [vmem:[#allocation1] sm:$0xff]
    %8266 = vst [vmem:[#allocation1] ss:$9 sm:$0xff] %v4449
    %8267 = vst [vmem:[%s8017] ss:$9 sm:$0xff] %v4452
    %8268 = vst [vmem:[%s8019] ss:$9 sm:$0xff] %v4455
    %8269 = vst [vmem:[%s8021] ss:$9 sm:$0xff] %v4458
    %8270 = vst [vmem:[%s8023] ss:$9 sm:$0xff] %v4461
    %8271 = vst [vmem:[%s8025] ss:$9 sm:$0xff] %v4464
    %8272 = vst [vmem:[%s8027] ss:$9 sm:$0xff] %v4467
    %8273 = vst [vmem:[%s8029] ss:$9 sm:$0xff] %v4470
    %v8274 = vld [vmem:[#allocation1] sm:$0xff]
    %8275 = vst [vmem:[#allocation1] ss:$9 sm:$0xff] %v4473
    %v8276 = vld [vmem:[#allocation1] sm:$0xff]
    %8277 = vst [vmem:[#allocation1] ss:$9 sm:$0xff] %v4476
    %8278 = vst [vmem:[%s8017] ss:$9 sm:$0xff] %v4479
    %8279 = vst [vmem:[%s8019] ss:$9 sm:$0xff] %v4482
    %8280 = vst [vmem:[%s8021] ss:$9 sm:$0xff] %v4485
    %8281 = vst [vmem:[%s8023] ss:$9 sm:$0xff] %v4488
    %8282 = vst [vmem:[%s8025] ss:$9 sm:$0xff] %v4491
    %8283 = vst [vmem:[%s8027] ss:$9 sm:$0xff] %v4494
    %8284 = vst [vmem:[%s8029] ss:$9 sm:$0xff] %v4497
    %v8285 = vld [vmem:[#allocation1] sm:$0xff]
    %8286 = vst [vmem:[#allocation1] ss:$9 sm:$0xff] %v4500
    %v8287 = vld [vmem:[#allocation1] sm:$0xff]
    %8288 = vst [vmem:[#allocation1] ss:$9 sm:$0xff] %v4503
    %8289 = vst [vmem:[%s8017] ss:$9 sm:$0xff] %v4506
    %8290 = vst [vmem:[%s8019] ss:$9 sm:$0xff] %v4509
    %8291 = vst [vmem:[%s8021] ss:$9 sm:$0xff] %v4512
    %8292 = vst [vmem:[%s8023] ss:$9 sm:$0xff] %v4515
    %8293 = vst [vmem:[%s8025] ss:$9 sm:$0xff] %v4518
    %8294 = vst [vmem:[%s8027] ss:$9 sm:$0xff] %v4521
    %8295 = vst [vmem:[%s8029] ss:$9 sm:$0xff] %v4524
    %v8296 = vld [vmem:[#allocation1] sm:$0xff]
    %8297 = vst [vmem:[#allocation1] ss:$9 sm:$0xff] %v4527
    %v8298 = vld [vmem:[#allocation1] sm:$0xff]
    %8299 = vst [vmem:[#allocation1] ss:$9 sm:$0xff] %v4530
    %8300 = vst [vmem:[%s8017] ss:$9 sm:$0xff] %v4533
    %8301 = vst [vmem:[%s8019] ss:$9 sm:$0xff] %v4536
    %8302 = vst [vmem:[%s8021] ss:$9 sm:$0xff] %v4539
    %8303 = vst [vmem:[%s8023] ss:$9 sm:$0xff] %v4542
    %8304 = vst [vmem:[%s8025] ss:$9 sm:$0xff] %v4545
    %8305 = vst [vmem:[%s8027] ss:$9 sm:$0xff] %v4548
    %8306 = vst [vmem:[%s8029] ss:$9 sm:$0xff] %v4551
    %v8307 = vld [vmem:[#allocation1] sm:$0xff]
    %8308 = vst [vmem:[#allocation1] ss:$9 sm:$0xff] %v4554
    %v8309 = vld [vmem:[#allocation1] sm:$0xff]
    %8310 = vst [vmem:[#allocation1] ss:$9 sm:$0xff] %v4557
    %8311 = vst [vmem:[%s8017] ss:$9 sm:$0xff] %v4560
    %8312 = vst [vmem:[%s8019] ss:$9 sm:$0xff] %v4563
    %8313 = vst [vmem:[%s8021] ss:$9 sm:$0xff] %v4566
    %8314 = vst [vmem:[%s8023] ss:$9 sm:$0xff] %v4569
    %8315 = vst [vmem:[%s8025] ss:$9 sm:$0xff] %v4572
    %8316 = vst [vmem:[%s8027] ss:$9 sm:$0xff] %v4575
    %8317 = vst [vmem:[%s8029] ss:$9 sm:$0xff] %v4578
    %v8318 = vld [vmem:[#allocation1] sm:$0xff]
    %8319 = vst [vmem:[#allocation1] ss:$9 sm:$0xff] %v4581
    %v8320 = vld [vmem:[#allocation1] sm:$0xff]
    %8321 = vst [vmem:[#allocation1] ss:$9 sm:$0xff] %v4584
    %8322 = vst [vmem:[%s8017] ss:$9 sm:$0xff] %v4587
    %8323 = vst [vmem:[%s8019] ss:$9 sm:$0xff] %v4590
    %8324 = vst [vmem:[%s8021] ss:$9 sm:$0xff] %v4593
    %8325 = vst [vmem:[%s8023] ss:$9 sm:$0xff] %v4596
    %8326 = vst [vmem:[%s8025] ss:$9 sm:$0xff] %v4599
    %8327 = vst [vmem:[%s8027] ss:$9 sm:$0xff] %v4602
    %8328 = vst [vmem:[%s8029] ss:$9 sm:$0xff] %v4605
    %v8329 = vld [vmem:[#allocation1] sm:$0xff]
    %8330 = vst [vmem:[#allocation1] ss:$9 sm:$0xff] %v4608
    %v8331 = vld [vmem:[#allocation1] sm:$0xff]
    %8332 = vst [vmem:[#allocation1] ss:$9 sm:$0xff] %v4611
    %8333 = vst [vmem:[%s8017] ss:$9 sm:$0xff] %v4614
    %8334 = vst [vmem:[%s8019] ss:$9 sm:$0xff] %v4617
    %8335 = vst [vmem:[%s8021] ss:$9 sm:$0xff] %v4620
    %8336 = vst [vmem:[%s8023] ss:$9 sm:$0xff] %v4623
    %8337 = vst [vmem:[%s8025] ss:$9 sm:$0xff] %v4626
    %8338 = vst [vmem:[%s8027] ss:$9 sm:$0xff] %v4629
    %8339 = vst [vmem:[%s8029] ss:$9 sm:$0xff] %v4632
    %v8340 = vld [vmem:[#allocation1] sm:$0xff]
    %8341 = vst [vmem:[#allocation1] ss:$9 sm:$0xff] %v4635
    %v8342 = vld [vmem:[#allocation1] sm:$0xff]
    %8343 = vst [vmem:[#allocation1] ss:$9 sm:$0xff] %v4638
    %8344 = vst [vmem:[%s8017] ss:$9 sm:$0xff] %v4641
    %8345 = vst [vmem:[%s8019] ss:$9 sm:$0xff] %v4644
    %8346 = vst [vmem:[%s8021] ss:$9 sm:$0xff] %v4647
    %8347 = vst [vmem:[%s8023] ss:$9 sm:$0xff] %v4650
    %8348 = vst [vmem:[%s8025] ss:$9 sm:$0xff] %v4653
    %8349 = vst [vmem:[%s8027] ss:$9 sm:$0xff] %v4656
    %8350 = vst [vmem:[%s8029] ss:$9 sm:$0xff] %v4659
    %v8351 = vld [vmem:[#allocation1] sm:$0xff]
    %8352 = vst [vmem:[#allocation1] ss:$9 sm:$0xff] %v4662
    %v8353 = vld [vmem:[#allocation1] sm:$0xff]
    %8354 = vst [vmem:[#allocation1] ss:$9 sm:$0xff] %v4665
    %8355 = vst [vmem:[%s8017] ss:$9 sm:$0xff] %v4668
    %8356 = vst [vmem:[%s8019] ss:$9 sm:$0xff] %v4671
    %8357 = vst [vmem:[%s8021] ss:$9 sm:$0xff] %v4674
    %8358 = vst [vmem:[%s8023] ss:$9 sm:$0xff] %v4677
    %8359 = vst [vmem:[%s8025] ss:$9 sm:$0xff] %v4680
    %8360 = vst [vmem:[%s8027] ss:$9 sm:$0xff] %v4683
    %8361 = vst [vmem:[%s8029] ss:$9 sm:$0xff] %v4686
    %v8362 = vld [vmem:[#allocation1] sm:$0xff]
    %8363 = vst [vmem:[#allocation1] ss:$9 sm:$0xff] %v4689
    %v8364 = vld [vmem:[#allocation1] sm:$0xff]
    %8365 = vst [vmem:[#allocation1] ss:$9 sm:$0xff] %v4692
    %8366 = vst [vmem:[%s8017] ss:$9 sm:$0xff] %v4695
    %8367 = vst [vmem:[%s8019] ss:$9 sm:$0xff] %v4698
    %8368 = vst [vmem:[%s8021] ss:$9 sm:$0xff] %v4701
    %8369 = vst [vmem:[%s8023] ss:$9 sm:$0xff] %v4704
    %8370 = vst [vmem:[%s8025] ss:$9 sm:$0xff] %v4707
    %8371 = vst [vmem:[%s8027] ss:$9 sm:$0xff] %v4710
    %8372 = vst [vmem:[%s8029] ss:$9 sm:$0xff] %v4713
    %v8373 = vld [vmem:[#allocation1] sm:$0xff]
    %8375 = vst [vmem:[#allocation1] ss:$9 sm:$0xff] %v4716
    %v8376 = vld [vmem:[#allocation1] sm:$0xff]
    %v8377 = vshrl.u32 %v8031, 16
    %v8379 = vshll.u32 %v8031, 16
    %v8381 = vrot.slane %v8379, 1
    %v8382 = vor.u32 %v8377, %v8381
    %v8383 = vshll.u32 %v8033, 16
    %v8385 = vrot.slane %v8383, 1
    %v8386 = vsel %vm5619, %v8382, %v8385
    %v8387 = vshrl.u32 %v8042, 16
    %v8389 = vshll.u32 %v8042, 16
    %v8391 = vrot.slane %v8389, 1
    %v8392 = vor.u32 %v8387, %v8391
    %v8393 = vshll.u32 %v8044, 16
    %v8395 = vrot.slane %v8393, 1
    %v8396 = vsel %vm5619, %v8392, %v8395
    %v8397 = vshrl.u32 %v8053, 16
    %v8399 = vshll.u32 %v8053, 16
    %v8401 = vrot.slane %v8399, 1
    %v8402 = vor.u32 %v8397, %v8401
    %v8403 = vshll.u32 %v8055, 16
    %v8405 = vrot.slane %v8403, 1
    %v8406 = vsel %vm5619, %v8402, %v8405
    %v8407 = vshrl.u32 %v8064, 16
    %v8409 = vshll.u32 %v8064, 16
    %v8411 = vrot.slane %v8409, 1
    %v8412 = vor.u32 %v8407, %v8411
    %v8413 = vshll.u32 %v8066, 16
    %v8415 = vrot.slane %v8413, 1
    %v8416 = vsel %vm5619, %v8412, %v8415
    %v8417 = vshrl.u32 %v8075, 16
    %v8419 = vshll.u32 %v8075, 16
    %v8421 = vrot.slane %v8419, 1
    %v8422 = vor.u32 %v8417, %v8421
    %v8423 = vshll.u32 %v8077, 16
    %v8425 = vrot.slane %v8423, 1
    %v8426 = vsel %vm5619, %v8422, %v8425
    %v8427 = vshrl.u32 %v8086, 16
    %v8429 = vshll.u32 %v8086, 16
    %v8431 = vrot.slane %v8429, 1
    %v8432 = vor.u32 %v8427, %v8431
    %v8433 = vshll.u32 %v8088, 16
    %v8435 = vrot.slane %v8433, 1
    %v8436 = vsel %vm5619, %v8432, %v8435
    %v8437 = vshrl.u32 %v8097, 16
    %v8439 = vshll.u32 %v8097, 16
    %v8441 = vrot.slane %v8439, 1
    %v8442 = vor.u32 %v8437, %v8441
    %v8443 = vshll.u32 %v8099, 16
    %v8445 = vrot.slane %v8443, 1
    %v8446 = vsel %vm5619, %v8442, %v8445
    %v8447 = vshrl.u32 %v8108, 16
    %v8449 = vshll.u32 %v8108, 16
    %v8451 = vrot.slane %v8449, 1
    %v8452 = vor.u32 %v8447, %v8451
    %v8453 = vshll.u32 %v8110, 16
    %v8455 = vrot.slane %v8453, 1
    %v8456 = vsel %vm5619, %v8452, %v8455
    %v8457 = vshrl.u32 %v8119, 16
    %v8459 = vshll.u32 %v8119, 16
    %v8461 = vrot.slane %v8459, 1
    %v8462 = vor.u32 %v8457, %v8461
    %v8463 = vshll.u32 %v8121, 16
    %v8465 = vrot.slane %v8463, 1
    %v8466 = vsel %vm5619, %v8462, %v8465
    %v8467 = vshrl.u32 %v8130, 16
    %v8469 = vshll.u32 %v8130, 16
    %v8471 = vrot.slane %v8469, 1
    %v8472 = vor.u32 %v8467, %v8471
    %v8473 = vshll.u32 %v8132, 16
    %v8475 = vrot.slane %v8473, 1
    %v8476 = vsel %vm5619, %v8472, %v8475
    %v8477 = vshrl.u32 %v8141, 16
    %v8479 = vshll.u32 %v8141, 16
    %v8481 = vrot.slane %v8479, 1
    %v8482 = vor.u32 %v8477, %v8481
    %v8483 = vshll.u32 %v8143, 16
    %v8485 = vrot.slane %v8483, 1
    %v8486 = vsel %vm5619, %v8482, %v8485
    %v8487 = vshrl.u32 %v8152, 16
    %v8489 = vshll.u32 %v8152, 16
    %v8491 = vrot.slane %v8489, 1
    %v8492 = vor.u32 %v8487, %v8491
    %v8493 = vshll.u32 %v8154, 16
    %v8495 = vrot.slane %v8493, 1
    %v8496 = vsel %vm5619, %v8492, %v8495
    %v8497 = vshrl.u32 %v8163, 16
    %v8499 = vshll.u32 %v8163, 16
    %v8501 = vrot.slane %v8499, 1
    %v8502 = vor.u32 %v8497, %v8501
    %v8503 = vshll.u32 %v8165, 16
    %v8505 = vrot.slane %v8503, 1
    %v8506 = vsel %vm5619, %v8502, %v8505
    %v8507 = vshrl.u32 %v8174, 16
    %v8509 = vshll.u32 %v8174, 16
    %v8511 = vrot.slane %v8509, 1
    %v8512 = vor.u32 %v8507, %v8511
    %v8513 = vshll.u32 %v8176, 16
    %v8515 = vrot.slane %v8513, 1
    %v8516 = vsel %vm5619, %v8512, %v8515
    %v8517 = vshrl.u32 %v8185, 16
    %v8519 = vshll.u32 %v8185, 16
    %v8521 = vrot.slane %v8519, 1
    %v8522 = vor.u32 %v8517, %v8521
    %v8523 = vshll.u32 %v8187, 16
    %v8525 = vrot.slane %v8523, 1
    %v8526 = vsel %vm5619, %v8522, %v8525
    %v8527 = vshrl.u32 %v8196, 16
    %v8529 = vshll.u32 %v8196, 16
    %v8531 = vrot.slane %v8529, 1
    %v8532 = vor.u32 %v8527, %v8531
    %v8533 = vshll.u32 %v8199, 16
    %v8535 = vrot.slane %v8533, 1
    %v8536 = vsel %vm5619, %v8532, %v8535
    %v8537 = vshrl.u32 %v8208, 16
    %v8539 = vshll.u32 %v8208, 16
    %v8541 = vrot.slane %v8539, 1
    %v8542 = vor.u32 %v8537, %v8541
    %v8543 = vshll.u32 %v8210, 16
    %v8545 = vrot.slane %v8543, 1
    %v8546 = vsel %vm5619, %v8542, %v8545
    %v8547 = vshrl.u32 %v8219, 16
    %v8549 = vshll.u32 %v8219, 16
    %v8551 = vrot.slane %v8549, 1
    %v8552 = vor.u32 %v8547, %v8551
    %v8553 = vshll.u32 %v8221, 16
    %v8555 = vrot.slane %v8553, 1
    %v8556 = vsel %vm5619, %v8552, %v8555
    %v8557 = vshrl.u32 %v8230, 16
    %v8559 = vshll.u32 %v8230, 16
    %v8561 = vrot.slane %v8559, 1
    %v8562 = vor.u32 %v8557, %v8561
    %v8563 = vshll.u32 %v8232, 16
    %v8565 = vrot.slane %v8563, 1
    %v8566 = vsel %vm5619, %v8562, %v8565
    %v8567 = vshrl.u32 %v8241, 16
    %v8569 = vshll.u32 %v8241, 16
    %v8571 = vrot.slane %v8569, 1
    %v8572 = vor.u32 %v8567, %v8571
    %v8573 = vshll.u32 %v8243, 16
    %v8575 = vrot.slane %v8573, 1
    %v8576 = vsel %vm5619, %v8572, %v8575
    %v8577 = vshrl.u32 %v8252, 16
    %v8579 = vshll.u32 %v8252, 16
    %v8581 = vrot.slane %v8579, 1
    %v8582 = vor.u32 %v8577, %v8581
    %v8583 = vshll.u32 %v8254, 16
    %v8585 = vrot.slane %v8583, 1
    %v8586 = vsel %vm5619, %v8582, %v8585
    %v8587 = vshrl.u32 %v8263, 16
    %v8589 = vshll.u32 %v8263, 16
    %v8591 = vrot.slane %v8589, 1
    %v8592 = vor.u32 %v8587, %v8591
    %v8593 = vshll.u32 %v8265, 16
    %v8595 = vrot.slane %v8593, 1
    %v8596 = vsel %vm5619, %v8592, %v8595
    %v8597 = vshrl.u32 %v8274, 16
    %v8599 = vshll.u32 %v8274, 16
    %v8601 = vrot.slane %v8599, 1
    %v8602 = vor.u32 %v8597, %v8601
    %v8603 = vshll.u32 %v8276, 16
    %v8605 = vrot.slane %v8603, 1
    %v8606 = vsel %vm5619, %v8602, %v8605
    %v8607 = vshrl.u32 %v8285, 16
    %v8609 = vshll.u32 %v8285, 16
    %v8611 = vrot.slane %v8609, 1
    %v8612 = vor.u32 %v8607, %v8611
    %v8613 = vshll.u32 %v8287, 16
    %v8615 = vrot.slane %v8613, 1
    %v8616 = vsel %vm5619, %v8612, %v8615
    %v8617 = vshrl.u32 %v8296, 16
    %v8619 = vshll.u32 %v8296, 16
    %v8621 = vrot.slane %v8619, 1
    %v8622 = vor.u32 %v8617, %v8621
    %v8623 = vshll.u32 %v8298, 16
    %v8625 = vrot.slane %v8623, 1
    %v8626 = vsel %vm5619, %v8622, %v8625
    %v8627 = vshrl.u32 %v8307, 16
    %v8629 = vshll.u32 %v8307, 16
    %v8631 = vrot.slane %v8629, 1
    %v8632 = vor.u32 %v8627, %v8631
    %v8633 = vshll.u32 %v8309, 16
    %v8635 = vrot.slane %v8633, 1
    %v8636 = vsel %vm5619, %v8632, %v8635
    %v8637 = vshrl.u32 %v8318, 16
    %v8639 = vshll.u32 %v8318, 16
    %v8641 = vrot.slane %v8639, 1
    %v8642 = vor.u32 %v8637, %v8641
    %v8643 = vshll.u32 %v8320, 16
    %v8645 = vrot.slane %v8643, 1
    %v8646 = vsel %vm5619, %v8642, %v8645
    %v8647 = vshrl.u32 %v8329, 16
    %v8649 = vshll.u32 %v8329, 16
    %v8651 = vrot.slane %v8649, 1
    %v8652 = vor.u32 %v8647, %v8651
    %v8653 = vshll.u32 %v8331, 16
    %v8655 = vrot.slane %v8653, 1
    %v8656 = vsel %vm5619, %v8652, %v8655
    %v8657 = vshrl.u32 %v8340, 16
    %v8659 = vshll.u32 %v8340, 16
    %v8661 = vrot.slane %v8659, 1
    %v8662 = vor.u32 %v8657, %v8661
    %v8663 = vshll.u32 %v8342, 16
    %v8665 = vrot.slane %v8663, 1
    %v8666 = vsel %vm5619, %v8662, %v8665
    %v8667 = vshrl.u32 %v8351, 16
    %v8669 = vshll.u32 %v8351, 16
    %v8671 = vrot.slane %v8669, 1
    %v8672 = vor.u32 %v8667, %v8671
    %v8673 = vshll.u32 %v8353, 16
    %v8675 = vrot.slane %v8673, 1
    %v8676 = vsel %vm5619, %v8672, %v8675
    %v8677 = vshrl.u32 %v8362, 16
    %v8679 = vshll.u32 %v8362, 16
    %v8681 = vrot.slane %v8679, 1
    %v8682 = vor.u32 %v8677, %v8681
    %v8683 = vshll.u32 %v8364, 16
    %v8685 = vrot.slane %v8683, 1
    %v8686 = vsel %vm5619, %v8682, %v8685
    %v8687 = vshrl.u32 %v8373, 16
    %v8689 = vshll.u32 %v8373, 16
    %v8691 = vrot.slane %v8689, 1
    %v8692 = vor.u32 %v8687, %v8691
    %v8693 = vshll.u32 %v8376, 16
    %v8695 = vrot.slane %v8693, 1
    %v8696 = vsel %vm5619, %v8692, %v8695
    %8729 = vst [vmem:[#allocation1] ss:$9 sm:$0xff] %v3804
    %s8730 = scalar_lea.vmem [#allocation1], 1
    %8731 = vst [vmem:[%s8730] ss:$9 sm:$0xff] %v3807
    %s8732 = scalar_lea.vmem [#allocation1], 2
    %8733 = vst [vmem:[%s8732] ss:$9 sm:$0xff] %v3810
    %s8734 = scalar_lea.vmem [#allocation1], 3
    %8735 = vst [vmem:[%s8734] ss:$9 sm:$0xff] %v3813
    %s8736 = scalar_lea.vmem [#allocation1], 4
    %8737 = vst [vmem:[%s8736] ss:$9 sm:$0xff] %v3816
    %s8738 = scalar_lea.vmem [#allocation1], 5
    %8739 = vst [vmem:[%s8738] ss:$9 sm:$0xff] %v3819
    %s8740 = scalar_lea.vmem [#allocation1], 6
    %8741 = vst [vmem:[%s8740] ss:$9 sm:$0xff] %v3822
    %s8742 = scalar_lea.vmem [#allocation1], 7
    %8743 = vst [vmem:[%s8742] ss:$9 sm:$0xff] %v3825
    %v8744 = vld [vmem:[#allocation1] sm:$0xff]
    %8745 = vst [vmem:[#allocation1] ss:$9 sm:$0xff] %v3831
    %8746 = vst [vmem:[%s8730] ss:$9 sm:$0xff] %v3834
    %8747 = vst [vmem:[%s8732] ss:$9 sm:$0xff] %v3837
    %8748 = vst [vmem:[%s8734] ss:$9 sm:$0xff] %v3840
    %8749 = vst [vmem:[%s8736] ss:$9 sm:$0xff] %v3843
    %8750 = vst [vmem:[%s8738] ss:$9 sm:$0xff] %v3846
    %8751 = vst [vmem:[%s8740] ss:$9 sm:$0xff] %v3849
    %8752 = vst [vmem:[%s8742] ss:$9 sm:$0xff] %v3852
    %v8753 = vld [vmem:[#allocation1] sm:$0xff]
    %8754 = vst [vmem:[#allocation1] ss:$9 sm:$0xff] %v3858
    %8755 = vst [vmem:[%s8730] ss:$9 sm:$0xff] %v3861
    %8756 = vst [vmem:[%s8732] ss:$9 sm:$0xff] %v3864
    %8757 = vst [vmem:[%s8734] ss:$9 sm:$0xff] %v3867
    %8758 = vst [vmem:[%s8736] ss:$9 sm:$0xff] %v3870
    %8759 = vst [vmem:[%s8738] ss:$9 sm:$0xff] %v3873
    %8760 = vst [vmem:[%s8740] ss:$9 sm:$0xff] %v3876
    %8761 = vst [vmem:[%s8742] ss:$9 sm:$0xff] %v3879
    %v8762 = vld [vmem:[#allocation1] sm:$0xff]
    %8763 = vst [vmem:[#allocation1] ss:$9 sm:$0xff] %v3885
    %8764 = vst [vmem:[%s8730] ss:$9 sm:$0xff] %v3888
    %8765 = vst [vmem:[%s8732] ss:$9 sm:$0xff] %v3891
    %8766 = vst [vmem:[%s8734] ss:$9 sm:$0xff] %v3894
    %8767 = vst [vmem:[%s8736] ss:$9 sm:$0xff] %v3897
    %8768 = vst [vmem:[%s8738] ss:$9 sm:$0xff] %v3900
    %8769 = vst [vmem:[%s8740] ss:$9 sm:$0xff] %v3903
    %8770 = vst [vmem:[%s8742] ss:$9 sm:$0xff] %v3906
    %v8771 = vld [vmem:[#allocation1] sm:$0xff]
    %8772 = vst [vmem:[#allocation1] ss:$9 sm:$0xff] %v3912
    %8773 = vst [vmem:[%s8730] ss:$9 sm:$0xff] %v3915
    %8774 = vst [vmem:[%s8732] ss:$9 sm:$0xff] %v3918
    %8775 = vst [vmem:[%s8734] ss:$9 sm:$0xff] %v3921
    %8776 = vst [vmem:[%s8736] ss:$9 sm:$0xff] %v3924
    %8777 = vst [vmem:[%s8738] ss:$9 sm:$0xff] %v3927
    %8778 = vst [vmem:[%s8740] ss:$9 sm:$0xff] %v3930
    %8779 = vst [vmem:[%s8742] ss:$9 sm:$0xff] %v3933
    %v8780 = vld [vmem:[#allocation1] sm:$0xff]
    %8781 = vst [vmem:[#allocation1] ss:$9 sm:$0xff] %v3939
    %8782 = vst [vmem:[%s8730] ss:$9 sm:$0xff] %v3942
    %8783 = vst [vmem:[%s8732] ss:$9 sm:$0xff] %v3945
    %8784 = vst [vmem:[%s8734] ss:$9 sm:$0xff] %v3948
    %8785 = vst [vmem:[%s8736] ss:$9 sm:$0xff] %v3951
    %8786 = vst [vmem:[%s8738] ss:$9 sm:$0xff] %v3954
    %8787 = vst [vmem:[%s8740] ss:$9 sm:$0xff] %v3957
    %8788 = vst [vmem:[%s8742] ss:$9 sm:$0xff] %v3960
    %v8789 = vld [vmem:[#allocation1] sm:$0xff]
    %8790 = vst [vmem:[#allocation1] ss:$9 sm:$0xff] %v3966
    %8791 = vst [vmem:[%s8730] ss:$9 sm:$0xff] %v3969
    %8792 = vst [vmem:[%s8732] ss:$9 sm:$0xff] %v3972
    %8793 = vst [vmem:[%s8734] ss:$9 sm:$0xff] %v3975
    %8794 = vst [vmem:[%s8736] ss:$9 sm:$0xff] %v3978
    %8795 = vst [vmem:[%s8738] ss:$9 sm:$0xff] %v3981
    %8796 = vst [vmem:[%s8740] ss:$9 sm:$0xff] %v3984
    %8797 = vst [vmem:[%s8742] ss:$9 sm:$0xff] %v3987
    %v8798 = vld [vmem:[#allocation1] sm:$0xff]
    %8799 = vst [vmem:[#allocation1] ss:$9 sm:$0xff] %v3993
    %8800 = vst [vmem:[%s8730] ss:$9 sm:$0xff] %v3996
    %8801 = vst [vmem:[%s8732] ss:$9 sm:$0xff] %v3999
    %8802 = vst [vmem:[%s8734] ss:$9 sm:$0xff] %v4002
    %8803 = vst [vmem:[%s8736] ss:$9 sm:$0xff] %v4005
    %8804 = vst [vmem:[%s8738] ss:$9 sm:$0xff] %v4008
    %8805 = vst [vmem:[%s8740] ss:$9 sm:$0xff] %v4011
    %8806 = vst [vmem:[%s8742] ss:$9 sm:$0xff] %v4014
    %v8807 = vld [vmem:[#allocation1] sm:$0xff]
    %8808 = vst [vmem:[#allocation1] ss:$9 sm:$0xff] %v4020
    %8809 = vst [vmem:[%s8730] ss:$9 sm:$0xff] %v4023
    %8810 = vst [vmem:[%s8732] ss:$9 sm:$0xff] %v4026
    %8811 = vst [vmem:[%s8734] ss:$9 sm:$0xff] %v4029
    %8812 = vst [vmem:[%s8736] ss:$9 sm:$0xff] %v4032
    %8813 = vst [vmem:[%s8738] ss:$9 sm:$0xff] %v4035
    %8814 = vst [vmem:[%s8740] ss:$9 sm:$0xff] %v4038
    %8815 = vst [vmem:[%s8742] ss:$9 sm:$0xff] %v4041
    %v8816 = vld [vmem:[#allocation1] sm:$0xff]
    %8817 = vst [vmem:[#allocation1] ss:$9 sm:$0xff] %v4047
    %8818 = vst [vmem:[%s8730] ss:$9 sm:$0xff] %v4050
    %8819 = vst [vmem:[%s8732] ss:$9 sm:$0xff] %v4053
    %8820 = vst [vmem:[%s8734] ss:$9 sm:$0xff] %v4056
    %8821 = vst [vmem:[%s8736] ss:$9 sm:$0xff] %v4059
    %8822 = vst [vmem:[%s8738] ss:$9 sm:$0xff] %v4062
    %8823 = vst [vmem:[%s8740] ss:$9 sm:$0xff] %v4065
    %8824 = vst [vmem:[%s8742] ss:$9 sm:$0xff] %v4068
    %v8825 = vld [vmem:[#allocation1] sm:$0xff]
    %8826 = vst [vmem:[#allocation1] ss:$9 sm:$0xff] %v4074
    %8827 = vst [vmem:[%s8730] ss:$9 sm:$0xff] %v4077
    %8828 = vst [vmem:[%s8732] ss:$9 sm:$0xff] %v4080
    %8829 = vst [vmem:[%s8734] ss:$9 sm:$0xff] %v4083
    %8830 = vst [vmem:[%s8736] ss:$9 sm:$0xff] %v4086
    %8831 = vst [vmem:[%s8738] ss:$9 sm:$0xff] %v4089
    %8832 = vst [vmem:[%s8740] ss:$9 sm:$0xff] %v4092
    %8833 = vst [vmem:[%s8742] ss:$9 sm:$0xff] %v4095
    %v8834 = vld [vmem:[#allocation1] sm:$0xff]
    %8835 = vst [vmem:[#allocation1] ss:$9 sm:$0xff] %v4101
    %8836 = vst [vmem:[%s8730] ss:$9 sm:$0xff] %v4104
    %8837 = vst [vmem:[%s8732] ss:$9 sm:$0xff] %v4107
    %8838 = vst [vmem:[%s8734] ss:$9 sm:$0xff] %v4110
    %8839 = vst [vmem:[%s8736] ss:$9 sm:$0xff] %v4113
    %8840 = vst [vmem:[%s8738] ss:$9 sm:$0xff] %v4116
    %8841 = vst [vmem:[%s8740] ss:$9 sm:$0xff] %v4119
    %8842 = vst [vmem:[%s8742] ss:$9 sm:$0xff] %v4122
    %v8843 = vld [vmem:[#allocation1] sm:$0xff]
    %8844 = vst [vmem:[#allocation1] ss:$9 sm:$0xff] %v4128
    %8845 = vst [vmem:[%s8730] ss:$9 sm:$0xff] %v4131
    %8846 = vst [vmem:[%s8732] ss:$9 sm:$0xff] %v4134
    %8847 = vst [vmem:[%s8734] ss:$9 sm:$0xff] %v4137
    %8848 = vst [vmem:[%s8736] ss:$9 sm:$0xff] %v4140
    %8849 = vst [vmem:[%s8738] ss:$9 sm:$0xff] %v4143
    %8850 = vst [vmem:[%s8740] ss:$9 sm:$0xff] %v4146
    %8851 = vst [vmem:[%s8742] ss:$9 sm:$0xff] %v4149
    %v8852 = vld [vmem:[#allocation1] sm:$0xff]
    %8853 = vst [vmem:[#allocation1] ss:$9 sm:$0xff] %v4155
    %8854 = vst [vmem:[%s8730] ss:$9 sm:$0xff] %v4158
    %8855 = vst [vmem:[%s8732] ss:$9 sm:$0xff] %v4161
    %8856 = vst [vmem:[%s8734] ss:$9 sm:$0xff] %v4164
    %8857 = vst [vmem:[%s8736] ss:$9 sm:$0xff] %v4167
    %8858 = vst [vmem:[%s8738] ss:$9 sm:$0xff] %v4170
    %8859 = vst [vmem:[%s8740] ss:$9 sm:$0xff] %v4173
    %8860 = vst [vmem:[%s8742] ss:$9 sm:$0xff] %v4176
    %v8861 = vld [vmem:[#allocation1] sm:$0xff]
    %8862 = vst [vmem:[#allocation1] ss:$9 sm:$0xff] %v4182
    %8863 = vst [vmem:[%s8730] ss:$9 sm:$0xff] %v4185
    %8864 = vst [vmem:[%s8732] ss:$9 sm:$0xff] %v4188
    %8865 = vst [vmem:[%s8734] ss:$9 sm:$0xff] %v4191
    %8866 = vst [vmem:[%s8736] ss:$9 sm:$0xff] %v4194
    %8867 = vst [vmem:[%s8738] ss:$9 sm:$0xff] %v4197
    %8868 = vst [vmem:[%s8740] ss:$9 sm:$0xff] %v4200
    %8869 = vst [vmem:[%s8742] ss:$9 sm:$0xff] %v4203
    %v8870 = vld [vmem:[#allocation1] sm:$0xff]
    %8871 = vst [vmem:[#allocation1] ss:$9 sm:$0xff] %v4209
    %8872 = vst [vmem:[%s8730] ss:$9 sm:$0xff] %v4212
    %8873 = vst [vmem:[%s8732] ss:$9 sm:$0xff] %v4215
    %8874 = vst [vmem:[%s8734] ss:$9 sm:$0xff] %v4218
    %8875 = vst [vmem:[%s8736] ss:$9 sm:$0xff] %v4221
    %8876 = vst [vmem:[%s8738] ss:$9 sm:$0xff] %v4224
    %8877 = vst [vmem:[%s8740] ss:$9 sm:$0xff] %v4227
    %8878 = vst [vmem:[%s8742] ss:$9 sm:$0xff] %v4230
    %v8879 = vld [vmem:[#allocation1] sm:$0xff]
    %8880 = vst [vmem:[#allocation1] ss:$9 sm:$0xff] %v4290
    %8881 = vst [vmem:[%s8730] ss:$9 sm:$0xff] %v4293
    %8882 = vst [vmem:[%s8732] ss:$9 sm:$0xff] %v4296
    %8883 = vst [vmem:[%s8734] ss:$9 sm:$0xff] %v4299
    %8884 = vst [vmem:[%s8736] ss:$9 sm:$0xff] %v4302
    %8885 = vst [vmem:[%s8738] ss:$9 sm:$0xff] %v4305
    %8886 = vst [vmem:[%s8740] ss:$9 sm:$0xff] %v4308
    %8887 = vst [vmem:[%s8742] ss:$9 sm:$0xff] %v4311
    %v8888 = vld [vmem:[#allocation1] sm:$0xff]
    %8889 = vst [vmem:[#allocation1] ss:$9 sm:$0xff] %v4317
    %8890 = vst [vmem:[%s8730] ss:$9 sm:$0xff] %v4320
    %8891 = vst [vmem:[%s8732] ss:$9 sm:$0xff] %v4323
    %8892 = vst [vmem:[%s8734] ss:$9 sm:$0xff] %v4326
    %8893 = vst [vmem:[%s8736] ss:$9 sm:$0xff] %v4329
    %8894 = vst [vmem:[%s8738] ss:$9 sm:$0xff] %v4332
    %8895 = vst [vmem:[%s8740] ss:$9 sm:$0xff] %v4335
    %8896 = vst [vmem:[%s8742] ss:$9 sm:$0xff] %v4338
    %v8897 = vld [vmem:[#allocation1] sm:$0xff]
    %8898 = vst [vmem:[#allocation1] ss:$9 sm:$0xff] %v4344
    %8899 = vst [vmem:[%s8730] ss:$9 sm:$0xff] %v4347
    %8900 = vst [vmem:[%s8732] ss:$9 sm:$0xff] %v4350
    %8901 = vst [vmem:[%s8734] ss:$9 sm:$0xff] %v4353
    %8902 = vst [vmem:[%s8736] ss:$9 sm:$0xff] %v4356
    %8903 = vst [vmem:[%s8738] ss:$9 sm:$0xff] %v4359
    %8904 = vst [vmem:[%s8740] ss:$9 sm:$0xff] %v4362
    %8905 = vst [vmem:[%s8742] ss:$9 sm:$0xff] %v4365
    %v8906 = vld [vmem:[#allocation1] sm:$0xff]
    %8907 = vst [vmem:[#allocation1] ss:$9 sm:$0xff] %v4371
    %8908 = vst [vmem:[%s8730] ss:$9 sm:$0xff] %v4374
    %8909 = vst [vmem:[%s8732] ss:$9 sm:$0xff] %v4377
    %8910 = vst [vmem:[%s8734] ss:$9 sm:$0xff] %v4380
    %8911 = vst [vmem:[%s8736] ss:$9 sm:$0xff] %v4383
    %8912 = vst [vmem:[%s8738] ss:$9 sm:$0xff] %v4386
    %8913 = vst [vmem:[%s8740] ss:$9 sm:$0xff] %v4389
    %8914 = vst [vmem:[%s8742] ss:$9 sm:$0xff] %v4392
    %v8915 = vld [vmem:[#allocation1] sm:$0xff]
    %8916 = vst [vmem:[#allocation1] ss:$9 sm:$0xff] %v4398
    %8917 = vst [vmem:[%s8730] ss:$9 sm:$0xff] %v4401
    %8918 = vst [vmem:[%s8732] ss:$9 sm:$0xff] %v4404
    %8919 = vst [vmem:[%s8734] ss:$9 sm:$0xff] %v4407
    %8920 = vst [vmem:[%s8736] ss:$9 sm:$0xff] %v4410
    %8921 = vst [vmem:[%s8738] ss:$9 sm:$0xff] %v4413
    %8922 = vst [vmem:[%s8740] ss:$9 sm:$0xff] %v4416
    %8923 = vst [vmem:[%s8742] ss:$9 sm:$0xff] %v4419
    %v8924 = vld [vmem:[#allocation1] sm:$0xff]
    %8925 = vst [vmem:[#allocation1] ss:$9 sm:$0xff] %v4425
    %8926 = vst [vmem:[%s8730] ss:$9 sm:$0xff] %v4428
    %8927 = vst [vmem:[%s8732] ss:$9 sm:$0xff] %v4431
    %8928 = vst [vmem:[%s8734] ss:$9 sm:$0xff] %v4434
    %8929 = vst [vmem:[%s8736] ss:$9 sm:$0xff] %v4437
    %8930 = vst [vmem:[%s8738] ss:$9 sm:$0xff] %v4440
    %8931 = vst [vmem:[%s8740] ss:$9 sm:$0xff] %v4443
    %8932 = vst [vmem:[%s8742] ss:$9 sm:$0xff] %v4446
    %v8933 = vld [vmem:[#allocation1] sm:$0xff]
    %8934 = vst [vmem:[#allocation1] ss:$9 sm:$0xff] %v4452
    %8935 = vst [vmem:[%s8730] ss:$9 sm:$0xff] %v4455
    %8936 = vst [vmem:[%s8732] ss:$9 sm:$0xff] %v4458
    %8937 = vst [vmem:[%s8734] ss:$9 sm:$0xff] %v4461
    %8938 = vst [vmem:[%s8736] ss:$9 sm:$0xff] %v4464
    %8939 = vst [vmem:[%s8738] ss:$9 sm:$0xff] %v4467
    %8940 = vst [vmem:[%s8740] ss:$9 sm:$0xff] %v4470
    %8941 = vst [vmem:[%s8742] ss:$9 sm:$0xff] %v4473
    %v8942 = vld [vmem:[#allocation1] sm:$0xff]
    %8943 = vst [vmem:[#allocation1] ss:$9 sm:$0xff] %v4479
    %8944 = vst [vmem:[%s8730] ss:$9 sm:$0xff] %v4482
    %8945 = vst [vmem:[%s8732] ss:$9 sm:$0xff] %v4485
    %8946 = vst [vmem:[%s8734] ss:$9 sm:$0xff] %v4488
    %8947 = vst [vmem:[%s8736] ss:$9 sm:$0xff] %v4491
    %8948 = vst [vmem:[%s8738] ss:$9 sm:$0xff] %v4494
    %8949 = vst [vmem:[%s8740] ss:$9 sm:$0xff] %v4497
    %8950 = vst [vmem:[%s8742] ss:$9 sm:$0xff] %v4500
    %v8951 = vld [vmem:[#allocation1] sm:$0xff]
    %8952 = vst [vmem:[#allocation1] ss:$9 sm:$0xff] %v4506
    %8953 = vst [vmem:[%s8730] ss:$9 sm:$0xff] %v4509
    %8954 = vst [vmem:[%s8732] ss:$9 sm:$0xff] %v4512
    %8955 = vst [vmem:[%s8734] ss:$9 sm:$0xff] %v4515
    %8956 = vst [vmem:[%s8736] ss:$9 sm:$0xff] %v4518
    %8957 = vst [vmem:[%s8738] ss:$9 sm:$0xff] %v4521
    %8958 = vst [vmem:[%s8740] ss:$9 sm:$0xff] %v4524
    %8959 = vst [vmem:[%s8742] ss:$9 sm:$0xff] %v4527
    %v8960 = vld [vmem:[#allocation1] sm:$0xff]
    %8961 = vst [vmem:[#allocation1] ss:$9 sm:$0xff] %v4533
    %8962 = vst [vmem:[%s8730] ss:$9 sm:$0xff] %v4536
    %8963 = vst [vmem:[%s8732] ss:$9 sm:$0xff] %v4539
    %8964 = vst [vmem:[%s8734] ss:$9 sm:$0xff] %v4542
    %8965 = vst [vmem:[%s8736] ss:$9 sm:$0xff] %v4545
    %8966 = vst [vmem:[%s8738] ss:$9 sm:$0xff] %v4548
    %8967 = vst [vmem:[%s8740] ss:$9 sm:$0xff] %v4551
    %8968 = vst [vmem:[%s8742] ss:$9 sm:$0xff] %v4554
    %v8969 = vld [vmem:[#allocation1] sm:$0xff]
    %8970 = vst [vmem:[#allocation1] ss:$9 sm:$0xff] %v4560
    %8971 = vst [vmem:[%s8730] ss:$9 sm:$0xff] %v4563
    %8972 = vst [vmem:[%s8732] ss:$9 sm:$0xff] %v4566
    %8973 = vst [vmem:[%s8734] ss:$9 sm:$0xff] %v4569
    %8974 = vst [vmem:[%s8736] ss:$9 sm:$0xff] %v4572
    %8975 = vst [vmem:[%s8738] ss:$9 sm:$0xff] %v4575
    %8976 = vst [vmem:[%s8740] ss:$9 sm:$0xff] %v4578
    %8977 = vst [vmem:[%s8742] ss:$9 sm:$0xff] %v4581
    %v8978 = vld [vmem:[#allocation1] sm:$0xff]
    %8979 = vst [vmem:[#allocation1] ss:$9 sm:$0xff] %v4587
    %8980 = vst [vmem:[%s8730] ss:$9 sm:$0xff] %v4590
    %8981 = vst [vmem:[%s8732] ss:$9 sm:$0xff] %v4593
    %8982 = vst [vmem:[%s8734] ss:$9 sm:$0xff] %v4596
    %8983 = vst [vmem:[%s8736] ss:$9 sm:$0xff] %v4599
    %8984 = vst [vmem:[%s8738] ss:$9 sm:$0xff] %v4602
    %8985 = vst [vmem:[%s8740] ss:$9 sm:$0xff] %v4605
    %8986 = vst [vmem:[%s8742] ss:$9 sm:$0xff] %v4608
    %v8987 = vld [vmem:[#allocation1] sm:$0xff]
    %8988 = vst [vmem:[#allocation1] ss:$9 sm:$0xff] %v4614
    %8989 = vst [vmem:[%s8730] ss:$9 sm:$0xff] %v4617
    %8990 = vst [vmem:[%s8732] ss:$9 sm:$0xff] %v4620
    %8991 = vst [vmem:[%s8734] ss:$9 sm:$0xff] %v4623
    %8992 = vst [vmem:[%s8736] ss:$9 sm:$0xff] %v4626
    %8993 = vst [vmem:[%s8738] ss:$9 sm:$0xff] %v4629
    %8994 = vst [vmem:[%s8740] ss:$9 sm:$0xff] %v4632
    %8995 = vst [vmem:[%s8742] ss:$9 sm:$0xff] %v4635
    %v8996 = vld [vmem:[#allocation1] sm:$0xff]
    %8997 = vst [vmem:[#allocation1] ss:$9 sm:$0xff] %v4641
    %8998 = vst [vmem:[%s8730] ss:$9 sm:$0xff] %v4644
    %8999 = vst [vmem:[%s8732] ss:$9 sm:$0xff] %v4647
    %9000 = vst [vmem:[%s8734] ss:$9 sm:$0xff] %v4650
    %9001 = vst [vmem:[%s8736] ss:$9 sm:$0xff] %v4653
    %9002 = vst [vmem:[%s8738] ss:$9 sm:$0xff] %v4656
    %9003 = vst [vmem:[%s8740] ss:$9 sm:$0xff] %v4659
    %9004 = vst [vmem:[%s8742] ss:$9 sm:$0xff] %v4662
    %v9005 = vld [vmem:[#allocation1] sm:$0xff]
    %9006 = vst [vmem:[#allocation1] ss:$9 sm:$0xff] %v4668
    %9007 = vst [vmem:[%s8730] ss:$9 sm:$0xff] %v4671
    %9008 = vst [vmem:[%s8732] ss:$9 sm:$0xff] %v4674
    %9009 = vst [vmem:[%s8734] ss:$9 sm:$0xff] %v4677
    %9010 = vst [vmem:[%s8736] ss:$9 sm:$0xff] %v4680
    %9011 = vst [vmem:[%s8738] ss:$9 sm:$0xff] %v4683
    %9012 = vst [vmem:[%s8740] ss:$9 sm:$0xff] %v4686
    %9013 = vst [vmem:[%s8742] ss:$9 sm:$0xff] %v4689
    %v9014 = vld [vmem:[#allocation1] sm:$0xff]
    %9015 = vst [vmem:[#allocation1] ss:$9 sm:$0xff] %v4695
    %9016 = vst [vmem:[%s8730] ss:$9 sm:$0xff] %v4698
    %9017 = vst [vmem:[%s8732] ss:$9 sm:$0xff] %v4701
    %9018 = vst [vmem:[%s8734] ss:$9 sm:$0xff] %v4704
    %9019 = vst [vmem:[%s8736] ss:$9 sm:$0xff] %v4707
    %9020 = vst [vmem:[%s8738] ss:$9 sm:$0xff] %v4710
    %9021 = vst [vmem:[%s8740] ss:$9 sm:$0xff] %v4713
    %9022 = vst [vmem:[%s8742] ss:$9 sm:$0xff] %v4716
    %v9023 = vld [vmem:[#allocation1] sm:$0xff]
    %v9056 = vld [vmem:[%s4] sm:$0xf]
    %v9057 = vld [vmem:[%s4 + $0x4] sm:$0xf]
    %v9058 = vld [vmem:[%s4 + $0x8] sm:$0xf]
    %v9059 = vld [vmem:[%s4 + $0xc] sm:$0xf]
    %v9060 = vld [vmem:[%s4 + $0x10] sm:$0xf]
    %v9061 = vld [vmem:[%s4 + $0x14] sm:$0xf]
    %v9062 = vld [vmem:[%s4 + $0x18] sm:$0xf]
    %v9063 = vld [vmem:[%s4 + $0x1c] sm:$0xf]
    %v9064 = vld [vmem:[%s4 + $0x20] sm:$0xf]
    %v9065 = vld [vmem:[%s4 + $0x24] sm:$0xf]
    %v9066 = vld [vmem:[%s4 + $0x28] sm:$0xf]
    %v9067 = vld [vmem:[%s4 + $0x2c] sm:$0xf]
    %v9068 = vld [vmem:[%s4 + $0x30] sm:$0xf]
    %v9069 = vld [vmem:[%s4 + $0x34] sm:$0xf]
    %v9070 = vld [vmem:[%s4 + $0x38] sm:$0xf]
    %v9071 = vld [vmem:[%s4 + $0x3c] sm:$0xf]
    %v9072 = vld [vmem:[%s4 + $0x40] sm:$0xf]
    %v9073 = vld [vmem:[%s4 + $0x44] sm:$0xf]
    %v9074 = vld [vmem:[%s4 + $0x48] sm:$0xf]
    %v9075 = vld [vmem:[%s4 + $0x4c] sm:$0xf]
    %v9076 = vld [vmem:[%s4 + $0x50] sm:$0xf]
    %v9077 = vld [vmem:[%s4 + $0x54] sm:$0xf]
    %v9078 = vld [vmem:[%s4 + $0x58] sm:$0xf]
    %v9079 = vld [vmem:[%s4 + $0x5c] sm:$0xf]
    %v9080 = vld [vmem:[%s4 + $0x60] sm:$0xf]
    %v9081 = vld [vmem:[%s4 + $0x64] sm:$0xf]
    %v9082 = vld [vmem:[%s4 + $0x68] sm:$0xf]
    %v9083 = vld [vmem:[%s4 + $0x6c] sm:$0xf]
    %v9084 = vld [vmem:[%s4 + $0x70] sm:$0xf]
    %v9085 = vld [vmem:[%s4 + $0x74] sm:$0xf]
    %v9086 = vld [vmem:[%s4 + $0x78] sm:$0xf]
    %v9087 = vld [vmem:[%s4 + $0x7c] sm:$0xf]
    %v9088 = vld [vmem:[%s4 + $0x80] sm:$0xf]
    %v9089 = vld [vmem:[%s4 + $0x84] sm:$0xf]
    %v9090 = vld [vmem:[%s4 + $0x88] sm:$0xf]
    %v9091 = vld [vmem:[%s4 + $0x8c] sm:$0xf]
    %v9092 = vld [vmem:[%s4 + $0x90] sm:$0xf]
    %v9093 = vld [vmem:[%s4 + $0x94] sm:$0xf]
    %v9094 = vld [vmem:[%s4 + $0x98] sm:$0xf]
    %v9095 = vld [vmem:[%s4 + $0x9c] sm:$0xf]
    %v9096 = vld [vmem:[%s4 + $0xa0] sm:$0xf]
    %v9097 = vld [vmem:[%s4 + $0xa4] sm:$0xf]
    %v9098 = vld [vmem:[%s4 + $0xa8] sm:$0xf]
    %v9099 = vld [vmem:[%s4 + $0xac] sm:$0xf]
    %v9100 = vld [vmem:[%s4 + $0xb0] sm:$0xf]
    %v9101 = vld [vmem:[%s4 + $0xb4] sm:$0xf]
    %v9102 = vld [vmem:[%s4 + $0xb8] sm:$0xf]
    %v9103 = vld [vmem:[%s4 + $0xbc] sm:$0xf]
    %v9104 = vld [vmem:[%s4 + $0xc0] sm:$0xf]
    %v9105 = vld [vmem:[%s4 + $0xc4] sm:$0xf]
    %v9106 = vld [vmem:[%s4 + $0xc8] sm:$0xf]
    %v9107 = vld [vmem:[%s4 + $0xcc] sm:$0xf]
    %v9108 = vld [vmem:[%s4 + $0xd0] sm:$0xf]
    %v9109 = vld [vmem:[%s4 + $0xd4] sm:$0xf]
    %v9110 = vld [vmem:[%s4 + $0xd8] sm:$0xf]
    %v9111 = vld [vmem:[%s4 + $0xdc] sm:$0xf]
    %v9112 = vld [vmem:[%s4 + $0xe0] sm:$0xf]
    %v9113 = vld [vmem:[%s4 + $0xe4] sm:$0xf]
    %v9114 = vld [vmem:[%s4 + $0xe8] sm:$0xf]
    %v9115 = vld [vmem:[%s4 + $0xec] sm:$0xf]
    %v9116 = vld [vmem:[%s4 + $0xf0] sm:$0xf]
    %v9117 = vld [vmem:[%s4 + $0xf4] sm:$0xf]
    %v9118 = vld [vmem:[%s4 + $0xf8] sm:$0xf]
    %v9119 = vld [vmem:[%s4 + $0xfc] sm:$0xf]
    %v9120 = vld [vmem:[%s4 + $0x100] sm:$0xf]
    %v9121 = vld [vmem:[%s4 + $0x104] sm:$0xf]
    %v9122 = vld [vmem:[%s4 + $0x108] sm:$0xf]
    %v9123 = vld [vmem:[%s4 + $0x10c] sm:$0xf]
    %v9124 = vld [vmem:[%s4 + $0x110] sm:$0xf]
    %v9125 = vld [vmem:[%s4 + $0x114] sm:$0xf]
    %v9126 = vld [vmem:[%s4 + $0x118] sm:$0xf]
    %v9127 = vld [vmem:[%s4 + $0x11c] sm:$0xf]
    %v9128 = vld [vmem:[%s4 + $0x120] sm:$0xf]
    %v9129 = vld [vmem:[%s4 + $0x124] sm:$0xf]
    %v9130 = vld [vmem:[%s4 + $0x128] sm:$0xf]
    %v9131 = vld [vmem:[%s4 + $0x12c] sm:$0xf]
    %v9132 = vld [vmem:[%s4 + $0x130] sm:$0xf]
    %v9133 = vld [vmem:[%s4 + $0x134] sm:$0xf]
    %v9134 = vld [vmem:[%s4 + $0x138] sm:$0xf]
    %v9135 = vld [vmem:[%s4 + $0x13c] sm:$0xf]
    %v9136 = vld [vmem:[%s4 + $0x140] sm:$0xf]
    %v9137 = vld [vmem:[%s4 + $0x144] sm:$0xf]
    %v9138 = vld [vmem:[%s4 + $0x148] sm:$0xf]
    %v9139 = vld [vmem:[%s4 + $0x14c] sm:$0xf]
    %v9140 = vld [vmem:[%s4 + $0x150] sm:$0xf]
    %v9141 = vld [vmem:[%s4 + $0x154] sm:$0xf]
    %v9142 = vld [vmem:[%s4 + $0x158] sm:$0xf]
    %v9143 = vld [vmem:[%s4 + $0x15c] sm:$0xf]
    %v9144 = vld [vmem:[%s4 + $0x160] sm:$0xf]
    %v9145 = vld [vmem:[%s4 + $0x164] sm:$0xf]
    %v9146 = vld [vmem:[%s4 + $0x168] sm:$0xf]
    %v9147 = vld [vmem:[%s4 + $0x16c] sm:$0xf]
    %v9148 = vld [vmem:[%s4 + $0x170] sm:$0xf]
    %v9149 = vld [vmem:[%s4 + $0x174] sm:$0xf]
    %v9150 = vld [vmem:[%s4 + $0x178] sm:$0xf]
    %v9151 = vld [vmem:[%s4 + $0x17c] sm:$0xf]
    %v9152 = vld [vmem:[%s4 + $0x180] sm:$0xf]
    %v9153 = vld [vmem:[%s4 + $0x184] sm:$0xf]
    %v9154 = vld [vmem:[%s4 + $0x188] sm:$0xf]
    %v9155 = vld [vmem:[%s4 + $0x18c] sm:$0xf]
    %v9156 = vld [vmem:[%s4 + $0x190] sm:$0xf]
    %v9157 = vld [vmem:[%s4 + $0x194] sm:$0xf]
    %v9158 = vld [vmem:[%s4 + $0x198] sm:$0xf]
    %v9159 = vld [vmem:[%s4 + $0x19c] sm:$0xf]
    %v9160 = vld [vmem:[%s4 + $0x1a0] sm:$0xf]
    %v9161 = vld [vmem:[%s4 + $0x1a4] sm:$0xf]
    %v9162 = vld [vmem:[%s4 + $0x1a8] sm:$0xf]
    %v9163 = vld [vmem:[%s4 + $0x1ac] sm:$0xf]
    %v9164 = vld [vmem:[%s4 + $0x1b0] sm:$0xf]
    %v9165 = vld [vmem:[%s4 + $0x1b4] sm:$0xf]
    %v9166 = vld [vmem:[%s4 + $0x1b8] sm:$0xf]
    %v9167 = vld [vmem:[%s4 + $0x1bc] sm:$0xf]
    %v9168 = vld [vmem:[%s4 + $0x1c0] sm:$0xf]
    %v9169 = vld [vmem:[%s4 + $0x1c4] sm:$0xf]
    %v9170 = vld [vmem:[%s4 + $0x1c8] sm:$0xf]
    %v9171 = vld [vmem:[%s4 + $0x1cc] sm:$0xf]
    %v9172 = vld [vmem:[%s4 + $0x1d0] sm:$0xf]
    %v9173 = vld [vmem:[%s4 + $0x1d4] sm:$0xf]
    %v9174 = vld [vmem:[%s4 + $0x1d8] sm:$0xf]
    %v9175 = vld [vmem:[%s4 + $0x1dc] sm:$0xf]
    %v9176 = vld [vmem:[%s4 + $0x1e0] sm:$0xf]
    %v9177 = vld [vmem:[%s4 + $0x1e4] sm:$0xf]
    %v9178 = vld [vmem:[%s4 + $0x1e8] sm:$0xf]
    %v9179 = vld [vmem:[%s4 + $0x1ec] sm:$0xf]
    %v9180 = vld [vmem:[%s4 + $0x1f0] sm:$0xf]
    %v9181 = vld [vmem:[%s4 + $0x1f4] sm:$0xf]
    %v9182 = vld [vmem:[%s4 + $0x1f8] sm:$0xf]
    %v9183 = vld [vmem:[%s4 + $0x1fc] sm:$0xf]
    %v9184 = vld [vmem:[%s4 + $0x200] sm:$0xf]
    %v9185 = vld [vmem:[%s4 + $0x204] sm:$0xf]
    %v9186 = vld [vmem:[%s4 + $0x208] sm:$0xf]
    %v9187 = vld [vmem:[%s4 + $0x20c] sm:$0xf]
    %v9188 = vld [vmem:[%s4 + $0x210] sm:$0xf]
    %v9189 = vld [vmem:[%s4 + $0x214] sm:$0xf]
    %v9190 = vld [vmem:[%s4 + $0x218] sm:$0xf]
    %v9191 = vld [vmem:[%s4 + $0x21c] sm:$0xf]
    %v9192 = vld [vmem:[%s4 + $0x220] sm:$0xf]
    %v9193 = vld [vmem:[%s4 + $0x224] sm:$0xf]
    %v9194 = vld [vmem:[%s4 + $0x228] sm:$0xf]
    %v9195 = vld [vmem:[%s4 + $0x22c] sm:$0xf]
    %v9196 = vld [vmem:[%s4 + $0x230] sm:$0xf]
    %v9197 = vld [vmem:[%s4 + $0x234] sm:$0xf]
    %v9198 = vld [vmem:[%s4 + $0x238] sm:$0xf]
    %v9199 = vld [vmem:[%s4 + $0x23c] sm:$0xf]
    %v9344 = vunpack.c.l.b16 %v9056
    %v9345 = vunpack.c.l.b16 %v9057
    %v9346 = vunpack.c.l.b16 %v9058
    %v9347 = vunpack.c.l.b16 %v9059
    %v9348 = vunpack.c.l.b16 %v9060
    %v9349 = vunpack.c.l.b16 %v9061
    %v9350 = vunpack.c.l.b16 %v9062
    %v9351 = vunpack.c.l.b16 %v9063
    %v9352 = vunpack.c.l.b16 %v9064
    %v9353 = vunpack.c.l.b16 %v9065
    %v9354 = vunpack.c.l.b16 %v9066
    %v9355 = vunpack.c.l.b16 %v9067
    %v9356 = vunpack.c.l.b16 %v9068
    %v9357 = vunpack.c.l.b16 %v9069
    %v9358 = vunpack.c.l.b16 %v9070
    %v9359 = vunpack.c.l.b16 %v9071
    %v9360 = vunpack.c.l.b16 %v9072
    %v9361 = vunpack.c.l.b16 %v9073
    %v9362 = vunpack.c.l.b16 %v9074
    %v9363 = vunpack.c.l.b16 %v9075
    %v9364 = vunpack.c.l.b16 %v9076
    %v9365 = vunpack.c.l.b16 %v9077
    %v9366 = vunpack.c.l.b16 %v9078
    %v9367 = vunpack.c.l.b16 %v9079
    %v9368 = vunpack.c.l.b16 %v9080
    %v9369 = vunpack.c.l.b16 %v9081
    %v9370 = vunpack.c.l.b16 %v9082
    %v9371 = vunpack.c.l.b16 %v9083
    %v9372 = vunpack.c.l.b16 %v9084
    %v9373 = vunpack.c.l.b16 %v9085
    %v9374 = vunpack.c.l.b16 %v9086
    %v9375 = vunpack.c.l.b16 %v9087
    %v9376 = vunpack.c.l.b16 %v9088
    %v9377 = vunpack.c.l.b16 %v9089
    %v9378 = vunpack.c.l.b16 %v9090
    %v9379 = vunpack.c.l.b16 %v9091
    %v9380 = vunpack.c.l.b16 %v9092
    %v9381 = vunpack.c.l.b16 %v9093
    %v9382 = vunpack.c.l.b16 %v9094
    %v9383 = vunpack.c.l.b16 %v9095
    %v9384 = vunpack.c.l.b16 %v9096
    %v9385 = vunpack.c.l.b16 %v9097
    %v9386 = vunpack.c.l.b16 %v9098
    %v9387 = vunpack.c.l.b16 %v9099
    %v9388 = vunpack.c.l.b16 %v9100
    %v9389 = vunpack.c.l.b16 %v9101
    %v9390 = vunpack.c.l.b16 %v9102
    %v9391 = vunpack.c.l.b16 %v9103
    %v9392 = vunpack.c.l.b16 %v9104
    %v9393 = vunpack.c.l.b16 %v9105
    %v9394 = vunpack.c.l.b16 %v9106
    %v9395 = vunpack.c.l.b16 %v9107
    %v9396 = vunpack.c.l.b16 %v9108
    %v9397 = vunpack.c.l.b16 %v9109
    %v9398 = vunpack.c.l.b16 %v9110
    %v9399 = vunpack.c.l.b16 %v9111
    %v9400 = vunpack.c.l.b16 %v9112
    %v9401 = vunpack.c.l.b16 %v9113
    %v9402 = vunpack.c.l.b16 %v9114
    %v9403 = vunpack.c.l.b16 %v9115
    %v9404 = vunpack.c.l.b16 %v9116
    %v9405 = vunpack.c.l.b16 %v9117
    %v9406 = vunpack.c.l.b16 %v9118
    %v9407 = vunpack.c.l.b16 %v9119
    %v9408 = vunpack.c.l.b16 %v9120
    %v9409 = vunpack.c.l.b16 %v9121
    %v9410 = vunpack.c.l.b16 %v9122
    %v9411 = vunpack.c.l.b16 %v9123
    %v9412 = vunpack.c.l.b16 %v9124
    %v9413 = vunpack.c.l.b16 %v9125
    %v9414 = vunpack.c.l.b16 %v9126
    %v9415 = vunpack.c.l.b16 %v9127
    %v9416 = vunpack.c.l.b16 %v9128
    %v9417 = vunpack.c.l.b16 %v9129
    %v9418 = vunpack.c.l.b16 %v9130
    %v9419 = vunpack.c.l.b16 %v9131
    %v9420 = vunpack.c.l.b16 %v9132
    %v9421 = vunpack.c.l.b16 %v9133
    %v9422 = vunpack.c.l.b16 %v9134
    %v9423 = vunpack.c.l.b16 %v9135
    %v9424 = vunpack.c.l.b16 %v9136
    %v9425 = vunpack.c.l.b16 %v9137
    %v9426 = vunpack.c.l.b16 %v9138
    %v9427 = vunpack.c.l.b16 %v9139
    %v9428 = vunpack.c.l.b16 %v9140
    %v9429 = vunpack.c.l.b16 %v9141
    %v9430 = vunpack.c.l.b16 %v9142
    %v9431 = vunpack.c.l.b16 %v9143
    %v9432 = vunpack.c.l.b16 %v9144
    %v9433 = vunpack.c.l.b16 %v9145
    %v9434 = vunpack.c.l.b16 %v9146
    %v9435 = vunpack.c.l.b16 %v9147
    %v9436 = vunpack.c.l.b16 %v9148
    %v9437 = vunpack.c.l.b16 %v9149
    %v9438 = vunpack.c.l.b16 %v9150
    %v9439 = vunpack.c.l.b16 %v9151
    %v9440 = vunpack.c.l.b16 %v9152
    %v9441 = vunpack.c.l.b16 %v9153
    %v9442 = vunpack.c.l.b16 %v9154
    %v9443 = vunpack.c.l.b16 %v9155
    %v9444 = vunpack.c.l.b16 %v9156
    %v9445 = vunpack.c.l.b16 %v9157
    %v9446 = vunpack.c.l.b16 %v9158
    %v9447 = vunpack.c.l.b16 %v9159
    %v9448 = vunpack.c.l.b16 %v9160
    %v9449 = vunpack.c.l.b16 %v9161
    %v9450 = vunpack.c.l.b16 %v9162
    %v9451 = vunpack.c.l.b16 %v9163
    %v9452 = vunpack.c.l.b16 %v9164
    %v9453 = vunpack.c.l.b16 %v9165
    %v9454 = vunpack.c.l.b16 %v9166
    %v9455 = vunpack.c.l.b16 %v9167
    %v9456 = vunpack.c.l.b16 %v9168
    %v9457 = vunpack.c.l.b16 %v9169
    %v9458 = vunpack.c.l.b16 %v9170
    %v9459 = vunpack.c.l.b16 %v9171
    %v9460 = vunpack.c.l.b16 %v9172
    %v9461 = vunpack.c.l.b16 %v9173
    %v9462 = vunpack.c.l.b16 %v9174
    %v9463 = vunpack.c.l.b16 %v9175
    %v9464 = vunpack.c.l.b16 %v9176
    %v9465 = vunpack.c.l.b16 %v9177
    %v9466 = vunpack.c.l.b16 %v9178
    %v9467 = vunpack.c.l.b16 %v9179
    %v9468 = vunpack.c.l.b16 %v9180
    %v9469 = vunpack.c.l.b16 %v9181
    %v9470 = vunpack.c.l.b16 %v9182
    %v9471 = vunpack.c.l.b16 %v9183
    %v9472 = vunpack.c.l.b16 %v9184
    %v9473 = vunpack.c.l.b16 %v9185
    %v9474 = vunpack.c.l.b16 %v9186
    %v9475 = vunpack.c.l.b16 %v9187
    %v9476 = vunpack.c.l.b16 %v9188
    %v9477 = vunpack.c.l.b16 %v9189
    %v9478 = vunpack.c.l.b16 %v9190
    %v9479 = vunpack.c.l.b16 %v9191
    %v9480 = vunpack.c.l.b16 %v9192
    %v9481 = vunpack.c.l.b16 %v9193
    %v9482 = vunpack.c.l.b16 %v9194
    %v9483 = vunpack.c.l.b16 %v9195
    %v9484 = vunpack.c.l.b16 %v9196
    %v9485 = vunpack.c.l.b16 %v9197
    %v9486 = vunpack.c.l.b16 %v9198
    %v9487 = vunpack.c.l.b16 %v9199
    %v9488 = vpack.c.b16 %v9345, %v9344
    %v9489 = vpack.c.b16 %v9347, %v9346
    %v9490 = vpack.c.b16 %v9349, %v9348
    %v9491 = vpack.c.b16 %v9351, %v9350
    %v9492 = vpack.c.b16 %v9353, %v9352
    %v9493 = vpack.c.b16 %v9355, %v9354
    %v9494 = vpack.c.b16 %v9357, %v9356
    %v9495 = vpack.c.b16 %v9359, %v9358
    %v9496 = vpack.c.b16 %v9361, %v9360
    %v9497 = vpack.c.b16 %v9363, %v9362
    %v9498 = vpack.c.b16 %v9365, %v9364
    %v9499 = vpack.c.b16 %v9367, %v9366
    %v9500 = vpack.c.b16 %v9369, %v9368
    %v9501 = vpack.c.b16 %v9371, %v9370
    %v9502 = vpack.c.b16 %v9373, %v9372
    %v9503 = vpack.c.b16 %v9375, %v9374
    %v9504 = vpack.c.b16 %v9377, %v9376
    %v9505 = vpack.c.b16 %v9379, %v9378
    %v9506 = vpack.c.b16 %v9381, %v9380
    %v9507 = vpack.c.b16 %v9383, %v9382
    %v9508 = vpack.c.b16 %v9385, %v9384
    %v9509 = vpack.c.b16 %v9387, %v9386
    %v9510 = vpack.c.b16 %v9389, %v9388
    %v9511 = vpack.c.b16 %v9391, %v9390
    %v9512 = vpack.c.b16 %v9393, %v9392
    %v9513 = vpack.c.b16 %v9395, %v9394
    %v9514 = vpack.c.b16 %v9397, %v9396
    %v9515 = vpack.c.b16 %v9399, %v9398
    %v9516 = vpack.c.b16 %v9401, %v9400
    %v9517 = vpack.c.b16 %v9403, %v9402
    %v9518 = vpack.c.b16 %v9405, %v9404
    %v9519 = vpack.c.b16 %v9407, %v9406
    %v9520 = vpack.c.b16 %v9409, %v9408
    %v9521 = vpack.c.b16 %v9411, %v9410
    %v9522 = vpack.c.b16 %v9413, %v9412
    %v9523 = vpack.c.b16 %v9415, %v9414
    %v9524 = vpack.c.b16 %v9417, %v9416
    %v9525 = vpack.c.b16 %v9419, %v9418
    %v9526 = vpack.c.b16 %v9421, %v9420
    %v9527 = vpack.c.b16 %v9423, %v9422
    %v9528 = vpack.c.b16 %v9425, %v9424
    %v9529 = vpack.c.b16 %v9427, %v9426
    %v9530 = vpack.c.b16 %v9429, %v9428
    %v9531 = vpack.c.b16 %v9431, %v9430
    %v9532 = vpack.c.b16 %v9433, %v9432
    %v9533 = vpack.c.b16 %v9435, %v9434
    %v9534 = vpack.c.b16 %v9437, %v9436
    %v9535 = vpack.c.b16 %v9439, %v9438
    %v9536 = vpack.c.b16 %v9441, %v9440
    %v9537 = vpack.c.b16 %v9443, %v9442
    %v9538 = vpack.c.b16 %v9445, %v9444
    %v9539 = vpack.c.b16 %v9447, %v9446
    %v9540 = vpack.c.b16 %v9449, %v9448
    %v9541 = vpack.c.b16 %v9451, %v9450
    %v9542 = vpack.c.b16 %v9453, %v9452
    %v9543 = vpack.c.b16 %v9455, %v9454
    %v9544 = vpack.c.b16 %v9457, %v9456
    %v9545 = vpack.c.b16 %v9459, %v9458
    %v9546 = vpack.c.b16 %v9461, %v9460
    %v9547 = vpack.c.b16 %v9463, %v9462
    %v9548 = vpack.c.b16 %v9465, %v9464
    %v9549 = vpack.c.b16 %v9467, %v9466
    %v9550 = vpack.c.b16 %v9469, %v9468
    %v9551 = vpack.c.b16 %v9471, %v9470
    %v9552 = vpack.c.b16 %v9473, %v9472
    %v9553 = vpack.c.b16 %v9475, %v9474
    %v9554 = vpack.c.b16 %v9477, %v9476
    %v9555 = vpack.c.b16 %v9479, %v9478
    %v9556 = vpack.c.b16 %v9481, %v9480
    %v9557 = vpack.c.b16 %v9483, %v9482
    %v9558 = vpack.c.b16 %v9485, %v9484
    %v9559 = vpack.c.b16 %v9487, %v9486
    %9632 = vmatpush.bf16.msra.mxu0 %v9495
    %9633 = vmatpush.bf16.msra.mxu0 %v9494
    %9634 = vmatpush.bf16.msra.mxu0 %v9493
    %9635 = vmatpush.bf16.msra.mxu0 %v9492
    %9636 = vmatpush.bf16.msra.mxu0 %v9491
    %9637 = vmatpush.bf16.msra.mxu0 %v9490
    %9638 = vmatpush.bf16.msra.mxu0 %v9489
    %9639 = vmatpush.bf16.msra.mxu0 %v9488
    %9640 = vmatmul.bf16.gmra.mxu0 %v4738
    %v9641 = vpop.f32.mrf.mxu0
    %v9642 = vadd.f32 0.0, %v9641
    %v9643 = vpop.f32.mrf.mxu0
    %v9644 = vadd.f32 0.0, %v9643
    %9645 = vmatmul.bf16.gmra.mxu0 %v4753
    %v9646 = vpop.f32.mrf.mxu0
    %v9647 = vadd.f32 0.0, %v9646
    %v9648 = vpop.f32.mrf.mxu0
    %v9649 = vadd.f32 0.0, %v9648
    %9650 = vmatmul.bf16.gmra.mxu0 %v4768
    %v9651 = vpop.f32.mrf.mxu0
    %v9652 = vadd.f32 0.0, %v9651
    %v9653 = vpop.f32.mrf.mxu0
    %v9654 = vadd.f32 0.0, %v9653
    %9655 = vmatmul.bf16.gmra.mxu0 %v4783
    %v9656 = vpop.f32.mrf.mxu0
    %v9657 = vadd.f32 0.0, %v9656
    %v9658 = vpop.f32.mrf.mxu0
    %v9659 = vadd.f32 0.0, %v9658
    %9660 = vmatmul.bf16.gmra.mxu0 %v4798
    %v9661 = vpop.f32.mrf.mxu0
    %v9662 = vadd.f32 0.0, %v9661
    %v9663 = vpop.f32.mrf.mxu0
    %v9664 = vadd.f32 0.0, %v9663
    %9665 = vmatmul.bf16.gmra.mxu0 %v4813
    %v9666 = vpop.f32.mrf.mxu0
    %v9667 = vadd.f32 0.0, %v9666
    %v9668 = vpop.f32.mrf.mxu0
    %v9669 = vadd.f32 0.0, %v9668
    %9670 = vmatmul.bf16.gmra.mxu0 %v4828
    %v9671 = vpop.f32.mrf.mxu0
    %v9672 = vadd.f32 0.0, %v9671
    %v9673 = vpop.f32.mrf.mxu0
    %v9674 = vadd.f32 0.0, %v9673
    %9675 = vmatmul.bf16.gmra.mxu0 %v4843
    %v9676 = vpop.f32.mrf.mxu0
    %v9677 = vadd.f32 0.0, %v9676
    %v9678 = vpop.f32.mrf.mxu0
    %v9679 = vadd.f32 0.0, %v9678
    %9680 = vmatmul.bf16.gmra.mxu0 %v4858
    %v9681 = vpop.f32.mrf.mxu0
    %v9682 = vadd.f32 0.0, %v9681
    %v9683 = vpop.f32.mrf.mxu0
    %v9684 = vadd.f32 0.0, %v9683
    %9685 = vmatmul.bf16.gmra.mxu0 %v4873
    %v9686 = vpop.f32.mrf.mxu0
    %v9687 = vadd.f32 0.0, %v9686
    %v9688 = vpop.f32.mrf.mxu0
    %v9689 = vadd.f32 0.0, %v9688
    %9690 = vmatmul.bf16.gmra.mxu0 %v4888
    %v9691 = vpop.f32.mrf.mxu0
    %v9692 = vadd.f32 0.0, %v9691
    %v9693 = vpop.f32.mrf.mxu0
    %v9694 = vadd.f32 0.0, %v9693
    %9695 = vmatmul.bf16.gmra.mxu0 %v4903
    %v9696 = vpop.f32.mrf.mxu0
    %v9697 = vadd.f32 0.0, %v9696
    %v9698 = vpop.f32.mrf.mxu0
    %v9699 = vadd.f32 0.0, %v9698
    %9700 = vmatmul.bf16.gmra.mxu0 %v4918
    %v9701 = vpop.f32.mrf.mxu0
    %v9702 = vadd.f32 0.0, %v9701
    %v9703 = vpop.f32.mrf.mxu0
    %v9704 = vadd.f32 0.0, %v9703
    %9705 = vmatmul.bf16.gmra.mxu0 %v4933
    %v9706 = vpop.f32.mrf.mxu0
    %v9707 = vadd.f32 0.0, %v9706
    %v9708 = vpop.f32.mrf.mxu0
    %v9709 = vadd.f32 0.0, %v9708
    %9710 = vmatmul.bf16.gmra.mxu0 %v4948
    %v9711 = vpop.f32.mrf.mxu0
    %v9712 = vadd.f32 0.0, %v9711
    %v9713 = vpop.f32.mrf.mxu0
    %v9714 = vadd.f32 0.0, %v9713
    %9715 = vmatmul.bf16.gmra.mxu0 %v4963
    %v9716 = vpop.f32.mrf.mxu0
    %v9717 = vadd.f32 0.0, %v9716
    %v9718 = vpop.f32.mrf.mxu0
    %v9719 = vadd.f32 0.0, %v9718
    %9720 = vmatmul.bf16.gmra.mxu0 %v4978
    %v9721 = vpop.f32.mrf.mxu0
    %v9722 = vadd.f32 0.0, %v9721
    %v9723 = vpop.f32.mrf.mxu0
    %v9724 = vadd.f32 0.0, %v9723
    %9725 = vmatmul.bf16.gmra.mxu0 %v4993
    %v9726 = vpop.f32.mrf.mxu0
    %v9727 = vadd.f32 0.0, %v9726
    %v9728 = vpop.f32.mrf.mxu0
    %v9729 = vadd.f32 0.0, %v9728
    %9730 = vmatmul.bf16.gmra.mxu0 %v5008
    %v9731 = vpop.f32.mrf.mxu0
    %v9732 = vadd.f32 0.0, %v9731
    %v9733 = vpop.f32.mrf.mxu0
    %v9734 = vadd.f32 0.0, %v9733
    %9735 = vmatmul.bf16.gmra.mxu0 %v5023
    %v9736 = vpop.f32.mrf.mxu0
    %v9737 = vadd.f32 0.0, %v9736
    %v9738 = vpop.f32.mrf.mxu0
    %v9739 = vadd.f32 0.0, %v9738
    %9740 = vmatmul.bf16.gmra.mxu0 %v5038
    %v9741 = vpop.f32.mrf.mxu0
    %v9742 = vadd.f32 0.0, %v9741
    %v9743 = vpop.f32.mrf.mxu0
    %v9744 = vadd.f32 0.0, %v9743
    %9745 = vmatmul.bf16.gmra.mxu0 %v5053
    %v9746 = vpop.f32.mrf.mxu0
    %v9747 = vadd.f32 0.0, %v9746
    %v9748 = vpop.f32.mrf.mxu0
    %v9749 = vadd.f32 0.0, %v9748
    %9750 = vmatmul.bf16.gmra.mxu0 %v5068
    %v9751 = vpop.f32.mrf.mxu0
    %v9752 = vadd.f32 0.0, %v9751
    %v9753 = vpop.f32.mrf.mxu0
    %v9754 = vadd.f32 0.0, %v9753
    %9755 = vmatmul.bf16.gmra.mxu0 %v5083
    %v9756 = vpop.f32.mrf.mxu0
    %v9757 = vadd.f32 0.0, %v9756
    %v9758 = vpop.f32.mrf.mxu0
    %v9759 = vadd.f32 0.0, %v9758
    %9760 = vmatmul.bf16.gmra.mxu0 %v5098
    %v9761 = vpop.f32.mrf.mxu0
    %v9762 = vadd.f32 0.0, %v9761
    %v9763 = vpop.f32.mrf.mxu0
    %v9764 = vadd.f32 0.0, %v9763
    %9765 = vmatmul.bf16.gmra.mxu0 %v5113
    %v9766 = vpop.f32.mrf.mxu0
    %v9767 = vadd.f32 0.0, %v9766
    %v9768 = vpop.f32.mrf.mxu0
    %v9769 = vadd.f32 0.0, %v9768
    %9770 = vmatmul.bf16.gmra.mxu0 %v5128
    %v9771 = vpop.f32.mrf.mxu0
    %v9772 = vadd.f32 0.0, %v9771
    %v9773 = vpop.f32.mrf.mxu0
    %v9774 = vadd.f32 0.0, %v9773
    %9775 = vmatmul.bf16.gmra.mxu0 %v5143
    %v9776 = vpop.f32.mrf.mxu0
    %v9777 = vadd.f32 0.0, %v9776
    %v9778 = vpop.f32.mrf.mxu0
    %v9779 = vadd.f32 0.0, %v9778
    %9780 = vmatmul.bf16.gmra.mxu0 %v5158
    %v9781 = vpop.f32.mrf.mxu0
    %v9782 = vadd.f32 0.0, %v9781
    %v9783 = vpop.f32.mrf.mxu0
    %v9784 = vadd.f32 0.0, %v9783
    %9785 = vmatmul.bf16.gmra.mxu0 %v5173
    %v9786 = vpop.f32.mrf.mxu0
    %v9787 = vadd.f32 0.0, %v9786
    %v9788 = vpop.f32.mrf.mxu0
    %v9789 = vadd.f32 0.0, %v9788
    %9790 = vmatmul.bf16.gmra.mxu0 %v5188
    %v9791 = vpop.f32.mrf.mxu0
    %v9792 = vadd.f32 0.0, %v9791
    %v9793 = vpop.f32.mrf.mxu0
    %v9794 = vadd.f32 0.0, %v9793
    %9795 = vmatmul.bf16.gmra.mxu0 %v5203
    %v9796 = vpop.f32.mrf.mxu0
    %v9797 = vadd.f32 0.0, %v9796
    %v9798 = vpop.f32.mrf.mxu0
    %v9799 = vadd.f32 0.0, %v9798
    %9800 = vdwg.mxu0
    %9801 = vmatpush.bf16.msra.mxu0 %v9503
    %9802 = vmatpush.bf16.msra.mxu0 %v9502
    %9803 = vmatpush.bf16.msra.mxu0 %v9501
    %9804 = vmatpush.bf16.msra.mxu0 %v9500
    %9805 = vmatpush.bf16.msra.mxu0 %v9499
    %9806 = vmatpush.bf16.msra.mxu0 %v9498
    %9807 = vmatpush.bf16.msra.mxu0 %v9497
    %9808 = vmatpush.bf16.msra.mxu0 %v9496
    %9809 = vmatmul.bf16.gmra.mxu0 %v5629
    %v9810 = vpop.f32.mrf.mxu0
    %v9811 = vadd.f32 %v9642, %v9810
    %v9812 = vpop.f32.mrf.mxu0
    %v9813 = vadd.f32 %v9644, %v9812
    %9814 = vmatmul.bf16.gmra.mxu0 %v5639
    %v9815 = vpop.f32.mrf.mxu0
    %v9816 = vadd.f32 %v9647, %v9815
    %v9817 = vpop.f32.mrf.mxu0
    %v9818 = vadd.f32 %v9649, %v9817
    %9819 = vmatmul.bf16.gmra.mxu0 %v5649
    %v9820 = vpop.f32.mrf.mxu0
    %v9821 = vadd.f32 %v9652, %v9820
    %v9822 = vpop.f32.mrf.mxu0
    %v9823 = vadd.f32 %v9654, %v9822
    %9824 = vmatmul.bf16.gmra.mxu0 %v5659
    %v9825 = vpop.f32.mrf.mxu0
    %v9826 = vadd.f32 %v9657, %v9825
    %v9827 = vpop.f32.mrf.mxu0
    %v9828 = vadd.f32 %v9659, %v9827
    %9829 = vmatmul.bf16.gmra.mxu0 %v5669
    %v9830 = vpop.f32.mrf.mxu0
    %v9831 = vadd.f32 %v9662, %v9830
    %v9832 = vpop.f32.mrf.mxu0
    %v9833 = vadd.f32 %v9664, %v9832
    %9834 = vmatmul.bf16.gmra.mxu0 %v5679
    %v9835 = vpop.f32.mrf.mxu0
    %v9836 = vadd.f32 %v9667, %v9835
    %v9837 = vpop.f32.mrf.mxu0
    %v9838 = vadd.f32 %v9669, %v9837
    %9839 = vmatmul.bf16.gmra.mxu0 %v5689
    %v9840 = vpop.f32.mrf.mxu0
    %v9841 = vadd.f32 %v9672, %v9840
    %v9842 = vpop.f32.mrf.mxu0
    %v9843 = vadd.f32 %v9674, %v9842
    %9844 = vmatmul.bf16.gmra.mxu0 %v5699
    %v9845 = vpop.f32.mrf.mxu0
    %v9846 = vadd.f32 %v9677, %v9845
    %v9847 = vpop.f32.mrf.mxu0
    %v9848 = vadd.f32 %v9679, %v9847
    %9849 = vmatmul.bf16.gmra.mxu0 %v5709
    %v9850 = vpop.f32.mrf.mxu0
    %v9851 = vadd.f32 %v9682, %v9850
    %v9852 = vpop.f32.mrf.mxu0
    %v9853 = vadd.f32 %v9684, %v9852
    %9854 = vmatmul.bf16.gmra.mxu0 %v5719
    %v9855 = vpop.f32.mrf.mxu0
    %v9856 = vadd.f32 %v9687, %v9855
    %v9857 = vpop.f32.mrf.mxu0
    %v9858 = vadd.f32 %v9689, %v9857
    %9859 = vmatmul.bf16.gmra.mxu0 %v5729
    %v9860 = vpop.f32.mrf.mxu0
    %v9861 = vadd.f32 %v9692, %v9860
    %v9862 = vpop.f32.mrf.mxu0
    %v9863 = vadd.f32 %v9694, %v9862
    %9864 = vmatmul.bf16.gmra.mxu0 %v5739
    %v9865 = vpop.f32.mrf.mxu0
    %v9866 = vadd.f32 %v9697, %v9865
    %v9867 = vpop.f32.mrf.mxu0
    %v9868 = vadd.f32 %v9699, %v9867
    %9869 = vmatmul.bf16.gmra.mxu0 %v5749
    %v9870 = vpop.f32.mrf.mxu0
    %v9871 = vadd.f32 %v9702, %v9870
    %v9872 = vpop.f32.mrf.mxu0
    %v9873 = vadd.f32 %v9704, %v9872
    %9874 = vmatmul.bf16.gmra.mxu0 %v5759
    %v9875 = vpop.f32.mrf.mxu0
    %v9876 = vadd.f32 %v9707, %v9875
    %v9877 = vpop.f32.mrf.mxu0
    %v9878 = vadd.f32 %v9709, %v9877
    %9879 = vmatmul.bf16.gmra.mxu0 %v5769
    %v9880 = vpop.f32.mrf.mxu0
    %v9881 = vadd.f32 %v9712, %v9880
    %v9882 = vpop.f32.mrf.mxu0
    %v9883 = vadd.f32 %v9714, %v9882
    %9884 = vmatmul.bf16.gmra.mxu0 %v5779
    %v9885 = vpop.f32.mrf.mxu0
    %v9886 = vadd.f32 %v9717, %v9885
    %v9887 = vpop.f32.mrf.mxu0
    %v9888 = vadd.f32 %v9719, %v9887
    %9889 = vmatmul.bf16.gmra.mxu0 %v5789
    %v9890 = vpop.f32.mrf.mxu0
    %v9891 = vadd.f32 %v9722, %v9890
    %v9892 = vpop.f32.mrf.mxu0
    %v9893 = vadd.f32 %v9724, %v9892
    %9894 = vmatmul.bf16.gmra.mxu0 %v5799
    %v9895 = vpop.f32.mrf.mxu0
    %v9896 = vadd.f32 %v9727, %v9895
    %v9897 = vpop.f32.mrf.mxu0
    %v9898 = vadd.f32 %v9729, %v9897
    %9899 = vmatmul.bf16.gmra.mxu0 %v5809
    %v9900 = vpop.f32.mrf.mxu0
    %v9901 = vadd.f32 %v9732, %v9900
    %v9902 = vpop.f32.mrf.mxu0
    %v9903 = vadd.f32 %v9734, %v9902
    %9904 = vmatmul.bf16.gmra.mxu0 %v5819
    %v9905 = vpop.f32.mrf.mxu0
    %v9906 = vadd.f32 %v9737, %v9905
    %v9907 = vpop.f32.mrf.mxu0
    %v9908 = vadd.f32 %v9739, %v9907
    %9909 = vmatmul.bf16.gmra.mxu0 %v5829
    %v9910 = vpop.f32.mrf.mxu0
    %v9911 = vadd.f32 %v9742, %v9910
    %v9912 = vpop.f32.mrf.mxu0
    %v9913 = vadd.f32 %v9744, %v9912
    %9914 = vmatmul.bf16.gmra.mxu0 %v5839
    %v9915 = vpop.f32.mrf.mxu0
    %v9916 = vadd.f32 %v9747, %v9915
    %v9917 = vpop.f32.mrf.mxu0
    %v9918 = vadd.f32 %v9749, %v9917
    %9919 = vmatmul.bf16.gmra.mxu0 %v5849
    %v9920 = vpop.f32.mrf.mxu0
    %v9921 = vadd.f32 %v9752, %v9920
    %v9922 = vpop.f32.mrf.mxu0
    %v9923 = vadd.f32 %v9754, %v9922
    %9924 = vmatmul.bf16.gmra.mxu0 %v5859
    %v9925 = vpop.f32.mrf.mxu0
    %v9926 = vadd.f32 %v9757, %v9925
    %v9927 = vpop.f32.mrf.mxu0
    %v9928 = vadd.f32 %v9759, %v9927
    %9929 = vmatmul.bf16.gmra.mxu0 %v5869
    %v9930 = vpop.f32.mrf.mxu0
    %v9931 = vadd.f32 %v9762, %v9930
    %v9932 = vpop.f32.mrf.mxu0
    %v9933 = vadd.f32 %v9764, %v9932
    %9934 = vmatmul.bf16.gmra.mxu0 %v5879
    %v9935 = vpop.f32.mrf.mxu0
    %v9936 = vadd.f32 %v9767, %v9935
    %v9937 = vpop.f32.mrf.mxu0
    %v9938 = vadd.f32 %v9769, %v9937
    %9939 = vmatmul.bf16.gmra.mxu0 %v5889
    %v9940 = vpop.f32.mrf.mxu0
    %v9941 = vadd.f32 %v9772, %v9940
    %v9942 = vpop.f32.mrf.mxu0
    %v9943 = vadd.f32 %v9774, %v9942
    %9944 = vmatmul.bf16.gmra.mxu0 %v5899
    %v9945 = vpop.f32.mrf.mxu0
    %v9946 = vadd.f32 %v9777, %v9945
    %v9947 = vpop.f32.mrf.mxu0
    %v9948 = vadd.f32 %v9779, %v9947
    %9949 = vmatmul.bf16.gmra.mxu0 %v5909
    %v9950 = vpop.f32.mrf.mxu0
    %v9951 = vadd.f32 %v9782, %v9950
    %v9952 = vpop.f32.mrf.mxu0
    %v9953 = vadd.f32 %v9784, %v9952
    %9954 = vmatmul.bf16.gmra.mxu0 %v5919
    %v9955 = vpop.f32.mrf.mxu0
    %v9956 = vadd.f32 %v9787, %v9955
    %v9957 = vpop.f32.mrf.mxu0
    %v9958 = vadd.f32 %v9789, %v9957
    %9959 = vmatmul.bf16.gmra.mxu0 %v5929
    %v9960 = vpop.f32.mrf.mxu0
    %v9961 = vadd.f32 %v9792, %v9960
    %v9962 = vpop.f32.mrf.mxu0
    %v9963 = vadd.f32 %v9794, %v9962
    %9964 = vmatmul.bf16.gmra.mxu0 %v5939
    %v9965 = vpop.f32.mrf.mxu0
    %v9966 = vadd.f32 %v9797, %v9965
    %v9967 = vpop.f32.mrf.mxu0
    %v9968 = vadd.f32 %v9799, %v9967
    %9969 = vdwg.mxu0
    %9970 = vmatpush.bf16.msra.mxu0 %v9511
    %9971 = vmatpush.bf16.msra.mxu0 %v9510
    %9972 = vmatpush.bf16.msra.mxu0 %v9509
    %9973 = vmatpush.bf16.msra.mxu0 %v9508
    %9974 = vmatpush.bf16.msra.mxu0 %v9507
    %9975 = vmatpush.bf16.msra.mxu0 %v9506
    %9976 = vmatpush.bf16.msra.mxu0 %v9505
    %9977 = vmatpush.bf16.msra.mxu0 %v9504
    %9978 = vmatmul.bf16.gmra.mxu0 %v5987
    %v9979 = vpop.f32.mrf.mxu0
    %v9980 = vadd.f32 %v9811, %v9979
    %v9981 = vpop.f32.mrf.mxu0
    %v9982 = vadd.f32 %v9813, %v9981
    %9983 = vmatmul.bf16.gmra.mxu0 %v5996
    %v9984 = vpop.f32.mrf.mxu0
    %v9985 = vadd.f32 %v9816, %v9984
    %v9986 = vpop.f32.mrf.mxu0
    %v9987 = vadd.f32 %v9818, %v9986
    %9988 = vmatmul.bf16.gmra.mxu0 %v6005
    %v9989 = vpop.f32.mrf.mxu0
    %v9990 = vadd.f32 %v9821, %v9989
    %v9991 = vpop.f32.mrf.mxu0
    %v9992 = vadd.f32 %v9823, %v9991
    %9993 = vmatmul.bf16.gmra.mxu0 %v6014
    %v9994 = vpop.f32.mrf.mxu0
    %v9995 = vadd.f32 %v9826, %v9994
    %v9996 = vpop.f32.mrf.mxu0
    %v9997 = vadd.f32 %v9828, %v9996
    %9998 = vmatmul.bf16.gmra.mxu0 %v6023
    %v9999 = vpop.f32.mrf.mxu0
    %v10000 = vadd.f32 %v9831, %v9999
    %v10001 = vpop.f32.mrf.mxu0
    %v10002 = vadd.f32 %v9833, %v10001
    %10003 = vmatmul.bf16.gmra.mxu0 %v6032
    %v10004 = vpop.f32.mrf.mxu0
    %v10005 = vadd.f32 %v9836, %v10004
    %v10006 = vpop.f32.mrf.mxu0
    %v10007 = vadd.f32 %v9838, %v10006
    %10008 = vmatmul.bf16.gmra.mxu0 %v6041
    %v10009 = vpop.f32.mrf.mxu0
    %v10010 = vadd.f32 %v9841, %v10009
    %v10011 = vpop.f32.mrf.mxu0
    %v10012 = vadd.f32 %v9843, %v10011
    %10013 = vmatmul.bf16.gmra.mxu0 %v6050
    %v10014 = vpop.f32.mrf.mxu0
    %v10015 = vadd.f32 %v9846, %v10014
    %v10016 = vpop.f32.mrf.mxu0
    %v10017 = vadd.f32 %v9848, %v10016
    %10018 = vmatmul.bf16.gmra.mxu0 %v6059
    %v10019 = vpop.f32.mrf.mxu0
    %v10020 = vadd.f32 %v9851, %v10019
    %v10021 = vpop.f32.mrf.mxu0
    %v10022 = vadd.f32 %v9853, %v10021
    %10023 = vmatmul.bf16.gmra.mxu0 %v6068
    %v10024 = vpop.f32.mrf.mxu0
    %v10025 = vadd.f32 %v9856, %v10024
    %v10026 = vpop.f32.mrf.mxu0
    %v10027 = vadd.f32 %v9858, %v10026
    %10028 = vmatmul.bf16.gmra.mxu0 %v6077
    %v10029 = vpop.f32.mrf.mxu0
    %v10030 = vadd.f32 %v9861, %v10029
    %v10031 = vpop.f32.mrf.mxu0
    %v10032 = vadd.f32 %v9863, %v10031
    %10033 = vmatmul.bf16.gmra.mxu0 %v6086
    %v10034 = vpop.f32.mrf.mxu0
    %v10035 = vadd.f32 %v9866, %v10034
    %v10036 = vpop.f32.mrf.mxu0
    %v10037 = vadd.f32 %v9868, %v10036
    %10038 = vmatmul.bf16.gmra.mxu0 %v6095
    %v10039 = vpop.f32.mrf.mxu0
    %v10040 = vadd.f32 %v9871, %v10039
    %v10041 = vpop.f32.mrf.mxu0
    %v10042 = vadd.f32 %v9873, %v10041
    %10043 = vmatmul.bf16.gmra.mxu0 %v6104
    %v10044 = vpop.f32.mrf.mxu0
    %v10045 = vadd.f32 %v9876, %v10044
    %v10046 = vpop.f32.mrf.mxu0
    %v10047 = vadd.f32 %v9878, %v10046
    %10048 = vmatmul.bf16.gmra.mxu0 %v6113
    %v10049 = vpop.f32.mrf.mxu0
    %v10050 = vadd.f32 %v9881, %v10049
    %v10051 = vpop.f32.mrf.mxu0
    %v10052 = vadd.f32 %v9883, %v10051
    %10053 = vmatmul.bf16.gmra.mxu0 %v6122
    %v10054 = vpop.f32.mrf.mxu0
    %v10055 = vadd.f32 %v9886, %v10054
    %v10056 = vpop.f32.mrf.mxu0
    %v10057 = vadd.f32 %v9888, %v10056
    %10058 = vmatmul.bf16.gmra.mxu0 %v6131
    %v10059 = vpop.f32.mrf.mxu0
    %v10060 = vadd.f32 %v9891, %v10059
    %v10061 = vpop.f32.mrf.mxu0
    %v10062 = vadd.f32 %v9893, %v10061
    %10063 = vmatmul.bf16.gmra.mxu0 %v6140
    %v10064 = vpop.f32.mrf.mxu0
    %v10065 = vadd.f32 %v9896, %v10064
    %v10066 = vpop.f32.mrf.mxu0
    %v10067 = vadd.f32 %v9898, %v10066
    %10068 = vmatmul.bf16.gmra.mxu0 %v6149
    %v10069 = vpop.f32.mrf.mxu0
    %v10070 = vadd.f32 %v9901, %v10069
    %v10071 = vpop.f32.mrf.mxu0
    %v10072 = vadd.f32 %v9903, %v10071
    %10073 = vmatmul.bf16.gmra.mxu0 %v6158
    %v10074 = vpop.f32.mrf.mxu0
    %v10075 = vadd.f32 %v9906, %v10074
    %v10076 = vpop.f32.mrf.mxu0
    %v10077 = vadd.f32 %v9908, %v10076
    %10078 = vmatmul.bf16.gmra.mxu0 %v6167
    %v10079 = vpop.f32.mrf.mxu0
    %v10080 = vadd.f32 %v9911, %v10079
    %v10081 = vpop.f32.mrf.mxu0
    %v10082 = vadd.f32 %v9913, %v10081
    %10083 = vmatmul.bf16.gmra.mxu0 %v6176
    %v10084 = vpop.f32.mrf.mxu0
    %v10085 = vadd.f32 %v9916, %v10084
    %v10086 = vpop.f32.mrf.mxu0
    %v10087 = vadd.f32 %v9918, %v10086
    %10088 = vmatmul.bf16.gmra.mxu0 %v6185
    %v10089 = vpop.f32.mrf.mxu0
    %v10090 = vadd.f32 %v9921, %v10089
    %v10091 = vpop.f32.mrf.mxu0
    %v10092 = vadd.f32 %v9923, %v10091
    %10093 = vmatmul.bf16.gmra.mxu0 %v6194
    %v10094 = vpop.f32.mrf.mxu0
    %v10095 = vadd.f32 %v9926, %v10094
    %v10096 = vpop.f32.mrf.mxu0
    %v10097 = vadd.f32 %v9928, %v10096
    %10098 = vmatmul.bf16.gmra.mxu0 %v6203
    %v10099 = vpop.f32.mrf.mxu0
    %v10100 = vadd.f32 %v9931, %v10099
    %v10101 = vpop.f32.mrf.mxu0
    %v10102 = vadd.f32 %v9933, %v10101
    %10103 = vmatmul.bf16.gmra.mxu0 %v6212
    %v10104 = vpop.f32.mrf.mxu0
    %v10105 = vadd.f32 %v9936, %v10104
    %v10106 = vpop.f32.mrf.mxu0
    %v10107 = vadd.f32 %v9938, %v10106
    %10108 = vmatmul.bf16.gmra.mxu0 %v6221
    %v10109 = vpop.f32.mrf.mxu0
    %v10110 = vadd.f32 %v9941, %v10109
    %v10111 = vpop.f32.mrf.mxu0
    %v10112 = vadd.f32 %v9943, %v10111
    %10113 = vmatmul.bf16.gmra.mxu0 %v6230
    %v10114 = vpop.f32.mrf.mxu0
    %v10115 = vadd.f32 %v9946, %v10114
    %v10116 = vpop.f32.mrf.mxu0
    %v10117 = vadd.f32 %v9948, %v10116
    %10118 = vmatmul.bf16.gmra.mxu0 %v6239
    %v10119 = vpop.f32.mrf.mxu0
    %v10120 = vadd.f32 %v9951, %v10119
    %v10121 = vpop.f32.mrf.mxu0
    %v10122 = vadd.f32 %v9953, %v10121
    %10123 = vmatmul.bf16.gmra.mxu0 %v6248
    %v10124 = vpop.f32.mrf.mxu0
    %v10125 = vadd.f32 %v9956, %v10124
    %v10126 = vpop.f32.mrf.mxu0
    %v10127 = vadd.f32 %v9958, %v10126
    %10128 = vmatmul.bf16.gmra.mxu0 %v6257
    %v10129 = vpop.f32.mrf.mxu0
    %v10130 = vadd.f32 %v9961, %v10129
    %v10131 = vpop.f32.mrf.mxu0
    %v10132 = vadd.f32 %v9963, %v10131
    %10133 = vmatmul.bf16.gmra.mxu0 %v6266
    %v10134 = vpop.f32.mrf.mxu0
    %v10135 = vadd.f32 %v9966, %v10134
    %v10136 = vpop.f32.mrf.mxu0
    %v10137 = vadd.f32 %v9968, %v10136
    %10138 = vdwg.mxu0
    %10139 = vmatpush.bf16.msra.mxu0 %v9519
    %10140 = vmatpush.bf16.msra.mxu0 %v9518
    %10141 = vmatpush.bf16.msra.mxu0 %v9517
    %10142 = vmatpush.bf16.msra.mxu0 %v9516
    %10143 = vmatpush.bf16.msra.mxu0 %v9515
    %10144 = vmatpush.bf16.msra.mxu0 %v9514
    %10145 = vmatpush.bf16.msra.mxu0 %v9513
    %10146 = vmatpush.bf16.msra.mxu0 %v9512
    %10147 = vmatmul.bf16.gmra.mxu0 %v6314
    %v10148 = vpop.f32.mrf.mxu0
    %v10149 = vadd.f32 %v9980, %v10148
    %v10150 = vpop.f32.mrf.mxu0
    %v10151 = vadd.f32 %v9982, %v10150
    %10152 = vmatmul.bf16.gmra.mxu0 %v6323
    %v10153 = vpop.f32.mrf.mxu0
    %v10154 = vadd.f32 %v9985, %v10153
    %v10155 = vpop.f32.mrf.mxu0
    %v10156 = vadd.f32 %v9987, %v10155
    %10157 = vmatmul.bf16.gmra.mxu0 %v6332
    %v10158 = vpop.f32.mrf.mxu0
    %v10159 = vadd.f32 %v9990, %v10158
    %v10160 = vpop.f32.mrf.mxu0
    %v10161 = vadd.f32 %v9992, %v10160
    %10162 = vmatmul.bf16.gmra.mxu0 %v6341
    %v10163 = vpop.f32.mrf.mxu0
    %v10164 = vadd.f32 %v9995, %v10163
    %v10165 = vpop.f32.mrf.mxu0
    %v10166 = vadd.f32 %v9997, %v10165
    %10167 = vmatmul.bf16.gmra.mxu0 %v6350
    %v10168 = vpop.f32.mrf.mxu0
    %v10169 = vadd.f32 %v10000, %v10168
    %v10170 = vpop.f32.mrf.mxu0
    %v10171 = vadd.f32 %v10002, %v10170
    %10172 = vmatmul.bf16.gmra.mxu0 %v6359
    %v10173 = vpop.f32.mrf.mxu0
    %v10174 = vadd.f32 %v10005, %v10173
    %v10175 = vpop.f32.mrf.mxu0
    %v10176 = vadd.f32 %v10007, %v10175
    %10177 = vmatmul.bf16.gmra.mxu0 %v6368
    %v10178 = vpop.f32.mrf.mxu0
    %v10179 = vadd.f32 %v10010, %v10178
    %v10180 = vpop.f32.mrf.mxu0
    %v10181 = vadd.f32 %v10012, %v10180
    %10182 = vmatmul.bf16.gmra.mxu0 %v6377
    %v10183 = vpop.f32.mrf.mxu0
    %v10184 = vadd.f32 %v10015, %v10183
    %v10185 = vpop.f32.mrf.mxu0
    %v10186 = vadd.f32 %v10017, %v10185
    %10187 = vmatmul.bf16.gmra.mxu0 %v6386
    %v10188 = vpop.f32.mrf.mxu0
    %v10189 = vadd.f32 %v10020, %v10188
    %v10190 = vpop.f32.mrf.mxu0
    %v10191 = vadd.f32 %v10022, %v10190
    %10192 = vmatmul.bf16.gmra.mxu0 %v6395
    %v10193 = vpop.f32.mrf.mxu0
    %v10194 = vadd.f32 %v10025, %v10193
    %v10195 = vpop.f32.mrf.mxu0
    %v10196 = vadd.f32 %v10027, %v10195
    %10197 = vmatmul.bf16.gmra.mxu0 %v6404
    %v10198 = vpop.f32.mrf.mxu0
    %v10199 = vadd.f32 %v10030, %v10198
    %v10200 = vpop.f32.mrf.mxu0
    %v10201 = vadd.f32 %v10032, %v10200
    %10202 = vmatmul.bf16.gmra.mxu0 %v6413
    %v10203 = vpop.f32.mrf.mxu0
    %v10204 = vadd.f32 %v10035, %v10203
    %v10205 = vpop.f32.mrf.mxu0
    %v10206 = vadd.f32 %v10037, %v10205
    %10207 = vmatmul.bf16.gmra.mxu0 %v6422
    %v10208 = vpop.f32.mrf.mxu0
    %v10209 = vadd.f32 %v10040, %v10208
    %v10210 = vpop.f32.mrf.mxu0
    %v10211 = vadd.f32 %v10042, %v10210
    %10212 = vmatmul.bf16.gmra.mxu0 %v6431
    %v10213 = vpop.f32.mrf.mxu0
    %v10214 = vadd.f32 %v10045, %v10213
    %v10215 = vpop.f32.mrf.mxu0
    %v10216 = vadd.f32 %v10047, %v10215
    %10217 = vmatmul.bf16.gmra.mxu0 %v6440
    %v10218 = vpop.f32.mrf.mxu0
    %v10219 = vadd.f32 %v10050, %v10218
    %v10220 = vpop.f32.mrf.mxu0
    %v10221 = vadd.f32 %v10052, %v10220
    %10222 = vmatmul.bf16.gmra.mxu0 %v6455
    %v10223 = vpop.f32.mrf.mxu0
    %v10224 = vadd.f32 %v10055, %v10223
    %v10225 = vpop.f32.mrf.mxu0
    %v10226 = vadd.f32 %v10057, %v10225
    %10227 = vmatmul.bf16.gmra.mxu0 %v6464
    %v10228 = vpop.f32.mrf.mxu0
    %v10229 = vadd.f32 %v10060, %v10228
    %v10230 = vpop.f32.mrf.mxu0
    %v10231 = vadd.f32 %v10062, %v10230
    %10232 = vmatmul.bf16.gmra.mxu0 %v6473
    %v10233 = vpop.f32.mrf.mxu0
    %v10234 = vadd.f32 %v10065, %v10233
    %v10235 = vpop.f32.mrf.mxu0
    %v10236 = vadd.f32 %v10067, %v10235
    %10237 = vmatmul.bf16.gmra.mxu0 %v6482
    %v10238 = vpop.f32.mrf.mxu0
    %v10239 = vadd.f32 %v10070, %v10238
    %v10240 = vpop.f32.mrf.mxu0
    %v10241 = vadd.f32 %v10072, %v10240
    %10242 = vmatmul.bf16.gmra.mxu0 %v6491
    %v10243 = vpop.f32.mrf.mxu0
    %v10244 = vadd.f32 %v10075, %v10243
    %v10245 = vpop.f32.mrf.mxu0
    %v10246 = vadd.f32 %v10077, %v10245
    %10247 = vmatmul.bf16.gmra.mxu0 %v6500
    %v10248 = vpop.f32.mrf.mxu0
    %v10249 = vadd.f32 %v10080, %v10248
    %v10250 = vpop.f32.mrf.mxu0
    %v10251 = vadd.f32 %v10082, %v10250
    %10252 = vmatmul.bf16.gmra.mxu0 %v6509
    %v10253 = vpop.f32.mrf.mxu0
    %v10254 = vadd.f32 %v10085, %v10253
    %v10255 = vpop.f32.mrf.mxu0
    %v10256 = vadd.f32 %v10087, %v10255
    %10257 = vmatmul.bf16.gmra.mxu0 %v6518
    %v10258 = vpop.f32.mrf.mxu0
    %v10259 = vadd.f32 %v10090, %v10258
    %v10260 = vpop.f32.mrf.mxu0
    %v10261 = vadd.f32 %v10092, %v10260
    %10262 = vmatmul.bf16.gmra.mxu0 %v6527
    %v10263 = vpop.f32.mrf.mxu0
    %v10264 = vadd.f32 %v10095, %v10263
    %v10265 = vpop.f32.mrf.mxu0
    %v10266 = vadd.f32 %v10097, %v10265
    %10267 = vmatmul.bf16.gmra.mxu0 %v6536
    %v10268 = vpop.f32.mrf.mxu0
    %v10269 = vadd.f32 %v10100, %v10268
    %v10270 = vpop.f32.mrf.mxu0
    %v10271 = vadd.f32 %v10102, %v10270
    %10272 = vmatmul.bf16.gmra.mxu0 %v6545
    %v10273 = vpop.f32.mrf.mxu0
    %v10274 = vadd.f32 %v10105, %v10273
    %v10275 = vpop.f32.mrf.mxu0
    %v10276 = vadd.f32 %v10107, %v10275
    %10277 = vmatmul.bf16.gmra.mxu0 %v6554
    %v10278 = vpop.f32.mrf.mxu0
    %v10279 = vadd.f32 %v10110, %v10278
    %v10280 = vpop.f32.mrf.mxu0
    %v10281 = vadd.f32 %v10112, %v10280
    %10282 = vmatmul.bf16.gmra.mxu0 %v6563
    %v10283 = vpop.f32.mrf.mxu0
    %v10284 = vadd.f32 %v10115, %v10283
    %v10285 = vpop.f32.mrf.mxu0
    %v10286 = vadd.f32 %v10117, %v10285
    %10287 = vmatmul.bf16.gmra.mxu0 %v6572
    %v10288 = vpop.f32.mrf.mxu0
    %v10289 = vadd.f32 %v10120, %v10288
    %v10290 = vpop.f32.mrf.mxu0
    %v10291 = vadd.f32 %v10122, %v10290
    %10292 = vmatmul.bf16.gmra.mxu0 %v6581
    %v10293 = vpop.f32.mrf.mxu0
    %v10294 = vadd.f32 %v10125, %v10293
    %v10295 = vpop.f32.mrf.mxu0
    %v10296 = vadd.f32 %v10127, %v10295
    %10297 = vmatmul.bf16.gmra.mxu0 %v6590
    %v10298 = vpop.f32.mrf.mxu0
    %v10299 = vadd.f32 %v10130, %v10298
    %v10300 = vpop.f32.mrf.mxu0
    %v10301 = vadd.f32 %v10132, %v10300
    %10302 = vmatmul.bf16.gmra.mxu0 %v6605
    %v10303 = vpop.f32.mrf.mxu0
    %v10304 = vadd.f32 %v10135, %v10303
    %v10305 = vpop.f32.mrf.mxu0
    %v10306 = vadd.f32 %v10137, %v10305
    %10307 = vdwg.mxu0
    %10308 = vmatpush.bf16.msra.mxu0 %v9527
    %10309 = vmatpush.bf16.msra.mxu0 %v9526
    %10310 = vmatpush.bf16.msra.mxu0 %v9525
    %10311 = vmatpush.bf16.msra.mxu0 %v9524
    %10312 = vmatpush.bf16.msra.mxu0 %v9523
    %10313 = vmatpush.bf16.msra.mxu0 %v9522
    %10314 = vmatpush.bf16.msra.mxu0 %v9521
    %10315 = vmatpush.bf16.msra.mxu0 %v9520
    %10316 = vmatmul.bf16.gmra.mxu0 %v7007
    %v10317 = vpop.f32.mrf.mxu0
    %v10318 = vadd.f32 %v10149, %v10317
    %v10319 = vpop.f32.mrf.mxu0
    %v10320 = vadd.f32 %v10151, %v10319
    %10321 = vmatmul.bf16.gmra.mxu0 %v7017
    %v10322 = vpop.f32.mrf.mxu0
    %v10323 = vadd.f32 %v10154, %v10322
    %v10324 = vpop.f32.mrf.mxu0
    %v10325 = vadd.f32 %v10156, %v10324
    %10326 = vmatmul.bf16.gmra.mxu0 %v7027
    %v10327 = vpop.f32.mrf.mxu0
    %v10328 = vadd.f32 %v10159, %v10327
    %v10329 = vpop.f32.mrf.mxu0
    %v10330 = vadd.f32 %v10161, %v10329
    %10331 = vmatmul.bf16.gmra.mxu0 %v7037
    %v10332 = vpop.f32.mrf.mxu0
    %v10333 = vadd.f32 %v10164, %v10332
    %v10334 = vpop.f32.mrf.mxu0
    %v10335 = vadd.f32 %v10166, %v10334
    %10336 = vmatmul.bf16.gmra.mxu0 %v7047
    %v10337 = vpop.f32.mrf.mxu0
    %v10338 = vadd.f32 %v10169, %v10337
    %v10339 = vpop.f32.mrf.mxu0
    %v10340 = vadd.f32 %v10171, %v10339
    %10341 = vmatmul.bf16.gmra.mxu0 %v7057
    %v10342 = vpop.f32.mrf.mxu0
    %v10343 = vadd.f32 %v10174, %v10342
    %v10344 = vpop.f32.mrf.mxu0
    %v10345 = vadd.f32 %v10176, %v10344
    %10346 = vmatmul.bf16.gmra.mxu0 %v7067
    %v10347 = vpop.f32.mrf.mxu0
    %v10348 = vadd.f32 %v10179, %v10347
    %v10349 = vpop.f32.mrf.mxu0
    %v10350 = vadd.f32 %v10181, %v10349
    %10351 = vmatmul.bf16.gmra.mxu0 %v7077
    %v10352 = vpop.f32.mrf.mxu0
    %v10353 = vadd.f32 %v10184, %v10352
    %v10354 = vpop.f32.mrf.mxu0
    %v10355 = vadd.f32 %v10186, %v10354
    %10356 = vmatmul.bf16.gmra.mxu0 %v7087
    %v10357 = vpop.f32.mrf.mxu0
    %v10358 = vadd.f32 %v10189, %v10357
    %v10359 = vpop.f32.mrf.mxu0
    %v10360 = vadd.f32 %v10191, %v10359
    %10361 = vmatmul.bf16.gmra.mxu0 %v7097
    %v10362 = vpop.f32.mrf.mxu0
    %v10363 = vadd.f32 %v10194, %v10362
    %v10364 = vpop.f32.mrf.mxu0
    %v10365 = vadd.f32 %v10196, %v10364
    %10366 = vmatmul.bf16.gmra.mxu0 %v7107
    %v10367 = vpop.f32.mrf.mxu0
    %v10368 = vadd.f32 %v10199, %v10367
    %v10369 = vpop.f32.mrf.mxu0
    %v10370 = vadd.f32 %v10201, %v10369
    %10371 = vmatmul.bf16.gmra.mxu0 %v7117
    %v10372 = vpop.f32.mrf.mxu0
    %v10373 = vadd.f32 %v10204, %v10372
    %v10374 = vpop.f32.mrf.mxu0
    %v10375 = vadd.f32 %v10206, %v10374
    %10376 = vmatmul.bf16.gmra.mxu0 %v7127
    %v10377 = vpop.f32.mrf.mxu0
    %v10378 = vadd.f32 %v10209, %v10377
    %v10379 = vpop.f32.mrf.mxu0
    %v10380 = vadd.f32 %v10211, %v10379
    %10381 = vmatmul.bf16.gmra.mxu0 %v7137
    %v10382 = vpop.f32.mrf.mxu0
    %v10383 = vadd.f32 %v10214, %v10382
    %v10384 = vpop.f32.mrf.mxu0
    %v10385 = vadd.f32 %v10216, %v10384
    %10386 = vmatmul.bf16.gmra.mxu0 %v7147
    %v10387 = vpop.f32.mrf.mxu0
    %v10388 = vadd.f32 %v10219, %v10387
    %v10389 = vpop.f32.mrf.mxu0
    %v10390 = vadd.f32 %v10221, %v10389
    %10391 = vmatmul.bf16.gmra.mxu0 %v7157
    %v10392 = vpop.f32.mrf.mxu0
    %v10393 = vadd.f32 %v10224, %v10392
    %v10394 = vpop.f32.mrf.mxu0
    %v10395 = vadd.f32 %v10226, %v10394
    %10396 = vmatmul.bf16.gmra.mxu0 %v7167
    %v10397 = vpop.f32.mrf.mxu0
    %v10398 = vadd.f32 %v10229, %v10397
    %v10399 = vpop.f32.mrf.mxu0
    %v10400 = vadd.f32 %v10231, %v10399
    %10401 = vmatmul.bf16.gmra.mxu0 %v7177
    %v10402 = vpop.f32.mrf.mxu0
    %v10403 = vadd.f32 %v10234, %v10402
    %v10404 = vpop.f32.mrf.mxu0
    %v10405 = vadd.f32 %v10236, %v10404
    %10406 = vmatmul.bf16.gmra.mxu0 %v7187
    %v10407 = vpop.f32.mrf.mxu0
    %v10408 = vadd.f32 %v10239, %v10407
    %v10409 = vpop.f32.mrf.mxu0
    %v10410 = vadd.f32 %v10241, %v10409
    %10411 = vmatmul.bf16.gmra.mxu0 %v7197
    %v10412 = vpop.f32.mrf.mxu0
    %v10413 = vadd.f32 %v10244, %v10412
    %v10414 = vpop.f32.mrf.mxu0
    %v10415 = vadd.f32 %v10246, %v10414
    %10416 = vmatmul.bf16.gmra.mxu0 %v7207
    %v10417 = vpop.f32.mrf.mxu0
    %v10418 = vadd.f32 %v10249, %v10417
    %v10419 = vpop.f32.mrf.mxu0
    %v10420 = vadd.f32 %v10251, %v10419
    %10421 = vmatmul.bf16.gmra.mxu0 %v7217
    %v10422 = vpop.f32.mrf.mxu0
    %v10423 = vadd.f32 %v10254, %v10422
    %v10424 = vpop.f32.mrf.mxu0
    %v10425 = vadd.f32 %v10256, %v10424
    %10426 = vmatmul.bf16.gmra.mxu0 %v7227
    %v10427 = vpop.f32.mrf.mxu0
    %v10428 = vadd.f32 %v10259, %v10427
    %v10429 = vpop.f32.mrf.mxu0
    %v10430 = vadd.f32 %v10261, %v10429
    %10431 = vmatmul.bf16.gmra.mxu0 %v7237
    %v10432 = vpop.f32.mrf.mxu0
    %v10433 = vadd.f32 %v10264, %v10432
    %v10434 = vpop.f32.mrf.mxu0
    %v10435 = vadd.f32 %v10266, %v10434
    %10436 = vmatmul.bf16.gmra.mxu0 %v7247
    %v10437 = vpop.f32.mrf.mxu0
    %v10438 = vadd.f32 %v10269, %v10437
    %v10439 = vpop.f32.mrf.mxu0
    %v10440 = vadd.f32 %v10271, %v10439
    %10441 = vmatmul.bf16.gmra.mxu0 %v7257
    %v10442 = vpop.f32.mrf.mxu0
    %v10443 = vadd.f32 %v10274, %v10442
    %v10444 = vpop.f32.mrf.mxu0
    %v10445 = vadd.f32 %v10276, %v10444
    %10446 = vmatmul.bf16.gmra.mxu0 %v7267
    %v10447 = vpop.f32.mrf.mxu0
    %v10448 = vadd.f32 %v10279, %v10447
    %v10449 = vpop.f32.mrf.mxu0
    %v10450 = vadd.f32 %v10281, %v10449
    %10451 = vmatmul.bf16.gmra.mxu0 %v7277
    %v10452 = vpop.f32.mrf.mxu0
    %v10453 = vadd.f32 %v10284, %v10452
    %v10454 = vpop.f32.mrf.mxu0
    %v10455 = vadd.f32 %v10286, %v10454
    %10456 = vmatmul.bf16.gmra.mxu0 %v7287
    %v10457 = vpop.f32.mrf.mxu0
    %v10458 = vadd.f32 %v10289, %v10457
    %v10459 = vpop.f32.mrf.mxu0
    %v10460 = vadd.f32 %v10291, %v10459
    %10461 = vmatmul.bf16.gmra.mxu0 %v7297
    %v10462 = vpop.f32.mrf.mxu0
    %v10463 = vadd.f32 %v10294, %v10462
    %v10464 = vpop.f32.mrf.mxu0
    %v10465 = vadd.f32 %v10296, %v10464
    %10466 = vmatmul.bf16.gmra.mxu0 %v7307
    %v10467 = vpop.f32.mrf.mxu0
    %v10468 = vadd.f32 %v10299, %v10467
    %v10469 = vpop.f32.mrf.mxu0
    %v10470 = vadd.f32 %v10301, %v10469
    %10471 = vmatmul.bf16.gmra.mxu0 %v7317
    %v10472 = vpop.f32.mrf.mxu0
    %v10473 = vadd.f32 %v10304, %v10472
    %v10474 = vpop.f32.mrf.mxu0
    %v10475 = vadd.f32 %v10306, %v10474
    %10476 = vdwg.mxu0
    %10477 = vmatpush.bf16.msra.mxu0 %v9535
    %10478 = vmatpush.bf16.msra.mxu0 %v9534
    %10479 = vmatpush.bf16.msra.mxu0 %v9533
    %10480 = vmatpush.bf16.msra.mxu0 %v9532
    %10481 = vmatpush.bf16.msra.mxu0 %v9531
    %10482 = vmatpush.bf16.msra.mxu0 %v9530
    %10483 = vmatpush.bf16.msra.mxu0 %v9529
    %10484 = vmatpush.bf16.msra.mxu0 %v9528
    %10485 = vmatmul.bf16.gmra.mxu0 %v7365
    %v10486 = vpop.f32.mrf.mxu0
    %v10487 = vadd.f32 %v10318, %v10486
    %v10488 = vpop.f32.mrf.mxu0
    %v10489 = vadd.f32 %v10320, %v10488
    %10490 = vmatmul.bf16.gmra.mxu0 %v7374
    %v10491 = vpop.f32.mrf.mxu0
    %v10492 = vadd.f32 %v10323, %v10491
    %v10493 = vpop.f32.mrf.mxu0
    %v10494 = vadd.f32 %v10325, %v10493
    %10495 = vmatmul.bf16.gmra.mxu0 %v7383
    %v10496 = vpop.f32.mrf.mxu0
    %v10497 = vadd.f32 %v10328, %v10496
    %v10498 = vpop.f32.mrf.mxu0
    %v10499 = vadd.f32 %v10330, %v10498
    %10500 = vmatmul.bf16.gmra.mxu0 %v7392
    %v10501 = vpop.f32.mrf.mxu0
    %v10502 = vadd.f32 %v10333, %v10501
    %v10503 = vpop.f32.mrf.mxu0
    %v10504 = vadd.f32 %v10335, %v10503
    %10505 = vmatmul.bf16.gmra.mxu0 %v7401
    %v10506 = vpop.f32.mrf.mxu0
    %v10507 = vadd.f32 %v10338, %v10506
    %v10508 = vpop.f32.mrf.mxu0
    %v10509 = vadd.f32 %v10340, %v10508
    %10510 = vmatmul.bf16.gmra.mxu0 %v7410
    %v10511 = vpop.f32.mrf.mxu0
    %v10512 = vadd.f32 %v10343, %v10511
    %v10513 = vpop.f32.mrf.mxu0
    %v10514 = vadd.f32 %v10345, %v10513
    %10515 = vmatmul.bf16.gmra.mxu0 %v7419
    %v10516 = vpop.f32.mrf.mxu0
    %v10517 = vadd.f32 %v10348, %v10516
    %v10518 = vpop.f32.mrf.mxu0
    %v10519 = vadd.f32 %v10350, %v10518
    %10520 = vmatmul.bf16.gmra.mxu0 %v7428
    %v10521 = vpop.f32.mrf.mxu0
    %v10522 = vadd.f32 %v10353, %v10521
    %v10523 = vpop.f32.mrf.mxu0
    %v10524 = vadd.f32 %v10355, %v10523
    %10525 = vmatmul.bf16.gmra.mxu0 %v7437
    %v10526 = vpop.f32.mrf.mxu0
    %v10527 = vadd.f32 %v10358, %v10526
    %v10528 = vpop.f32.mrf.mxu0
    %v10529 = vadd.f32 %v10360, %v10528
    %10530 = vmatmul.bf16.gmra.mxu0 %v7446
    %v10531 = vpop.f32.mrf.mxu0
    %v10532 = vadd.f32 %v10363, %v10531
    %v10533 = vpop.f32.mrf.mxu0
    %v10534 = vadd.f32 %v10365, %v10533
    %10535 = vmatmul.bf16.gmra.mxu0 %v7455
    %v10536 = vpop.f32.mrf.mxu0
    %v10537 = vadd.f32 %v10368, %v10536
    %v10538 = vpop.f32.mrf.mxu0
    %v10539 = vadd.f32 %v10370, %v10538
    %10540 = vmatmul.bf16.gmra.mxu0 %v7464
    %v10541 = vpop.f32.mrf.mxu0
    %v10542 = vadd.f32 %v10373, %v10541
    %v10543 = vpop.f32.mrf.mxu0
    %v10544 = vadd.f32 %v10375, %v10543
    %10545 = vmatmul.bf16.gmra.mxu0 %v7473
    %v10546 = vpop.f32.mrf.mxu0
    %v10547 = vadd.f32 %v10378, %v10546
    %v10548 = vpop.f32.mrf.mxu0
    %v10549 = vadd.f32 %v10380, %v10548
    %10550 = vmatmul.bf16.gmra.mxu0 %v7482
    %v10551 = vpop.f32.mrf.mxu0
    %v10552 = vadd.f32 %v10383, %v10551
    %v10553 = vpop.f32.mrf.mxu0
    %v10554 = vadd.f32 %v10385, %v10553
    %10555 = vmatmul.bf16.gmra.mxu0 %v7491
    %v10556 = vpop.f32.mrf.mxu0
    %v10557 = vadd.f32 %v10388, %v10556
    %v10558 = vpop.f32.mrf.mxu0
    %v10559 = vadd.f32 %v10390, %v10558
    %10560 = vmatmul.bf16.gmra.mxu0 %v7500
    %v10561 = vpop.f32.mrf.mxu0
    %v10562 = vadd.f32 %v10393, %v10561
    %v10563 = vpop.f32.mrf.mxu0
    %v10564 = vadd.f32 %v10395, %v10563
    %10565 = vmatmul.bf16.gmra.mxu0 %v7509
    %v10566 = vpop.f32.mrf.mxu0
    %v10567 = vadd.f32 %v10398, %v10566
    %v10568 = vpop.f32.mrf.mxu0
    %v10569 = vadd.f32 %v10400, %v10568
    %10570 = vmatmul.bf16.gmra.mxu0 %v7518
    %v10571 = vpop.f32.mrf.mxu0
    %v10572 = vadd.f32 %v10403, %v10571
    %v10573 = vpop.f32.mrf.mxu0
    %v10574 = vadd.f32 %v10405, %v10573
    %10575 = vmatmul.bf16.gmra.mxu0 %v7527
    %v10576 = vpop.f32.mrf.mxu0
    %v10577 = vadd.f32 %v10408, %v10576
    %v10578 = vpop.f32.mrf.mxu0
    %v10579 = vadd.f32 %v10410, %v10578
    %10580 = vmatmul.bf16.gmra.mxu0 %v7536
    %v10581 = vpop.f32.mrf.mxu0
    %v10582 = vadd.f32 %v10413, %v10581
    %v10583 = vpop.f32.mrf.mxu0
    %v10584 = vadd.f32 %v10415, %v10583
    %10585 = vmatmul.bf16.gmra.mxu0 %v7545
    %v10586 = vpop.f32.mrf.mxu0
    %v10587 = vadd.f32 %v10418, %v10586
    %v10588 = vpop.f32.mrf.mxu0
    %v10589 = vadd.f32 %v10420, %v10588
    %10590 = vmatmul.bf16.gmra.mxu0 %v7554
    %v10591 = vpop.f32.mrf.mxu0
    %v10592 = vadd.f32 %v10423, %v10591
    %v10593 = vpop.f32.mrf.mxu0
    %v10594 = vadd.f32 %v10425, %v10593
    %10595 = vmatmul.bf16.gmra.mxu0 %v7563
    %v10596 = vpop.f32.mrf.mxu0
    %v10597 = vadd.f32 %v10428, %v10596
    %v10598 = vpop.f32.mrf.mxu0
    %v10599 = vadd.f32 %v10430, %v10598
    %10600 = vmatmul.bf16.gmra.mxu0 %v7572
    %v10601 = vpop.f32.mrf.mxu0
    %v10602 = vadd.f32 %v10433, %v10601
    %v10603 = vpop.f32.mrf.mxu0
    %v10604 = vadd.f32 %v10435, %v10603
    %10605 = vmatmul.bf16.gmra.mxu0 %v7581
    %v10606 = vpop.f32.mrf.mxu0
    %v10607 = vadd.f32 %v10438, %v10606
    %v10608 = vpop.f32.mrf.mxu0
    %v10609 = vadd.f32 %v10440, %v10608
    %10610 = vmatmul.bf16.gmra.mxu0 %v7590
    %v10611 = vpop.f32.mrf.mxu0
    %v10612 = vadd.f32 %v10443, %v10611
    %v10613 = vpop.f32.mrf.mxu0
    %v10614 = vadd.f32 %v10445, %v10613
    %10615 = vmatmul.bf16.gmra.mxu0 %v7599
    %v10616 = vpop.f32.mrf.mxu0
    %v10617 = vadd.f32 %v10448, %v10616
    %v10618 = vpop.f32.mrf.mxu0
    %v10619 = vadd.f32 %v10450, %v10618
    %10620 = vmatmul.bf16.gmra.mxu0 %v7608
    %v10621 = vpop.f32.mrf.mxu0
    %v10622 = vadd.f32 %v10453, %v10621
    %v10623 = vpop.f32.mrf.mxu0
    %v10624 = vadd.f32 %v10455, %v10623
    %10625 = vmatmul.bf16.gmra.mxu0 %v7617
    %v10626 = vpop.f32.mrf.mxu0
    %v10627 = vadd.f32 %v10458, %v10626
    %v10628 = vpop.f32.mrf.mxu0
    %v10629 = vadd.f32 %v10460, %v10628
    %10630 = vmatmul.bf16.gmra.mxu0 %v7626
    %v10631 = vpop.f32.mrf.mxu0
    %v10632 = vadd.f32 %v10463, %v10631
    %v10633 = vpop.f32.mrf.mxu0
    %v10634 = vadd.f32 %v10465, %v10633
    %10635 = vmatmul.bf16.gmra.mxu0 %v7635
    %v10636 = vpop.f32.mrf.mxu0
    %v10637 = vadd.f32 %v10468, %v10636
    %v10638 = vpop.f32.mrf.mxu0
    %v10639 = vadd.f32 %v10470, %v10638
    %10640 = vmatmul.bf16.gmra.mxu0 %v7644
    %v10641 = vpop.f32.mrf.mxu0
    %v10642 = vadd.f32 %v10473, %v10641
    %v10643 = vpop.f32.mrf.mxu0
    %v10644 = vadd.f32 %v10475, %v10643
    %10645 = vdwg.mxu0
    %10646 = vmatpush.bf16.msra.mxu0 %v9543
    %10647 = vmatpush.bf16.msra.mxu0 %v9542
    %10648 = vmatpush.bf16.msra.mxu0 %v9541
    %10649 = vmatpush.bf16.msra.mxu0 %v9540
    %10650 = vmatpush.bf16.msra.mxu0 %v9539
    %10651 = vmatpush.bf16.msra.mxu0 %v9538
    %10652 = vmatpush.bf16.msra.mxu0 %v9537
    %10653 = vmatpush.bf16.msra.mxu0 %v9536
    %10654 = vmatmul.bf16.gmra.mxu0 %v7692
    %v10655 = vpop.f32.mrf.mxu0
    %v10656 = vadd.f32 %v10487, %v10655
    %v10657 = vpop.f32.mrf.mxu0
    %v10658 = vadd.f32 %v10489, %v10657
    %10659 = vmatmul.bf16.gmra.mxu0 %v7701
    %v10660 = vpop.f32.mrf.mxu0
    %v10661 = vadd.f32 %v10492, %v10660
    %v10662 = vpop.f32.mrf.mxu0
    %v10663 = vadd.f32 %v10494, %v10662
    %10664 = vmatmul.bf16.gmra.mxu0 %v7710
    %v10665 = vpop.f32.mrf.mxu0
    %v10666 = vadd.f32 %v10497, %v10665
    %v10667 = vpop.f32.mrf.mxu0
    %v10668 = vadd.f32 %v10499, %v10667
    %10669 = vmatmul.bf16.gmra.mxu0 %v7719
    %v10670 = vpop.f32.mrf.mxu0
    %v10671 = vadd.f32 %v10502, %v10670
    %v10672 = vpop.f32.mrf.mxu0
    %v10673 = vadd.f32 %v10504, %v10672
    %10674 = vmatmul.bf16.gmra.mxu0 %v7728
    %v10675 = vpop.f32.mrf.mxu0
    %v10676 = vadd.f32 %v10507, %v10675
    %v10677 = vpop.f32.mrf.mxu0
    %v10678 = vadd.f32 %v10509, %v10677
    %10679 = vmatmul.bf16.gmra.mxu0 %v7737
    %v10680 = vpop.f32.mrf.mxu0
    %v10681 = vadd.f32 %v10512, %v10680
    %v10682 = vpop.f32.mrf.mxu0
    %v10683 = vadd.f32 %v10514, %v10682
    %10684 = vmatmul.bf16.gmra.mxu0 %v7746
    %v10685 = vpop.f32.mrf.mxu0
    %v10686 = vadd.f32 %v10517, %v10685
    %v10687 = vpop.f32.mrf.mxu0
    %v10688 = vadd.f32 %v10519, %v10687
    %10689 = vmatmul.bf16.gmra.mxu0 %v7755
    %v10690 = vpop.f32.mrf.mxu0
    %v10691 = vadd.f32 %v10522, %v10690
    %v10692 = vpop.f32.mrf.mxu0
    %v10693 = vadd.f32 %v10524, %v10692
    %10694 = vmatmul.bf16.gmra.mxu0 %v7764
    %v10695 = vpop.f32.mrf.mxu0
    %v10696 = vadd.f32 %v10527, %v10695
    %v10697 = vpop.f32.mrf.mxu0
    %v10698 = vadd.f32 %v10529, %v10697
    %10699 = vmatmul.bf16.gmra.mxu0 %v7773
    %v10700 = vpop.f32.mrf.mxu0
    %v10701 = vadd.f32 %v10532, %v10700
    %v10702 = vpop.f32.mrf.mxu0
    %v10703 = vadd.f32 %v10534, %v10702
    %10704 = vmatmul.bf16.gmra.mxu0 %v7782
    %v10705 = vpop.f32.mrf.mxu0
    %v10706 = vadd.f32 %v10537, %v10705
    %v10707 = vpop.f32.mrf.mxu0
    %v10708 = vadd.f32 %v10539, %v10707
    %10709 = vmatmul.bf16.gmra.mxu0 %v7791
    %v10710 = vpop.f32.mrf.mxu0
    %v10711 = vadd.f32 %v10542, %v10710
    %v10712 = vpop.f32.mrf.mxu0
    %v10713 = vadd.f32 %v10544, %v10712
    %10714 = vmatmul.bf16.gmra.mxu0 %v7800
    %v10715 = vpop.f32.mrf.mxu0
    %v10716 = vadd.f32 %v10547, %v10715
    %v10717 = vpop.f32.mrf.mxu0
    %v10718 = vadd.f32 %v10549, %v10717
    %10719 = vmatmul.bf16.gmra.mxu0 %v7809
    %v10720 = vpop.f32.mrf.mxu0
    %v10721 = vadd.f32 %v10552, %v10720
    %v10722 = vpop.f32.mrf.mxu0
    %v10723 = vadd.f32 %v10554, %v10722
    %10724 = vmatmul.bf16.gmra.mxu0 %v7818
    %v10725 = vpop.f32.mrf.mxu0
    %v10726 = vadd.f32 %v10557, %v10725
    %v10727 = vpop.f32.mrf.mxu0
    %v10728 = vadd.f32 %v10559, %v10727
    %10729 = vmatmul.bf16.gmra.mxu0 %v7833
    %v10730 = vpop.f32.mrf.mxu0
    %v10731 = vadd.f32 %v10562, %v10730
    %v10732 = vpop.f32.mrf.mxu0
    %v10733 = vadd.f32 %v10564, %v10732
    %10734 = vmatmul.bf16.gmra.mxu0 %v7842
    %v10735 = vpop.f32.mrf.mxu0
    %v10736 = vadd.f32 %v10567, %v10735
    %v10737 = vpop.f32.mrf.mxu0
    %v10738 = vadd.f32 %v10569, %v10737
    %10739 = vmatmul.bf16.gmra.mxu0 %v7851
    %v10740 = vpop.f32.mrf.mxu0
    %v10741 = vadd.f32 %v10572, %v10740
    %v10742 = vpop.f32.mrf.mxu0
    %v10743 = vadd.f32 %v10574, %v10742
    %10744 = vmatmul.bf16.gmra.mxu0 %v7860
    %v10745 = vpop.f32.mrf.mxu0
    %v10746 = vadd.f32 %v10577, %v10745
    %v10747 = vpop.f32.mrf.mxu0
    %v10748 = vadd.f32 %v10579, %v10747
    %10749 = vmatmul.bf16.gmra.mxu0 %v7869
    %v10750 = vpop.f32.mrf.mxu0
    %v10751 = vadd.f32 %v10582, %v10750
    %v10752 = vpop.f32.mrf.mxu0
    %v10753 = vadd.f32 %v10584, %v10752
    %10754 = vmatmul.bf16.gmra.mxu0 %v7878
    %v10755 = vpop.f32.mrf.mxu0
    %v10756 = vadd.f32 %v10587, %v10755
    %v10757 = vpop.f32.mrf.mxu0
    %v10758 = vadd.f32 %v10589, %v10757
    %10759 = vmatmul.bf16.gmra.mxu0 %v7887
    %v10760 = vpop.f32.mrf.mxu0
    %v10761 = vadd.f32 %v10592, %v10760
    %v10762 = vpop.f32.mrf.mxu0
    %v10763 = vadd.f32 %v10594, %v10762
    %10764 = vmatmul.bf16.gmra.mxu0 %v7896
    %v10765 = vpop.f32.mrf.mxu0
    %v10766 = vadd.f32 %v10597, %v10765
    %v10767 = vpop.f32.mrf.mxu0
    %v10768 = vadd.f32 %v10599, %v10767
    %10769 = vmatmul.bf16.gmra.mxu0 %v7905
    %v10770 = vpop.f32.mrf.mxu0
    %v10771 = vadd.f32 %v10602, %v10770
    %v10772 = vpop.f32.mrf.mxu0
    %v10773 = vadd.f32 %v10604, %v10772
    %10774 = vmatmul.bf16.gmra.mxu0 %v7914
    %v10775 = vpop.f32.mrf.mxu0
    %v10776 = vadd.f32 %v10607, %v10775
    %v10777 = vpop.f32.mrf.mxu0
    %v10778 = vadd.f32 %v10609, %v10777
    %10779 = vmatmul.bf16.gmra.mxu0 %v7923
    %v10780 = vpop.f32.mrf.mxu0
    %v10781 = vadd.f32 %v10612, %v10780
    %v10782 = vpop.f32.mrf.mxu0
    %v10783 = vadd.f32 %v10614, %v10782
    %10784 = vmatmul.bf16.gmra.mxu0 %v7932
    %v10785 = vpop.f32.mrf.mxu0
    %v10786 = vadd.f32 %v10617, %v10785
    %v10787 = vpop.f32.mrf.mxu0
    %v10788 = vadd.f32 %v10619, %v10787
    %10789 = vmatmul.bf16.gmra.mxu0 %v7941
    %v10790 = vpop.f32.mrf.mxu0
    %v10791 = vadd.f32 %v10622, %v10790
    %v10792 = vpop.f32.mrf.mxu0
    %v10793 = vadd.f32 %v10624, %v10792
    %10794 = vmatmul.bf16.gmra.mxu0 %v7950
    %v10795 = vpop.f32.mrf.mxu0
    %v10796 = vadd.f32 %v10627, %v10795
    %v10797 = vpop.f32.mrf.mxu0
    %v10798 = vadd.f32 %v10629, %v10797
    %10799 = vmatmul.bf16.gmra.mxu0 %v7959
    %v10800 = vpop.f32.mrf.mxu0
    %v10801 = vadd.f32 %v10632, %v10800
    %v10802 = vpop.f32.mrf.mxu0
    %v10803 = vadd.f32 %v10634, %v10802
    %10804 = vmatmul.bf16.gmra.mxu0 %v7968
    %v10805 = vpop.f32.mrf.mxu0
    %v10806 = vadd.f32 %v10637, %v10805
    %v10807 = vpop.f32.mrf.mxu0
    %v10808 = vadd.f32 %v10639, %v10807
    %10809 = vmatmul.bf16.gmra.mxu0 %v7983
    %v10810 = vpop.f32.mrf.mxu0
    %v10811 = vadd.f32 %v10642, %v10810
    %v10812 = vpop.f32.mrf.mxu0
    %v10813 = vadd.f32 %v10644, %v10812
    %10814 = vdwg.mxu0
    %10815 = vmatpush.bf16.msra.mxu0 %v9551
    %10816 = vmatpush.bf16.msra.mxu0 %v9550
    %10817 = vmatpush.bf16.msra.mxu0 %v9549
    %10818 = vmatpush.bf16.msra.mxu0 %v9548
    %10819 = vmatpush.bf16.msra.mxu0 %v9547
    %10820 = vmatpush.bf16.msra.mxu0 %v9546
    %10821 = vmatpush.bf16.msra.mxu0 %v9545
    %10822 = vmatpush.bf16.msra.mxu0 %v9544
    %10823 = vmatmul.bf16.gmra.mxu0 %v8386
    %v10824 = vpop.f32.mrf.mxu0
    %v10825 = vadd.f32 %v10656, %v10824
    %v10826 = vpop.f32.mrf.mxu0
    %v10827 = vadd.f32 %v10658, %v10826
    %10828 = vmatmul.bf16.gmra.mxu0 %v8396
    %v10829 = vpop.f32.mrf.mxu0
    %v10830 = vadd.f32 %v10661, %v10829
    %v10831 = vpop.f32.mrf.mxu0
    %v10832 = vadd.f32 %v10663, %v10831
    %10833 = vmatmul.bf16.gmra.mxu0 %v8406
    %v10834 = vpop.f32.mrf.mxu0
    %v10835 = vadd.f32 %v10666, %v10834
    %v10836 = vpop.f32.mrf.mxu0
    %v10837 = vadd.f32 %v10668, %v10836
    %10838 = vmatmul.bf16.gmra.mxu0 %v8416
    %v10839 = vpop.f32.mrf.mxu0
    %v10840 = vadd.f32 %v10671, %v10839
    %v10841 = vpop.f32.mrf.mxu0
    %v10842 = vadd.f32 %v10673, %v10841
    %10843 = vmatmul.bf16.gmra.mxu0 %v8426
    %v10844 = vpop.f32.mrf.mxu0
    %v10845 = vadd.f32 %v10676, %v10844
    %v10846 = vpop.f32.mrf.mxu0
    %v10847 = vadd.f32 %v10678, %v10846
    %10848 = vmatmul.bf16.gmra.mxu0 %v8436
    %v10849 = vpop.f32.mrf.mxu0
    %v10850 = vadd.f32 %v10681, %v10849
    %v10851 = vpop.f32.mrf.mxu0
    %v10852 = vadd.f32 %v10683, %v10851
    %10853 = vmatmul.bf16.gmra.mxu0 %v8446
    %v10854 = vpop.f32.mrf.mxu0
    %v10855 = vadd.f32 %v10686, %v10854
    %v10856 = vpop.f32.mrf.mxu0
    %v10857 = vadd.f32 %v10688, %v10856
    %10858 = vmatmul.bf16.gmra.mxu0 %v8456
    %v10859 = vpop.f32.mrf.mxu0
    %v10860 = vadd.f32 %v10691, %v10859
    %v10861 = vpop.f32.mrf.mxu0
    %v10862 = vadd.f32 %v10693, %v10861
    %10863 = vmatmul.bf16.gmra.mxu0 %v8466
    %v10864 = vpop.f32.mrf.mxu0
    %v10865 = vadd.f32 %v10696, %v10864
    %v10866 = vpop.f32.mrf.mxu0
    %v10867 = vadd.f32 %v10698, %v10866
    %10868 = vmatmul.bf16.gmra.mxu0 %v8476
    %v10869 = vpop.f32.mrf.mxu0
    %v10870 = vadd.f32 %v10701, %v10869
    %v10871 = vpop.f32.mrf.mxu0
    %v10872 = vadd.f32 %v10703, %v10871
    %10873 = vmatmul.bf16.gmra.mxu0 %v8486
    %v10874 = vpop.f32.mrf.mxu0
    %v10875 = vadd.f32 %v10706, %v10874
    %v10876 = vpop.f32.mrf.mxu0
    %v10877 = vadd.f32 %v10708, %v10876
    %10878 = vmatmul.bf16.gmra.mxu0 %v8496
    %v10879 = vpop.f32.mrf.mxu0
    %v10880 = vadd.f32 %v10711, %v10879
    %v10881 = vpop.f32.mrf.mxu0
    %v10882 = vadd.f32 %v10713, %v10881
    %10883 = vmatmul.bf16.gmra.mxu0 %v8506
    %v10884 = vpop.f32.mrf.mxu0
    %v10885 = vadd.f32 %v10716, %v10884
    %v10886 = vpop.f32.mrf.mxu0
    %v10887 = vadd.f32 %v10718, %v10886
    %10888 = vmatmul.bf16.gmra.mxu0 %v8516
    %v10889 = vpop.f32.mrf.mxu0
    %v10890 = vadd.f32 %v10721, %v10889
    %v10891 = vpop.f32.mrf.mxu0
    %v10892 = vadd.f32 %v10723, %v10891
    %10893 = vmatmul.bf16.gmra.mxu0 %v8526
    %v10894 = vpop.f32.mrf.mxu0
    %v10895 = vadd.f32 %v10726, %v10894
    %v10896 = vpop.f32.mrf.mxu0
    %v10897 = vadd.f32 %v10728, %v10896
    %10898 = vmatmul.bf16.gmra.mxu0 %v8536
    %v10899 = vpop.f32.mrf.mxu0
    %v10900 = vadd.f32 %v10731, %v10899
    %v10901 = vpop.f32.mrf.mxu0
    %v10902 = vadd.f32 %v10733, %v10901
    %10903 = vmatmul.bf16.gmra.mxu0 %v8546
    %v10904 = vpop.f32.mrf.mxu0
    %v10905 = vadd.f32 %v10736, %v10904
    %v10906 = vpop.f32.mrf.mxu0
    %v10907 = vadd.f32 %v10738, %v10906
    %10908 = vmatmul.bf16.gmra.mxu0 %v8556
    %v10909 = vpop.f32.mrf.mxu0
    %v10910 = vadd.f32 %v10741, %v10909
    %v10911 = vpop.f32.mrf.mxu0
    %v10912 = vadd.f32 %v10743, %v10911
    %10913 = vmatmul.bf16.gmra.mxu0 %v8566
    %v10914 = vpop.f32.mrf.mxu0
    %v10915 = vadd.f32 %v10746, %v10914
    %v10916 = vpop.f32.mrf.mxu0
    %v10917 = vadd.f32 %v10748, %v10916
    %10918 = vmatmul.bf16.gmra.mxu0 %v8576
    %v10919 = vpop.f32.mrf.mxu0
    %v10920 = vadd.f32 %v10751, %v10919
    %v10921 = vpop.f32.mrf.mxu0
    %v10922 = vadd.f32 %v10753, %v10921
    %10923 = vmatmul.bf16.gmra.mxu0 %v8586
    %v10924 = vpop.f32.mrf.mxu0
    %v10925 = vadd.f32 %v10756, %v10924
    %v10926 = vpop.f32.mrf.mxu0
    %v10927 = vadd.f32 %v10758, %v10926
    %10928 = vmatmul.bf16.gmra.mxu0 %v8596
    %v10929 = vpop.f32.mrf.mxu0
    %v10930 = vadd.f32 %v10761, %v10929
    %v10931 = vpop.f32.mrf.mxu0
    %v10932 = vadd.f32 %v10763, %v10931
    %10933 = vmatmul.bf16.gmra.mxu0 %v8606
    %v10934 = vpop.f32.mrf.mxu0
    %v10935 = vadd.f32 %v10766, %v10934
    %v10936 = vpop.f32.mrf.mxu0
    %v10937 = vadd.f32 %v10768, %v10936
    %10938 = vmatmul.bf16.gmra.mxu0 %v8616
    %v10939 = vpop.f32.mrf.mxu0
    %v10940 = vadd.f32 %v10771, %v10939
    %v10941 = vpop.f32.mrf.mxu0
    %v10942 = vadd.f32 %v10773, %v10941
    %10943 = vmatmul.bf16.gmra.mxu0 %v8626
    %v10944 = vpop.f32.mrf.mxu0
    %v10945 = vadd.f32 %v10776, %v10944
    %v10946 = vpop.f32.mrf.mxu0
    %v10947 = vadd.f32 %v10778, %v10946
    %10948 = vmatmul.bf16.gmra.mxu0 %v8636
    %v10949 = vpop.f32.mrf.mxu0
    %v10950 = vadd.f32 %v10781, %v10949
    %v10951 = vpop.f32.mrf.mxu0
    %v10952 = vadd.f32 %v10783, %v10951
    %10953 = vmatmul.bf16.gmra.mxu0 %v8646
    %v10954 = vpop.f32.mrf.mxu0
    %v10955 = vadd.f32 %v10786, %v10954
    %v10956 = vpop.f32.mrf.mxu0
    %v10957 = vadd.f32 %v10788, %v10956
    %10958 = vmatmul.bf16.gmra.mxu0 %v8656
    %v10959 = vpop.f32.mrf.mxu0
    %v10960 = vadd.f32 %v10791, %v10959
    %v10961 = vpop.f32.mrf.mxu0
    %v10962 = vadd.f32 %v10793, %v10961
    %10963 = vmatmul.bf16.gmra.mxu0 %v8666
    %v10964 = vpop.f32.mrf.mxu0
    %v10965 = vadd.f32 %v10796, %v10964
    %v10966 = vpop.f32.mrf.mxu0
    %v10967 = vadd.f32 %v10798, %v10966
    %10968 = vmatmul.bf16.gmra.mxu0 %v8676
    %v10969 = vpop.f32.mrf.mxu0
    %v10970 = vadd.f32 %v10801, %v10969
    %v10971 = vpop.f32.mrf.mxu0
    %v10972 = vadd.f32 %v10803, %v10971
    %10973 = vmatmul.bf16.gmra.mxu0 %v8686
    %v10974 = vpop.f32.mrf.mxu0
    %v10975 = vadd.f32 %v10806, %v10974
    %v10976 = vpop.f32.mrf.mxu0
    %v10977 = vadd.f32 %v10808, %v10976
    %10978 = vmatmul.bf16.gmra.mxu0 %v8696
    %v10979 = vpop.f32.mrf.mxu0
    %v10980 = vadd.f32 %v10811, %v10979
    %v10981 = vpop.f32.mrf.mxu0
    %v10982 = vadd.f32 %v10813, %v10981
    %10983 = vdwg.mxu0
    %10984 = vmatpush.bf16.msra.mxu0 %v9559
    %10985 = vmatpush.bf16.msra.mxu0 %v9558
    %10986 = vmatpush.bf16.msra.mxu0 %v9557
    %10987 = vmatpush.bf16.msra.mxu0 %v9556
    %10988 = vmatpush.bf16.msra.mxu0 %v9555
    %10989 = vmatpush.bf16.msra.mxu0 %v9554
    %10990 = vmatpush.bf16.msra.mxu0 %v9553
    %10991 = vmatpush.bf16.msra.mxu0 %v9552
    %10992 = vmatmul.bf16.gmra.mxu0 %v8744
    %v10993 = vpop.f32.mrf.mxu0
    %v10994 = vadd.f32 %v10825, %v10993
    %v10995 = vpop.f32.mrf.mxu0
    %v10996 = vadd.f32 %v10827, %v10995
    %10997 = vmatmul.bf16.gmra.mxu0 %v8753
    %v10998 = vpop.f32.mrf.mxu0
    %v10999 = vadd.f32 %v10830, %v10998
    %v11000 = vpop.f32.mrf.mxu0
    %v11001 = vadd.f32 %v10832, %v11000
    %11002 = vmatmul.bf16.gmra.mxu0 %v8762
    %v11003 = vpop.f32.mrf.mxu0
    %v11004 = vadd.f32 %v10835, %v11003
    %v11005 = vpop.f32.mrf.mxu0
    %v11006 = vadd.f32 %v10837, %v11005
    %11007 = vmatmul.bf16.gmra.mxu0 %v8771
    %v11008 = vpop.f32.mrf.mxu0
    %v11009 = vadd.f32 %v10840, %v11008
    %v11010 = vpop.f32.mrf.mxu0
    %v11011 = vadd.f32 %v10842, %v11010
    %11012 = vmatmul.bf16.gmra.mxu0 %v8780
    %v11013 = vpop.f32.mrf.mxu0
    %v11014 = vadd.f32 %v10845, %v11013
    %v11015 = vpop.f32.mrf.mxu0
    %v11016 = vadd.f32 %v10847, %v11015
    %11017 = vmatmul.bf16.gmra.mxu0 %v8789
    %v11018 = vpop.f32.mrf.mxu0
    %v11019 = vadd.f32 %v10850, %v11018
    %v11020 = vpop.f32.mrf.mxu0
    %v11021 = vadd.f32 %v10852, %v11020
    %11022 = vmatmul.bf16.gmra.mxu0 %v8798
    %v11023 = vpop.f32.mrf.mxu0
    %v11024 = vadd.f32 %v10855, %v11023
    %v11025 = vpop.f32.mrf.mxu0
    %v11026 = vadd.f32 %v10857, %v11025
    %11027 = vmatmul.bf16.gmra.mxu0 %v8807
    %v11028 = vpop.f32.mrf.mxu0
    %v11029 = vadd.f32 %v10860, %v11028
    %v11030 = vpop.f32.mrf.mxu0
    %v11031 = vadd.f32 %v10862, %v11030
    %11032 = vmatmul.bf16.gmra.mxu0 %v8816
    %v11033 = vpop.f32.mrf.mxu0
    %v11034 = vadd.f32 %v10865, %v11033
    %v11035 = vpop.f32.mrf.mxu0
    %v11036 = vadd.f32 %v10867, %v11035
    %11037 = vmatmul.bf16.gmra.mxu0 %v8825
    %v11038 = vpop.f32.mrf.mxu0
    %v11039 = vadd.f32 %v10870, %v11038
    %v11040 = vpop.f32.mrf.mxu0
    %v11041 = vadd.f32 %v10872, %v11040
    %11042 = vmatmul.bf16.gmra.mxu0 %v8834
    %v11043 = vpop.f32.mrf.mxu0
    %v11044 = vadd.f32 %v10875, %v11043
    %v11045 = vpop.f32.mrf.mxu0
    %v11046 = vadd.f32 %v10877, %v11045
    %11047 = vmatmul.bf16.gmra.mxu0 %v8843
    %v11048 = vpop.f32.mrf.mxu0
    %v11049 = vadd.f32 %v10880, %v11048
    %v11050 = vpop.f32.mrf.mxu0
    %v11051 = vadd.f32 %v10882, %v11050
    %11052 = vmatmul.bf16.gmra.mxu0 %v8852
    %v11053 = vpop.f32.mrf.mxu0
    %v11054 = vadd.f32 %v10885, %v11053
    %v11055 = vpop.f32.mrf.mxu0
    %v11056 = vadd.f32 %v10887, %v11055
    %11057 = vmatmul.bf16.gmra.mxu0 %v8861
    %v11058 = vpop.f32.mrf.mxu0
    %v11059 = vadd.f32 %v10890, %v11058
    %v11060 = vpop.f32.mrf.mxu0
    %v11061 = vadd.f32 %v10892, %v11060
    %11062 = vmatmul.bf16.gmra.mxu0 %v8870
    %v11063 = vpop.f32.mrf.mxu0
    %v11064 = vadd.f32 %v10895, %v11063
    %v11065 = vpop.f32.mrf.mxu0
    %v11066 = vadd.f32 %v10897, %v11065
    %11067 = vmatmul.bf16.gmra.mxu0 %v8879
    %v11068 = vpop.f32.mrf.mxu0
    %v11069 = vadd.f32 %v10900, %v11068
    %v11070 = vpop.f32.mrf.mxu0
    %v11071 = vadd.f32 %v10902, %v11070
    %11072 = vmatmul.bf16.gmra.mxu0 %v8888
    %v11073 = vpop.f32.mrf.mxu0
    %v11074 = vadd.f32 %v10905, %v11073
    %v11075 = vpop.f32.mrf.mxu0
    %v11076 = vadd.f32 %v10907, %v11075
    %11077 = vmatmul.bf16.gmra.mxu0 %v8897
    %v11078 = vpop.f32.mrf.mxu0
    %v11079 = vadd.f32 %v10910, %v11078
    %v11080 = vpop.f32.mrf.mxu0
    %v11081 = vadd.f32 %v10912, %v11080
    %11082 = vmatmul.bf16.gmra.mxu0 %v8906
    %v11083 = vpop.f32.mrf.mxu0
    %v11084 = vadd.f32 %v10915, %v11083
    %v11085 = vpop.f32.mrf.mxu0
    %v11086 = vadd.f32 %v10917, %v11085
    %11087 = vmatmul.bf16.gmra.mxu0 %v8915
    %v11088 = vpop.f32.mrf.mxu0
    %v11089 = vadd.f32 %v10920, %v11088
    %v11090 = vpop.f32.mrf.mxu0
    %v11091 = vadd.f32 %v10922, %v11090
    %11092 = vmatmul.bf16.gmra.mxu0 %v8924
    %v11093 = vpop.f32.mrf.mxu0
    %v11094 = vadd.f32 %v10925, %v11093
    %v11095 = vpop.f32.mrf.mxu0
    %v11096 = vadd.f32 %v10927, %v11095
    %11097 = vmatmul.bf16.gmra.mxu0 %v8933
    %v11098 = vpop.f32.mrf.mxu0
    %v11099 = vadd.f32 %v10930, %v11098
    %v11100 = vpop.f32.mrf.mxu0
    %v11101 = vadd.f32 %v10932, %v11100
    %11102 = vmatmul.bf16.gmra.mxu0 %v8942
    %v11103 = vpop.f32.mrf.mxu0
    %v11104 = vadd.f32 %v10935, %v11103
    %v11105 = vpop.f32.mrf.mxu0
    %v11106 = vadd.f32 %v10937, %v11105
    %11107 = vmatmul.bf16.gmra.mxu0 %v8951
    %v11108 = vpop.f32.mrf.mxu0
    %v11109 = vadd.f32 %v10940, %v11108
    %v11110 = vpop.f32.mrf.mxu0
    %v11111 = vadd.f32 %v10942, %v11110
    %11112 = vmatmul.bf16.gmra.mxu0 %v8960
    %v11113 = vpop.f32.mrf.mxu0
    %v11114 = vadd.f32 %v10945, %v11113
    %v11115 = vpop.f32.mrf.mxu0
    %v11116 = vadd.f32 %v10947, %v11115
    %11117 = vmatmul.bf16.gmra.mxu0 %v8969
    %v11118 = vpop.f32.mrf.mxu0
    %v11119 = vadd.f32 %v10950, %v11118
    %v11120 = vpop.f32.mrf.mxu0
    %v11121 = vadd.f32 %v10952, %v11120
    %11122 = vmatmul.bf16.gmra.mxu0 %v8978
    %v11123 = vpop.f32.mrf.mxu0
    %v11124 = vadd.f32 %v10955, %v11123
    %v11125 = vpop.f32.mrf.mxu0
    %v11126 = vadd.f32 %v10957, %v11125
    %11127 = vmatmul.bf16.gmra.mxu0 %v8987
    %v11128 = vpop.f32.mrf.mxu0
    %v11129 = vadd.f32 %v10960, %v11128
    %v11130 = vpop.f32.mrf.mxu0
    %v11131 = vadd.f32 %v10962, %v11130
    %11132 = vmatmul.bf16.gmra.mxu0 %v8996
    %v11133 = vpop.f32.mrf.mxu0
    %v11134 = vadd.f32 %v10965, %v11133
    %v11135 = vpop.f32.mrf.mxu0
    %v11136 = vadd.f32 %v10967, %v11135
    %11137 = vmatmul.bf16.gmra.mxu0 %v9005
    %v11138 = vpop.f32.mrf.mxu0
    %v11139 = vadd.f32 %v10970, %v11138
    %v11140 = vpop.f32.mrf.mxu0
    %v11141 = vadd.f32 %v10972, %v11140
    %11142 = vmatmul.bf16.gmra.mxu0 %v9014
    %v11143 = vpop.f32.mrf.mxu0
    %v11144 = vadd.f32 %v10975, %v11143
    %v11145 = vpop.f32.mrf.mxu0
    %v11146 = vadd.f32 %v10977, %v11145
    %11147 = vmatmul.bf16.gmra.mxu0 %v9023
    %v11148 = vpop.f32.mrf.mxu0
    %v11149 = vadd.f32 %v10980, %v11148
    %v11150 = vpop.f32.mrf.mxu0
    %v11151 = vadd.f32 %v10982, %v11150
    %11152 = vdwg.mxu0
    %v11153 = vadd.f32 %v10994, %v10996
    %v11154 = vadd.f32 %v11153, %v10999
    %v11155 = vadd.f32 %v11154, %v11001
    %v11156 = vadd.f32 %v11155, %v11004
    %v11157 = vadd.f32 %v11156, %v11006
    %v11158 = vadd.f32 %v11157, %v11009
    %v11159 = vadd.f32 %v11158, %v11011
    %v11160 = vadd.f32 %v11159, %v11014
    %v11161 = vadd.f32 %v11160, %v11016
    %v11162 = vadd.f32 %v11161, %v11019
    %v11163 = vadd.f32 %v11162, %v11021
    %v11164 = vadd.f32 %v11163, %v11024
    %v11165 = vadd.f32 %v11164, %v11026
    %v11166 = vadd.f32 %v11165, %v11029
    %v11167 = vadd.f32 %v11166, %v11031
    %v11168 = vadd.f32 %v11167, %v11034
    %v11169 = vadd.f32 %v11168, %v11036
    %v11170 = vadd.f32 %v11169, %v11039
    %v11171 = vadd.f32 %v11170, %v11041
    %v11172 = vadd.f32 %v11171, %v11044
    %v11173 = vadd.f32 %v11172, %v11046
    %v11174 = vadd.f32 %v11173, %v11049
    %v11175 = vadd.f32 %v11174, %v11051
    %v11176 = vadd.f32 %v11175, %v11054
    %v11177 = vadd.f32 %v11176, %v11056
    %v11178 = vadd.f32 %v11177, %v11059
    %v11179 = vadd.f32 %v11178, %v11061
    %v11180 = vadd.f32 %v11179, %v11064
    %v11181 = vadd.f32 %v11180, %v11066
    %v11182 = vadd.f32 %v11181, %v11069
    %v11183 = vadd.f32 %v11182, %v11071
    %v11184 = vadd.f32 %v11183, %v11074
    %v11185 = vadd.f32 %v11184, %v11076
    %v11186 = vadd.f32 %v11185, %v11079
    %v11187 = vadd.f32 %v11186, %v11081
    %v11188 = vadd.f32 %v11187, %v11084
    %v11189 = vadd.f32 %v11188, %v11086
    %v11190 = vadd.f32 %v11189, %v11089
    %v11191 = vadd.f32 %v11190, %v11091
    %v11192 = vadd.f32 %v11191, %v11094
    %v11193 = vadd.f32 %v11192, %v11096
    %v11194 = vadd.f32 %v11193, %v11099
    %v11195 = vadd.f32 %v11194, %v11101
    %v11196 = vadd.f32 %v11195, %v11104
    %v11197 = vadd.f32 %v11196, %v11106
    %v11198 = vadd.f32 %v11197, %v11109
    %v11199 = vadd.f32 %v11198, %v11111
    %v11200 = vadd.f32 %v11199, %v11114
    %v11201 = vadd.f32 %v11200, %v11116
    %v11202 = vadd.f32 %v11201, %v11119
    %v11203 = vadd.f32 %v11202, %v11121
    %v11204 = vadd.f32 %v11203, %v11124
    %v11205 = vadd.f32 %v11204, %v11126
    %v11206 = vadd.f32 %v11205, %v11129
    %v11207 = vadd.f32 %v11206, %v11131
    %v11208 = vadd.f32 %v11207, %v11134
    %v11209 = vadd.f32 %v11208, %v11136
    %v11210 = vadd.f32 %v11209, %v11139
    %v11211 = vadd.f32 %v11210, %v11141
    %v11212 = vadd.f32 %v11211, %v11144
    %v11213 = vadd.f32 %v11212, %v11146
    %v11214 = vadd.f32 %v11213, %v11149
    %v11215 = vadd.f32 %v11214, %v11151
    %v11216 = vrot.slane %v11215, 4
    %v11217 = vadd.f32 %v11215, %v11216
    %v11218 = vrot.slane %v11217, 2
    %v11219 = vadd.f32 %v11217, %v11218
    %v11220 = vrot.slane %v11219, 1
    %v11221 = vadd.f32 %v11219, %v11220
    %v11222 = vmul.f32 %v10994, %v10994
    %v11223 = vmul.f32 %v10996, %v10996
    %v11224 = vmul.f32 %v10999, %v10999
    %v11225 = vmul.f32 %v11001, %v11001
    %v11226 = vmul.f32 %v11004, %v11004
    %v11227 = vmul.f32 %v11006, %v11006
    %v11228 = vmul.f32 %v11009, %v11009
    %v11229 = vmul.f32 %v11011, %v11011
    %v11230 = vmul.f32 %v11014, %v11014
    %v11231 = vmul.f32 %v11016, %v11016
    %v11232 = vmul.f32 %v11019, %v11019
    %v11233 = vmul.f32 %v11021, %v11021
    %v11234 = vmul.f32 %v11024, %v11024
    %v11235 = vmul.f32 %v11026, %v11026
    %v11236 = vmul.f32 %v11029, %v11029
    %v11237 = vmul.f32 %v11031, %v11031
    %v11238 = vmul.f32 %v11034, %v11034
    %v11239 = vmul.f32 %v11036, %v11036
    %v11240 = vmul.f32 %v11039, %v11039
    %v11241 = vmul.f32 %v11041, %v11041
    %v11242 = vmul.f32 %v11044, %v11044
    %v11243 = vmul.f32 %v11046, %v11046
    %v11244 = vmul.f32 %v11049, %v11049
    %v11245 = vmul.f32 %v11051, %v11051
    %v11246 = vmul.f32 %v11054, %v11054
    %v11247 = vmul.f32 %v11056, %v11056
    %v11248 = vmul.f32 %v11059, %v11059
    %v11249 = vmul.f32 %v11061, %v11061
    %v11250 = vmul.f32 %v11064, %v11064
    %v11251 = vmul.f32 %v11066, %v11066
    %v11252 = vmul.f32 %v11069, %v11069
    %v11253 = vmul.f32 %v11071, %v11071
    %v11254 = vmul.f32 %v11074, %v11074
    %v11255 = vmul.f32 %v11076, %v11076
    %v11256 = vmul.f32 %v11079, %v11079
    %v11257 = vmul.f32 %v11081, %v11081
    %v11258 = vmul.f32 %v11084, %v11084
    %v11259 = vmul.f32 %v11086, %v11086
    %v11260 = vmul.f32 %v11089, %v11089
    %v11261 = vmul.f32 %v11091, %v11091
    %v11262 = vmul.f32 %v11094, %v11094
    %v11263 = vmul.f32 %v11096, %v11096
    %v11264 = vmul.f32 %v11099, %v11099
    %v11265 = vmul.f32 %v11101, %v11101
    %v11266 = vmul.f32 %v11104, %v11104
    %v11267 = vmul.f32 %v11106, %v11106
    %v11268 = vmul.f32 %v11109, %v11109
    %v11269 = vmul.f32 %v11111, %v11111
    %v11270 = vmul.f32 %v11114, %v11114
    %v11271 = vmul.f32 %v11116, %v11116
    %v11272 = vmul.f32 %v11119, %v11119
    %v11273 = vmul.f32 %v11121, %v11121
    %v11274 = vmul.f32 %v11124, %v11124
    %v11275 = vmul.f32 %v11126, %v11126
    %v11276 = vmul.f32 %v11129, %v11129
    %v11277 = vmul.f32 %v11131, %v11131
    %v11278 = vmul.f32 %v11134, %v11134
    %v11279 = vmul.f32 %v11136, %v11136
    %v11280 = vmul.f32 %v11139, %v11139
    %v11281 = vmul.f32 %v11141, %v11141
    %v11282 = vmul.f32 %v11144, %v11144
    %v11283 = vmul.f32 %v11146, %v11146
    %v11284 = vmul.f32 %v11149, %v11149
    %v11285 = vmul.f32 %v11151, %v11151
    %v11286 = vadd.f32 %v11222, %v11223
    %v11287 = vadd.f32 %v11286, %v11224
    %v11288 = vadd.f32 %v11287, %v11225
    %v11289 = vadd.f32 %v11288, %v11226
    %v11290 = vadd.f32 %v11289, %v11227
    %v11291 = vadd.f32 %v11290, %v11228
    %v11292 = vadd.f32 %v11291, %v11229
    %v11293 = vadd.f32 %v11292, %v11230
    %v11294 = vadd.f32 %v11293, %v11231
    %v11295 = vadd.f32 %v11294, %v11232
    %v11296 = vadd.f32 %v11295, %v11233
    %v11297 = vadd.f32 %v11296, %v11234
    %v11298 = vadd.f32 %v11297, %v11235
    %v11299 = vadd.f32 %v11298, %v11236
    %v11300 = vadd.f32 %v11299, %v11237
    %v11301 = vadd.f32 %v11300, %v11238
    %v11302 = vadd.f32 %v11301, %v11239
    %v11303 = vadd.f32 %v11302, %v11240
    %v11304 = vadd.f32 %v11303, %v11241
    %v11305 = vadd.f32 %v11304, %v11242
    %v11306 = vadd.f32 %v11305, %v11243
    %v11307 = vadd.f32 %v11306, %v11244
    %v11308 = vadd.f32 %v11307, %v11245
    %v11309 = vadd.f32 %v11308, %v11246
    %v11310 = vadd.f32 %v11309, %v11247
    %v11311 = vadd.f32 %v11310, %v11248
    %v11312 = vadd.f32 %v11311, %v11249
    %v11313 = vadd.f32 %v11312, %v11250
    %v11314 = vadd.f32 %v11313, %v11251
    %v11315 = vadd.f32 %v11314, %v11252
    %v11316 = vadd.f32 %v11315, %v11253
    %v11317 = vadd.f32 %v11316, %v11254
    %v11318 = vadd.f32 %v11317, %v11255
    %v11319 = vadd.f32 %v11318, %v11256
    %v11320 = vadd.f32 %v11319, %v11257
    %v11321 = vadd.f32 %v11320, %v11258
    %v11322 = vadd.f32 %v11321, %v11259
    %v11323 = vadd.f32 %v11322, %v11260
    %v11324 = vadd.f32 %v11323, %v11261
    %v11325 = vadd.f32 %v11324, %v11262
    %v11326 = vadd.f32 %v11325, %v11263
    %v11327 = vadd.f32 %v11326, %v11264
    %v11328 = vadd.f32 %v11327, %v11265
    %v11329 = vadd.f32 %v11328, %v11266
    %v11330 = vadd.f32 %v11329, %v11267
    %v11331 = vadd.f32 %v11330, %v11268
    %v11332 = vadd.f32 %v11331, %v11269
    %v11333 = vadd.f32 %v11332, %v11270
    %v11334 = vadd.f32 %v11333, %v11271
    %v11335 = vadd.f32 %v11334, %v11272
    %v11336 = vadd.f32 %v11335, %v11273
    %v11337 = vadd.f32 %v11336, %v11274
    %v11338 = vadd.f32 %v11337, %v11275
    %v11339 = vadd.f32 %v11338, %v11276
    %v11340 = vadd.f32 %v11339, %v11277
    %v11341 = vadd.f32 %v11340, %v11278
    %v11342 = vadd.f32 %v11341, %v11279
    %v11343 = vadd.f32 %v11342, %v11280
    %v11344 = vadd.f32 %v11343, %v11281
    %v11345 = vadd.f32 %v11344, %v11282
    %v11346 = vadd.f32 %v11345, %v11283
    %v11347 = vadd.f32 %v11346, %v11284
    %v11348 = vadd.f32 %v11347, %v11285
    %v11349 = vrot.slane %v11348, 4
    %v11350 = vadd.f32 %v11348, %v11349
    %v11351 = vrot.slane %v11350, 2
    %v11352 = vadd.f32 %v11350, %v11351
    %v11353 = vrot.slane %v11352, 1
    %v11354 = vadd.f32 %v11352, %v11353
    %v11355 = vmul.f32 %v11221, 0.001953125
    %v11356 = vmul.f32 %v11354, 0.001953125
    %v11357 = vmul.f32 %v11355, %v11355
    %v11358 = vsub.f32 %v11356, %v11357
    %v11359 = vld [vmem:[%s8] sm:$0x1]
    %v11360 = vadd.f32 %v11358, 1e-05
    %v11361 = vrsqrt.pop %v11360
    %v11362 = vmul.f32 %v11361, %v11360
    %v11363 = vmul.f32 %v11362, %v11361
    %v11364 = vmul.f32 0.5, %v11363
    %v11365 = vsub.f32 1.5, %v11364
    %v11366 = vmul.f32 %v11361, %v11365
    %vm11367 = vweird.f32 %v11360
    %vm11368 = vweird.f32 %v11361
    %vm11369 = vmor %vm11367, %vm11368
    %v11370 = vsel %vm11369, %v11361, %v11366
    %v11371 = vmul.f32 %v11359, %v11370
    %v11372 = vld [vmem:[%s9] sm:$0x1]
    %v11373 = vmul.f32 %v11355, %v11371
    %v11374 = vsub.f32 %v11372, %v11373
    %v11376 = vperm.slane %v11371, 0
    %v11378 = vmul.f32 %v10994, %v11376
    %v11379 = vmul.f32 %v10996, %v11376
    %v11380 = vmul.f32 %v10999, %v11376
    %v11381 = vmul.f32 %v11001, %v11376
    %v11382 = vmul.f32 %v11004, %v11376
    %v11383 = vmul.f32 %v11006, %v11376
    %v11384 = vmul.f32 %v11009, %v11376
    %v11385 = vmul.f32 %v11011, %v11376
    %v11386 = vmul.f32 %v11014, %v11376
    %v11387 = vmul.f32 %v11016, %v11376
    %v11388 = vmul.f32 %v11019, %v11376
    %v11389 = vmul.f32 %v11021, %v11376
    %v11390 = vmul.f32 %v11024, %v11376
    %v11391 = vmul.f32 %v11026, %v11376
    %v11392 = vmul.f32 %v11029, %v11376
    %v11393 = vmul.f32 %v11031, %v11376
    %v11394 = vmul.f32 %v11034, %v11376
    %v11395 = vmul.f32 %v11036, %v11376
    %v11396 = vmul.f32 %v11039, %v11376
    %v11397 = vmul.f32 %v11041, %v11376
    %v11398 = vmul.f32 %v11044, %v11376
    %v11399 = vmul.f32 %v11046, %v11376
    %v11400 = vmul.f32 %v11049, %v11376
    %v11401 = vmul.f32 %v11051, %v11376
    %v11402 = vmul.f32 %v11054, %v11376
    %v11403 = vmul.f32 %v11056, %v11376
    %v11404 = vmul.f32 %v11059, %v11376
    %v11405 = vmul.f32 %v11061, %v11376
    %v11406 = vmul.f32 %v11064, %v11376
    %v11407 = vmul.f32 %v11066, %v11376
    %v11408 = vmul.f32 %v11069, %v11376
    %v11409 = vmul.f32 %v11071, %v11376
    %v11410 = vmul.f32 %v11074, %v11376
    %v11411 = vmul.f32 %v11076, %v11376
    %v11412 = vmul.f32 %v11079, %v11376
    %v11413 = vmul.f32 %v11081, %v11376
    %v11414 = vmul.f32 %v11084, %v11376
    %v11415 = vmul.f32 %v11086, %v11376
    %v11416 = vmul.f32 %v11089, %v11376
    %v11417 = vmul.f32 %v11091, %v11376
    %v11418 = vmul.f32 %v11094, %v11376
    %v11419 = vmul.f32 %v11096, %v11376
    %v11420 = vmul.f32 %v11099, %v11376
    %v11421 = vmul.f32 %v11101, %v11376
    %v11422 = vmul.f32 %v11104, %v11376
    %v11423 = vmul.f32 %v11106, %v11376
    %v11424 = vmul.f32 %v11109, %v11376
    %v11425 = vmul.f32 %v11111, %v11376
    %v11426 = vmul.f32 %v11114, %v11376
    %v11427 = vmul.f32 %v11116, %v11376
    %v11428 = vmul.f32 %v11119, %v11376
    %v11429 = vmul.f32 %v11121, %v11376
    %v11430 = vmul.f32 %v11124, %v11376
    %v11431 = vmul.f32 %v11126, %v11376
    %v11432 = vmul.f32 %v11129, %v11376
    %v11433 = vmul.f32 %v11131, %v11376
    %v11434 = vmul.f32 %v11134, %v11376
    %v11435 = vmul.f32 %v11136, %v11376
    %v11436 = vmul.f32 %v11139, %v11376
    %v11437 = vmul.f32 %v11141, %v11376
    %v11438 = vmul.f32 %v11144, %v11376
    %v11439 = vmul.f32 %v11146, %v11376
    %v11440 = vmul.f32 %v11149, %v11376
    %v11441 = vmul.f32 %v11151, %v11376
    %v11443 = vperm.slane %v11374, 0
    %v11445 = vadd.f32 %v11378, %v11443
    %v11446 = vadd.f32 %v11379, %v11443
    %v11447 = vadd.f32 %v11380, %v11443
    %v11448 = vadd.f32 %v11381, %v11443
    %v11449 = vadd.f32 %v11382, %v11443
    %v11450 = vadd.f32 %v11383, %v11443
    %v11451 = vadd.f32 %v11384, %v11443
    %v11452 = vadd.f32 %v11385, %v11443
    %v11453 = vadd.f32 %v11386, %v11443
    %v11454 = vadd.f32 %v11387, %v11443
    %v11455 = vadd.f32 %v11388, %v11443
    %v11456 = vadd.f32 %v11389, %v11443
    %v11457 = vadd.f32 %v11390, %v11443
    %v11458 = vadd.f32 %v11391, %v11443
    %v11459 = vadd.f32 %v11392, %v11443
    %v11460 = vadd.f32 %v11393, %v11443
    %v11461 = vadd.f32 %v11394, %v11443
    %v11462 = vadd.f32 %v11395, %v11443
    %v11463 = vadd.f32 %v11396, %v11443
    %v11464 = vadd.f32 %v11397, %v11443
    %v11465 = vadd.f32 %v11398, %v11443
    %v11466 = vadd.f32 %v11399, %v11443
    %v11467 = vadd.f32 %v11400, %v11443
    %v11468 = vadd.f32 %v11401, %v11443
    %v11469 = vadd.f32 %v11402, %v11443
    %v11470 = vadd.f32 %v11403, %v11443
    %v11471 = vadd.f32 %v11404, %v11443
    %v11472 = vadd.f32 %v11405, %v11443
    %v11473 = vadd.f32 %v11406, %v11443
    %v11474 = vadd.f32 %v11407, %v11443
    %v11475 = vadd.f32 %v11408, %v11443
    %v11476 = vadd.f32 %v11409, %v11443
    %v11477 = vadd.f32 %v11410, %v11443
    %v11478 = vadd.f32 %v11411, %v11443
    %v11479 = vadd.f32 %v11412, %v11443
    %v11480 = vadd.f32 %v11413, %v11443
    %v11481 = vadd.f32 %v11414, %v11443
    %v11482 = vadd.f32 %v11415, %v11443
    %v11483 = vadd.f32 %v11416, %v11443
    %v11484 = vadd.f32 %v11417, %v11443
    %v11485 = vadd.f32 %v11418, %v11443
    %v11486 = vadd.f32 %v11419, %v11443
    %v11487 = vadd.f32 %v11420, %v11443
    %v11488 = vadd.f32 %v11421, %v11443
    %v11489 = vadd.f32 %v11422, %v11443
    %v11490 = vadd.f32 %v11423, %v11443
    %v11491 = vadd.f32 %v11424, %v11443
    %v11492 = vadd.f32 %v11425, %v11443
    %v11493 = vadd.f32 %v11426, %v11443
    %v11494 = vadd.f32 %v11427, %v11443
    %v11495 = vadd.f32 %v11428, %v11443
    %v11496 = vadd.f32 %v11429, %v11443
    %v11497 = vadd.f32 %v11430, %v11443
    %v11498 = vadd.f32 %v11431, %v11443
    %v11499 = vadd.f32 %v11432, %v11443
    %v11500 = vadd.f32 %v11433, %v11443
    %v11501 = vadd.f32 %v11434, %v11443
    %v11502 = vadd.f32 %v11435, %v11443
    %v11503 = vadd.f32 %v11436, %v11443
    %v11504 = vadd.f32 %v11437, %v11443
    %v11505 = vadd.f32 %v11438, %v11443
    %v11506 = vadd.f32 %v11439, %v11443
    %v11507 = vadd.f32 %v11440, %v11443
    %v11508 = vadd.f32 %v11441, %v11443
    %v11509 = vld [vmem:[%s1] sm:$0xf]
    %v11510 = vld [vmem:[%s1 + $0x4] sm:$0xf]
    %v11511 = vld [vmem:[%s1 + $0x8] sm:$0xf]
    %v11512 = vld [vmem:[%s1 + $0xc] sm:$0xf]
    %v11513 = vld [vmem:[%s1 + $0x10] sm:$0xf]
    %v11514 = vld [vmem:[%s1 + $0x14] sm:$0xf]
    %v11515 = vld [vmem:[%s1 + $0x18] sm:$0xf]
    %v11516 = vld [vmem:[%s1 + $0x1c] sm:$0xf]
    %v11517 = vld [vmem:[%s1 + $0x20] sm:$0xf]
    %v11518 = vld [vmem:[%s1 + $0x24] sm:$0xf]
    %v11519 = vld [vmem:[%s1 + $0x28] sm:$0xf]
    %v11520 = vld [vmem:[%s1 + $0x2c] sm:$0xf]
    %v11521 = vld [vmem:[%s1 + $0x30] sm:$0xf]
    %v11522 = vld [vmem:[%s1 + $0x34] sm:$0xf]
    %v11523 = vld [vmem:[%s1 + $0x38] sm:$0xf]
    %v11524 = vld [vmem:[%s1 + $0x3c] sm:$0xf]
    %v11525 = vld [vmem:[%s1 + $0x40] sm:$0xf]
    %v11526 = vld [vmem:[%s1 + $0x44] sm:$0xf]
    %v11527 = vld [vmem:[%s1 + $0x48] sm:$0xf]
    %v11528 = vld [vmem:[%s1 + $0x4c] sm:$0xf]
    %v11529 = vld [vmem:[%s1 + $0x50] sm:$0xf]
    %v11530 = vld [vmem:[%s1 + $0x54] sm:$0xf]
    %v11531 = vld [vmem:[%s1 + $0x58] sm:$0xf]
    %v11532 = vld [vmem:[%s1 + $0x5c] sm:$0xf]
    %v11533 = vld [vmem:[%s1 + $0x60] sm:$0xf]
    %v11534 = vld [vmem:[%s1 + $0x64] sm:$0xf]
    %v11535 = vld [vmem:[%s1 + $0x68] sm:$0xf]
    %v11536 = vld [vmem:[%s1 + $0x6c] sm:$0xf]
    %v11537 = vld [vmem:[%s1 + $0x70] sm:$0xf]
    %v11538 = vld [vmem:[%s1 + $0x74] sm:$0xf]
    %v11539 = vld [vmem:[%s1 + $0x78] sm:$0xf]
    %v11540 = vld [vmem:[%s1 + $0x7c] sm:$0xf]
    %v11541 = vld [vmem:[%s1 + $0x80] sm:$0xf]
    %v11542 = vld [vmem:[%s1 + $0x84] sm:$0xf]
    %v11543 = vld [vmem:[%s1 + $0x88] sm:$0xf]
    %v11544 = vld [vmem:[%s1 + $0x8c] sm:$0xf]
    %v11545 = vld [vmem:[%s1 + $0x90] sm:$0xf]
    %v11546 = vld [vmem:[%s1 + $0x94] sm:$0xf]
    %v11547 = vld [vmem:[%s1 + $0x98] sm:$0xf]
    %v11548 = vld [vmem:[%s1 + $0x9c] sm:$0xf]
    %v11549 = vld [vmem:[%s1 + $0xa0] sm:$0xf]
    %v11550 = vld [vmem:[%s1 + $0xa4] sm:$0xf]
    %v11551 = vld [vmem:[%s1 + $0xa8] sm:$0xf]
    %v11552 = vld [vmem:[%s1 + $0xac] sm:$0xf]
    %v11553 = vld [vmem:[%s1 + $0xb0] sm:$0xf]
    %v11554 = vld [vmem:[%s1 + $0xb4] sm:$0xf]
    %v11555 = vld [vmem:[%s1 + $0xb8] sm:$0xf]
    %v11556 = vld [vmem:[%s1 + $0xbc] sm:$0xf]
    %v11557 = vld [vmem:[%s1 + $0xc0] sm:$0xf]
    %v11558 = vld [vmem:[%s1 + $0xc4] sm:$0xf]
    %v11559 = vld [vmem:[%s1 + $0xc8] sm:$0xf]
    %v11560 = vld [vmem:[%s1 + $0xcc] sm:$0xf]
    %v11561 = vld [vmem:[%s1 + $0xd0] sm:$0xf]
    %v11562 = vld [vmem:[%s1 + $0xd4] sm:$0xf]
    %v11563 = vld [vmem:[%s1 + $0xd8] sm:$0xf]
    %v11564 = vld [vmem:[%s1 + $0xdc] sm:$0xf]
    %v11565 = vld [vmem:[%s1 + $0xe0] sm:$0xf]
    %v11566 = vld [vmem:[%s1 + $0xe4] sm:$0xf]
    %v11567 = vld [vmem:[%s1 + $0xe8] sm:$0xf]
    %v11568 = vld [vmem:[%s1 + $0xec] sm:$0xf]
    %v11569 = vld [vmem:[%s1 + $0xf0] sm:$0xf]
    %v11570 = vld [vmem:[%s1 + $0xf4] sm:$0xf]
    %v11571 = vld [vmem:[%s1 + $0xf8] sm:$0xf]
    %v11572 = vld [vmem:[%s1 + $0xfc] sm:$0xf]
    %v11573 = vld [vmem:[%s5] sm:$0x3]
    %v11638 = vunpack.c.l.b16 %v11509
    %v11639 = vunpack.c.l.b16 %v11510
    %v11640 = vunpack.c.l.b16 %v11511
    %v11641 = vunpack.c.l.b16 %v11512
    %v11642 = vunpack.c.l.b16 %v11513
    %v11643 = vunpack.c.l.b16 %v11514
    %v11644 = vunpack.c.l.b16 %v11515
    %v11645 = vunpack.c.l.b16 %v11516
    %v11646 = vunpack.c.l.b16 %v11517
    %v11647 = vunpack.c.l.b16 %v11518
    %v11648 = vunpack.c.l.b16 %v11519
    %v11649 = vunpack.c.l.b16 %v11520
    %v11650 = vunpack.c.l.b16 %v11521
    %v11651 = vunpack.c.l.b16 %v11522
    %v11652 = vunpack.c.l.b16 %v11523
    %v11653 = vunpack.c.l.b16 %v11524
    %v11654 = vunpack.c.l.b16 %v11525
    %v11655 = vunpack.c.l.b16 %v11526
    %v11656 = vunpack.c.l.b16 %v11527
    %v11657 = vunpack.c.l.b16 %v11528
    %v11658 = vunpack.c.l.b16 %v11529
    %v11659 = vunpack.c.l.b16 %v11530
    %v11660 = vunpack.c.l.b16 %v11531
    %v11661 = vunpack.c.l.b16 %v11532
    %v11662 = vunpack.c.l.b16 %v11533
    %v11663 = vunpack.c.l.b16 %v11534
    %v11664 = vunpack.c.l.b16 %v11535
    %v11665 = vunpack.c.l.b16 %v11536
    %v11666 = vunpack.c.l.b16 %v11537
    %v11667 = vunpack.c.l.b16 %v11538
    %v11668 = vunpack.c.l.b16 %v11539
    %v11669 = vunpack.c.l.b16 %v11540
    %v11670 = vunpack.c.l.b16 %v11541
    %v11671 = vunpack.c.l.b16 %v11542
    %v11672 = vunpack.c.l.b16 %v11543
    %v11673 = vunpack.c.l.b16 %v11544
    %v11674 = vunpack.c.l.b16 %v11545
    %v11675 = vunpack.c.l.b16 %v11546
    %v11676 = vunpack.c.l.b16 %v11547
    %v11677 = vunpack.c.l.b16 %v11548
    %v11678 = vunpack.c.l.b16 %v11549
    %v11679 = vunpack.c.l.b16 %v11550
    %v11680 = vunpack.c.l.b16 %v11551
    %v11681 = vunpack.c.l.b16 %v11552
    %v11682 = vunpack.c.l.b16 %v11553
    %v11683 = vunpack.c.l.b16 %v11554
    %v11684 = vunpack.c.l.b16 %v11555
    %v11685 = vunpack.c.l.b16 %v11556
    %v11686 = vunpack.c.l.b16 %v11557
    %v11687 = vunpack.c.l.b16 %v11558
    %v11688 = vunpack.c.l.b16 %v11559
    %v11689 = vunpack.c.l.b16 %v11560
    %v11690 = vunpack.c.l.b16 %v11561
    %v11691 = vunpack.c.l.b16 %v11562
    %v11692 = vunpack.c.l.b16 %v11563
    %v11693 = vunpack.c.l.b16 %v11564
    %v11694 = vunpack.c.l.b16 %v11565
    %v11695 = vunpack.c.l.b16 %v11566
    %v11696 = vunpack.c.l.b16 %v11567
    %v11697 = vunpack.c.l.b16 %v11568
    %v11698 = vunpack.c.l.b16 %v11569
    %v11699 = vunpack.c.l.b16 %v11570
    %v11700 = vunpack.c.l.b16 %v11571
    %v11701 = vunpack.c.l.b16 %v11572
    %v11702 = vpack.c.b16 %v11639, %v11638
    %v11703 = vpack.c.b16 %v11641, %v11640
    %v11704 = vpack.c.b16 %v11643, %v11642
    %v11705 = vpack.c.b16 %v11645, %v11644
    %v11706 = vpack.c.b16 %v11647, %v11646
    %v11707 = vpack.c.b16 %v11649, %v11648
    %v11708 = vpack.c.b16 %v11651, %v11650
    %v11709 = vpack.c.b16 %v11653, %v11652
    %v11710 = vpack.c.b16 %v11655, %v11654
    %v11711 = vpack.c.b16 %v11657, %v11656
    %v11712 = vpack.c.b16 %v11659, %v11658
    %v11713 = vpack.c.b16 %v11661, %v11660
    %v11714 = vpack.c.b16 %v11663, %v11662
    %v11715 = vpack.c.b16 %v11665, %v11664
    %v11716 = vpack.c.b16 %v11667, %v11666
    %v11717 = vpack.c.b16 %v11669, %v11668
    %v11718 = vpack.c.b16 %v11671, %v11670
    %v11719 = vpack.c.b16 %v11673, %v11672
    %v11720 = vpack.c.b16 %v11675, %v11674
    %v11721 = vpack.c.b16 %v11677, %v11676
    %v11722 = vpack.c.b16 %v11679, %v11678
    %v11723 = vpack.c.b16 %v11681, %v11680
    %v11724 = vpack.c.b16 %v11683, %v11682
    %v11725 = vpack.c.b16 %v11685, %v11684
    %v11726 = vpack.c.b16 %v11687, %v11686
    %v11727 = vpack.c.b16 %v11689, %v11688
    %v11728 = vpack.c.b16 %v11691, %v11690
    %v11729 = vpack.c.b16 %v11693, %v11692
    %v11730 = vpack.c.b16 %v11695, %v11694
    %v11731 = vpack.c.b16 %v11697, %v11696
    %v11732 = vpack.c.b16 %v11699, %v11698
    %v11733 = vpack.c.b16 %v11701, %v11700
    %vm11734 = vcmask 31744
    %v11736 = vsel %vm11734, %v11702, 0
    %v11739 = vsel %vm11734, %v11703, 0
    %v11742 = vsel %vm11734, %v11704, 0
    %v11745 = vsel %vm11734, %v11705, 0
    %v11748 = vsel %vm11734, %v11706, 0
    %v11751 = vsel %vm11734, %v11707, 0
    %v11754 = vsel %vm11734, %v11708, 0
    %v11757 = vsel %vm11734, %v11709, 0
    %v11760 = vsel %vm11734, %v11710, 0
    %v11763 = vsel %vm11734, %v11711, 0
    %v11766 = vsel %vm11734, %v11712, 0
    %v11769 = vsel %vm11734, %v11713, 0
    %v11772 = vsel %vm11734, %v11714, 0
    %v11775 = vsel %vm11734, %v11715, 0
    %v11778 = vsel %vm11734, %v11716, 0
    %v11781 = vsel %vm11734, %v11717, 0
    %v11784 = vsel %vm11734, %v11718, 0
    %v11787 = vsel %vm11734, %v11719, 0
    %v11790 = vsel %vm11734, %v11720, 0
    %v11793 = vsel %vm11734, %v11721, 0
    %v11796 = vsel %vm11734, %v11722, 0
    %v11799 = vsel %vm11734, %v11723, 0
    %v11802 = vsel %vm11734, %v11724, 0
    %v11805 = vsel %vm11734, %v11725, 0
    %v11808 = vsel %vm11734, %v11726, 0
    %v11811 = vsel %vm11734, %v11727, 0
    %v11814 = vsel %vm11734, %v11728, 0
    %v11817 = vsel %vm11734, %v11729, 0
    %v11820 = vsel %vm11734, %v11730, 0
    %v11823 = vsel %vm11734, %v11731, 0
    %v11826 = vsel %vm11734, %v11732, 0
    %v11829 = vsel %vm11734, %v11733, 0
    %v11832 = vsel %vm2115, %v11573, 0
    %11834 = vmatpush.bf16.msra.mxu0 0
    %11835 = vmatpush.bf16.msra.mxu0 0
    %11836 = vmatpush.bf16.msra.mxu0 0
    %11837 = vmatpush.bf16.msra.mxu0 0
    %11838 = vmatpush.bf16.msra.mxu0 0
    %11839 = vmatpush.bf16.msra.mxu0 0
    %11840 = vmatpush.bf16.msra.mxu0 0
    %11841 = vmatpush.bf16.msra.mxu0 %v11832
    %11842 = vmatmul.bf16.gmra.mxu0 %v11736
    %v11843 = vpop.f32.mrf.mxu0
    %v11844 = vadd.f32 0.0, %v11843
    %v11845 = vpop.f32.mrf.mxu0
    %v11846 = vadd.f32 0.0, %v11845
    %11847 = vmatmul.bf16.gmra.mxu0 %v11739
    %v11848 = vpop.f32.mrf.mxu0
    %v11849 = vadd.f32 0.0, %v11848
    %v11850 = vpop.f32.mrf.mxu0
    %v11851 = vadd.f32 0.0, %v11850
    %11852 = vmatmul.bf16.gmra.mxu0 %v11742
    %v11853 = vpop.f32.mrf.mxu0
    %v11854 = vadd.f32 0.0, %v11853
    %v11855 = vpop.f32.mrf.mxu0
    %v11856 = vadd.f32 0.0, %v11855
    %11857 = vmatmul.bf16.gmra.mxu0 %v11745
    %v11858 = vpop.f32.mrf.mxu0
    %v11859 = vadd.f32 0.0, %v11858
    %v11860 = vpop.f32.mrf.mxu0
    %v11861 = vadd.f32 0.0, %v11860
    %11862 = vmatmul.bf16.gmra.mxu0 %v11748
    %v11863 = vpop.f32.mrf.mxu0
    %v11864 = vadd.f32 0.0, %v11863
    %v11865 = vpop.f32.mrf.mxu0
    %v11866 = vadd.f32 0.0, %v11865
    %11867 = vmatmul.bf16.gmra.mxu0 %v11751
    %v11868 = vpop.f32.mrf.mxu0
    %v11869 = vadd.f32 0.0, %v11868
    %v11870 = vpop.f32.mrf.mxu0
    %v11871 = vadd.f32 0.0, %v11870
    %11872 = vmatmul.bf16.gmra.mxu0 %v11754
    %v11873 = vpop.f32.mrf.mxu0
    %v11874 = vadd.f32 0.0, %v11873
    %v11875 = vpop.f32.mrf.mxu0
    %v11876 = vadd.f32 0.0, %v11875
    %11877 = vmatmul.bf16.gmra.mxu0 %v11757
    %v11878 = vpop.f32.mrf.mxu0
    %v11879 = vadd.f32 0.0, %v11878
    %v11880 = vpop.f32.mrf.mxu0
    %v11881 = vadd.f32 0.0, %v11880
    %11882 = vmatmul.bf16.gmra.mxu0 %v11760
    %v11883 = vpop.f32.mrf.mxu0
    %v11884 = vadd.f32 0.0, %v11883
    %v11885 = vpop.f32.mrf.mxu0
    %v11886 = vadd.f32 0.0, %v11885
    %11887 = vmatmul.bf16.gmra.mxu0 %v11763
    %v11888 = vpop.f32.mrf.mxu0
    %v11889 = vadd.f32 0.0, %v11888
    %v11890 = vpop.f32.mrf.mxu0
    %v11891 = vadd.f32 0.0, %v11890
    %11892 = vmatmul.bf16.gmra.mxu0 %v11766
    %v11893 = vpop.f32.mrf.mxu0
    %v11894 = vadd.f32 0.0, %v11893
    %v11895 = vpop.f32.mrf.mxu0
    %v11896 = vadd.f32 0.0, %v11895
    %11897 = vmatmul.bf16.gmra.mxu0 %v11769
    %v11898 = vpop.f32.mrf.mxu0
    %v11899 = vadd.f32 0.0, %v11898
    %v11900 = vpop.f32.mrf.mxu0
    %v11901 = vadd.f32 0.0, %v11900
    %11902 = vmatmul.bf16.gmra.mxu0 %v11772
    %v11903 = vpop.f32.mrf.mxu0
    %v11904 = vadd.f32 0.0, %v11903
    %v11905 = vpop.f32.mrf.mxu0
    %v11906 = vadd.f32 0.0, %v11905
    %11907 = vmatmul.bf16.gmra.mxu0 %v11775
    %v11908 = vpop.f32.mrf.mxu0
    %v11909 = vadd.f32 0.0, %v11908
    %v11910 = vpop.f32.mrf.mxu0
    %v11911 = vadd.f32 0.0, %v11910
    %11912 = vmatmul.bf16.gmra.mxu0 %v11778
    %v11913 = vpop.f32.mrf.mxu0
    %v11914 = vadd.f32 0.0, %v11913
    %v11915 = vpop.f32.mrf.mxu0
    %v11916 = vadd.f32 0.0, %v11915
    %11917 = vmatmul.bf16.gmra.mxu0 %v11781
    %v11918 = vpop.f32.mrf.mxu0
    %v11919 = vadd.f32 0.0, %v11918
    %v11920 = vpop.f32.mrf.mxu0
    %v11921 = vadd.f32 0.0, %v11920
    %11922 = vmatmul.bf16.gmra.mxu0 %v11784
    %v11923 = vpop.f32.mrf.mxu0
    %v11924 = vadd.f32 0.0, %v11923
    %v11925 = vpop.f32.mrf.mxu0
    %v11926 = vadd.f32 0.0, %v11925
    %11927 = vmatmul.bf16.gmra.mxu0 %v11787
    %v11928 = vpop.f32.mrf.mxu0
    %v11929 = vadd.f32 0.0, %v11928
    %v11930 = vpop.f32.mrf.mxu0
    %v11931 = vadd.f32 0.0, %v11930
    %11932 = vmatmul.bf16.gmra.mxu0 %v11790
    %v11933 = vpop.f32.mrf.mxu0
    %v11934 = vadd.f32 0.0, %v11933
    %v11935 = vpop.f32.mrf.mxu0
    %v11936 = vadd.f32 0.0, %v11935
    %11937 = vmatmul.bf16.gmra.mxu0 %v11793
    %v11938 = vpop.f32.mrf.mxu0
    %v11939 = vadd.f32 0.0, %v11938
    %v11940 = vpop.f32.mrf.mxu0
    %v11941 = vadd.f32 0.0, %v11940
    %11942 = vmatmul.bf16.gmra.mxu0 %v11796
    %v11943 = vpop.f32.mrf.mxu0
    %v11944 = vadd.f32 0.0, %v11943
    %v11945 = vpop.f32.mrf.mxu0
    %v11946 = vadd.f32 0.0, %v11945
    %11947 = vmatmul.bf16.gmra.mxu0 %v11799
    %v11948 = vpop.f32.mrf.mxu0
    %v11949 = vadd.f32 0.0, %v11948
    %v11950 = vpop.f32.mrf.mxu0
    %v11951 = vadd.f32 0.0, %v11950
    %11952 = vmatmul.bf16.gmra.mxu0 %v11802
    %v11953 = vpop.f32.mrf.mxu0
    %v11954 = vadd.f32 0.0, %v11953
    %v11955 = vpop.f32.mrf.mxu0
    %v11956 = vadd.f32 0.0, %v11955
    %11957 = vmatmul.bf16.gmra.mxu0 %v11805
    %v11958 = vpop.f32.mrf.mxu0
    %v11959 = vadd.f32 0.0, %v11958
    %v11960 = vpop.f32.mrf.mxu0
    %v11961 = vadd.f32 0.0, %v11960
    %11962 = vmatmul.bf16.gmra.mxu0 %v11808
    %v11963 = vpop.f32.mrf.mxu0
    %v11964 = vadd.f32 0.0, %v11963
    %v11965 = vpop.f32.mrf.mxu0
    %v11966 = vadd.f32 0.0, %v11965
    %11967 = vmatmul.bf16.gmra.mxu0 %v11811
    %v11968 = vpop.f32.mrf.mxu0
    %v11969 = vadd.f32 0.0, %v11968
    %v11970 = vpop.f32.mrf.mxu0
    %v11971 = vadd.f32 0.0, %v11970
    %11972 = vmatmul.bf16.gmra.mxu0 %v11814
    %v11973 = vpop.f32.mrf.mxu0
    %v11974 = vadd.f32 0.0, %v11973
    %v11975 = vpop.f32.mrf.mxu0
    %v11976 = vadd.f32 0.0, %v11975
    %11977 = vmatmul.bf16.gmra.mxu0 %v11817
    %v11978 = vpop.f32.mrf.mxu0
    %v11979 = vadd.f32 0.0, %v11978
    %v11980 = vpop.f32.mrf.mxu0
    %v11981 = vadd.f32 0.0, %v11980
    %11982 = vmatmul.bf16.gmra.mxu0 %v11820
    %v11983 = vpop.f32.mrf.mxu0
    %v11984 = vadd.f32 0.0, %v11983
    %v11985 = vpop.f32.mrf.mxu0
    %v11986 = vadd.f32 0.0, %v11985
    %11987 = vmatmul.bf16.gmra.mxu0 %v11823
    %v11988 = vpop.f32.mrf.mxu0
    %v11989 = vadd.f32 0.0, %v11988
    %v11990 = vpop.f32.mrf.mxu0
    %v11991 = vadd.f32 0.0, %v11990
    %11992 = vmatmul.bf16.gmra.mxu0 %v11826
    %v11993 = vpop.f32.mrf.mxu0
    %v11994 = vadd.f32 0.0, %v11993
    %v11995 = vpop.f32.mrf.mxu0
    %v11996 = vadd.f32 0.0, %v11995
    %11997 = vmatmul.bf16.gmra.mxu0 %v11829
    %v11998 = vpop.f32.mrf.mxu0
    %v11999 = vadd.f32 0.0, %v11998
    %v12000 = vpop.f32.mrf.mxu0
    %v12001 = vadd.f32 0.0, %v12000
    %12002 = vdwg.mxu0
    %v12003 = vadd.f32 %v11844, %v11846
    %v12004 = vadd.f32 %v12003, %v11849
    %v12005 = vadd.f32 %v12004, %v11851
    %v12006 = vadd.f32 %v12005, %v11854
    %v12007 = vadd.f32 %v12006, %v11856
    %v12008 = vadd.f32 %v12007, %v11859
    %v12009 = vadd.f32 %v12008, %v11861
    %v12010 = vadd.f32 %v12009, %v11864
    %v12011 = vadd.f32 %v12010, %v11866
    %v12012 = vadd.f32 %v12011, %v11869
    %v12013 = vadd.f32 %v12012, %v11871
    %v12014 = vadd.f32 %v12013, %v11874
    %v12015 = vadd.f32 %v12014, %v11876
    %v12016 = vadd.f32 %v12015, %v11879
    %v12017 = vadd.f32 %v12016, %v11881
    %v12018 = vadd.f32 %v12017, %v11884
    %v12019 = vadd.f32 %v12018, %v11886
    %v12020 = vadd.f32 %v12019, %v11889
    %v12021 = vadd.f32 %v12020, %v11891
    %v12022 = vadd.f32 %v12021, %v11894
    %v12023 = vadd.f32 %v12022, %v11896
    %v12024 = vadd.f32 %v12023, %v11899
    %v12025 = vadd.f32 %v12024, %v11901
    %v12026 = vadd.f32 %v12025, %v11904
    %v12027 = vadd.f32 %v12026, %v11906
    %v12028 = vadd.f32 %v12027, %v11909
    %v12029 = vadd.f32 %v12028, %v11911
    %v12030 = vadd.f32 %v12029, %v11914
    %v12031 = vadd.f32 %v12030, %v11916
    %v12032 = vadd.f32 %v12031, %v11919
    %v12033 = vadd.f32 %v12032, %v11921
    %v12034 = vadd.f32 %v12033, %v11924
    %v12035 = vadd.f32 %v12034, %v11926
    %v12036 = vadd.f32 %v12035, %v11929
    %v12037 = vadd.f32 %v12036, %v11931
    %v12038 = vadd.f32 %v12037, %v11934
    %v12039 = vadd.f32 %v12038, %v11936
    %v12040 = vadd.f32 %v12039, %v11939
    %v12041 = vadd.f32 %v12040, %v11941
    %v12042 = vadd.f32 %v12041, %v11944
    %v12043 = vadd.f32 %v12042, %v11946
    %v12044 = vadd.f32 %v12043, %v11949
    %v12045 = vadd.f32 %v12044, %v11951
    %v12046 = vadd.f32 %v12045, %v11954
    %v12047 = vadd.f32 %v12046, %v11956
    %v12048 = vadd.f32 %v12047, %v11959
    %v12049 = vadd.f32 %v12048, %v11961
    %v12050 = vadd.f32 %v12049, %v11964
    %v12051 = vadd.f32 %v12050, %v11966
    %v12052 = vadd.f32 %v12051, %v11969
    %v12053 = vadd.f32 %v12052, %v11971
    %v12054 = vadd.f32 %v12053, %v11974
    %v12055 = vadd.f32 %v12054, %v11976
    %v12056 = vadd.f32 %v12055, %v11979
    %v12057 = vadd.f32 %v12056, %v11981
    %v12058 = vadd.f32 %v12057, %v11984
    %v12059 = vadd.f32 %v12058, %v11986
    %v12060 = vadd.f32 %v12059, %v11989
    %v12061 = vadd.f32 %v12060, %v11991
    %v12062 = vadd.f32 %v12061, %v11994
    %v12063 = vadd.f32 %v12062, %v11996
    %v12064 = vadd.f32 %v12063, %v11999
    %v12065 = vadd.f32 %v12064, %v12001
    %v12066 = vrot.slane %v12065, 4
    %v12067 = vadd.f32 %v12065, %v12066
    %v12068 = vrot.slane %v12067, 2
    %v12069 = vadd.f32 %v12067, %v12068
    %v12070 = vrot.slane %v12069, 1
    %v12071 = vadd.f32 %v12069, %v12070
    %v12072 = vmul.f32 %v11844, %v11844
    %v12073 = vmul.f32 %v11846, %v11846
    %v12074 = vmul.f32 %v11849, %v11849
    %v12075 = vmul.f32 %v11851, %v11851
    %v12076 = vmul.f32 %v11854, %v11854
    %v12077 = vmul.f32 %v11856, %v11856
    %v12078 = vmul.f32 %v11859, %v11859
    %v12079 = vmul.f32 %v11861, %v11861
    %v12080 = vmul.f32 %v11864, %v11864
    %v12081 = vmul.f32 %v11866, %v11866
    %v12082 = vmul.f32 %v11869, %v11869
    %v12083 = vmul.f32 %v11871, %v11871
    %v12084 = vmul.f32 %v11874, %v11874
    %v12085 = vmul.f32 %v11876, %v11876
    %v12086 = vmul.f32 %v11879, %v11879
    %v12087 = vmul.f32 %v11881, %v11881
    %v12088 = vmul.f32 %v11884, %v11884
    %v12089 = vmul.f32 %v11886, %v11886
    %v12090 = vmul.f32 %v11889, %v11889
    %v12091 = vmul.f32 %v11891, %v11891
    %v12092 = vmul.f32 %v11894, %v11894
    %v12093 = vmul.f32 %v11896, %v11896
    %v12094 = vmul.f32 %v11899, %v11899
    %v12095 = vmul.f32 %v11901, %v11901
    %v12096 = vmul.f32 %v11904, %v11904
    %v12097 = vmul.f32 %v11906, %v11906
    %v12098 = vmul.f32 %v11909, %v11909
    %v12099 = vmul.f32 %v11911, %v11911
    %v12100 = vmul.f32 %v11914, %v11914
    %v12101 = vmul.f32 %v11916, %v11916
    %v12102 = vmul.f32 %v11919, %v11919
    %v12103 = vmul.f32 %v11921, %v11921
    %v12104 = vmul.f32 %v11924, %v11924
    %v12105 = vmul.f32 %v11926, %v11926
    %v12106 = vmul.f32 %v11929, %v11929
    %v12107 = vmul.f32 %v11931, %v11931
    %v12108 = vmul.f32 %v11934, %v11934
    %v12109 = vmul.f32 %v11936, %v11936
    %v12110 = vmul.f32 %v11939, %v11939
    %v12111 = vmul.f32 %v11941, %v11941
    %v12112 = vmul.f32 %v11944, %v11944
    %v12113 = vmul.f32 %v11946, %v11946
    %v12114 = vmul.f32 %v11949, %v11949
    %v12115 = vmul.f32 %v11951, %v11951
    %v12116 = vmul.f32 %v11954, %v11954
    %v12117 = vmul.f32 %v11956, %v11956
    %v12118 = vmul.f32 %v11959, %v11959
    %v12119 = vmul.f32 %v11961, %v11961
    %v12120 = vmul.f32 %v11964, %v11964
    %v12121 = vmul.f32 %v11966, %v11966
    %v12122 = vmul.f32 %v11969, %v11969
    %v12123 = vmul.f32 %v11971, %v11971
    %v12124 = vmul.f32 %v11974, %v11974
    %v12125 = vmul.f32 %v11976, %v11976
    %v12126 = vmul.f32 %v11979, %v11979
    %v12127 = vmul.f32 %v11981, %v11981
    %v12128 = vmul.f32 %v11984, %v11984
    %v12129 = vmul.f32 %v11986, %v11986
    %v12130 = vmul.f32 %v11989, %v11989
    %v12131 = vmul.f32 %v11991, %v11991
    %v12132 = vmul.f32 %v11994, %v11994
    %v12133 = vmul.f32 %v11996, %v11996
    %v12134 = vmul.f32 %v11999, %v11999
    %v12135 = vmul.f32 %v12001, %v12001
    %v12136 = vadd.f32 %v12072, %v12073
    %v12137 = vadd.f32 %v12136, %v12074
    %v12138 = vadd.f32 %v12137, %v12075
    %v12139 = vadd.f32 %v12138, %v12076
    %v12140 = vadd.f32 %v12139, %v12077
    %v12141 = vadd.f32 %v12140, %v12078
    %v12142 = vadd.f32 %v12141, %v12079
    %v12143 = vadd.f32 %v12142, %v12080
    %v12144 = vadd.f32 %v12143, %v12081
    %v12145 = vadd.f32 %v12144, %v12082
    %v12146 = vadd.f32 %v12145, %v12083
    %v12147 = vadd.f32 %v12146, %v12084
    %v12148 = vadd.f32 %v12147, %v12085
    %v12149 = vadd.f32 %v12148, %v12086
    %v12150 = vadd.f32 %v12149, %v12087
    %v12151 = vadd.f32 %v12150, %v12088
    %v12152 = vadd.f32 %v12151, %v12089
    %v12153 = vadd.f32 %v12152, %v12090
    %v12154 = vadd.f32 %v12153, %v12091
    %v12155 = vadd.f32 %v12154, %v12092
    %v12156 = vadd.f32 %v12155, %v12093
    %v12157 = vadd.f32 %v12156, %v12094
    %v12158 = vadd.f32 %v12157, %v12095
    %v12159 = vadd.f32 %v12158, %v12096
    %v12160 = vadd.f32 %v12159, %v12097
    %v12161 = vadd.f32 %v12160, %v12098
    %v12162 = vadd.f32 %v12161, %v12099
    %v12163 = vadd.f32 %v12162, %v12100
    %v12164 = vadd.f32 %v12163, %v12101
    %v12165 = vadd.f32 %v12164, %v12102
    %v12166 = vadd.f32 %v12165, %v12103
    %v12167 = vadd.f32 %v12166, %v12104
    %v12168 = vadd.f32 %v12167, %v12105
    %v12169 = vadd.f32 %v12168, %v12106
    %v12170 = vadd.f32 %v12169, %v12107
    %v12171 = vadd.f32 %v12170, %v12108
    %v12172 = vadd.f32 %v12171, %v12109
    %v12173 = vadd.f32 %v12172, %v12110
    %v12174 = vadd.f32 %v12173, %v12111
    %v12175 = vadd.f32 %v12174, %v12112
    %v12176 = vadd.f32 %v12175, %v12113
    %v12177 = vadd.f32 %v12176, %v12114
    %v12178 = vadd.f32 %v12177, %v12115
    %v12179 = vadd.f32 %v12178, %v12116
    %v12180 = vadd.f32 %v12179, %v12117
    %v12181 = vadd.f32 %v12180, %v12118
    %v12182 = vadd.f32 %v12181, %v12119
    %v12183 = vadd.f32 %v12182, %v12120
    %v12184 = vadd.f32 %v12183, %v12121
    %v12185 = vadd.f32 %v12184, %v12122
    %v12186 = vadd.f32 %v12185, %v12123
    %v12187 = vadd.f32 %v12186, %v12124
    %v12188 = vadd.f32 %v12187, %v12125
    %v12189 = vadd.f32 %v12188, %v12126
    %v12190 = vadd.f32 %v12189, %v12127
    %v12191 = vadd.f32 %v12190, %v12128
    %v12192 = vadd.f32 %v12191, %v12129
    %v12193 = vadd.f32 %v12192, %v12130
    %v12194 = vadd.f32 %v12193, %v12131
    %v12195 = vadd.f32 %v12194, %v12132
    %v12196 = vadd.f32 %v12195, %v12133
    %v12197 = vadd.f32 %v12196, %v12134
    %v12198 = vadd.f32 %v12197, %v12135
    %v12199 = vrot.slane %v12198, 4
    %v12200 = vadd.f32 %v12198, %v12199
    %v12201 = vrot.slane %v12200, 2
    %v12202 = vadd.f32 %v12200, %v12201
    %v12203 = vrot.slane %v12202, 1
    %v12204 = vadd.f32 %v12202, %v12203
    %v12205 = vmul.f32 %v12071, 0.001953125
    %v12206 = vmul.f32 %v12204, 0.001953125
    %v12207 = vmul.f32 %v12205, %v12205
    %v12208 = vsub.f32 %v12206, %v12207
    %v12209 = vld [vmem:[%s10] sm:$0x1]
    %v12210 = vadd.f32 %v12208, 1e-05
    %v12211 = vrsqrt.pop %v12210
    %v12212 = vmul.f32 %v12211, %v12210
    %v12213 = vmul.f32 %v12212, %v12211
    %v12214 = vmul.f32 0.5, %v12213
    %v12215 = vsub.f32 1.5, %v12214
    %v12216 = vmul.f32 %v12211, %v12215
    %vm12217 = vweird.f32 %v12210
    %vm12218 = vweird.f32 %v12211
    %vm12219 = vmor %vm12217, %vm12218
    %v12220 = vsel %vm12219, %v12211, %v12216
    %v12221 = vmul.f32 %v12209, %v12220
    %v12222 = vld [vmem:[%s11] sm:$0x1]
    %v12223 = vmul.f32 %v12205, %v12221
    %v12224 = vsub.f32 %v12222, %v12223
    %v12226 = vperm.slane %v12221, 0
    %v12228 = vmul.f32 %v11844, %v12226
    %v12229 = vmul.f32 %v11846, %v12226
    %v12230 = vmul.f32 %v11849, %v12226
    %v12231 = vmul.f32 %v11851, %v12226
    %v12232 = vmul.f32 %v11854, %v12226
    %v12233 = vmul.f32 %v11856, %v12226
    %v12234 = vmul.f32 %v11859, %v12226
    %v12235 = vmul.f32 %v11861, %v12226
    %v12236 = vmul.f32 %v11864, %v12226
    %v12237 = vmul.f32 %v11866, %v12226
    %v12238 = vmul.f32 %v11869, %v12226
    %v12239 = vmul.f32 %v11871, %v12226
    %v12240 = vmul.f32 %v11874, %v12226
    %v12241 = vmul.f32 %v11876, %v12226
    %v12242 = vmul.f32 %v11879, %v12226
    %v12243 = vmul.f32 %v11881, %v12226
    %v12244 = vmul.f32 %v11884, %v12226
    %v12245 = vmul.f32 %v11886, %v12226
    %v12246 = vmul.f32 %v11889, %v12226
    %v12247 = vmul.f32 %v11891, %v12226
    %v12248 = vmul.f32 %v11894, %v12226
    %v12249 = vmul.f32 %v11896, %v12226
    %v12250 = vmul.f32 %v11899, %v12226
    %v12251 = vmul.f32 %v11901, %v12226
    %v12252 = vmul.f32 %v11904, %v12226
    %v12253 = vmul.f32 %v11906, %v12226
    %v12254 = vmul.f32 %v11909, %v12226
    %v12255 = vmul.f32 %v11911, %v12226
    %v12256 = vmul.f32 %v11914, %v12226
    %v12257 = vmul.f32 %v11916, %v12226
    %v12258 = vmul.f32 %v11919, %v12226
    %v12259 = vmul.f32 %v11921, %v12226
    %v12260 = vmul.f32 %v11924, %v12226
    %v12261 = vmul.f32 %v11926, %v12226
    %v12262 = vmul.f32 %v11929, %v12226
    %v12263 = vmul.f32 %v11931, %v12226
    %v12264 = vmul.f32 %v11934, %v12226
    %v12265 = vmul.f32 %v11936, %v12226
    %v12266 = vmul.f32 %v11939, %v12226
    %v12267 = vmul.f32 %v11941, %v12226
    %v12268 = vmul.f32 %v11944, %v12226
    %v12269 = vmul.f32 %v11946, %v12226
    %v12270 = vmul.f32 %v11949, %v12226
    %v12271 = vmul.f32 %v11951, %v12226
    %v12272 = vmul.f32 %v11954, %v12226
    %v12273 = vmul.f32 %v11956, %v12226
    %v12274 = vmul.f32 %v11959, %v12226
    %v12275 = vmul.f32 %v11961, %v12226
    %v12276 = vmul.f32 %v11964, %v12226
    %v12277 = vmul.f32 %v11966, %v12226
    %v12278 = vmul.f32 %v11969, %v12226
    %v12279 = vmul.f32 %v11971, %v12226
    %v12280 = vmul.f32 %v11974, %v12226
    %v12281 = vmul.f32 %v11976, %v12226
    %v12282 = vmul.f32 %v11979, %v12226
    %v12283 = vmul.f32 %v11981, %v12226
    %v12284 = vmul.f32 %v11984, %v12226
    %v12285 = vmul.f32 %v11986, %v12226
    %v12286 = vmul.f32 %v11989, %v12226
    %v12287 = vmul.f32 %v11991, %v12226
    %v12288 = vmul.f32 %v11994, %v12226
    %v12289 = vmul.f32 %v11996, %v12226
    %v12290 = vmul.f32 %v11999, %v12226
    %v12291 = vmul.f32 %v12001, %v12226
    %v12293 = vperm.slane %v12224, 0
    %v12295 = vadd.f32 %v12228, %v12293
    %v12296 = vadd.f32 %v12229, %v12293
    %v12297 = vadd.f32 %v12230, %v12293
    %v12298 = vadd.f32 %v12231, %v12293
    %v12299 = vadd.f32 %v12232, %v12293
    %v12300 = vadd.f32 %v12233, %v12293
    %v12301 = vadd.f32 %v12234, %v12293
    %v12302 = vadd.f32 %v12235, %v12293
    %v12303 = vadd.f32 %v12236, %v12293
    %v12304 = vadd.f32 %v12237, %v12293
    %v12305 = vadd.f32 %v12238, %v12293
    %v12306 = vadd.f32 %v12239, %v12293
    %v12307 = vadd.f32 %v12240, %v12293
    %v12308 = vadd.f32 %v12241, %v12293
    %v12309 = vadd.f32 %v12242, %v12293
    %v12310 = vadd.f32 %v12243, %v12293
    %v12311 = vadd.f32 %v12244, %v12293
    %v12312 = vadd.f32 %v12245, %v12293
    %v12313 = vadd.f32 %v12246, %v12293
    %v12314 = vadd.f32 %v12247, %v12293
    %v12315 = vadd.f32 %v12248, %v12293
    %v12316 = vadd.f32 %v12249, %v12293
    %v12317 = vadd.f32 %v12250, %v12293
    %v12318 = vadd.f32 %v12251, %v12293
    %v12319 = vadd.f32 %v12252, %v12293
    %v12320 = vadd.f32 %v12253, %v12293
    %v12321 = vadd.f32 %v12254, %v12293
    %v12322 = vadd.f32 %v12255, %v12293
    %v12323 = vadd.f32 %v12256, %v12293
    %v12324 = vadd.f32 %v12257, %v12293
    %v12325 = vadd.f32 %v12258, %v12293
    %v12326 = vadd.f32 %v12259, %v12293
    %v12327 = vadd.f32 %v12260, %v12293
    %v12328 = vadd.f32 %v12261, %v12293
    %v12329 = vadd.f32 %v12262, %v12293
    %v12330 = vadd.f32 %v12263, %v12293
    %v12331 = vadd.f32 %v12264, %v12293
    %v12332 = vadd.f32 %v12265, %v12293
    %v12333 = vadd.f32 %v12266, %v12293
    %v12334 = vadd.f32 %v12267, %v12293
    %v12335 = vadd.f32 %v12268, %v12293
    %v12336 = vadd.f32 %v12269, %v12293
    %v12337 = vadd.f32 %v12270, %v12293
    %v12338 = vadd.f32 %v12271, %v12293
    %v12339 = vadd.f32 %v12272, %v12293
    %v12340 = vadd.f32 %v12273, %v12293
    %v12341 = vadd.f32 %v12274, %v12293
    %v12342 = vadd.f32 %v12275, %v12293
    %v12343 = vadd.f32 %v12276, %v12293
    %v12344 = vadd.f32 %v12277, %v12293
    %v12345 = vadd.f32 %v12278, %v12293
    %v12346 = vadd.f32 %v12279, %v12293
    %v12347 = vadd.f32 %v12280, %v12293
    %v12348 = vadd.f32 %v12281, %v12293
    %v12349 = vadd.f32 %v12282, %v12293
    %v12350 = vadd.f32 %v12283, %v12293
    %v12351 = vadd.f32 %v12284, %v12293
    %v12352 = vadd.f32 %v12285, %v12293
    %v12353 = vadd.f32 %v12286, %v12293
    %v12354 = vadd.f32 %v12287, %v12293
    %v12355 = vadd.f32 %v12288, %v12293
    %v12356 = vadd.f32 %v12289, %v12293
    %v12357 = vadd.f32 %v12290, %v12293
    %v12358 = vadd.f32 %v12291, %v12293
    %v12359 = vadd.f32 %v11445, %v12295
    %v12360 = vadd.f32 %v11446, %v12296
    %v12361 = vadd.f32 %v11447, %v12297
    %v12362 = vadd.f32 %v11448, %v12298
    %v12363 = vadd.f32 %v11449, %v12299
    %v12364 = vadd.f32 %v11450, %v12300
    %v12365 = vadd.f32 %v11451, %v12301
    %v12366 = vadd.f32 %v11452, %v12302
    %v12367 = vadd.f32 %v11453, %v12303
    %v12368 = vadd.f32 %v11454, %v12304
    %v12369 = vadd.f32 %v11455, %v12305
    %v12370 = vadd.f32 %v11456, %v12306
    %v12371 = vadd.f32 %v11457, %v12307
    %v12372 = vadd.f32 %v11458, %v12308
    %v12373 = vadd.f32 %v11459, %v12309
    %v12374 = vadd.f32 %v11460, %v12310
    %v12375 = vadd.f32 %v11461, %v12311
    %v12376 = vadd.f32 %v11462, %v12312
    %v12377 = vadd.f32 %v11463, %v12313
    %v12378 = vadd.f32 %v11464, %v12314
    %v12379 = vadd.f32 %v11465, %v12315
    %v12380 = vadd.f32 %v11466, %v12316
    %v12381 = vadd.f32 %v11467, %v12317
    %v12382 = vadd.f32 %v11468, %v12318
    %v12383 = vadd.f32 %v11469, %v12319
    %v12384 = vadd.f32 %v11470, %v12320
    %v12385 = vadd.f32 %v11471, %v12321
    %v12386 = vadd.f32 %v11472, %v12322
    %v12387 = vadd.f32 %v11473, %v12323
    %v12388 = vadd.f32 %v11474, %v12324
    %v12389 = vadd.f32 %v11475, %v12325
    %v12390 = vadd.f32 %v11476, %v12326
    %v12391 = vadd.f32 %v11477, %v12327
    %v12392 = vadd.f32 %v11478, %v12328
    %v12393 = vadd.f32 %v11479, %v12329
    %v12394 = vadd.f32 %v11480, %v12330
    %v12395 = vadd.f32 %v11481, %v12331
    %v12396 = vadd.f32 %v11482, %v12332
    %v12397 = vadd.f32 %v11483, %v12333
    %v12398 = vadd.f32 %v11484, %v12334
    %v12399 = vadd.f32 %v11485, %v12335
    %v12400 = vadd.f32 %v11486, %v12336
    %v12401 = vadd.f32 %v11487, %v12337
    %v12402 = vadd.f32 %v11488, %v12338
    %v12403 = vadd.f32 %v11489, %v12339
    %v12404 = vadd.f32 %v11490, %v12340
    %v12405 = vadd.f32 %v11491, %v12341
    %v12406 = vadd.f32 %v11492, %v12342
    %v12407 = vadd.f32 %v11493, %v12343
    %v12408 = vadd.f32 %v11494, %v12344
    %v12409 = vadd.f32 %v11495, %v12345
    %v12410 = vadd.f32 %v11496, %v12346
    %v12411 = vadd.f32 %v11497, %v12347
    %v12412 = vadd.f32 %v11498, %v12348
    %v12413 = vadd.f32 %v11499, %v12349
    %v12414 = vadd.f32 %v11500, %v12350
    %v12415 = vadd.f32 %v11501, %v12351
    %v12416 = vadd.f32 %v11502, %v12352
    %v12417 = vadd.f32 %v11503, %v12353
    %v12418 = vadd.f32 %v11504, %v12354
    %v12419 = vadd.f32 %v11505, %v12355
    %v12420 = vadd.f32 %v11506, %v12356
    %v12421 = vadd.f32 %v11507, %v12357
    %v12422 = vadd.f32 %v11508, %v12358
    %v12423 = vmax.f32 %v12359, 0.0
    %v12424 = vmax.f32 %v12360, 0.0
    %v12425 = vmax.f32 %v12361, 0.0
    %v12426 = vmax.f32 %v12362, 0.0
    %v12427 = vmax.f32 %v12363, 0.0
    %v12428 = vmax.f32 %v12364, 0.0
    %v12429 = vmax.f32 %v12365, 0.0
    %v12430 = vmax.f32 %v12366, 0.0
    %v12431 = vmax.f32 %v12367, 0.0
    %v12432 = vmax.f32 %v12368, 0.0
    %v12433 = vmax.f32 %v12369, 0.0
    %v12434 = vmax.f32 %v12370, 0.0
    %v12435 = vmax.f32 %v12371, 0.0
    %v12436 = vmax.f32 %v12372, 0.0
    %v12437 = vmax.f32 %v12373, 0.0
    %v12438 = vmax.f32 %v12374, 0.0
    %v12439 = vmax.f32 %v12375, 0.0
    %v12440 = vmax.f32 %v12376, 0.0
    %v12441 = vmax.f32 %v12377, 0.0
    %v12442 = vmax.f32 %v12378, 0.0
    %v12443 = vmax.f32 %v12379, 0.0
    %v12444 = vmax.f32 %v12380, 0.0
    %v12445 = vmax.f32 %v12381, 0.0
    %v12446 = vmax.f32 %v12382, 0.0
    %v12447 = vmax.f32 %v12383, 0.0
    %v12448 = vmax.f32 %v12384, 0.0
    %v12449 = vmax.f32 %v12385, 0.0
    %v12450 = vmax.f32 %v12386, 0.0
    %v12451 = vmax.f32 %v12387, 0.0
    %v12452 = vmax.f32 %v12388, 0.0
    %v12453 = vmax.f32 %v12389, 0.0
    %v12454 = vmax.f32 %v12390, 0.0
    %v12455 = vmax.f32 %v12391, 0.0
    %v12456 = vmax.f32 %v12392, 0.0
    %v12457 = vmax.f32 %v12393, 0.0
    %v12458 = vmax.f32 %v12394, 0.0
    %v12459 = vmax.f32 %v12395, 0.0
    %v12460 = vmax.f32 %v12396, 0.0
    %v12461 = vmax.f32 %v12397, 0.0
    %v12462 = vmax.f32 %v12398, 0.0
    %v12463 = vmax.f32 %v12399, 0.0
    %v12464 = vmax.f32 %v12400, 0.0
    %v12465 = vmax.f32 %v12401, 0.0
    %v12466 = vmax.f32 %v12402, 0.0
    %v12467 = vmax.f32 %v12403, 0.0
    %v12468 = vmax.f32 %v12404, 0.0
    %v12469 = vmax.f32 %v12405, 0.0
    %v12470 = vmax.f32 %v12406, 0.0
    %v12471 = vmax.f32 %v12407, 0.0
    %v12472 = vmax.f32 %v12408, 0.0
    %v12473 = vmax.f32 %v12409, 0.0
    %v12474 = vmax.f32 %v12410, 0.0
    %v12475 = vmax.f32 %v12411, 0.0
    %v12476 = vmax.f32 %v12412, 0.0
    %v12477 = vmax.f32 %v12413, 0.0
    %v12478 = vmax.f32 %v12414, 0.0
    %v12479 = vmax.f32 %v12415, 0.0
    %v12480 = vmax.f32 %v12416, 0.0
    %v12481 = vmax.f32 %v12417, 0.0
    %v12482 = vmax.f32 %v12418, 0.0
    %v12483 = vmax.f32 %v12419, 0.0
    %v12484 = vmax.f32 %v12420, 0.0
    %v12485 = vmax.f32 %v12421, 0.0
    %v12486 = vmax.f32 %v12422, 0.0
    %12487 = vst [vmem:[#allocation2] sm:$0xff] %v12423
    %12488 = vst [vmem:[#allocation2 + $0x8] sm:$0xff] %v12424
    %12489 = vst [vmem:[#allocation2 + $0x10] sm:$0xff] %v12425
    %12490 = vst [vmem:[#allocation2 + $0x18] sm:$0xff] %v12426
    %12491 = vst [vmem:[#allocation2 + $0x20] sm:$0xff] %v12427
    %12492 = vst [vmem:[#allocation2 + $0x28] sm:$0xff] %v12428
    %12493 = vst [vmem:[#allocation2 + $0x30] sm:$0xff] %v12429
    %12494 = vst [vmem:[#allocation2 + $0x38] sm:$0xff] %v12430
    %12495 = vst [vmem:[#allocation2 + $0x40] sm:$0xff] %v12431
    %12496 = vst [vmem:[#allocation2 + $0x48] sm:$0xff] %v12432
    %12497 = vst [vmem:[#allocation2 + $0x50] sm:$0xff] %v12433
    %12498 = vst [vmem:[#allocation2 + $0x58] sm:$0xff] %v12434
    %12499 = vst [vmem:[#allocation2 + $0x60] sm:$0xff] %v12435
    %12500 = vst [vmem:[#allocation2 + $0x68] sm:$0xff] %v12436
    %12501 = vst [vmem:[#allocation2 + $0x70] sm:$0xff] %v12437
    %12502 = vst [vmem:[#allocation2 + $0x78] sm:$0xff] %v12438
    %12503 = vst [vmem:[#allocation2 + $0x80] sm:$0xff] %v12439
    %12504 = vst [vmem:[#allocation2 + $0x88] sm:$0xff] %v12440
    %12505 = vst [vmem:[#allocation2 + $0x90] sm:$0xff] %v12441
    %12506 = vst [vmem:[#allocation2 + $0x98] sm:$0xff] %v12442
    %12507 = vst [vmem:[#allocation2 + $0xa0] sm:$0xff] %v12443
    %12508 = vst [vmem:[#allocation2 + $0xa8] sm:$0xff] %v12444
    %12509 = vst [vmem:[#allocation2 + $0xb0] sm:$0xff] %v12445
    %12510 = vst [vmem:[#allocation2 + $0xb8] sm:$0xff] %v12446
    %12511 = vst [vmem:[#allocation2 + $0xc0] sm:$0xff] %v12447
    %12512 = vst [vmem:[#allocation2 + $0xc8] sm:$0xff] %v12448
    %12513 = vst [vmem:[#allocation2 + $0xd0] sm:$0xff] %v12449
    %12514 = vst [vmem:[#allocation2 + $0xd8] sm:$0xff] %v12450
    %12515 = vst [vmem:[#allocation2 + $0xe0] sm:$0xff] %v12451
    %12516 = vst [vmem:[#allocation2 + $0xe8] sm:$0xff] %v12452
    %12517 = vst [vmem:[#allocation2 + $0xf0] sm:$0xff] %v12453
    %12518 = vst [vmem:[#allocation2 + $0xf8] sm:$0xff] %v12454
    %12519 = vst [vmem:[#allocation2 + $0x100] sm:$0xff] %v12455
    %12520 = vst [vmem:[#allocation2 + $0x108] sm:$0xff] %v12456
    %12521 = vst [vmem:[#allocation2 + $0x110] sm:$0xff] %v12457
    %12522 = vst [vmem:[#allocation2 + $0x118] sm:$0xff] %v12458
    %12523 = vst [vmem:[#allocation2 + $0x120] sm:$0xff] %v12459
    %12524 = vst [vmem:[#allocation2 + $0x128] sm:$0xff] %v12460
    %12525 = vst [vmem:[#allocation2 + $0x130] sm:$0xff] %v12461
    %12526 = vst [vmem:[#allocation2 + $0x138] sm:$0xff] %v12462
    %12527 = vst [vmem:[#allocation2 + $0x140] sm:$0xff] %v12463
    %12528 = vst [vmem:[#allocation2 + $0x148] sm:$0xff] %v12464
    %12529 = vst [vmem:[#allocation2 + $0x150] sm:$0xff] %v12465
    %12530 = vst [vmem:[#allocation2 + $0x158] sm:$0xff] %v12466
    %12531 = vst [vmem:[#allocation2 + $0x160] sm:$0xff] %v12467
    %12532 = vst [vmem:[#allocation2 + $0x168] sm:$0xff] %v12468
    %12533 = vst [vmem:[#allocation2 + $0x170] sm:$0xff] %v12469
    %12534 = vst [vmem:[#allocation2 + $0x178] sm:$0xff] %v12470
    %12535 = vst [vmem:[#allocation2 + $0x180] sm:$0xff] %v12471
    %12536 = vst [vmem:[#allocation2 + $0x188] sm:$0xff] %v12472
    %12537 = vst [vmem:[#allocation2 + $0x190] sm:$0xff] %v12473
    %12538 = vst [vmem:[#allocation2 + $0x198] sm:$0xff] %v12474
    %12539 = vst [vmem:[#allocation2 + $0x1a0] sm:$0xff] %v12475
    %12540 = vst [vmem:[#allocation2 + $0x1a8] sm:$0xff] %v12476
    %12541 = vst [vmem:[#allocation2 + $0x1b0] sm:$0xff] %v12477
    %12542 = vst [vmem:[#allocation2 + $0x1b8] sm:$0xff] %v12478
    %12543 = vst [vmem:[#allocation2 + $0x1c0] sm:$0xff] %v12479
    %12544 = vst [vmem:[#allocation2 + $0x1c8] sm:$0xff] %v12480
    %12545 = vst [vmem:[#allocation2 + $0x1d0] sm:$0xff] %v12481
    %12546 = vst [vmem:[#allocation2 + $0x1d8] sm:$0xff] %v12482
    %12547 = vst [vmem:[#allocation2 + $0x1e0] sm:$0xff] %v12483
    %12548 = vst [vmem:[#allocation2 + $0x1e8] sm:$0xff] %v12484
    %12549 = vst [vmem:[#allocation2 + $0x1f0] sm:$0xff] %v12485
    %12550 = vst [vmem:[#allocation2 + $0x1f8] sm:$0xff] %v12486
    // Predicated region
    $region50: #{tpu_custom_call.1} parent=1 // pred_check
      _
    $region51: #{tpu_custom_call.1} parent=1 // pred_check_branch
      %12552 = sbr.rel (0) target = $region53
    $region52: #{tpu_custom_call.1} parent=1 // pred_region
      %12554 = vsyncadd [#allocation3], 0
      %s12555 = sshll.u32 [#allocation2], 4
      %s12556 = int_to_ptr.vmem [resolvable:$true] %s12555
      %s12557 = sshll.u32 %s12, 4
      %s12558 = int_to_ptr.hbm [resolvable:$true] %s12557
      %12563 = dma.vmem_to_hbm [thread:$0]  %s12556, 8192, %s12558, [#allocation3], 128, 128, 8
    $region53: #{tpu_custom_call.1} parent=1 // pred_fallthru
      _
    // Predicated region
    $region54: #{tpu_custom_call.1} parent=1 // pred_check
      _
    $region55: #{tpu_custom_call.1} parent=1 // pred_check_branch
      %12565 = sbr.rel (0) target = $region57
    $region56: #{tpu_custom_call.1} parent=1 // pred_region
      %12567 = dma.done [#allocation3], 8192
    $region57: #{tpu_custom_call.1} parent=1 // pred_fallthru
      _
    %12568 = vsyncpa [#allocation3], 1

</llo_original>
